<compile_context>
chip_gen: v6e
topology: v6e:2x2x1
jax: 0.10.0
libtpu: 0.0.40
codegen_flags: <defaults>
</compile_context>

<pallas_src>
import functools

import jax
import jax.numpy as jnp
from jax.experimental import pallas as pl
from jax.experimental.pallas import tpu as pltpu

_BN_EPS = 1e-5
_LANE = 128
_VMEM_LIMIT = 48 * 1024 * 1024  # > v5e/v6e scoped default, < v7x 64 MiB physical


def _round_up(x, m):
    return ((x + m - 1) // m) * m


def _tile_rows(n_rows, cap):
    """Sublane-aligned row tile: whole problem if tiny, else the largest
    16-aligned tile <= cap that still leaves >=2 grid steps (so both v7x
    TensorCores get work). Ragged last block is handled by Pallas."""
    if n_rows < 32:
        return n_rows
    half = _round_up((n_rows + 1) // 2, 16)
    return min(cap, half)


# -----------------------------------------------------------------------------
# Pallas kernel: fused MLP chain (1x1 conv + folded BN + ReLU per layer),
# optionally followed by a max-pool over the neighbor axis — one kernel,
# intermediates never leave VMEM.  Matmuls in bf16, epilogue in f32.
# -----------------------------------------------------------------------------
def _make_fused_mlp_kernel(num_layers, pool):
    def run_layers(h, params):
        for l in range(num_layers):
            w = params[2 * l][...]          # bf16, lane-padded
            b = params[2 * l + 1][...]      # f32,  lane-padded
            acc = jnp.dot(h.astype(jnp.bfloat16), w,
                          preferred_element_type=jnp.float32)
            h = jnp.maximum(acc + b, 0.0)   # f32 epilogue
        return h

    def kernel(x_ref, *refs):
        o_ref, params = refs[-1], refs[:-1]
        x = x_ref[...]
        if not pool:
            o_ref[...] = run_layers(x, params).astype(o_ref.dtype)
            return
        g, k, c = x.shape
        # One tall matmul over all (group, neighbor) rows, then a sublane
        # max-reduce over the neighbor axis (XLU slot, no per-K copies).
        h = run_layers(x.reshape(g * k, c), params).reshape(g, k, -1)
        o_ref[...] = jnp.max(h, axis=1).astype(o_ref.dtype)

    return kernel


def _mlp_specs_and_args(layers):
    specs, args = [], []
    for (w, b) in layers:
        ci, co = w.shape
        specs.append(pl.BlockSpec((ci, co), lambda i: (0, 0)))
        specs.append(pl.BlockSpec((1, co), lambda i: (0, 0)))
        args.extend([w, b])
    return specs, args


def fused_mlp(x, layers, tile_cap=2048):
    """x: (M, Cin).  layers: [(w_bf16, b_f32), ...] BN-folded, lane-padded.
    Returns (M, Cout_pad) f32 relu-chain output (lane-dense store)."""
    x = x.astype(jnp.bfloat16)
    M, Cin = x.shape
    Cout = layers[-1][0].shape[1]
    tile_m = _tile_rows(M, tile_cap)
    w_specs, w_args = _mlp_specs_and_args(layers)
    return pl.pallas_call(
        _make_fused_mlp_kernel(len(layers), pool=False),
        out_shape=jax.ShapeDtypeStruct((M, Cout), jnp.float32),
        grid_spec=pltpu.PrefetchScalarGridSpec(
            num_scalar_prefetch=0,
            grid=(pl.cdiv(M, tile_m),),
            in_specs=[pl.BlockSpec((tile_m, Cin), lambda i: (i, 0))] + w_specs,
            out_specs=pl.BlockSpec((tile_m, Cout), lambda i: (i, 0)),
        ),
        compiler_params=pltpu.CompilerParams(
            dimension_semantics=("parallel",),
            vmem_limit_bytes=_VMEM_LIMIT),
    )(x, *w_args)


def fused_mlp_maxpool(x, layers, max_rows=4096):
    """x: (G, K, Cin).  Runs the MLP chain on every (group, neighbor) point and
    max-pools over K inside one kernel.  Returns (G, Cout_pad) f32.
    NOTE: the ragged last group-block runs the chain on Pallas pad rows; they
    are per-group garbage and never reduce into a valid group's max."""
    x = x.astype(jnp.bfloat16)
    G, K, Cin = x.shape
    if K % 8:
        # Pad K to a multiple of 8 by duplicating the first neighbor; the max
        # pool is invariant to duplicates (query_ball_point already duplicates
        # for short neighborhoods), and this keeps the single tall-matmul path.
        pad = 8 - (K % 8)
        x = jnp.concatenate(
            [x, jnp.broadcast_to(x[:, :1, :], (G, pad, Cin))], axis=1)
        K += pad
    Cout = layers[-1][0].shape[1]
    cap_g = max(16, (max_rows // K) // 16 * 16)
    tile_g = _tile_rows(G, cap_g)
    w_specs, w_args = _mlp_specs_and_args(layers)
    return pl.pallas_call(
        _make_fused_mlp_kernel(len(layers), pool=True),
        out_shape=jax.ShapeDtypeStruct((G, Cout), jnp.float32),
        grid_spec=pltpu.PrefetchScalarGridSpec(
            num_scalar_prefetch=0,
            grid=(pl.cdiv(G, tile_g),),
            in_specs=[pl.BlockSpec((tile_g, K, Cin), lambda i: (i, 0, 0))] + w_specs,
            out_specs=pl.BlockSpec((tile_g, Cout), lambda i: (i, 0)),
        ),
        compiler_params=pltpu.CompilerParams(
            dimension_semantics=("parallel",),
            vmem_limit_bytes=_VMEM_LIMIT),
    )(x, *w_args)


# -----------------------------------------------------------------------------
# Plain-JAX glue: sampling / grouping / interpolation (data-dependent gathers)
# -----------------------------------------------------------------------------
def square_distance(src, dst):
    # src: (B, N, 3), dst: (B, M, 3) -> (B, N, M)
    return (
        jnp.sum(src * src, -1)[:, :, None]
        + jnp.sum(dst * dst, -1)[:, None, :]
        - 2.0 * jnp.einsum("bnc,bmc->bnm", src, dst)
    )


def index_points(points, idx):
    # points: (B, N, C), idx: (B, ...) int -> (B, ..., C)
    return jax.vmap(lambda p, i: p[i])(points, idx)


def farthest_point_sample(xyz, npoint):
    # TODO(synk): the PyTorch reference seeds FPS with a random point; we start
    # at index 0 for determinism.
    B, N, _ = xyz.shape

    def body(i, state):
        distance, farthest, centroids = state
        centroids = centroids.at[:, i].set(farthest)
        centroid = index_points(xyz, farthest[:, None])  # (B, 1, 3)
        dist = jnp.sum((xyz - centroid) ** 2, -1)
        distance = jnp.minimum(distance, dist)
        farthest = jnp.argmax(distance, axis=-1).astype(jnp.int32)
        return distance, farthest, centroids

    state = (
        jnp.full((B, N), 1e10, jnp.float32),
        jnp.zeros((B,), jnp.int32),
        jnp.zeros((B, npoint), jnp.int32),
    )
    _, _, centroids = jax.lax.fori_loop(0, npoint, body, state)
    return centroids


def query_ball_point(radius, nsample, xyz, new_xyz):
    B, N, _ = xyz.shape
    S = new_xyz.shape[1]
    sqrdists = square_distance(new_xyz, xyz)  # (B, S, N)
    group_idx = jnp.broadcast_to(jnp.arange(N, dtype=jnp.int32), (B, S, N))
    group_idx = jnp.where(sqrdists > radius * radius, N, group_idx)
    group_idx = jnp.sort(group_idx, axis=-1)[:, :, :nsample]
    group_first = jnp.broadcast_to(group_idx[:, :, :1], group_idx.shape)
    group_idx = jnp.where(group_idx == N, group_first, group_idx)
    return group_idx


# -----------------------------------------------------------------------------
# PointNet++ building blocks (hot compute routed through the fused Pallas kernel)
# -----------------------------------------------------------------------------
def sa_msg(xyz, points, npoint, radius_list, nsample_list, mlp_list, branch_params):
    # xyz: (B, 3, N); points: (B, D, N)
    xyz_t = jnp.transpose(xyz, (0, 2, 1))
    points_t = jnp.transpose(points, (0, 2, 1)) if points is not None else None
    fps_idx = farthest_point_sample(xyz_t, npoint)
    new_xyz = index_points(xyz_t, fps_idx)  # (B, S, 3)
    outs = []
    for i, radius in enumerate(radius_list):
        K = nsample_list[i]
        group_idx = query_ball_point(radius, K, xyz_t, new_xyz)
        grouped_xyz = index_points(xyz_t, group_idx) - new_xyz[:, :, None, :]
        if points_t is not None:
            grouped_points = jnp.concatenate(
                [index_points(points_t, group_idx), grouped_xyz], axis=-1)
        else:
            grouped_points = grouped_xyz
        B, S, Kq, Ci = grouped_points.shape
        # one fused kernel: 3-layer MLP + max over the K neighbors
        pooled = fused_mlp_maxpool(grouped_points.reshape(B * S, Kq, Ci),
                                   branch_params[i])
        co = mlp_list[i][-1]
        outs.append(pooled[:, :co].reshape(B, S, co))
    new_points = jnp.concatenate(outs, axis=-1)
    return jnp.transpose(new_xyz, (0, 2, 1)), jnp.transpose(new_points, (0, 2, 1))


def sa_group_all(xyz, points, layer_params, out_channels):
    xyz_t = jnp.transpose(xyz, (0, 2, 1))        # (B, N, 3)
    points_t = jnp.transpose(points, (0, 2, 1))  # (B, N, D)
    new_points = jnp.concatenate([xyz_t, points_t], axis=-1)  # [xyz, points] (group_all)
    B = new_points.shape[0]
    # MLP over every point + max over ALL points, fused (pool axis = N)
    pooled = fused_mlp_maxpool(new_points, layer_params)[:, :out_channels]  # (B, Co)
    new_xyz = jnp.zeros((B, 3, 1), jnp.float32)
    return new_xyz, pooled[:, :, None]  # (B, Co, 1)


def feature_propagation(xyz1, xyz2, points1, points2, layer_params, out_channels):
    x1 = jnp.transpose(xyz1, (0, 2, 1))  # (B, N, 3)
    x2 = jnp.transpose(xyz2, (0, 2, 1))  # (B, S, 3)
    p2 = jnp.transpose(points2, (0, 2, 1))  # (B, S, D2)
    B, N, _ = x1.shape
    S = x2.shape[1]
    if S == 1:
        interp = jnp.broadcast_to(p2, (B, N, p2.shape[-1]))
    else:
        dists = square_distance(x1, x2)  # (B, N, S)
        idx = jnp.argsort(dists, axis=-1)[:, :, :3]
        d3 = jnp.take_along_axis(dists, idx, axis=-1)
        dist_recip = 1.0 / (d3 + 1e-8)
        weight = dist_recip / jnp.sum(dist_recip, axis=2, keepdims=True)
        gathered = index_points(p2, idx)  # (B, N, 3, D2)
        interp = jnp.sum(gathered * weight[..., None], axis=2)
    if points1 is not None:
        p1 = jnp.transpose(points1, (0, 2, 1))
        newp = jnp.concatenate([p1, interp], axis=-1)
    else:
        newp = interp
    Ci = newp.shape[-1]
    flat = fused_mlp(newp.reshape(B * N, Ci), layer_params)[:, :out_channels]
    return jnp.transpose(flat.reshape(B, N, out_channels), (0, 2, 1))


# -----------------------------------------------------------------------------
# Parameters (deterministic, synthetic).  Eval-mode BatchNorm (mean=0, var=1,
# gamma=1, beta=0) is folded into the conv weight/bias at build time, so the
# kernel only does relu(x @ w' + b').  EVERY layer's output channels are
# zero-padded to a multiple of 128 lanes (full-vreg intermediates, lane-dense
# final store); weights are stored bf16, biases f32.
# TODO(synk): if real trained running stats / affine params are loaded, the
# fold must also include the mean/beta terms.
# -----------------------------------------------------------------------------
def make_layer_params(key, cin, cout, cin_pad=None, cout_pad=None):
    k1, k2 = jax.random.split(key)
    w = jax.random.normal(k1, (cin, cout), jnp.float32) / jnp.sqrt(float(cin))
    b = jax.random.normal(k2, (cout,), jnp.float32) * 0.01
    s = 1.0 / jnp.sqrt(1.0 + _BN_EPS)       # gamma / sqrt(var + eps)
    w = w * s                                # BN scale folded into the weight
    b = b * s                                # bias pushed through BN
    if cout_pad is not None and cout_pad > cout:
        w = jnp.pad(w, ((0, 0), (0, cout_pad - cout)))
        b = jnp.pad(b, ((0, cout_pad - cout),))
    if cin_pad is not None and cin_pad > cin:
        w = jnp.pad(w, ((0, cin_pad - cin), (0, 0)))   # zero rows for padded inputs
    return w.astype(jnp.bfloat16), b.reshape(1, -1)


def make_mlp_params(key, cin, channels):
    params = []
    cin_real, cin_pad = cin, cin
    for cout in channels:
        key, sub = jax.random.split(key)
        cout_pad = _round_up(cout, _LANE)
        params.append(make_layer_params(sub, cin_real, cout,
                                        cin_pad=cin_pad, cout_pad=cout_pad))
        cin_real, cin_pad = cout, cout_pad
    return params, cin_real


def build_params(net_cfg, in_dim, out_dim, key):
    P = {}
    sa1_params = []
    for mlp in net_cfg["sa1"]["mlp_list"]:
        key, sub = jax.random.split(key)
        sa1_params.append(make_mlp_params(sub, in_dim + 3, mlp)[0])
    P["sa1"] = sa1_params
    sa1_out = sum(m[-1] for m in net_cfg["sa1"]["mlp_list"])

    sa2_params = []
    for mlp in net_cfg["sa2"]["mlp_list"]:
        key, sub = jax.random.split(key)
        sa2_params.append(make_mlp_params(sub, sa1_out + 3, mlp)[0])
    P["sa2"] = sa2_params
    sa2_out = sum(m[-1] for m in net_cfg["sa2"]["mlp_list"])

    key, sub = jax.random.split(key)
    P["sa3"], _ = make_mlp_params(sub, sa2_out + 3, net_cfg["sa3"]["mlp"])
    sa3_out = net_cfg["sa3"]["mlp"][-1]
    key, sub = jax.random.split(key)
    P["fp3"], _ = make_mlp_params(sub, sa2_out + sa3_out, net_cfg["fp3"]["mlp"])
    fp3_out = net_cfg["fp3"]["mlp"][-1]
    key, sub = jax.random.split(key)
    P["fp2"], _ = make_mlp_params(sub, sa1_out + fp3_out, net_cfg["fp2"]["mlp"])
    fp2_out = net_cfg["fp2"]["mlp"][-1]
    key, sub = jax.random.split(key)
    P["fp1"], _ = make_mlp_params(sub, in_dim + 3 + fp2_out, net_cfg["fp1"]["mlp"])
    fp1_out = net_cfg["fp1"]["mlp"][-1]
    key, sub = jax.random.split(key)
    P["head"], _ = make_mlp_params(sub, fp1_out, [out_dim])
    return P


# -----------------------------------------------------------------------------
# Full forward (PointNet2Msg.forward with use_xyz_feat=True, init_feature_dim=0)
# -----------------------------------------------------------------------------
def pointnet2_msg_forward(x, P, net_cfg, out_dim):
    # x: (B, 3, N)  channel-first, like the PyTorch module input
    l0_xyz = x[:, :3]
    l0_points = x  # use_xyz_feat=True

    l1_xyz, l1_points = sa_msg(
        l0_xyz, l0_points, net_cfg["sa1"]["npoint"],
        net_cfg["sa1"]["radius_list"], net_cfg["sa1"]["nsample_list"],
        net_cfg["sa1"]["mlp_list"], P["sa1"])
    l2_xyz, l2_points = sa_msg(
        l1_xyz, l1_points, net_cfg["sa2"]["npoint"],
        net_cfg["sa2"]["radius_list"], net_cfg["sa2"]["nsample_list"],
        net_cfg["sa2"]["mlp_list"], P["sa2"])
    l3_xyz, l3_points = sa_group_all(l2_xyz, l2_points, P["sa3"],
                                     net_cfg["sa3"]["mlp"][-1])

    l2_points = feature_propagation(l2_xyz, l3_xyz, l2_points, l3_points,
                                    P["fp3"], net_cfg["fp3"]["mlp"][-1])
    l1_points = feature_propagation(l1_xyz, l2_xyz, l1_points, l2_points,
                                    P["fp2"], net_cfg["fp2"]["mlp"][-1])
    l0_points = feature_propagation(
        l0_xyz, l1_xyz, jnp.concatenate([l0_xyz, l0_points], axis=1), l1_points,
        P["fp1"], net_cfg["fp1"]["mlp"][-1])

    # head: conv1d(1x1) + bn + relu, fused in the Pallas kernel (lane-dense out)
    B, C, N = l0_points.shape
    flat = jnp.transpose(l0_points, (0, 2, 1)).reshape(B * N, C)
    flat = fused_mlp(flat, P["head"])[:, :out_dim]
    return jnp.transpose(flat.reshape(B, N, out_dim), (0, 2, 1))


# -----------------------------------------------------------------------------
if __name__ == "__main__":
    net_cfg = {
        "sa1": {"npoint": 32, "radius_list": [0.2, 0.4], "nsample_list": [8, 16],
                "mlp_list": [[16, 16, 32], [16, 16, 32]]},
        "sa2": {"npoint": 16, "radius_list": [0.4, 0.8], "nsample_list": [8, 16],
                "mlp_list": [[32, 32, 64], [32, 32, 64]]},
        "sa3": {"mlp": [64, 64, 128]},
        "fp3": {"mlp": [64, 64]},
        "fp2": {"mlp": [64, 32]},
        "fp1": {"mlp": [32, 32, 32]},
    }
    out_dim = 32
    in_dim = 3  # use_xyz_feat=True, init_feature_dim=0

    key = jax.random.PRNGKey(0)
    key, kp, kx = jax.random.split(key, 3)
    params = build_params(net_cfg, in_dim, out_dim, kp)

    B, N = 2, 64
    x = jax.random.normal(kx, (B, 3, N), jnp.float32)

    fwd = jax.jit(functools.partial(pointnet2_msg_forward,
                                    net_cfg=net_cfg, out_dim=out_dim))
    feat = fwd(x, params)
    jax.block_until_ready(feat)

    assert feat.shape == (B, out_dim, N), feat.shape
    assert feat.dtype == jnp.float32
    assert bool(jnp.all(jnp.isfinite(feat)))
    assert bool(jnp.all(feat >= 0.0))  # ReLU output
    print("KERNEL_OK")
</pallas_src>

<mosaic_0001>
module attributes {stable_mosaic.version = 11 : i64} {
  func.func @kernel(%arg0: i32, %arg1: memref<32x16x6xbf16, #tpu.memory_space<vmem>>, %arg2: memref<6x128xbf16, #tpu.memory_space<vmem>>, %arg3: memref<1x128xf32, #tpu.memory_space<vmem>>, %arg4: memref<128x128xbf16, #tpu.memory_space<vmem>>, %arg5: memref<1x128xf32, #tpu.memory_space<vmem>>, %arg6: memref<128x128xbf16, #tpu.memory_space<vmem>>, %arg7: memref<1x128xf32, #tpu.memory_space<vmem>>, %arg8: memref<32x128xf32, #tpu.memory_space<vmem>>) attributes {dimension_semantics = [#tpu.dimension_semantics<parallel>], iteration_bounds = array<i64: 2>, scalar_prefetch = 0 : i64, scratch_operands = 0 : i64, tpu.core_type = #tpu.core_type<tc>, window_params = [{transform_indices = @transform_0, window_bounds = array<i64: 32, 16, 6>}, {pipeline_mode = #tpu.pipeline_mode<synchronous>, transform_indices = @transform_1, window_bounds = array<i64: 6, 128>}, {pipeline_mode = #tpu.pipeline_mode<synchronous>, transform_indices = @transform_2, window_bounds = array<i64: 1, 128>}, {pipeline_mode = #tpu.pipeline_mode<synchronous>, transform_indices = @transform_3, window_bounds = array<i64: 128, 128>}, {pipeline_mode = #tpu.pipeline_mode<synchronous>, transform_indices = @transform_4, window_bounds = array<i64: 1, 128>}, {pipeline_mode = #tpu.pipeline_mode<synchronous>, transform_indices = @transform_5, window_bounds = array<i64: 128, 128>}, {pipeline_mode = #tpu.pipeline_mode<synchronous>, transform_indices = @transform_6, window_bounds = array<i64: 1, 128>}, {transform_indices = @transform_7, window_bounds = array<i64: 32, 128>}]} {
    %c0 = arith.constant 0 : index
    %c0_0 = arith.constant 0 : index
    %c0_1 = arith.constant 0 : index
    %0 = vector.load %arg1[%c0, %c0_0, %c0_1] : memref<32x16x6xbf16, #tpu.memory_space<vmem>>, vector<32x16x6xbf16>
    %1 = vector.shape_cast %0 : vector<32x16x6xbf16> to vector<512x6xbf16>
    %c0_2 = arith.constant 0 : index
    %c0_3 = arith.constant 0 : index
    %2 = vector.load %arg2[%c0_2, %c0_3] : memref<6x128xbf16, #tpu.memory_space<vmem>>, vector<6x128xbf16>
    %c0_4 = arith.constant 0 : index
    %c0_5 = arith.constant 0 : index
    %3 = vector.load %arg3[%c0_4, %c0_5] : memref<1x128xf32, #tpu.memory_space<vmem>>, vector<1x128xf32>
    %cst = arith.constant dense<0.000000e+00> : vector<512x128xf32>
    %4 = tpu.matmul %1, %2, %cst {dimension_numbers = #tpu.dot_dimension_numbers<[1], [0], [0], [1], [0, 0, 1, 1], [], []>} : vector<512x6xbf16>, vector<6x128xbf16>, vector<512x128xf32> -> vector<512x128xf32>
    %5 = vector.broadcast %3 : vector<1x128xf32> to vector<512x128xf32>
    %6 = arith.addf %4, %5 : vector<512x128xf32>
    %cst_6 = arith.constant 0.000000e+00 : f32
    %7 = vector.broadcast %cst_6 : f32 to vector<512x128xf32>
    %8 = arith.maximumf %6, %7 : vector<512x128xf32>
    %c0_7 = arith.constant 0 : index
    %c0_8 = arith.constant 0 : index
    %9 = vector.load %arg4[%c0_7, %c0_8] : memref<128x128xbf16, #tpu.memory_space<vmem>>, vector<128x128xbf16>
    %c0_9 = arith.constant 0 : index
    %c0_10 = arith.constant 0 : index
    %10 = vector.load %arg5[%c0_9, %c0_10] : memref<1x128xf32, #tpu.memory_space<vmem>>, vector<1x128xf32>
    %11 = arith.truncf %8 : vector<512x128xf32> to vector<512x128xbf16>
    %cst_11 = arith.constant dense<0.000000e+00> : vector<512x128xf32>
    %12 = tpu.matmul %11, %9, %cst_11 {dimension_numbers = #tpu.dot_dimension_numbers<[1], [0], [0], [1], [0, 0, 1, 1], [], []>} : vector<512x128xbf16>, vector<128x128xbf16>, vector<512x128xf32> -> vector<512x128xf32>
    %13 = vector.broadcast %10 : vector<1x128xf32> to vector<512x128xf32>
    %14 = arith.addf %12, %13 : vector<512x128xf32>
    %cst_12 = arith.constant 0.000000e+00 : f32
    %15 = vector.broadcast %cst_12 : f32 to vector<512x128xf32>
    %16 = arith.maximumf %14, %15 : vector<512x128xf32>
    %c0_13 = arith.constant 0 : index
    %c0_14 = arith.constant 0 : index
    %17 = vector.load %arg6[%c0_13, %c0_14] : memref<128x128xbf16, #tpu.memory_space<vmem>>, vector<128x128xbf16>
    %c0_15 = arith.constant 0 : index
    %c0_16 = arith.constant 0 : index
    %18 = vector.load %arg7[%c0_15, %c0_16] : memref<1x128xf32, #tpu.memory_space<vmem>>, vector<1x128xf32>
    %19 = arith.truncf %16 : vector<512x128xf32> to vector<512x128xbf16>
    %cst_17 = arith.constant dense<0.000000e+00> : vector<512x128xf32>
    %20 = tpu.matmul %19, %17, %cst_17 {dimension_numbers = #tpu.dot_dimension_numbers<[1], [0], [0], [1], [0, 0, 1, 1], [], []>} : vector<512x128xbf16>, vector<128x128xbf16>, vector<512x128xf32> -> vector<512x128xf32>
    %21 = vector.broadcast %18 : vector<1x128xf32> to vector<512x128xf32>
    %22 = arith.addf %20, %21 : vector<512x128xf32>
    %cst_18 = arith.constant 0.000000e+00 : f32
    %23 = vector.broadcast %cst_18 : f32 to vector<512x128xf32>
    %24 = arith.maximumf %22, %23 : vector<512x128xf32>
    %25 = vector.shape_cast %24 : vector<512x128xf32> to vector<32x16x128xf32>
    %cst_19 = arith.constant dense<0xFF800000> : vector<32x128xf32>
    %26 = vector.multi_reduction <maximumf>, %25, %cst_19 [1] : vector<32x16x128xf32> to vector<32x128xf32>
    %c0_20 = arith.constant 0 : index
    %c0_21 = arith.constant 0 : index
    %27 = vector.load %arg8[%c0_20, %c0_21] : memref<32x128xf32, #tpu.memory_space<vmem>>, vector<32x128xf32>
    tpu.vector_store %arg8[%c0_20, %c0_21], %26 {strides = array<i32>} : memref<32x128xf32, #tpu.memory_space<vmem>>, vector<32x128xf32>,
    return
  }
  func.func @transform_0(%arg0: i32) -> (i32, i32, i32) {
    %c0_i32 = arith.constant 0 : i32
    %c0_i32_0 = arith.constant 0 : i32
    %c0_i32_1 = arith.constant 0 : i32
    return %arg0, %c0_i32, %c0_i32_0 : i32, i32, i32
  }
  func.func @transform_1(%arg0: i32) -> (i32, i32) {
    %c0_i32 = arith.constant 0 : i32
    %c0_i32_0 = arith.constant 0 : i32
    %c0_i32_1 = arith.constant 0 : i32
    return %c0_i32, %c0_i32_0 : i32, i32
  }
  func.func @transform_2(%arg0: i32) -> (i32, i32) {
    %c0_i32 = arith.constant 0 : i32
    %c0_i32_0 = arith.constant 0 : i32
    %c0_i32_1 = arith.constant 0 : i32
    return %c0_i32, %c0_i32_0 : i32, i32
  }
  func.func @transform_3(%arg0: i32) -> (i32, i32) {
    %c0_i32 = arith.constant 0 : i32
    %c0_i32_0 = arith.constant 0 : i32
    %c0_i32_1 = arith.constant 0 : i32
    return %c0_i32, %c0_i32_0 : i32, i32
  }
  func.func @transform_4(%arg0: i32) -> (i32, i32) {
    %c0_i32 = arith.constant 0 : i32
    %c0_i32_0 = arith.constant 0 : i32
    %c0_i32_1 = arith.constant 0 : i32
    return %c0_i32, %c0_i32_0 : i32, i32
  }
  func.func @transform_5(%arg0: i32) -> (i32, i32) {
    %c0_i32 = arith.constant 0 : i32
    %c0_i32_0 = arith.constant 0 : i32
    %c0_i32_1 = arith.constant 0 : i32
    return %c0_i32, %c0_i32_0 : i32, i32
  }
  func.func @transform_6(%arg0: i32) -> (i32, i32) {
    %c0_i32 = arith.constant 0 : i32
    %c0_i32_0 = arith.constant 0 : i32
    %c0_i32_1 = arith.constant 0 : i32
    return %c0_i32, %c0_i32_0 : i32, i32
  }
  func.func @transform_7(%arg0: i32) -> (i32, i32) {
    %c0_i32 = arith.constant 0 : i32
    %c0_i32_0 = arith.constant 0 : i32
    return %arg0, %c0_i32 : i32, i32
  }
}

module attributes {stable_mosaic.version = 11 : i64} {
  func.func @kernel(%arg0: i32, %arg1: memref<32x8x6xbf16, #tpu.memory_space<vmem>>, %arg2: memref<6x128xbf16, #tpu.memory_space<vmem>>, %arg3: memref<1x128xf32, #tpu.memory_space<vmem>>, %arg4: memref<128x128xbf16, #tpu.memory_space<vmem>>, %arg5: memref<1x128xf32, #tpu.memory_space<vmem>>, %arg6: memref<128x128xbf16, #tpu.memory_space<vmem>>, %arg7: memref<1x128xf32, #tpu.memory_space<vmem>>, %arg8: memref<32x128xf32, #tpu.memory_space<vmem>>) attributes {dimension_semantics = [#tpu.dimension_semantics<parallel>], iteration_bounds = array<i64: 2>, scalar_prefetch = 0 : i64, scratch_operands = 0 : i64, tpu.core_type = #tpu.core_type<tc>, window_params = [{transform_indices = @transform_0, window_bounds = array<i64: 32, 8, 6>}, {pipeline_mode = #tpu.pipeline_mode<synchronous>, transform_indices = @transform_1, window_bounds = array<i64: 6, 128>}, {pipeline_mode = #tpu.pipeline_mode<synchronous>, transform_indices = @transform_2, window_bounds = array<i64: 1, 128>}, {pipeline_mode = #tpu.pipeline_mode<synchronous>, transform_indices = @transform_3, window_bounds = array<i64: 128, 128>}, {pipeline_mode = #tpu.pipeline_mode<synchronous>, transform_indices = @transform_4, window_bounds = array<i64: 1, 128>}, {pipeline_mode = #tpu.pipeline_mode<synchronous>, transform_indices = @transform_5, window_bounds = array<i64: 128, 128>}, {pipeline_mode = #tpu.pipeline_mode<synchronous>, transform_indices = @transform_6, window_bounds = array<i64: 1, 128>}, {transform_indices = @transform_7, window_bounds = array<i64: 32, 128>}]} {
    %c0 = arith.constant 0 : index
    %c0_0 = arith.constant 0 : index
    %c0_1 = arith.constant 0 : index
    %0 = vector.load %arg1[%c0, %c0_0, %c0_1] : memref<32x8x6xbf16, #tpu.memory_space<vmem>>, vector<32x8x6xbf16>
    %1 = vector.shape_cast %0 : vector<32x8x6xbf16> to vector<256x6xbf16>
    %c0_2 = arith.constant 0 : index
    %c0_3 = arith.constant 0 : index
    %2 = vector.load %arg2[%c0_2, %c0_3] : memref<6x128xbf16, #tpu.memory_space<vmem>>, vector<6x128xbf16>
    %c0_4 = arith.constant 0 : index
    %c0_5 = arith.constant 0 : index
    %3 = vector.load %arg3[%c0_4, %c0_5] : memref<1x128xf32, #tpu.memory_space<vmem>>, vector<1x128xf32>
    %cst = arith.constant dense<0.000000e+00> : vector<256x128xf32>
    %4 = tpu.matmul %1, %2, %cst {dimension_numbers = #tpu.dot_dimension_numbers<[1], [0], [0], [1], [0, 0, 1, 1], [], []>} : vector<256x6xbf16>, vector<6x128xbf16>, vector<256x128xf32> -> vector<256x128xf32>
    %5 = vector.broadcast %3 : vector<1x128xf32> to vector<256x128xf32>
    %6 = arith.addf %4, %5 : vector<256x128xf32>
    %cst_6 = arith.constant 0.000000e+00 : f32
    %7 = vector.broadcast %cst_6 : f32 to vector<256x128xf32>
    %8 = arith.maximumf %6, %7 : vector<256x128xf32>
    %c0_7 = arith.constant 0 : index
    %c0_8 = arith.constant 0 : index
    %9 = vector.load %arg4[%c0_7, %c0_8] : memref<128x128xbf16, #tpu.memory_space<vmem>>, vector<128x128xbf16>
    %c0_9 = arith.constant 0 : index
    %c0_10 = arith.constant 0 : index
    %10 = vector.load %arg5[%c0_9, %c0_10] : memref<1x128xf32, #tpu.memory_space<vmem>>, vector<1x128xf32>
    %11 = arith.truncf %8 : vector<256x128xf32> to vector<256x128xbf16>
    %cst_11 = arith.constant dense<0.000000e+00> : vector<256x128xf32>
    %12 = tpu.matmul %11, %9, %cst_11 {dimension_numbers = #tpu.dot_dimension_numbers<[1], [0], [0], [1], [0, 0, 1, 1], [], []>} : vector<256x128xbf16>, vector<128x128xbf16>, vector<256x128xf32> -> vector<256x128xf32>
    %13 = vector.broadcast %10 : vector<1x128xf32> to vector<256x128xf32>
    %14 = arith.addf %12, %13 : vector<256x128xf32>
    %cst_12 = arith.constant 0.000000e+00 : f32
    %15 = vector.broadcast %cst_12 : f32 to vector<256x128xf32>
    %16 = arith.maximumf %14, %15 : vector<256x128xf32>
    %c0_13 = arith.constant 0 : index
    %c0_14 = arith.constant 0 : index
    %17 = vector.load %arg6[%c0_13, %c0_14] : memref<128x128xbf16, #tpu.memory_space<vmem>>, vector<128x128xbf16>
    %c0_15 = arith.constant 0 : index
    %c0_16 = arith.constant 0 : index
    %18 = vector.load %arg7[%c0_15, %c0_16] : memref<1x128xf32, #tpu.memory_space<vmem>>, vector<1x128xf32>
    %19 = arith.truncf %16 : vector<256x128xf32> to vector<256x128xbf16>
    %cst_17 = arith.constant dense<0.000000e+00> : vector<256x128xf32>
    %20 = tpu.matmul %19, %17, %cst_17 {dimension_numbers = #tpu.dot_dimension_numbers<[1], [0], [0], [1], [0, 0, 1, 1], [], []>} : vector<256x128xbf16>, vector<128x128xbf16>, vector<256x128xf32> -> vector<256x128xf32>
    %21 = vector.broadcast %18 : vector<1x128xf32> to vector<256x128xf32>
    %22 = arith.addf %20, %21 : vector<256x128xf32>
    %cst_18 = arith.constant 0.000000e+00 : f32
    %23 = vector.broadcast %cst_18 : f32 to vector<256x128xf32>
    %24 = arith.maximumf %22, %23 : vector<256x128xf32>
    %25 = vector.shape_cast %24 : vector<256x128xf32> to vector<32x8x128xf32>
    %cst_19 = arith.constant dense<0xFF800000> : vector<32x128xf32>
    %26 = vector.multi_reduction <maximumf>, %25, %cst_19 [1] : vector<32x8x128xf32> to vector<32x128xf32>
    %c0_20 = arith.constant 0 : index
    %c0_21 = arith.constant 0 : index
    %27 = vector.load %arg8[%c0_20, %c0_21] : memref<32x128xf32, #tpu.memory_space<vmem>>, vector<32x128xf32>
    tpu.vector_store %arg8[%c0_20, %c0_21], %26 {strides = array<i32>} : memref<32x128xf32, #tpu.memory_space<vmem>>, vector<32x128xf32>,
    return
  }
  func.func @transform_0(%arg0: i32) -> (i32, i32, i32) {
    %c0_i32 = arith.constant 0 : i32
    %c0_i32_0 = arith.constant 0 : i32
    %c0_i32_1 = arith.constant 0 : i32
    return %arg0, %c0_i32, %c0_i32_0 : i32, i32, i32
  }
  func.func @transform_1(%arg0: i32) -> (i32, i32) {
    %c0_i32 = arith.constant 0 : i32
    %c0_i32_0 = arith.constant 0 : i32
    %c0_i32_1 = arith.constant 0 : i32
    return %c0_i32, %c0_i32_0 : i32, i32
  }
  func.func @transform_2(%arg0: i32) -> (i32, i32) {
    %c0_i32 = arith.constant 0 : i32
    %c0_i32_0 = arith.constant 0 : i32
    %c0_i32_1 = arith.constant 0 : i32
    return %c0_i32, %c0_i32_0 : i32, i32
  }
  func.func @transform_3(%arg0: i32) -> (i32, i32) {
    %c0_i32 = arith.constant 0 : i32
    %c0_i32_0 = arith.constant 0 : i32
    %c0_i32_1 = arith.constant 0 : i32
    return %c0_i32, %c0_i32_0 : i32, i32
  }
  func.func @transform_4(%arg0: i32) -> (i32, i32) {
    %c0_i32 = arith.constant 0 : i32
    %c0_i32_0 = arith.constant 0 : i32
    %c0_i32_1 = arith.constant 0 : i32
    return %c0_i32, %c0_i32_0 : i32, i32
  }
  func.func @transform_5(%arg0: i32) -> (i32, i32) {
    %c0_i32 = arith.constant 0 : i32
    %c0_i32_0 = arith.constant 0 : i32
    %c0_i32_1 = arith.constant 0 : i32
    return %c0_i32, %c0_i32_0 : i32, i32
  }
  func.func @transform_6(%arg0: i32) -> (i32, i32) {
    %c0_i32 = arith.constant 0 : i32
    %c0_i32_0 = arith.constant 0 : i32
    %c0_i32_1 = arith.constant 0 : i32
    return %c0_i32, %c0_i32_0 : i32, i32
  }
  func.func @transform_7(%arg0: i32) -> (i32, i32) {
    %c0_i32 = arith.constant 0 : i32
    %c0_i32_0 = arith.constant 0 : i32
    return %arg0, %c0_i32 : i32, i32
  }
}

module attributes {stable_mosaic.version = 11 : i64} {
  func.func @kernel(%arg0: i32, %arg1: memref<16x8x67xbf16, #tpu.memory_space<vmem>>, %arg2: memref<67x128xbf16, #tpu.memory_space<vmem>>, %arg3: memref<1x128xf32, #tpu.memory_space<vmem>>, %arg4: memref<128x128xbf16, #tpu.memory_space<vmem>>, %arg5: memref<1x128xf32, #tpu.memory_space<vmem>>, %arg6: memref<128x128xbf16, #tpu.memory_space<vmem>>, %arg7: memref<1x128xf32, #tpu.memory_space<vmem>>, %arg8: memref<16x128xf32, #tpu.memory_space<vmem>>) attributes {dimension_semantics = [#tpu.dimension_semantics<parallel>], iteration_bounds = array<i64: 2>, scalar_prefetch = 0 : i64, scratch_operands = 0 : i64, tpu.core_type = #tpu.core_type<tc>, window_params = [{transform_indices = @transform_0, window_bounds = array<i64: 16, 8, 67>}, {pipeline_mode = #tpu.pipeline_mode<synchronous>, transform_indices = @transform_1, window_bounds = array<i64: 67, 128>}, {pipeline_mode = #tpu.pipeline_mode<synchronous>, transform_indices = @transform_2, window_bounds = array<i64: 1, 128>}, {pipeline_mode = #tpu.pipeline_mode<synchronous>, transform_indices = @transform_3, window_bounds = array<i64: 128, 128>}, {pipeline_mode = #tpu.pipeline_mode<synchronous>, transform_indices = @transform_4, window_bounds = array<i64: 1, 128>}, {pipeline_mode = #tpu.pipeline_mode<synchronous>, transform_indices = @transform_5, window_bounds = array<i64: 128, 128>}, {pipeline_mode = #tpu.pipeline_mode<synchronous>, transform_indices = @transform_6, window_bounds = array<i64: 1, 128>}, {transform_indices = @transform_7, window_bounds = array<i64: 16, 128>}]} {
    %c0 = arith.constant 0 : index
    %c0_0 = arith.constant 0 : index
    %c0_1 = arith.constant 0 : index
    %0 = vector.load %arg1[%c0, %c0_0, %c0_1] : memref<16x8x67xbf16, #tpu.memory_space<vmem>>, vector<16x8x67xbf16>
    %1 = vector.shape_cast %0 : vector<16x8x67xbf16> to vector<128x67xbf16>
    %c0_2 = arith.constant 0 : index
    %c0_3 = arith.constant 0 : index
    %2 = vector.load %arg2[%c0_2, %c0_3] : memref<67x128xbf16, #tpu.memory_space<vmem>>, vector<67x128xbf16>
    %c0_4 = arith.constant 0 : index
    %c0_5 = arith.constant 0 : index
    %3 = vector.load %arg3[%c0_4, %c0_5] : memref<1x128xf32, #tpu.memory_space<vmem>>, vector<1x128xf32>
    %cst = arith.constant dense<0.000000e+00> : vector<128x128xf32>
    %4 = tpu.matmul %1, %2, %cst {dimension_numbers = #tpu.dot_dimension_numbers<[1], [0], [0], [1], [0, 0, 1, 1], [], []>} : vector<128x67xbf16>, vector<67x128xbf16>, vector<128x128xf32> -> vector<128x128xf32>
    %5 = vector.broadcast %3 : vector<1x128xf32> to vector<128x128xf32>
    %6 = arith.addf %4, %5 : vector<128x128xf32>
    %cst_6 = arith.constant 0.000000e+00 : f32
    %7 = vector.broadcast %cst_6 : f32 to vector<128x128xf32>
    %8 = arith.maximumf %6, %7 : vector<128x128xf32>
    %c0_7 = arith.constant 0 : index
    %c0_8 = arith.constant 0 : index
    %9 = vector.load %arg4[%c0_7, %c0_8] : memref<128x128xbf16, #tpu.memory_space<vmem>>, vector<128x128xbf16>
    %c0_9 = arith.constant 0 : index
    %c0_10 = arith.constant 0 : index
    %10 = vector.load %arg5[%c0_9, %c0_10] : memref<1x128xf32, #tpu.memory_space<vmem>>, vector<1x128xf32>
    %11 = arith.truncf %8 : vector<128x128xf32> to vector<128x128xbf16>
    %cst_11 = arith.constant dense<0.000000e+00> : vector<128x128xf32>
    %12 = tpu.matmul %11, %9, %cst_11 {dimension_numbers = #tpu.dot_dimension_numbers<[1], [0], [0], [1], [0, 0, 1, 1], [], []>} : vector<128x128xbf16>, vector<128x128xbf16>, vector<128x128xf32> -> vector<128x128xf32>
    %13 = vector.broadcast %10 : vector<1x128xf32> to vector<128x128xf32>
    %14 = arith.addf %12, %13 : vector<128x128xf32>
    %cst_12 = arith.constant 0.000000e+00 : f32
    %15 = vector.broadcast %cst_12 : f32 to vector<128x128xf32>
    %16 = arith.maximumf %14, %15 : vector<128x128xf32>
    %c0_13 = arith.constant 0 : index
    %c0_14 = arith.constant 0 : index
    %17 = vector.load %arg6[%c0_13, %c0_14] : memref<128x128xbf16, #tpu.memory_space<vmem>>, vector<128x128xbf16>
    %c0_15 = arith.constant 0 : index
    %c0_16 = arith.constant 0 : index
    %18 = vector.load %arg7[%c0_15, %c0_16] : memref<1x128xf32, #tpu.memory_space<vmem>>, vector<1x128xf32>
    %19 = arith.truncf %16 : vector<128x128xf32> to vector<128x128xbf16>
    %cst_17 = arith.constant dense<0.000000e+00> : vector<128x128xf32>
    %20 = tpu.matmul %19, %17, %cst_17 {dimension_numbers = #tpu.dot_dimension_numbers<[1], [0], [0], [1], [0, 0, 1, 1], [], []>} : vector<128x128xbf16>, vector<128x128xbf16>, vector<128x128xf32> -> vector<128x128xf32>
    %21 = vector.broadcast %18 : vector<1x128xf32> to vector<128x128xf32>
    %22 = arith.addf %20, %21 : vector<128x128xf32>
    %cst_18 = arith.constant 0.000000e+00 : f32
    %23 = vector.broadcast %cst_18 : f32 to vector<128x128xf32>
    %24 = arith.maximumf %22, %23 : vector<128x128xf32>
    %25 = vector.shape_cast %24 : vector<128x128xf32> to vector<16x8x128xf32>
    %cst_19 = arith.constant dense<0xFF800000> : vector<16x128xf32>
    %26 = vector.multi_reduction <maximumf>, %25, %cst_19 [1] : vector<16x8x128xf32> to vector<16x128xf32>
    %c0_20 = arith.constant 0 : index
    %c0_21 = arith.constant 0 : index
    %27 = vector.load %arg8[%c0_20, %c0_21] : memref<16x128xf32, #tpu.memory_space<vmem>>, vector<16x128xf32>
    tpu.vector_store %arg8[%c0_20, %c0_21], %26 {strides = array<i32>} : memref<16x128xf32, #tpu.memory_space<vmem>>, vector<16x128xf32>,
    return
  }
  func.func @transform_0(%arg0: i32) -> (i32, i32, i32) {
    %c0_i32 = arith.constant 0 : i32
    %c0_i32_0 = arith.constant 0 : i32
    %c0_i32_1 = arith.constant 0 : i32
    return %arg0, %c0_i32, %c0_i32_0 : i32, i32, i32
  }
  func.func @transform_1(%arg0: i32) -> (i32, i32) {
    %c0_i32 = arith.constant 0 : i32
    %c0_i32_0 = arith.constant 0 : i32
    %c0_i32_1 = arith.constant 0 : i32
    return %c0_i32, %c0_i32_0 : i32, i32
  }
  func.func @transform_2(%arg0: i32) -> (i32, i32) {
    %c0_i32 = arith.constant 0 : i32
    %c0_i32_0 = arith.constant 0 : i32
    %c0_i32_1 = arith.constant 0 : i32
    return %c0_i32, %c0_i32_0 : i32, i32
  }
  func.func @transform_3(%arg0: i32) -> (i32, i32) {
    %c0_i32 = arith.constant 0 : i32
    %c0_i32_0 = arith.constant 0 : i32
    %c0_i32_1 = arith.constant 0 : i32
    return %c0_i32, %c0_i32_0 : i32, i32
  }
  func.func @transform_4(%arg0: i32) -> (i32, i32) {
    %c0_i32 = arith.constant 0 : i32
    %c0_i32_0 = arith.constant 0 : i32
    %c0_i32_1 = arith.constant 0 : i32
    return %c0_i32, %c0_i32_0 : i32, i32
  }
  func.func @transform_5(%arg0: i32) -> (i32, i32) {
    %c0_i32 = arith.constant 0 : i32
    %c0_i32_0 = arith.constant 0 : i32
    %c0_i32_1 = arith.constant 0 : i32
    return %c0_i32, %c0_i32_0 : i32, i32
  }
  func.func @transform_6(%arg0: i32) -> (i32, i32) {
    %c0_i32 = arith.constant 0 : i32
    %c0_i32_0 = arith.constant 0 : i32
    %c0_i32_1 = arith.constant 0 : i32
    return %c0_i32, %c0_i32_0 : i32, i32
  }
  func.func @transform_7(%arg0: i32) -> (i32, i32) {
    %c0_i32 = arith.constant 0 : i32
    %c0_i32_0 = arith.constant 0 : i32
    return %arg0, %c0_i32 : i32, i32
  }
}

module attributes {stable_mosaic.version = 11 : i64} {
  func.func @kernel(%arg0: i32, %arg1: memref<16x16x67xbf16, #tpu.memory_space<vmem>>, %arg2: memref<67x128xbf16, #tpu.memory_space<vmem>>, %arg3: memref<1x128xf32, #tpu.memory_space<vmem>>, %arg4: memref<128x128xbf16, #tpu.memory_space<vmem>>, %arg5: memref<1x128xf32, #tpu.memory_space<vmem>>, %arg6: memref<128x128xbf16, #tpu.memory_space<vmem>>, %arg7: memref<1x128xf32, #tpu.memory_space<vmem>>, %arg8: memref<16x128xf32, #tpu.memory_space<vmem>>) attributes {dimension_semantics = [#tpu.dimension_semantics<parallel>], iteration_bounds = array<i64: 2>, scalar_prefetch = 0 : i64, scratch_operands = 0 : i64, tpu.core_type = #tpu.core_type<tc>, window_params = [{transform_indices = @transform_0, window_bounds = array<i64: 16, 16, 67>}, {pipeline_mode = #tpu.pipeline_mode<synchronous>, transform_indices = @transform_1, window_bounds = array<i64: 67, 128>}, {pipeline_mode = #tpu.pipeline_mode<synchronous>, transform_indices = @transform_2, window_bounds = array<i64: 1, 128>}, {pipeline_mode = #tpu.pipeline_mode<synchronous>, transform_indices = @transform_3, window_bounds = array<i64: 128, 128>}, {pipeline_mode = #tpu.pipeline_mode<synchronous>, transform_indices = @transform_4, window_bounds = array<i64: 1, 128>}, {pipeline_mode = #tpu.pipeline_mode<synchronous>, transform_indices = @transform_5, window_bounds = array<i64: 128, 128>}, {pipeline_mode = #tpu.pipeline_mode<synchronous>, transform_indices = @transform_6, window_bounds = array<i64: 1, 128>}, {transform_indices = @transform_7, window_bounds = array<i64: 16, 128>}]} {
    %c0 = arith.constant 0 : index
    %c0_0 = arith.constant 0 : index
    %c0_1 = arith.constant 0 : index
    %0 = vector.load %arg1[%c0, %c0_0, %c0_1] : memref<16x16x67xbf16, #tpu.memory_space<vmem>>, vector<16x16x67xbf16>
    %1 = vector.shape_cast %0 : vector<16x16x67xbf16> to vector<256x67xbf16>
    %c0_2 = arith.constant 0 : index
    %c0_3 = arith.constant 0 : index
    %2 = vector.load %arg2[%c0_2, %c0_3] : memref<67x128xbf16, #tpu.memory_space<vmem>>, vector<67x128xbf16>
    %c0_4 = arith.constant 0 : index
    %c0_5 = arith.constant 0 : index
    %3 = vector.load %arg3[%c0_4, %c0_5] : memref<1x128xf32, #tpu.memory_space<vmem>>, vector<1x128xf32>
    %cst = arith.constant dense<0.000000e+00> : vector<256x128xf32>
    %4 = tpu.matmul %1, %2, %cst {dimension_numbers = #tpu.dot_dimension_numbers<[1], [0], [0], [1], [0, 0, 1, 1], [], []>} : vector<256x67xbf16>, vector<67x128xbf16>, vector<256x128xf32> -> vector<256x128xf32>
    %5 = vector.broadcast %3 : vector<1x128xf32> to vector<256x128xf32>
    %6 = arith.addf %4, %5 : vector<256x128xf32>
    %cst_6 = arith.constant 0.000000e+00 : f32
    %7 = vector.broadcast %cst_6 : f32 to vector<256x128xf32>
    %8 = arith.maximumf %6, %7 : vector<256x128xf32>
    %c0_7 = arith.constant 0 : index
    %c0_8 = arith.constant 0 : index
    %9 = vector.load %arg4[%c0_7, %c0_8] : memref<128x128xbf16, #tpu.memory_space<vmem>>, vector<128x128xbf16>
    %c0_9 = arith.constant 0 : index
    %c0_10 = arith.constant 0 : index
    %10 = vector.load %arg5[%c0_9, %c0_10] : memref<1x128xf32, #tpu.memory_space<vmem>>, vector<1x128xf32>
    %11 = arith.truncf %8 : vector<256x128xf32> to vector<256x128xbf16>
    %cst_11 = arith.constant dense<0.000000e+00> : vector<256x128xf32>
    %12 = tpu.matmul %11, %9, %cst_11 {dimension_numbers = #tpu.dot_dimension_numbers<[1], [0], [0], [1], [0, 0, 1, 1], [], []>} : vector<256x128xbf16>, vector<128x128xbf16>, vector<256x128xf32> -> vector<256x128xf32>
    %13 = vector.broadcast %10 : vector<1x128xf32> to vector<256x128xf32>
    %14 = arith.addf %12, %13 : vector<256x128xf32>
    %cst_12 = arith.constant 0.000000e+00 : f32
    %15 = vector.broadcast %cst_12 : f32 to vector<256x128xf32>
    %16 = arith.maximumf %14, %15 : vector<256x128xf32>
    %c0_13 = arith.constant 0 : index
    %c0_14 = arith.constant 0 : index
    %17 = vector.load %arg6[%c0_13, %c0_14] : memref<128x128xbf16, #tpu.memory_space<vmem>>, vector<128x128xbf16>
    %c0_15 = arith.constant 0 : index
    %c0_16 = arith.constant 0 : index
    %18 = vector.load %arg7[%c0_15, %c0_16] : memref<1x128xf32, #tpu.memory_space<vmem>>, vector<1x128xf32>
    %19 = arith.truncf %16 : vector<256x128xf32> to vector<256x128xbf16>
    %cst_17 = arith.constant dense<0.000000e+00> : vector<256x128xf32>
    %20 = tpu.matmul %19, %17, %cst_17 {dimension_numbers = #tpu.dot_dimension_numbers<[1], [0], [0], [1], [0, 0, 1, 1], [], []>} : vector<256x128xbf16>, vector<128x128xbf16>, vector<256x128xf32> -> vector<256x128xf32>
    %21 = vector.broadcast %18 : vector<1x128xf32> to vector<256x128xf32>
    %22 = arith.addf %20, %21 : vector<256x128xf32>
    %cst_18 = arith.constant 0.000000e+00 : f32
    %23 = vector.broadcast %cst_18 : f32 to vector<256x128xf32>
    %24 = arith.maximumf %22, %23 : vector<256x128xf32>
    %25 = vector.shape_cast %24 : vector<256x128xf32> to vector<16x16x128xf32>
    %cst_19 = arith.constant dense<0xFF800000> : vector<16x128xf32>
    %26 = vector.multi_reduction <maximumf>, %25, %cst_19 [1] : vector<16x16x128xf32> to vector<16x128xf32>
    %c0_20 = arith.constant 0 : index
    %c0_21 = arith.constant 0 : index
    %27 = vector.load %arg8[%c0_20, %c0_21] : memref<16x128xf32, #tpu.memory_space<vmem>>, vector<16x128xf32>
    tpu.vector_store %arg8[%c0_20, %c0_21], %26 {strides = array<i32>} : memref<16x128xf32, #tpu.memory_space<vmem>>, vector<16x128xf32>,
    return
  }
  func.func @transform_0(%arg0: i32) -> (i32, i32, i32) {
    %c0_i32 = arith.constant 0 : i32
    %c0_i32_0 = arith.constant 0 : i32
    %c0_i32_1 = arith.constant 0 : i32
    return %arg0, %c0_i32, %c0_i32_0 : i32, i32, i32
  }
  func.func @transform_1(%arg0: i32) -> (i32, i32) {
    %c0_i32 = arith.constant 0 : i32
    %c0_i32_0 = arith.constant 0 : i32
    %c0_i32_1 = arith.constant 0 : i32
    return %c0_i32, %c0_i32_0 : i32, i32
  }
  func.func @transform_2(%arg0: i32) -> (i32, i32) {
    %c0_i32 = arith.constant 0 : i32
    %c0_i32_0 = arith.constant 0 : i32
    %c0_i32_1 = arith.constant 0 : i32
    return %c0_i32, %c0_i32_0 : i32, i32
  }
  func.func @transform_3(%arg0: i32) -> (i32, i32) {
    %c0_i32 = arith.constant 0 : i32
    %c0_i32_0 = arith.constant 0 : i32
    %c0_i32_1 = arith.constant 0 : i32
    return %c0_i32, %c0_i32_0 : i32, i32
  }
  func.func @transform_4(%arg0: i32) -> (i32, i32) {
    %c0_i32 = arith.constant 0 : i32
    %c0_i32_0 = arith.constant 0 : i32
    %c0_i32_1 = arith.constant 0 : i32
    return %c0_i32, %c0_i32_0 : i32, i32
  }
  func.func @transform_5(%arg0: i32) -> (i32, i32) {
    %c0_i32 = arith.constant 0 : i32
    %c0_i32_0 = arith.constant 0 : i32
    %c0_i32_1 = arith.constant 0 : i32
    return %c0_i32, %c0_i32_0 : i32, i32
  }
  func.func @transform_6(%arg0: i32) -> (i32, i32) {
    %c0_i32 = arith.constant 0 : i32
    %c0_i32_0 = arith.constant 0 : i32
    %c0_i32_1 = arith.constant 0 : i32
    return %c0_i32, %c0_i32_0 : i32, i32
  }
  func.func @transform_7(%arg0: i32) -> (i32, i32) {
    %c0_i32 = arith.constant 0 : i32
    %c0_i32_0 = arith.constant 0 : i32
    return %arg0, %c0_i32 : i32, i32
  }
}

module attributes {stable_mosaic.version = 11 : i64} {
  func.func @kernel(%arg0: i32, %arg1: memref<2x16x131xbf16, #tpu.memory_space<vmem>>, %arg2: memref<131x128xbf16, #tpu.memory_space<vmem>>, %arg3: memref<1x128xf32, #tpu.memory_space<vmem>>, %arg4: memref<128x128xbf16, #tpu.memory_space<vmem>>, %arg5: memref<1x128xf32, #tpu.memory_space<vmem>>, %arg6: memref<128x128xbf16, #tpu.memory_space<vmem>>, %arg7: memref<1x128xf32, #tpu.memory_space<vmem>>, %arg8: memref<2x128xf32, #tpu.memory_space<vmem>>) attributes {dimension_semantics = [#tpu.dimension_semantics<parallel>], iteration_bounds = array<i64: 1>, scalar_prefetch = 0 : i64, scratch_operands = 0 : i64, tpu.core_type = #tpu.core_type<tc>, window_params = [{transform_indices = @transform_0, window_bounds = array<i64: 2, 16, 131>}, {pipeline_mode = #tpu.pipeline_mode<synchronous>, transform_indices = @transform_1, window_bounds = array<i64: 131, 128>}, {pipeline_mode = #tpu.pipeline_mode<synchronous>, transform_indices = @transform_2, window_bounds = array<i64: 1, 128>}, {pipeline_mode = #tpu.pipeline_mode<synchronous>, transform_indices = @transform_3, window_bounds = array<i64: 128, 128>}, {pipeline_mode = #tpu.pipeline_mode<synchronous>, transform_indices = @transform_4, window_bounds = array<i64: 1, 128>}, {pipeline_mode = #tpu.pipeline_mode<synchronous>, transform_indices = @transform_5, window_bounds = array<i64: 128, 128>}, {pipeline_mode = #tpu.pipeline_mode<synchronous>, transform_indices = @transform_6, window_bounds = array<i64: 1, 128>}, {transform_indices = @transform_7, window_bounds = array<i64: 2, 128>}]} {
    %c0 = arith.constant 0 : index
    %c0_0 = arith.constant 0 : index
    %c0_1 = arith.constant 0 : index
    %0 = vector.load %arg1[%c0, %c0_0, %c0_1] : memref<2x16x131xbf16, #tpu.memory_space<vmem>>, vector<2x16x131xbf16>
    %1 = vector.shape_cast %0 : vector<2x16x131xbf16> to vector<32x131xbf16>
    %c0_2 = arith.constant 0 : index
    %c0_3 = arith.constant 0 : index
    %2 = vector.load %arg2[%c0_2, %c0_3] : memref<131x128xbf16, #tpu.memory_space<vmem>>, vector<131x128xbf16>
    %c0_4 = arith.constant 0 : index
    %c0_5 = arith.constant 0 : index
    %3 = vector.load %arg3[%c0_4, %c0_5] : memref<1x128xf32, #tpu.memory_space<vmem>>, vector<1x128xf32>
    %cst = arith.constant dense<0.000000e+00> : vector<32x128xf32>
    %4 = tpu.matmul %1, %2, %cst {dimension_numbers = #tpu.dot_dimension_numbers<[1], [0], [0], [1], [0, 0, 1, 1], [], []>} : vector<32x131xbf16>, vector<131x128xbf16>, vector<32x128xf32> -> vector<32x128xf32>
    %5 = vector.broadcast %3 : vector<1x128xf32> to vector<32x128xf32>
    %6 = arith.addf %4, %5 : vector<32x128xf32>
    %cst_6 = arith.constant 0.000000e+00 : f32
    %7 = vector.broadcast %cst_6 : f32 to vector<32x128xf32>
    %8 = arith.maximumf %6, %7 : vector<32x128xf32>
    %c0_7 = arith.constant 0 : index
    %c0_8 = arith.constant 0 : index
    %9 = vector.load %arg4[%c0_7, %c0_8] : memref<128x128xbf16, #tpu.memory_space<vmem>>, vector<128x128xbf16>
    %c0_9 = arith.constant 0 : index
    %c0_10 = arith.constant 0 : index
    %10 = vector.load %arg5[%c0_9, %c0_10] : memref<1x128xf32, #tpu.memory_space<vmem>>, vector<1x128xf32>
    %11 = arith.truncf %8 : vector<32x128xf32> to vector<32x128xbf16>
    %cst_11 = arith.constant dense<0.000000e+00> : vector<32x128xf32>
    %12 = tpu.matmul %11, %9, %cst_11 {dimension_numbers = #tpu.dot_dimension_numbers<[1], [0], [0], [1], [0, 0, 1, 1], [], []>} : vector<32x128xbf16>, vector<128x128xbf16>, vector<32x128xf32> -> vector<32x128xf32>
    %13 = vector.broadcast %10 : vector<1x128xf32> to vector<32x128xf32>
    %14 = arith.addf %12, %13 : vector<32x128xf32>
    %cst_12 = arith.constant 0.000000e+00 : f32
    %15 = vector.broadcast %cst_12 : f32 to vector<32x128xf32>
    %16 = arith.maximumf %14, %15 : vector<32x128xf32>
    %c0_13 = arith.constant 0 : index
    %c0_14 = arith.constant 0 : index
    %17 = vector.load %arg6[%c0_13, %c0_14] : memref<128x128xbf16, #tpu.memory_space<vmem>>, vector<128x128xbf16>
    %c0_15 = arith.constant 0 : index
    %c0_16 = arith.constant 0 : index
    %18 = vector.load %arg7[%c0_15, %c0_16] : memref<1x128xf32, #tpu.memory_space<vmem>>, vector<1x128xf32>
    %19 = arith.truncf %16 : vector<32x128xf32> to vector<32x128xbf16>
    %cst_17 = arith.constant dense<0.000000e+00> : vector<32x128xf32>
    %20 = tpu.matmul %19, %17, %cst_17 {dimension_numbers = #tpu.dot_dimension_numbers<[1], [0], [0], [1], [0, 0, 1, 1], [], []>} : vector<32x128xbf16>, vector<128x128xbf16>, vector<32x128xf32> -> vector<32x128xf32>
    %21 = vector.broadcast %18 : vector<1x128xf32> to vector<32x128xf32>
    %22 = arith.addf %20, %21 : vector<32x128xf32>
    %cst_18 = arith.constant 0.000000e+00 : f32
    %23 = vector.broadcast %cst_18 : f32 to vector<32x128xf32>
    %24 = arith.maximumf %22, %23 : vector<32x128xf32>
    %25 = vector.shape_cast %24 : vector<32x128xf32> to vector<2x16x128xf32>
    %cst_19 = arith.constant dense<0xFF800000> : vector<2x128xf32>
    %26 = vector.multi_reduction <maximumf>, %25, %cst_19 [1] : vector<2x16x128xf32> to vector<2x128xf32>
    %c0_20 = arith.constant 0 : index
    %c0_21 = arith.constant 0 : index
    %27 = vector.load %arg8[%c0_20, %c0_21] : memref<2x128xf32, #tpu.memory_space<vmem>>, vector<2x128xf32>
    tpu.vector_store %arg8[%c0_20, %c0_21], %26 {strides = array<i32>} : memref<2x128xf32, #tpu.memory_space<vmem>>, vector<2x128xf32>,
    return
  }
  func.func @transform_0(%arg0: i32) -> (i32, i32, i32) {
    %c0_i32 = arith.constant 0 : i32
    %c0_i32_0 = arith.constant 0 : i32
    %c0_i32_1 = arith.constant 0 : i32
    return %arg0, %c0_i32, %c0_i32_0 : i32, i32, i32
  }
  func.func @transform_1(%arg0: i32) -> (i32, i32) {
    %c0_i32 = arith.constant 0 : i32
    %c0_i32_0 = arith.constant 0 : i32
    %c0_i32_1 = arith.constant 0 : i32
    return %c0_i32, %c0_i32_0 : i32, i32
  }
  func.func @transform_2(%arg0: i32) -> (i32, i32) {
    %c0_i32 = arith.constant 0 : i32
    %c0_i32_0 = arith.constant 0 : i32
    %c0_i32_1 = arith.constant 0 : i32
    return %c0_i32, %c0_i32_0 : i32, i32
  }
  func.func @transform_3(%arg0: i32) -> (i32, i32) {
    %c0_i32 = arith.constant 0 : i32
    %c0_i32_0 = arith.constant 0 : i32
    %c0_i32_1 = arith.constant 0 : i32
    return %c0_i32, %c0_i32_0 : i32, i32
  }
  func.func @transform_4(%arg0: i32) -> (i32, i32) {
    %c0_i32 = arith.constant 0 : i32
    %c0_i32_0 = arith.constant 0 : i32
    %c0_i32_1 = arith.constant 0 : i32
    return %c0_i32, %c0_i32_0 : i32, i32
  }
  func.func @transform_5(%arg0: i32) -> (i32, i32) {
    %c0_i32 = arith.constant 0 : i32
    %c0_i32_0 = arith.constant 0 : i32
    %c0_i32_1 = arith.constant 0 : i32
    return %c0_i32, %c0_i32_0 : i32, i32
  }
  func.func @transform_6(%arg0: i32) -> (i32, i32) {
    %c0_i32 = arith.constant 0 : i32
    %c0_i32_0 = arith.constant 0 : i32
    %c0_i32_1 = arith.constant 0 : i32
    return %c0_i32, %c0_i32_0 : i32, i32
  }
  func.func @transform_7(%arg0: i32) -> (i32, i32) {
    %c0_i32 = arith.constant 0 : i32
    %c0_i32_0 = arith.constant 0 : i32
    return %arg0, %c0_i32 : i32, i32
  }
}

module attributes {stable_mosaic.version = 11 : i64} {
  func.func @kernel(%arg0: i32, %arg1: memref<16x256xbf16, #tpu.memory_space<vmem>>, %arg2: memref<256x128xbf16, #tpu.memory_space<vmem>>, %arg3: memref<1x128xf32, #tpu.memory_space<vmem>>, %arg4: memref<128x128xbf16, #tpu.memory_space<vmem>>, %arg5: memref<1x128xf32, #tpu.memory_space<vmem>>, %arg6: memref<16x128xf32, #tpu.memory_space<vmem>>) attributes {dimension_semantics = [#tpu.dimension_semantics<parallel>], iteration_bounds = array<i64: 2>, scalar_prefetch = 0 : i64, scratch_operands = 0 : i64, tpu.core_type = #tpu.core_type<tc>, window_params = [{transform_indices = @transform_0, window_bounds = array<i64: 16, 256>}, {pipeline_mode = #tpu.pipeline_mode<synchronous>, transform_indices = @transform_1, window_bounds = array<i64: 256, 128>}, {pipeline_mode = #tpu.pipeline_mode<synchronous>, transform_indices = @transform_2, window_bounds = array<i64: 1, 128>}, {pipeline_mode = #tpu.pipeline_mode<synchronous>, transform_indices = @transform_3, window_bounds = array<i64: 128, 128>}, {pipeline_mode = #tpu.pipeline_mode<synchronous>, transform_indices = @transform_4, window_bounds = array<i64: 1, 128>}, {transform_indices = @transform_5, window_bounds = array<i64: 16, 128>}]} {
    %c0 = arith.constant 0 : index
    %c0_0 = arith.constant 0 : index
    %0 = vector.load %arg1[%c0, %c0_0] : memref<16x256xbf16, #tpu.memory_space<vmem>>, vector<16x256xbf16>
    %c0_1 = arith.constant 0 : index
    %c0_2 = arith.constant 0 : index
    %1 = vector.load %arg2[%c0_1, %c0_2] : memref<256x128xbf16, #tpu.memory_space<vmem>>, vector<256x128xbf16>
    %c0_3 = arith.constant 0 : index
    %c0_4 = arith.constant 0 : index
    %2 = vector.load %arg3[%c0_3, %c0_4] : memref<1x128xf32, #tpu.memory_space<vmem>>, vector<1x128xf32>
    %cst = arith.constant dense<0.000000e+00> : vector<16x128xf32>
    %3 = tpu.matmul %0, %1, %cst {dimension_numbers = #tpu.dot_dimension_numbers<[1], [0], [0], [1], [0, 0, 1, 1], [], []>} : vector<16x256xbf16>, vector<256x128xbf16>, vector<16x128xf32> -> vector<16x128xf32>
    %4 = vector.broadcast %2 : vector<1x128xf32> to vector<16x128xf32>
    %5 = arith.addf %3, %4 : vector<16x128xf32>
    %cst_5 = arith.constant 0.000000e+00 : f32
    %6 = vector.broadcast %cst_5 : f32 to vector<16x128xf32>
    %7 = arith.maximumf %5, %6 : vector<16x128xf32>
    %c0_6 = arith.constant 0 : index
    %c0_7 = arith.constant 0 : index
    %8 = vector.load %arg4[%c0_6, %c0_7] : memref<128x128xbf16, #tpu.memory_space<vmem>>, vector<128x128xbf16>
    %c0_8 = arith.constant 0 : index
    %c0_9 = arith.constant 0 : index
    %9 = vector.load %arg5[%c0_8, %c0_9] : memref<1x128xf32, #tpu.memory_space<vmem>>, vector<1x128xf32>
    %10 = arith.truncf %7 : vector<16x128xf32> to vector<16x128xbf16>
    %cst_10 = arith.constant dense<0.000000e+00> : vector<16x128xf32>
    %11 = tpu.matmul %10, %8, %cst_10 {dimension_numbers = #tpu.dot_dimension_numbers<[1], [0], [0], [1], [0, 0, 1, 1], [], []>} : vector<16x128xbf16>, vector<128x128xbf16>, vector<16x128xf32> -> vector<16x128xf32>
    %12 = vector.broadcast %9 : vector<1x128xf32> to vector<16x128xf32>
    %13 = arith.addf %11, %12 : vector<16x128xf32>
    %cst_11 = arith.constant 0.000000e+00 : f32
    %14 = vector.broadcast %cst_11 : f32 to vector<16x128xf32>
    %15 = arith.maximumf %13, %14 : vector<16x128xf32>
    %c0_12 = arith.constant 0 : index
    %c0_13 = arith.constant 0 : index
    %16 = vector.load %arg6[%c0_12, %c0_13] : memref<16x128xf32, #tpu.memory_space<vmem>>, vector<16x128xf32>
    tpu.vector_store %arg6[%c0_12, %c0_13], %15 {strides = array<i32>} : memref<16x128xf32, #tpu.memory_space<vmem>>, vector<16x128xf32>,
    return
  }
  func.func @transform_0(%arg0: i32) -> (i32, i32) {
    %c0_i32 = arith.constant 0 : i32
    %c0_i32_0 = arith.constant 0 : i32
    return %arg0, %c0_i32 : i32, i32
  }
  func.func @transform_1(%arg0: i32) -> (i32, i32) {
    %c0_i32 = arith.constant 0 : i32
    %c0_i32_0 = arith.constant 0 : i32
    %c0_i32_1 = arith.constant 0 : i32
    return %c0_i32, %c0_i32_0 : i32, i32
  }
  func.func @transform_2(%arg0: i32) -> (i32, i32) {
    %c0_i32 = arith.constant 0 : i32
    %c0_i32_0 = arith.constant 0 : i32
    %c0_i32_1 = arith.constant 0 : i32
    return %c0_i32, %c0_i32_0 : i32, i32
  }
  func.func @transform_3(%arg0: i32) -> (i32, i32) {
    %c0_i32 = arith.constant 0 : i32
    %c0_i32_0 = arith.constant 0 : i32
    %c0_i32_1 = arith.constant 0 : i32
    return %c0_i32, %c0_i32_0 : i32, i32
  }
  func.func @transform_4(%arg0: i32) -> (i32, i32) {
    %c0_i32 = arith.constant 0 : i32
    %c0_i32_0 = arith.constant 0 : i32
    %c0_i32_1 = arith.constant 0 : i32
    return %c0_i32, %c0_i32_0 : i32, i32
  }
  func.func @transform_5(%arg0: i32) -> (i32, i32) {
    %c0_i32 = arith.constant 0 : i32
    %c0_i32_0 = arith.constant 0 : i32
    return %arg0, %c0_i32 : i32, i32
  }
}

module attributes {stable_mosaic.version = 11 : i64} {
  func.func @kernel(%arg0: i32, %arg1: memref<32x128xbf16, #tpu.memory_space<vmem>>, %arg2: memref<128x128xbf16, #tpu.memory_space<vmem>>, %arg3: memref<1x128xf32, #tpu.memory_space<vmem>>, %arg4: memref<128x128xbf16, #tpu.memory_space<vmem>>, %arg5: memref<1x128xf32, #tpu.memory_space<vmem>>, %arg6: memref<32x128xf32, #tpu.memory_space<vmem>>) attributes {dimension_semantics = [#tpu.dimension_semantics<parallel>], iteration_bounds = array<i64: 2>, scalar_prefetch = 0 : i64, scratch_operands = 0 : i64, tpu.core_type = #tpu.core_type<tc>, window_params = [{transform_indices = @transform_0, window_bounds = array<i64: 32, 128>}, {pipeline_mode = #tpu.pipeline_mode<synchronous>, transform_indices = @transform_1, window_bounds = array<i64: 128, 128>}, {pipeline_mode = #tpu.pipeline_mode<synchronous>, transform_indices = @transform_2, window_bounds = array<i64: 1, 128>}, {pipeline_mode = #tpu.pipeline_mode<synchronous>, transform_indices = @transform_3, window_bounds = array<i64: 128, 128>}, {pipeline_mode = #tpu.pipeline_mode<synchronous>, transform_indices = @transform_4, window_bounds = array<i64: 1, 128>}, {transform_indices = @transform_5, window_bounds = array<i64: 32, 128>}]} {
    %c0 = arith.constant 0 : index
    %c0_0 = arith.constant 0 : index
    %0 = vector.load %arg1[%c0, %c0_0] : memref<32x128xbf16, #tpu.memory_space<vmem>>, vector<32x128xbf16>
    %c0_1 = arith.constant 0 : index
    %c0_2 = arith.constant 0 : index
    %1 = vector.load %arg2[%c0_1, %c0_2] : memref<128x128xbf16, #tpu.memory_space<vmem>>, vector<128x128xbf16>
    %c0_3 = arith.constant 0 : index
    %c0_4 = arith.constant 0 : index
    %2 = vector.load %arg3[%c0_3, %c0_4] : memref<1x128xf32, #tpu.memory_space<vmem>>, vector<1x128xf32>
    %cst = arith.constant dense<0.000000e+00> : vector<32x128xf32>
    %3 = tpu.matmul %0, %1, %cst {dimension_numbers = #tpu.dot_dimension_numbers<[1], [0], [0], [1], [0, 0, 1, 1], [], []>} : vector<32x128xbf16>, vector<128x128xbf16>, vector<32x128xf32> -> vector<32x128xf32>
    %4 = vector.broadcast %2 : vector<1x128xf32> to vector<32x128xf32>
    %5 = arith.addf %3, %4 : vector<32x128xf32>
    %cst_5 = arith.constant 0.000000e+00 : f32
    %6 = vector.broadcast %cst_5 : f32 to vector<32x128xf32>
    %7 = arith.maximumf %5, %6 : vector<32x128xf32>
    %c0_6 = arith.constant 0 : index
    %c0_7 = arith.constant 0 : index
    %8 = vector.load %arg4[%c0_6, %c0_7] : memref<128x128xbf16, #tpu.memory_space<vmem>>, vector<128x128xbf16>
    %c0_8 = arith.constant 0 : index
    %c0_9 = arith.constant 0 : index
    %9 = vector.load %arg5[%c0_8, %c0_9] : memref<1x128xf32, #tpu.memory_space<vmem>>, vector<1x128xf32>
    %10 = arith.truncf %7 : vector<32x128xf32> to vector<32x128xbf16>
    %cst_10 = arith.constant dense<0.000000e+00> : vector<32x128xf32>
    %11 = tpu.matmul %10, %8, %cst_10 {dimension_numbers = #tpu.dot_dimension_numbers<[1], [0], [0], [1], [0, 0, 1, 1], [], []>} : vector<32x128xbf16>, vector<128x128xbf16>, vector<32x128xf32> -> vector<32x128xf32>
    %12 = vector.broadcast %9 : vector<1x128xf32> to vector<32x128xf32>
    %13 = arith.addf %11, %12 : vector<32x128xf32>
    %cst_11 = arith.constant 0.000000e+00 : f32
    %14 = vector.broadcast %cst_11 : f32 to vector<32x128xf32>
    %15 = arith.maximumf %13, %14 : vector<32x128xf32>
    %c0_12 = arith.constant 0 : index
    %c0_13 = arith.constant 0 : index
    %16 = vector.load %arg6[%c0_12, %c0_13] : memref<32x128xf32, #tpu.memory_space<vmem>>, vector<32x128xf32>
    tpu.vector_store %arg6[%c0_12, %c0_13], %15 {strides = array<i32>} : memref<32x128xf32, #tpu.memory_space<vmem>>, vector<32x128xf32>,
    return
  }
  func.func @transform_0(%arg0: i32) -> (i32, i32) {
    %c0_i32 = arith.constant 0 : i32
    %c0_i32_0 = arith.constant 0 : i32
    return %arg0, %c0_i32 : i32, i32
  }
  func.func @transform_1(%arg0: i32) -> (i32, i32) {
    %c0_i32 = arith.constant 0 : i32
    %c0_i32_0 = arith.constant 0 : i32
    %c0_i32_1 = arith.constant 0 : i32
    return %c0_i32, %c0_i32_0 : i32, i32
  }
  func.func @transform_2(%arg0: i32) -> (i32, i32) {
    %c0_i32 = arith.constant 0 : i32
    %c0_i32_0 = arith.constant 0 : i32
    %c0_i32_1 = arith.constant 0 : i32
    return %c0_i32, %c0_i32_0 : i32, i32
  }
  func.func @transform_3(%arg0: i32) -> (i32, i32) {
    %c0_i32 = arith.constant 0 : i32
    %c0_i32_0 = arith.constant 0 : i32
    %c0_i32_1 = arith.constant 0 : i32
    return %c0_i32, %c0_i32_0 : i32, i32
  }
  func.func @transform_4(%arg0: i32) -> (i32, i32) {
    %c0_i32 = arith.constant 0 : i32
    %c0_i32_0 = arith.constant 0 : i32
    %c0_i32_1 = arith.constant 0 : i32
    return %c0_i32, %c0_i32_0 : i32, i32
  }
  func.func @transform_5(%arg0: i32) -> (i32, i32) {
    %c0_i32 = arith.constant 0 : i32
    %c0_i32_0 = arith.constant 0 : i32
    return %arg0, %c0_i32 : i32, i32
  }
}

module attributes {stable_mosaic.version = 11 : i64} {
  func.func @kernel(%arg0: i32, %arg1: memref<64x38xbf16, #tpu.memory_space<vmem>>, %arg2: memref<38x128xbf16, #tpu.memory_space<vmem>>, %arg3: memref<1x128xf32, #tpu.memory_space<vmem>>, %arg4: memref<128x128xbf16, #tpu.memory_space<vmem>>, %arg5: memref<1x128xf32, #tpu.memory_space<vmem>>, %arg6: memref<128x128xbf16, #tpu.memory_space<vmem>>, %arg7: memref<1x128xf32, #tpu.memory_space<vmem>>, %arg8: memref<64x128xf32, #tpu.memory_space<vmem>>) attributes {dimension_semantics = [#tpu.dimension_semantics<parallel>], iteration_bounds = array<i64: 2>, scalar_prefetch = 0 : i64, scratch_operands = 0 : i64, tpu.core_type = #tpu.core_type<tc>, window_params = [{transform_indices = @transform_0, window_bounds = array<i64: 64, 38>}, {pipeline_mode = #tpu.pipeline_mode<synchronous>, transform_indices = @transform_1, window_bounds = array<i64: 38, 128>}, {pipeline_mode = #tpu.pipeline_mode<synchronous>, transform_indices = @transform_2, window_bounds = array<i64: 1, 128>}, {pipeline_mode = #tpu.pipeline_mode<synchronous>, transform_indices = @transform_3, window_bounds = array<i64: 128, 128>}, {pipeline_mode = #tpu.pipeline_mode<synchronous>, transform_indices = @transform_4, window_bounds = array<i64: 1, 128>}, {pipeline_mode = #tpu.pipeline_mode<synchronous>, transform_indices = @transform_5, window_bounds = array<i64: 128, 128>}, {pipeline_mode = #tpu.pipeline_mode<synchronous>, transform_indices = @transform_6, window_bounds = array<i64: 1, 128>}, {transform_indices = @transform_7, window_bounds = array<i64: 64, 128>}]} {
    %c0 = arith.constant 0 : index
    %c0_0 = arith.constant 0 : index
    %0 = vector.load %arg1[%c0, %c0_0] : memref<64x38xbf16, #tpu.memory_space<vmem>>, vector<64x38xbf16>
    %c0_1 = arith.constant 0 : index
    %c0_2 = arith.constant 0 : index
    %1 = vector.load %arg2[%c0_1, %c0_2] : memref<38x128xbf16, #tpu.memory_space<vmem>>, vector<38x128xbf16>
    %c0_3 = arith.constant 0 : index
    %c0_4 = arith.constant 0 : index
    %2 = vector.load %arg3[%c0_3, %c0_4] : memref<1x128xf32, #tpu.memory_space<vmem>>, vector<1x128xf32>
    %cst = arith.constant dense<0.000000e+00> : vector<64x128xf32>
    %3 = tpu.matmul %0, %1, %cst {dimension_numbers = #tpu.dot_dimension_numbers<[1], [0], [0], [1], [0, 0, 1, 1], [], []>} : vector<64x38xbf16>, vector<38x128xbf16>, vector<64x128xf32> -> vector<64x128xf32>
    %4 = vector.broadcast %2 : vector<1x128xf32> to vector<64x128xf32>
    %5 = arith.addf %3, %4 : vector<64x128xf32>
    %cst_5 = arith.constant 0.000000e+00 : f32
    %6 = vector.broadcast %cst_5 : f32 to vector<64x128xf32>
    %7 = arith.maximumf %5, %6 : vector<64x128xf32>
    %c0_6 = arith.constant 0 : index
    %c0_7 = arith.constant 0 : index
    %8 = vector.load %arg4[%c0_6, %c0_7] : memref<128x128xbf16, #tpu.memory_space<vmem>>, vector<128x128xbf16>
    %c0_8 = arith.constant 0 : index
    %c0_9 = arith.constant 0 : index
    %9 = vector.load %arg5[%c0_8, %c0_9] : memref<1x128xf32, #tpu.memory_space<vmem>>, vector<1x128xf32>
    %10 = arith.truncf %7 : vector<64x128xf32> to vector<64x128xbf16>
    %cst_10 = arith.constant dense<0.000000e+00> : vector<64x128xf32>
    %11 = tpu.matmul %10, %8, %cst_10 {dimension_numbers = #tpu.dot_dimension_numbers<[1], [0], [0], [1], [0, 0, 1, 1], [], []>} : vector<64x128xbf16>, vector<128x128xbf16>, vector<64x128xf32> -> vector<64x128xf32>
    %12 = vector.broadcast %9 : vector<1x128xf32> to vector<64x128xf32>
    %13 = arith.addf %11, %12 : vector<64x128xf32>
    %cst_11 = arith.constant 0.000000e+00 : f32
    %14 = vector.broadcast %cst_11 : f32 to vector<64x128xf32>
    %15 = arith.maximumf %13, %14 : vector<64x128xf32>
    %c0_12 = arith.constant 0 : index
    %c0_13 = arith.constant 0 : index
    %16 = vector.load %arg6[%c0_12, %c0_13] : memref<128x128xbf16, #tpu.memory_space<vmem>>, vector<128x128xbf16>
    %c0_14 = arith.constant 0 : index
    %c0_15 = arith.constant 0 : index
    %17 = vector.load %arg7[%c0_14, %c0_15] : memref<1x128xf32, #tpu.memory_space<vmem>>, vector<1x128xf32>
    %18 = arith.truncf %15 : vector<64x128xf32> to vector<64x128xbf16>
    %cst_16 = arith.constant dense<0.000000e+00> : vector<64x128xf32>
    %19 = tpu.matmul %18, %16, %cst_16 {dimension_numbers = #tpu.dot_dimension_numbers<[1], [0], [0], [1], [0, 0, 1, 1], [], []>} : vector<64x128xbf16>, vector<128x128xbf16>, vector<64x128xf32> -> vector<64x128xf32>
    %20 = vector.broadcast %17 : vector<1x128xf32> to vector<64x128xf32>
    %21 = arith.addf %19, %20 : vector<64x128xf32>
    %cst_17 = arith.constant 0.000000e+00 : f32
    %22 = vector.broadcast %cst_17 : f32 to vector<64x128xf32>
    %23 = arith.maximumf %21, %22 : vector<64x128xf32>
    %c0_18 = arith.constant 0 : index
    %c0_19 = arith.constant 0 : index
    %24 = vector.load %arg8[%c0_18, %c0_19] : memref<64x128xf32, #tpu.memory_space<vmem>>, vector<64x128xf32>
    tpu.vector_store %arg8[%c0_18, %c0_19], %23 {strides = array<i32>} : memref<64x128xf32, #tpu.memory_space<vmem>>, vector<64x128xf32>,
    return
  }
  func.func @transform_0(%arg0: i32) -> (i32, i32) {
    %c0_i32 = arith.constant 0 : i32
    %c0_i32_0 = arith.constant 0 : i32
    return %arg0, %c0_i32 : i32, i32
  }
  func.func @transform_1(%arg0: i32) -> (i32, i32) {
    %c0_i32 = arith.constant 0 : i32
    %c0_i32_0 = arith.constant 0 : i32
    %c0_i32_1 = arith.constant 0 : i32
    return %c0_i32, %c0_i32_0 : i32, i32
  }
  func.func @transform_2(%arg0: i32) -> (i32, i32) {
    %c0_i32 = arith.constant 0 : i32
    %c0_i32_0 = arith.constant 0 : i32
    %c0_i32_1 = arith.constant 0 : i32
    return %c0_i32, %c0_i32_0 : i32, i32
  }
  func.func @transform_3(%arg0: i32) -> (i32, i32) {
    %c0_i32 = arith.constant 0 : i32
    %c0_i32_0 = arith.constant 0 : i32
    %c0_i32_1 = arith.constant 0 : i32
    return %c0_i32, %c0_i32_0 : i32, i32
  }
  func.func @transform_4(%arg0: i32) -> (i32, i32) {
    %c0_i32 = arith.constant 0 : i32
    %c0_i32_0 = arith.constant 0 : i32
    %c0_i32_1 = arith.constant 0 : i32
    return %c0_i32, %c0_i32_0 : i32, i32
  }
  func.func @transform_5(%arg0: i32) -> (i32, i32) {
    %c0_i32 = arith.constant 0 : i32
    %c0_i32_0 = arith.constant 0 : i32
    %c0_i32_1 = arith.constant 0 : i32
    return %c0_i32, %c0_i32_0 : i32, i32
  }
  func.func @transform_6(%arg0: i32) -> (i32, i32) {
    %c0_i32 = arith.constant 0 : i32
    %c0_i32_0 = arith.constant 0 : i32
    %c0_i32_1 = arith.constant 0 : i32
    return %c0_i32, %c0_i32_0 : i32, i32
  }
  func.func @transform_7(%arg0: i32) -> (i32, i32) {
    %c0_i32 = arith.constant 0 : i32
    %c0_i32_0 = arith.constant 0 : i32
    return %arg0, %c0_i32 : i32, i32
  }
}

module attributes {stable_mosaic.version = 11 : i64} {
  func.func @kernel(%arg0: i32, %arg1: memref<64x32xbf16, #tpu.memory_space<vmem>>, %arg2: memref<32x128xbf16, #tpu.memory_space<vmem>>, %arg3: memref<1x128xf32, #tpu.memory_space<vmem>>, %arg4: memref<64x128xf32, #tpu.memory_space<vmem>>) attributes {dimension_semantics = [#tpu.dimension_semantics<parallel>], iteration_bounds = array<i64: 2>, scalar_prefetch = 0 : i64, scratch_operands = 0 : i64, tpu.core_type = #tpu.core_type<tc>, window_params = [{transform_indices = @transform_0, window_bounds = array<i64: 64, 32>}, {pipeline_mode = #tpu.pipeline_mode<synchronous>, transform_indices = @transform_1, window_bounds = array<i64: 32, 128>}, {pipeline_mode = #tpu.pipeline_mode<synchronous>, transform_indices = @transform_2, window_bounds = array<i64: 1, 128>}, {transform_indices = @transform_3, window_bounds = array<i64: 64, 128>}]} {
    %c0 = arith.constant 0 : index
    %c0_0 = arith.constant 0 : index
    %0 = vector.load %arg1[%c0, %c0_0] : memref<64x32xbf16, #tpu.memory_space<vmem>>, vector<64x32xbf16>
    %c0_1 = arith.constant 0 : index
    %c0_2 = arith.constant 0 : index
    %1 = vector.load %arg2[%c0_1, %c0_2] : memref<32x128xbf16, #tpu.memory_space<vmem>>, vector<32x128xbf16>
    %c0_3 = arith.constant 0 : index
    %c0_4 = arith.constant 0 : index
    %2 = vector.load %arg3[%c0_3, %c0_4] : memref<1x128xf32, #tpu.memory_space<vmem>>, vector<1x128xf32>
    %cst = arith.constant dense<0.000000e+00> : vector<64x128xf32>
    %3 = tpu.matmul %0, %1, %cst {dimension_numbers = #tpu.dot_dimension_numbers<[1], [0], [0], [1], [0, 0, 1, 1], [], []>} : vector<64x32xbf16>, vector<32x128xbf16>, vector<64x128xf32> -> vector<64x128xf32>
    %4 = vector.broadcast %2 : vector<1x128xf32> to vector<64x128xf32>
    %5 = arith.addf %3, %4 : vector<64x128xf32>
    %cst_5 = arith.constant 0.000000e+00 : f32
    %6 = vector.broadcast %cst_5 : f32 to vector<64x128xf32>
    %7 = arith.maximumf %5, %6 : vector<64x128xf32>
    %c0_6 = arith.constant 0 : index
    %c0_7 = arith.constant 0 : index
    %8 = vector.load %arg4[%c0_6, %c0_7] : memref<64x128xf32, #tpu.memory_space<vmem>>, vector<64x128xf32>
    tpu.vector_store %arg4[%c0_6, %c0_7], %7 {strides = array<i32>} : memref<64x128xf32, #tpu.memory_space<vmem>>, vector<64x128xf32>,
    return
  }
  func.func @transform_0(%arg0: i32) -> (i32, i32) {
    %c0_i32 = arith.constant 0 : i32
    %c0_i32_0 = arith.constant 0 : i32
    return %arg0, %c0_i32 : i32, i32
  }
  func.func @transform_1(%arg0: i32) -> (i32, i32) {
    %c0_i32 = arith.constant 0 : i32
    %c0_i32_0 = arith.constant 0 : i32
    %c0_i32_1 = arith.constant 0 : i32
    return %c0_i32, %c0_i32_0 : i32, i32
  }
  func.func @transform_2(%arg0: i32) -> (i32, i32) {
    %c0_i32 = arith.constant 0 : i32
    %c0_i32_0 = arith.constant 0 : i32
    %c0_i32_1 = arith.constant 0 : i32
    return %c0_i32, %c0_i32_0 : i32, i32
  }
  func.func @transform_3(%arg0: i32) -> (i32, i32) {
    %c0_i32 = arith.constant 0 : i32
    %c0_i32_0 = arith.constant 0 : i32
    return %arg0, %c0_i32 : i32, i32
  }
}

</mosaic_0001>

<llo_original>
// kernel: custom-call.28
$region0: #{custom-call.28}
  %s0 = inlined_call_operand.vmem [shape: f32[2,64], index: 0, kind: output, shape index: {}]

// kernel: custom-call.29
$region0: #{custom-call.29}
  %s0 = inlined_call_operand.vmem [shape: f32[2,32], index: 0, kind: output, shape index: {}]

// kernel: pointnet2_msg_forward.10
$region0: #{pointnet2_msg_forward.10}
  #allocation0 [shape = 'u32[]', space=smem, size = 0x4, offset = 0x4, fixed_abs, tag = 'smem constant byte address 0x4 - core index']
  #allocation1 [shape = 'u32[144,128]{1,0:T(1,128)}', space=vmem, size = 0x12000, scoped, tag = 'internal scratch']
  %s0 = inlined_call_operand.vmem [shape: bf16[64,16,6], index: 0, kind: input, shape index: {}]
  %s1 = inlined_call_operand.vmem [shape: bf16[6,128], index: 1, kind: input, shape index: {}]
  %s2 = inlined_call_operand.vmem [shape: f32[1,128], index: 2, kind: input, shape index: {}]
  %s3 = inlined_call_operand.vmem [shape: bf16[128,128], index: 3, kind: input, shape index: {}]
  %s4 = inlined_call_operand.vmem [shape: f32[1,128], index: 4, kind: input, shape index: {}]
  %s5 = inlined_call_operand.vmem [shape: bf16[128,128], index: 5, kind: input, shape index: {}]
  %s6 = inlined_call_operand.vmem [shape: f32[1,128], index: 6, kind: input, shape index: {}]
  %s7 = inlined_call_operand.vmem [shape: f32[64,128], index: 7, kind: output, shape index: {}]
  %s8 = sld [smem:[#allocation0]]
  $region61: #{pointnet2_msg_forward.10} parent=0
    _
  %s10 = ssub.s32 1, %s8
  %s11 = scalar_select 0, %s10, %s8
  loop: start=0, step=1, limit=4
  $region2: #{pointnet2_msg_forward.10} parent=0 // loop_pre_header
    _
  $region3: #{pointnet2_msg_forward.10} parent=0 // loop_header
    %s13 = sphi 0, %s17
    %p14 = scmp.ge.s32.totalorder %s13, 4
    %s23 = sphi 0, %s25
    %s26 = sphi 0, %s23
    %s27 = sphi 0, %s26
    %s43 = sphi 0, %s27
    %s47 = sphi 0, %s47
    %s49 = sphi 0, %s47
    %s50 = sphi 0, %s49
    %s64 = sphi 0, %s50
    %s68 = sphi 0, %s68
    %s70 = sphi 0, %s68
    %s71 = sphi 0, %s70
    %s85 = sphi 0, %s71
    %s89 = sphi 0, %s89
    %s91 = sphi 0, %s89
    %s92 = sphi 0, %s91
    %s106 = sphi 0, %s92
    %s110 = sphi 0, %s110
    %s112 = sphi 0, %s110
    %s113 = sphi 0, %s112
    %s127 = sphi 0, %s113
    %s131 = sphi 0, %s131
    %s133 = sphi 0, %s131
    %s134 = sphi 0, %s133
    %s148 = sphi 0, %s134
    %s152 = sphi 0, %s152
    %s154 = sphi 0, %s152
    %s155 = sphi 0, %s154
    %s169 = sphi 0, %s155
    %s175 = sphi 0, %s177
    %s178 = sphi 0, %s175
    %s179 = sphi 0, %s178
    %s195 = sphi 0, %s179
  $region4: #{pointnet2_msg_forward.10} parent=0 // loop_header_branch
    %16 = sbr.rel (%p14) target = $region8
  $region5: #{pointnet2_msg_forward.10} parent=0 // loop_body
    %s18 = ssub.s32 %s13, 1
    %s19 = ssub.s32 %s13, 2
    %s20 = sadd.s32 %s13, 1
    %s21 = ssub.s32 %s13, %s20
    %p22 = scmp.eq.s32.totalorder %s21, 0
    %s24 = sadd.s32 %s23, 1
    %s25 = scalar_select %p22, %s23, %s24
    %p28 = pneg %p22
    %p29 = scmp.eq.s32.totalorder %s13, 1
    %p30 = por %p28, %p29
    %p31 = scmp.ne.s32.totalorder %s23, %s26
    %p32 = scmp.eq.s32.totalorder %s13, 0
    %p33 = por %p31, %p32
    %p34 = scmp.ne.s32.totalorder %s23, %s26
    %p35 = scmp.eq.s32.totalorder %s18, 1
    %p36 = por %p34, %p35
    %p37 = scmp.ne.s32.totalorder %s26, %s27
    %p38 = scmp.eq.s32.totalorder %s18, 0
    %p39 = por %p37, %p38
    %p40 = scmp.ne.s32.totalorder %s26, %s27
    %p41 = scmp.eq.s32.totalorder %s19, 1
    %p42 = por %p40, %p41
    %p44 = scmp.ne.s32.totalorder %s27, %s43
    %p45 = scmp.eq.s32.totalorder %s19, 0
    %p46 = por %p44, %p45
    %s48 = sadd.s32 %s47, 1
    %p51 = scmp.eq.s32.totalorder %s13, 1
    %p52 = scmp.ne.s32.totalorder %s47, %s49
    %p53 = scmp.eq.s32.totalorder %s13, 0
    %p54 = por %p52, %p53
    %p55 = scmp.ne.s32.totalorder %s47, %s49
    %p56 = scmp.eq.s32.totalorder %s18, 1
    %p57 = por %p55, %p56
    %p58 = scmp.ne.s32.totalorder %s49, %s50
    %p59 = scmp.eq.s32.totalorder %s18, 0
    %p60 = por %p58, %p59
    %p61 = scmp.ne.s32.totalorder %s49, %s50
    %p62 = scmp.eq.s32.totalorder %s19, 1
    %p63 = por %p61, %p62
    %p65 = scmp.ne.s32.totalorder %s50, %s64
    %p66 = scmp.eq.s32.totalorder %s19, 0
    %p67 = por %p65, %p66
    %s69 = sadd.s32 %s68, 1
    %p72 = scmp.eq.s32.totalorder %s13, 1
    %p73 = scmp.ne.s32.totalorder %s68, %s70
    %p74 = scmp.eq.s32.totalorder %s13, 0
    %p75 = por %p73, %p74
    %p76 = scmp.ne.s32.totalorder %s68, %s70
    %p77 = scmp.eq.s32.totalorder %s18, 1
    %p78 = por %p76, %p77
    %p79 = scmp.ne.s32.totalorder %s70, %s71
    %p80 = scmp.eq.s32.totalorder %s18, 0
    %p81 = por %p79, %p80
    %p82 = scmp.ne.s32.totalorder %s70, %s71
    %p83 = scmp.eq.s32.totalorder %s19, 1
    %p84 = por %p82, %p83
    %p86 = scmp.ne.s32.totalorder %s71, %s85
    %p87 = scmp.eq.s32.totalorder %s19, 0
    %p88 = por %p86, %p87
    %s90 = sadd.s32 %s89, 1
    %p93 = scmp.eq.s32.totalorder %s13, 1
    %p94 = scmp.ne.s32.totalorder %s89, %s91
    %p95 = scmp.eq.s32.totalorder %s13, 0
    %p96 = por %p94, %p95
    %p97 = scmp.ne.s32.totalorder %s89, %s91
    %p98 = scmp.eq.s32.totalorder %s18, 1
    %p99 = por %p97, %p98
    %p100 = scmp.ne.s32.totalorder %s91, %s92
    %p101 = scmp.eq.s32.totalorder %s18, 0
    %p102 = por %p100, %p101
    %p103 = scmp.ne.s32.totalorder %s91, %s92
    %p104 = scmp.eq.s32.totalorder %s19, 1
    %p105 = por %p103, %p104
    %p107 = scmp.ne.s32.totalorder %s92, %s106
    %p108 = scmp.eq.s32.totalorder %s19, 0
    %p109 = por %p107, %p108
    %s111 = sadd.s32 %s110, 1
    %p114 = scmp.eq.s32.totalorder %s13, 1
    %p115 = scmp.ne.s32.totalorder %s110, %s112
    %p116 = scmp.eq.s32.totalorder %s13, 0
    %p117 = por %p115, %p116
    %p118 = scmp.ne.s32.totalorder %s110, %s112
    %p119 = scmp.eq.s32.totalorder %s18, 1
    %p120 = por %p118, %p119
    %p121 = scmp.ne.s32.totalorder %s112, %s113
    %p122 = scmp.eq.s32.totalorder %s18, 0
    %p123 = por %p121, %p122
    %p124 = scmp.ne.s32.totalorder %s112, %s113
    %p125 = scmp.eq.s32.totalorder %s19, 1
    %p126 = por %p124, %p125
    %p128 = scmp.ne.s32.totalorder %s113, %s127
    %p129 = scmp.eq.s32.totalorder %s19, 0
    %p130 = por %p128, %p129
    %s132 = sadd.s32 %s131, 1
    %p135 = scmp.eq.s32.totalorder %s13, 1
    %p136 = scmp.ne.s32.totalorder %s131, %s133
    %p137 = scmp.eq.s32.totalorder %s13, 0
    %p138 = por %p136, %p137
    %p139 = scmp.ne.s32.totalorder %s131, %s133
    %p140 = scmp.eq.s32.totalorder %s18, 1
    %p141 = por %p139, %p140
    %p142 = scmp.ne.s32.totalorder %s133, %s134
    %p143 = scmp.eq.s32.totalorder %s18, 0
    %p144 = por %p142, %p143
    %p145 = scmp.ne.s32.totalorder %s133, %s134
    %p146 = scmp.eq.s32.totalorder %s19, 1
    %p147 = por %p145, %p146
    %p149 = scmp.ne.s32.totalorder %s134, %s148
    %p150 = scmp.eq.s32.totalorder %s19, 0
    %p151 = por %p149, %p150
    %s153 = sadd.s32 %s152, 1
    %p156 = scmp.eq.s32.totalorder %s13, 1
    %p157 = scmp.ne.s32.totalorder %s152, %s154
    %p158 = scmp.eq.s32.totalorder %s13, 0
    %p159 = por %p157, %p158
    %p160 = scmp.ne.s32.totalorder %s152, %s154
    %p161 = scmp.eq.s32.totalorder %s18, 1
    %p162 = por %p160, %p161
    %p163 = scmp.ne.s32.totalorder %s154, %s155
    %p164 = scmp.eq.s32.totalorder %s18, 0
    %p165 = por %p163, %p164
    %p166 = scmp.ne.s32.totalorder %s154, %s155
    %p167 = scmp.eq.s32.totalorder %s19, 1
    %p168 = por %p166, %p167
    %p170 = scmp.ne.s32.totalorder %s155, %s169
    %p171 = scmp.eq.s32.totalorder %s19, 0
    %p172 = por %p170, %p171
    %s173 = ssub.s32 %s13, %s20
    %p174 = scmp.eq.s32.totalorder %s173, 0
    %s176 = sadd.s32 %s175, 1
    %s177 = scalar_select %p174, %s175, %s176
    %p180 = pneg %p174
    %p181 = scmp.eq.s32.totalorder %s13, 1
    %p182 = por %p180, %p181
    %p183 = scmp.ne.s32.totalorder %s175, %s178
    %p184 = scmp.eq.s32.totalorder %s13, 0
    %p185 = por %p183, %p184
    %p186 = scmp.ne.s32.totalorder %s175, %s178
    %p187 = scmp.eq.s32.totalorder %s18, 1
    %p188 = por %p186, %p187
    %p189 = scmp.ne.s32.totalorder %s178, %s179
    %p190 = scmp.eq.s32.totalorder %s18, 0
    %p191 = por %p189, %p190
    %p192 = scmp.ne.s32.totalorder %s178, %s179
    %p193 = scmp.eq.s32.totalorder %s19, 1
    %p194 = por %p192, %p193
    %p196 = scmp.ne.s32.totalorder %s179, %s195
    %p197 = scmp.eq.s32.totalorder %s19, 0
    %p198 = por %p196, %p197
    %p199 = scmp.le.s32.totalorder 1, %s13
    %p200 = scmp.lt.s32.totalorder %s13, 3
    %p201 = pnand %p199, %p200
    %p202 = pneg %p201
    // Predicated region
    $region9: #{pointnet2_msg_forward.10} parent=5 // pred_check
      _
    $region10: #{pointnet2_msg_forward.10} parent=5 // pred_check_branch
      %204 = sbr.rel (%p201) target = $region12
    $region11: #{pointnet2_msg_forward.10} parent=5 // pred_region
      %s205 = ssub.s32 %s13, 1
      // Predicated region
      $region13: #{pointnet2_msg_forward.10} parent=11 // pred_check
        %p206 = pneg %p60
      $region14: #{pointnet2_msg_forward.10} parent=11 // pred_check_branch
        %208 = sbr.rel (%p206) target = $region16
      $region15: #{pointnet2_msg_forward.10} parent=11 // pred_region
        _
      $region16: #{pointnet2_msg_forward.10} parent=11 // pred_fallthru
        _
      // Predicated region
      $region17: #{pointnet2_msg_forward.10} parent=11 // pred_check
        %p209 = pneg %p81
      $region18: #{pointnet2_msg_forward.10} parent=11 // pred_check_branch
        %211 = sbr.rel (%p209) target = $region20
      $region19: #{pointnet2_msg_forward.10} parent=11 // pred_region
        _
      $region20: #{pointnet2_msg_forward.10} parent=11 // pred_fallthru
        _
      // Predicated region
      $region21: #{pointnet2_msg_forward.10} parent=11 // pred_check
        %p212 = pneg %p102
      $region22: #{pointnet2_msg_forward.10} parent=11 // pred_check_branch
        %214 = sbr.rel (%p212) target = $region24
      $region23: #{pointnet2_msg_forward.10} parent=11 // pred_region
        _
      $region24: #{pointnet2_msg_forward.10} parent=11 // pred_fallthru
        _
      // Predicated region
      $region25: #{pointnet2_msg_forward.10} parent=11 // pred_check
        %p215 = pneg %p123
      $region26: #{pointnet2_msg_forward.10} parent=11 // pred_check_branch
        %217 = sbr.rel (%p215) target = $region28
      $region27: #{pointnet2_msg_forward.10} parent=11 // pred_region
        _
      $region28: #{pointnet2_msg_forward.10} parent=11 // pred_fallthru
        _
      // Predicated region
      $region29: #{pointnet2_msg_forward.10} parent=11 // pred_check
        %p218 = pneg %p144
      $region30: #{pointnet2_msg_forward.10} parent=11 // pred_check_branch
        %220 = sbr.rel (%p218) target = $region32
      $region31: #{pointnet2_msg_forward.10} parent=11 // pred_region
        _
      $region32: #{pointnet2_msg_forward.10} parent=11 // pred_fallthru
        _
      // Predicated region
      $region33: #{pointnet2_msg_forward.10} parent=11 // pred_check
        %p221 = pneg %p165
      $region34: #{pointnet2_msg_forward.10} parent=11 // pred_check_branch
        %223 = sbr.rel (%p221) target = $region36
      $region35: #{pointnet2_msg_forward.10} parent=11 // pred_region
        _
      $region36: #{pointnet2_msg_forward.10} parent=11 // pred_fallthru
        _
    $region12: #{pointnet2_msg_forward.10} parent=5 // pred_fallthru
      _
    %p224 = scmp.lt.s32.totalorder %s13, 2
    // Predicated region
    $region37: #{pointnet2_msg_forward.10} parent=5 // pred_check
      %p225 = pneg %p224
    $region38: #{pointnet2_msg_forward.10} parent=5 // pred_check_branch
      %227 = sbr.rel (%p225) target = $region40
    $region39: #{pointnet2_msg_forward.10} parent=5 // pred_region
      // Predicated region
      $region41: #{pointnet2_msg_forward.10} parent=39 // pred_check
        %p228 = pneg %p33
      $region42: #{pointnet2_msg_forward.10} parent=39 // pred_check_branch
        %230 = sbr.rel (%p228) target = $region44
      $region43: #{pointnet2_msg_forward.10} parent=39 // pred_region
        %s231 = smul.u32 32, %s13
        %p232 = scmp.lt.s32.totalorder %s231, 63
        %s233 = scalar_select %p232, %s231, 63
        %s234 = smul.addr %s233, 2
        %s235 = smul.addr %s234, 4
        %s236 = scalar_lea.vmem %s0, %s235
        %s237 = smul.u32 32, %s13
      $region44: #{pointnet2_msg_forward.10} parent=39 // pred_fallthru
        _
    $region40: #{pointnet2_msg_forward.10} parent=5 // pred_fallthru
      _
    %p238 = scmp.le.s32.totalorder 1, %s13
    %p239 = scmp.lt.s32.totalorder %s13, 3
    %p240 = pnand %p238, %p239
    %p241 = pneg %p240
    // Predicated region
    $region45: #{pointnet2_msg_forward.10} parent=5 // pred_check
      _
    $region46: #{pointnet2_msg_forward.10} parent=5 // pred_check_branch
      %243 = sbr.rel (%p240) target = $region48
    $region47: #{pointnet2_msg_forward.10} parent=5 // pred_region
      %s244 = ssub.s32 %s13, 1
      %s245 = smul.u32 32, %s18
      %p246 = scmp.lt.s32.totalorder %s245, 63
      %s247 = scalar_select %p246, %s245, 63
      %s248 = smul.addr %s247, 2
      %s249 = smul.addr %s248, 4
      %s250 = scalar_lea.vmem %s0, %s249
      %p251 = pneg %p39
      %p252 = pneg %p36
      %p253 = pneg %p60
      %p254 = pneg %p57
      %p255 = pneg %p81
      %p256 = pneg %p78
      %p257 = pneg %p102
      %p258 = pneg %p99
      %p259 = pneg %p123
      %p260 = pneg %p120
      %p261 = pneg %p144
      %p262 = pneg %p141
      %p263 = pneg %p165
      %p264 = pneg %p162
      %p265 = pneg %p191
      %p266 = pneg %p188
      %s267 = smul.u32 4, %s18
      %p268 = scmp.lt.s32.totalorder %s267, 7
      %s269 = scalar_select %p268, %s267, 7
      %s270 = smul.addr %s269, 8
      %s271 = scalar_lea.vmem %s7, %s270
      %s272 = smul.u32 32, %s18
      %p273 = scmp.lt.s32.totalorder %s272, 63
      %s274 = scalar_select %p273, %s272, 63
      %s275 = smul.addr %s274, 2
      %s276 = smul.addr %s275, 4
      %s277 = scalar_lea.vmem %s0, %s276
      %s278 = smul.u32 32, %s18
      %s279 = smul.u32 4, %s18
      %p280 = scmp.lt.s32.totalorder %s279, 7
      %s281 = scalar_select %p280, %s279, 7
      %s282 = smul.addr %s281, 8
      %s283 = scalar_lea.vmem %s7, %s282
      %s284 = smul.u32 4, %s18
      %v286 = vld [vmem:[%s277] sm:$0xf]
      %v287 = vld [vmem:[%s277 + $0x4] sm:$0xf]
      %v288 = vld [vmem:[%s277 + $0x8] sm:$0xf]
      %v289 = vld [vmem:[%s277 + $0xc] sm:$0xf]
      %v290 = vld [vmem:[%s277 + $0x10] sm:$0xf]
      %v291 = vld [vmem:[%s277 + $0x14] sm:$0xf]
      %v292 = vld [vmem:[%s277 + $0x18] sm:$0xf]
      %v293 = vld [vmem:[%s277 + $0x1c] sm:$0xf]
      %v294 = vld [vmem:[%s277 + $0x20] sm:$0xf]
      %v295 = vld [vmem:[%s277 + $0x24] sm:$0xf]
      %v296 = vld [vmem:[%s277 + $0x28] sm:$0xf]
      %v297 = vld [vmem:[%s277 + $0x2c] sm:$0xf]
      %v298 = vld [vmem:[%s277 + $0x30] sm:$0xf]
      %v299 = vld [vmem:[%s277 + $0x34] sm:$0xf]
      %v300 = vld [vmem:[%s277 + $0x38] sm:$0xf]
      %v301 = vld [vmem:[%s277 + $0x3c] sm:$0xf]
      %v302 = vld [vmem:[%s277 + $0x40] sm:$0xf]
      %v303 = vld [vmem:[%s277 + $0x44] sm:$0xf]
      %v304 = vld [vmem:[%s277 + $0x48] sm:$0xf]
      %v305 = vld [vmem:[%s277 + $0x4c] sm:$0xf]
      %v306 = vld [vmem:[%s277 + $0x50] sm:$0xf]
      %v307 = vld [vmem:[%s277 + $0x54] sm:$0xf]
      %v308 = vld [vmem:[%s277 + $0x58] sm:$0xf]
      %v309 = vld [vmem:[%s277 + $0x5c] sm:$0xf]
      %v310 = vld [vmem:[%s277 + $0x60] sm:$0xf]
      %v311 = vld [vmem:[%s277 + $0x64] sm:$0xf]
      %v312 = vld [vmem:[%s277 + $0x68] sm:$0xf]
      %v313 = vld [vmem:[%s277 + $0x6c] sm:$0xf]
      %v314 = vld [vmem:[%s277 + $0x70] sm:$0xf]
      %v315 = vld [vmem:[%s277 + $0x74] sm:$0xf]
      %v316 = vld [vmem:[%s277 + $0x78] sm:$0xf]
      %v317 = vld [vmem:[%s277 + $0x7c] sm:$0xf]
      %v318 = vld [vmem:[%s277 + $0x80] sm:$0xf]
      %v319 = vld [vmem:[%s277 + $0x84] sm:$0xf]
      %v320 = vld [vmem:[%s277 + $0x88] sm:$0xf]
      %v321 = vld [vmem:[%s277 + $0x8c] sm:$0xf]
      %v322 = vld [vmem:[%s277 + $0x90] sm:$0xf]
      %v323 = vld [vmem:[%s277 + $0x94] sm:$0xf]
      %v324 = vld [vmem:[%s277 + $0x98] sm:$0xf]
      %v325 = vld [vmem:[%s277 + $0x9c] sm:$0xf]
      %v326 = vld [vmem:[%s277 + $0xa0] sm:$0xf]
      %v327 = vld [vmem:[%s277 + $0xa4] sm:$0xf]
      %v328 = vld [vmem:[%s277 + $0xa8] sm:$0xf]
      %v329 = vld [vmem:[%s277 + $0xac] sm:$0xf]
      %v330 = vld [vmem:[%s277 + $0xb0] sm:$0xf]
      %v331 = vld [vmem:[%s277 + $0xb4] sm:$0xf]
      %v332 = vld [vmem:[%s277 + $0xb8] sm:$0xf]
      %v333 = vld [vmem:[%s277 + $0xbc] sm:$0xf]
      %v334 = vld [vmem:[%s277 + $0xc0] sm:$0xf]
      %v335 = vld [vmem:[%s277 + $0xc4] sm:$0xf]
      %v336 = vld [vmem:[%s277 + $0xc8] sm:$0xf]
      %v337 = vld [vmem:[%s277 + $0xcc] sm:$0xf]
      %v338 = vld [vmem:[%s277 + $0xd0] sm:$0xf]
      %v339 = vld [vmem:[%s277 + $0xd4] sm:$0xf]
      %v340 = vld [vmem:[%s277 + $0xd8] sm:$0xf]
      %v341 = vld [vmem:[%s277 + $0xdc] sm:$0xf]
      %v342 = vld [vmem:[%s277 + $0xe0] sm:$0xf]
      %v343 = vld [vmem:[%s277 + $0xe4] sm:$0xf]
      %v344 = vld [vmem:[%s277 + $0xe8] sm:$0xf]
      %v345 = vld [vmem:[%s277 + $0xec] sm:$0xf]
      %v346 = vld [vmem:[%s277 + $0xf0] sm:$0xf]
      %v347 = vld [vmem:[%s277 + $0xf4] sm:$0xf]
      %v348 = vld [vmem:[%s277 + $0xf8] sm:$0xf]
      %v349 = vld [vmem:[%s277 + $0xfc] sm:$0xf]
      %v350 = vld [vmem:[%s1] sm:$0x7]
      %v351 = vld [vmem:[%s2] sm:$0x1]
      %v353 = vlaneseq
      %v354 = vshrl.u32 %v353, 7
      %v355 = vsub.s32 0, %v354
      %v356 = vrot.slane %v351, %v355
      %v422 = vunpack.c.l.b16 %v286
      %v423 = vunpack.c.l.b16 %v287
      %v424 = vunpack.c.l.b16 %v288
      %v425 = vunpack.c.l.b16 %v289
      %v426 = vunpack.c.l.b16 %v290
      %v427 = vunpack.c.l.b16 %v291
      %v428 = vunpack.c.l.b16 %v292
      %v429 = vunpack.c.l.b16 %v293
      %v430 = vunpack.c.l.b16 %v294
      %v431 = vunpack.c.l.b16 %v295
      %v432 = vunpack.c.l.b16 %v296
      %v433 = vunpack.c.l.b16 %v297
      %v434 = vunpack.c.l.b16 %v298
      %v435 = vunpack.c.l.b16 %v299
      %v436 = vunpack.c.l.b16 %v300
      %v437 = vunpack.c.l.b16 %v301
      %v438 = vunpack.c.l.b16 %v302
      %v439 = vunpack.c.l.b16 %v303
      %v440 = vunpack.c.l.b16 %v304
      %v441 = vunpack.c.l.b16 %v305
      %v442 = vunpack.c.l.b16 %v306
      %v443 = vunpack.c.l.b16 %v307
      %v444 = vunpack.c.l.b16 %v308
      %v445 = vunpack.c.l.b16 %v309
      %v446 = vunpack.c.l.b16 %v310
      %v447 = vunpack.c.l.b16 %v311
      %v448 = vunpack.c.l.b16 %v312
      %v449 = vunpack.c.l.b16 %v313
      %v450 = vunpack.c.l.b16 %v314
      %v451 = vunpack.c.l.b16 %v315
      %v452 = vunpack.c.l.b16 %v316
      %v453 = vunpack.c.l.b16 %v317
      %v454 = vunpack.c.l.b16 %v318
      %v455 = vunpack.c.l.b16 %v319
      %v456 = vunpack.c.l.b16 %v320
      %v457 = vunpack.c.l.b16 %v321
      %v458 = vunpack.c.l.b16 %v322
      %v459 = vunpack.c.l.b16 %v323
      %v460 = vunpack.c.l.b16 %v324
      %v461 = vunpack.c.l.b16 %v325
      %v462 = vunpack.c.l.b16 %v326
      %v463 = vunpack.c.l.b16 %v327
      %v464 = vunpack.c.l.b16 %v328
      %v465 = vunpack.c.l.b16 %v329
      %v466 = vunpack.c.l.b16 %v330
      %v467 = vunpack.c.l.b16 %v331
      %v468 = vunpack.c.l.b16 %v332
      %v469 = vunpack.c.l.b16 %v333
      %v470 = vunpack.c.l.b16 %v334
      %v471 = vunpack.c.l.b16 %v335
      %v472 = vunpack.c.l.b16 %v336
      %v473 = vunpack.c.l.b16 %v337
      %v474 = vunpack.c.l.b16 %v338
      %v475 = vunpack.c.l.b16 %v339
      %v476 = vunpack.c.l.b16 %v340
      %v477 = vunpack.c.l.b16 %v341
      %v478 = vunpack.c.l.b16 %v342
      %v479 = vunpack.c.l.b16 %v343
      %v480 = vunpack.c.l.b16 %v344
      %v481 = vunpack.c.l.b16 %v345
      %v482 = vunpack.c.l.b16 %v346
      %v483 = vunpack.c.l.b16 %v347
      %v484 = vunpack.c.l.b16 %v348
      %v485 = vunpack.c.l.b16 %v349
      %v486 = vpack.c.b16 %v423, %v422
      %v487 = vpack.c.b16 %v425, %v424
      %v488 = vpack.c.b16 %v427, %v426
      %v489 = vpack.c.b16 %v429, %v428
      %v490 = vpack.c.b16 %v431, %v430
      %v491 = vpack.c.b16 %v433, %v432
      %v492 = vpack.c.b16 %v435, %v434
      %v493 = vpack.c.b16 %v437, %v436
      %v494 = vpack.c.b16 %v439, %v438
      %v495 = vpack.c.b16 %v441, %v440
      %v496 = vpack.c.b16 %v443, %v442
      %v497 = vpack.c.b16 %v445, %v444
      %v498 = vpack.c.b16 %v447, %v446
      %v499 = vpack.c.b16 %v449, %v448
      %v500 = vpack.c.b16 %v451, %v450
      %v501 = vpack.c.b16 %v453, %v452
      %v502 = vpack.c.b16 %v455, %v454
      %v503 = vpack.c.b16 %v457, %v456
      %v504 = vpack.c.b16 %v459, %v458
      %v505 = vpack.c.b16 %v461, %v460
      %v506 = vpack.c.b16 %v463, %v462
      %v507 = vpack.c.b16 %v465, %v464
      %v508 = vpack.c.b16 %v467, %v466
      %v509 = vpack.c.b16 %v469, %v468
      %v510 = vpack.c.b16 %v471, %v470
      %v511 = vpack.c.b16 %v473, %v472
      %v512 = vpack.c.b16 %v475, %v474
      %v513 = vpack.c.b16 %v477, %v476
      %v514 = vpack.c.b16 %v479, %v478
      %v515 = vpack.c.b16 %v481, %v480
      %v516 = vpack.c.b16 %v483, %v482
      %v517 = vpack.c.b16 %v485, %v484
      %vm518 = vcmask 48128
      %v520 = vsel %vm518, %v486, 0
      %v523 = vsel %vm518, %v487, 0
      %v526 = vsel %vm518, %v488, 0
      %v529 = vsel %vm518, %v489, 0
      %v532 = vsel %vm518, %v490, 0
      %v535 = vsel %vm518, %v491, 0
      %v538 = vsel %vm518, %v492, 0
      %v541 = vsel %vm518, %v493, 0
      %v544 = vsel %vm518, %v494, 0
      %v547 = vsel %vm518, %v495, 0
      %v550 = vsel %vm518, %v496, 0
      %v553 = vsel %vm518, %v497, 0
      %v556 = vsel %vm518, %v498, 0
      %v559 = vsel %vm518, %v499, 0
      %v562 = vsel %vm518, %v500, 0
      %v565 = vsel %vm518, %v501, 0
      %v568 = vsel %vm518, %v502, 0
      %v571 = vsel %vm518, %v503, 0
      %v574 = vsel %vm518, %v504, 0
      %v577 = vsel %vm518, %v505, 0
      %v580 = vsel %vm518, %v506, 0
      %v583 = vsel %vm518, %v507, 0
      %v586 = vsel %vm518, %v508, 0
      %v589 = vsel %vm518, %v509, 0
      %v592 = vsel %vm518, %v510, 0
      %v595 = vsel %vm518, %v511, 0
      %v598 = vsel %vm518, %v512, 0
      %v601 = vsel %vm518, %v513, 0
      %v604 = vsel %vm518, %v514, 0
      %v607 = vsel %vm518, %v515, 0
      %v610 = vsel %vm518, %v516, 0
      %v613 = vsel %vm518, %v517, 0
      %vm615 = vcmask 1042432
      %v617 = vsel %vm615, %v350, 0
      %619 = vmatprep.subr.bf16.mxu0 0
      %620 = vmatpush1.bf16.msra.mxu0 0
      %621 = vmatprep.subr.bf16.mxu0 0
      %622 = vmatpush1.bf16.msra.mxu0 0
      %623 = vmatprep.subr.bf16.mxu0 0
      %624 = vmatpush1.bf16.msra.mxu0 0
      %625 = vmatprep.subr.bf16.mxu0 0
      %626 = vmatpush1.bf16.msra.mxu0 0
      %627 = vmatprep.subr.bf16.mxu0 0
      %628 = vmatpush1.bf16.msra.mxu0 0
      %629 = vmatprep.subr.bf16.mxu0 0
      %630 = vmatpush1.bf16.msra.mxu0 0
      %631 = vmatprep.subr.bf16.mxu0 0
      %632 = vmatpush1.bf16.msra.mxu0 0
      %633 = vmatprep.subr.bf16.mxu0 0
      %634 = vmatpush1.bf16.msra.mxu0 %v617
      %635 = vmatprep.subr.bf16.mxu0 0
      %636 = vmatpush2.bf16.msra.mxu0 0
      %637 = vmatprep.subr.bf16.mxu0 0
      %638 = vmatpush2.bf16.msra.mxu0 0
      %639 = vmatprep.subr.bf16.mxu0 0
      %640 = vmatpush2.bf16.msra.mxu0 0
      %641 = vmatprep.subr.bf16.mxu0 0
      %642 = vmatpush2.bf16.msra.mxu0 0
      %643 = vmatprep.subr.bf16.mxu0 0
      %644 = vmatpush2.bf16.msra.mxu0 0
      %645 = vmatprep.subr.bf16.mxu0 0
      %646 = vmatpush2.bf16.msra.mxu0 0
      %647 = vmatprep.subr.bf16.mxu0 0
      %648 = vmatpush2.bf16.msra.mxu0 0
      %649 = vmatprep.subr.bf16.mxu0 0
      %650 = vmatpush2.bf16.msra.mxu0 0
      %651 = vmatprep.mubr.bf16.mxu0 0
      %652 = vmatmul.mubr.bf16.gmra.mxu0 %v520
      %v653 = vpop.f32.mrf.mxu0
      %v654 = vadd.f32 %v356, %v653
      %v655 = vpop.f32.mrf.mxu0
      %v656 = vpop.f32.mrf.mxu0
      %v657 = vadd.f32 %v356, %v656
      %v658 = vpop.f32.mrf.mxu0
      %659 = vmatprep.mubr.bf16.mxu0 0
      %660 = vmatmul.mubr.bf16.gmra.mxu0 %v523
      %v661 = vpop.f32.mrf.mxu0
      %v662 = vadd.f32 %v356, %v661
      %v663 = vpop.f32.mrf.mxu0
      %v664 = vpop.f32.mrf.mxu0
      %v665 = vadd.f32 %v356, %v664
      %v666 = vpop.f32.mrf.mxu0
      %667 = vmatprep.mubr.bf16.mxu0 0
      %668 = vmatmul.mubr.bf16.gmra.mxu0 %v526
      %v669 = vpop.f32.mrf.mxu0
      %v670 = vadd.f32 %v356, %v669
      %v671 = vpop.f32.mrf.mxu0
      %v672 = vpop.f32.mrf.mxu0
      %v673 = vadd.f32 %v356, %v672
      %v674 = vpop.f32.mrf.mxu0
      %675 = vmatprep.mubr.bf16.mxu0 0
      %676 = vmatmul.mubr.bf16.gmra.mxu0 %v529
      %v677 = vpop.f32.mrf.mxu0
      %v678 = vadd.f32 %v356, %v677
      %v679 = vpop.f32.mrf.mxu0
      %v680 = vpop.f32.mrf.mxu0
      %v681 = vadd.f32 %v356, %v680
      %v682 = vpop.f32.mrf.mxu0
      %683 = vmatprep.mubr.bf16.mxu0 0
      %684 = vmatmul.mubr.bf16.gmra.mxu0 %v532
      %v685 = vpop.f32.mrf.mxu0
      %v686 = vadd.f32 %v356, %v685
      %v687 = vpop.f32.mrf.mxu0
      %v688 = vpop.f32.mrf.mxu0
      %v689 = vadd.f32 %v356, %v688
      %v690 = vpop.f32.mrf.mxu0
      %691 = vmatprep.mubr.bf16.mxu0 0
      %692 = vmatmul.mubr.bf16.gmra.mxu0 %v535
      %v693 = vpop.f32.mrf.mxu0
      %v694 = vadd.f32 %v356, %v693
      %v695 = vpop.f32.mrf.mxu0
      %v696 = vpop.f32.mrf.mxu0
      %v697 = vadd.f32 %v356, %v696
      %v698 = vpop.f32.mrf.mxu0
      %699 = vmatprep.mubr.bf16.mxu0 0
      %700 = vmatmul.mubr.bf16.gmra.mxu0 %v538
      %v701 = vpop.f32.mrf.mxu0
      %v702 = vadd.f32 %v356, %v701
      %v703 = vpop.f32.mrf.mxu0
      %v704 = vpop.f32.mrf.mxu0
      %v705 = vadd.f32 %v356, %v704
      %v706 = vpop.f32.mrf.mxu0
      %707 = vmatprep.mubr.bf16.mxu0 0
      %708 = vmatmul.mubr.bf16.gmra.mxu0 %v541
      %v709 = vpop.f32.mrf.mxu0
      %v710 = vadd.f32 %v356, %v709
      %v711 = vpop.f32.mrf.mxu0
      %v712 = vpop.f32.mrf.mxu0
      %v713 = vadd.f32 %v356, %v712
      %v714 = vpop.f32.mrf.mxu0
      %715 = vmatprep.mubr.bf16.mxu0 0
      %716 = vmatmul.mubr.bf16.gmra.mxu0 %v544
      %v717 = vpop.f32.mrf.mxu0
      %v718 = vadd.f32 %v356, %v717
      %v719 = vpop.f32.mrf.mxu0
      %v720 = vpop.f32.mrf.mxu0
      %v721 = vadd.f32 %v356, %v720
      %v722 = vpop.f32.mrf.mxu0
      %723 = vmatprep.mubr.bf16.mxu0 0
      %724 = vmatmul.mubr.bf16.gmra.mxu0 %v547
      %v725 = vpop.f32.mrf.mxu0
      %v726 = vadd.f32 %v356, %v725
      %v727 = vpop.f32.mrf.mxu0
      %v728 = vpop.f32.mrf.mxu0
      %v729 = vadd.f32 %v356, %v728
      %v730 = vpop.f32.mrf.mxu0
      %731 = vmatprep.mubr.bf16.mxu0 0
      %732 = vmatmul.mubr.bf16.gmra.mxu0 %v550
      %v733 = vpop.f32.mrf.mxu0
      %v734 = vadd.f32 %v356, %v733
      %v735 = vpop.f32.mrf.mxu0
      %v736 = vpop.f32.mrf.mxu0
      %v737 = vadd.f32 %v356, %v736
      %v738 = vpop.f32.mrf.mxu0
      %739 = vmatprep.mubr.bf16.mxu0 0
      %740 = vmatmul.mubr.bf16.gmra.mxu0 %v553
      %v741 = vpop.f32.mrf.mxu0
      %v742 = vadd.f32 %v356, %v741
      %v743 = vpop.f32.mrf.mxu0
      %v744 = vpop.f32.mrf.mxu0
      %v745 = vadd.f32 %v356, %v744
      %v746 = vpop.f32.mrf.mxu0
      %747 = vmatprep.mubr.bf16.mxu0 0
      %748 = vmatmul.mubr.bf16.gmra.mxu0 %v556
      %v749 = vpop.f32.mrf.mxu0
      %v750 = vadd.f32 %v356, %v749
      %v751 = vpop.f32.mrf.mxu0
      %v752 = vpop.f32.mrf.mxu0
      %v753 = vadd.f32 %v356, %v752
      %v754 = vpop.f32.mrf.mxu0
      %755 = vmatprep.mubr.bf16.mxu0 0
      %756 = vmatmul.mubr.bf16.gmra.mxu0 %v559
      %v757 = vpop.f32.mrf.mxu0
      %v758 = vadd.f32 %v356, %v757
      %v759 = vpop.f32.mrf.mxu0
      %v760 = vpop.f32.mrf.mxu0
      %v761 = vadd.f32 %v356, %v760
      %v762 = vpop.f32.mrf.mxu0
      %763 = vmatprep.mubr.bf16.mxu0 0
      %764 = vmatmul.mubr.bf16.gmra.mxu0 %v562
      %v765 = vpop.f32.mrf.mxu0
      %v766 = vadd.f32 %v356, %v765
      %v767 = vpop.f32.mrf.mxu0
      %v768 = vpop.f32.mrf.mxu0
      %v769 = vadd.f32 %v356, %v768
      %v770 = vpop.f32.mrf.mxu0
      %771 = vmatprep.mubr.bf16.mxu0 0
      %772 = vmatmul.mubr.bf16.gmra.mxu0 %v565
      %v773 = vpop.f32.mrf.mxu0
      %v774 = vadd.f32 %v356, %v773
      %v775 = vpop.f32.mrf.mxu0
      %v776 = vpop.f32.mrf.mxu0
      %v777 = vadd.f32 %v356, %v776
      %v778 = vpop.f32.mrf.mxu0
      %779 = vmatprep.mubr.bf16.mxu0 0
      %780 = vmatmul.mubr.bf16.gmra.mxu0 %v568
      %v781 = vpop.f32.mrf.mxu0
      %v782 = vadd.f32 %v356, %v781
      %v783 = vpop.f32.mrf.mxu0
      %v784 = vpop.f32.mrf.mxu0
      %v785 = vadd.f32 %v356, %v784
      %v786 = vpop.f32.mrf.mxu0
      %787 = vmatprep.mubr.bf16.mxu0 0
      %788 = vmatmul.mubr.bf16.gmra.mxu0 %v571
      %v789 = vpop.f32.mrf.mxu0
      %v790 = vadd.f32 %v356, %v789
      %v791 = vpop.f32.mrf.mxu0
      %v792 = vpop.f32.mrf.mxu0
      %v793 = vadd.f32 %v356, %v792
      %v794 = vpop.f32.mrf.mxu0
      %795 = vmatprep.mubr.bf16.mxu0 0
      %796 = vmatmul.mubr.bf16.gmra.mxu0 %v574
      %v797 = vpop.f32.mrf.mxu0
      %v798 = vadd.f32 %v356, %v797
      %v799 = vpop.f32.mrf.mxu0
      %v800 = vpop.f32.mrf.mxu0
      %v801 = vadd.f32 %v356, %v800
      %v802 = vpop.f32.mrf.mxu0
      %803 = vmatprep.mubr.bf16.mxu0 0
      %804 = vmatmul.mubr.bf16.gmra.mxu0 %v577
      %v805 = vpop.f32.mrf.mxu0
      %v806 = vadd.f32 %v356, %v805
      %v807 = vpop.f32.mrf.mxu0
      %v808 = vpop.f32.mrf.mxu0
      %v809 = vadd.f32 %v356, %v808
      %v810 = vpop.f32.mrf.mxu0
      %811 = vmatprep.mubr.bf16.mxu0 0
      %812 = vmatmul.mubr.bf16.gmra.mxu0 %v580
      %v813 = vpop.f32.mrf.mxu0
      %v814 = vadd.f32 %v356, %v813
      %v815 = vpop.f32.mrf.mxu0
      %v816 = vpop.f32.mrf.mxu0
      %v817 = vadd.f32 %v356, %v816
      %v818 = vpop.f32.mrf.mxu0
      %819 = vmatprep.mubr.bf16.mxu0 0
      %820 = vmatmul.mubr.bf16.gmra.mxu0 %v583
      %v821 = vpop.f32.mrf.mxu0
      %v822 = vadd.f32 %v356, %v821
      %v823 = vpop.f32.mrf.mxu0
      %v824 = vpop.f32.mrf.mxu0
      %v825 = vadd.f32 %v356, %v824
      %v826 = vpop.f32.mrf.mxu0
      %827 = vmatprep.mubr.bf16.mxu0 0
      %828 = vmatmul.mubr.bf16.gmra.mxu0 %v586
      %v829 = vpop.f32.mrf.mxu0
      %v830 = vadd.f32 %v356, %v829
      %v831 = vpop.f32.mrf.mxu0
      %v832 = vpop.f32.mrf.mxu0
      %v833 = vadd.f32 %v356, %v832
      %v834 = vpop.f32.mrf.mxu0
      %835 = vmatprep.mubr.bf16.mxu0 0
      %836 = vmatmul.mubr.bf16.gmra.mxu0 %v589
      %v837 = vpop.f32.mrf.mxu0
      %v838 = vadd.f32 %v356, %v837
      %v839 = vpop.f32.mrf.mxu0
      %v840 = vpop.f32.mrf.mxu0
      %v841 = vadd.f32 %v356, %v840
      %v842 = vpop.f32.mrf.mxu0
      %843 = vmatprep.mubr.bf16.mxu0 0
      %844 = vmatmul.mubr.bf16.gmra.mxu0 %v592
      %v845 = vpop.f32.mrf.mxu0
      %v846 = vadd.f32 %v356, %v845
      %v847 = vpop.f32.mrf.mxu0
      %v848 = vpop.f32.mrf.mxu0
      %v849 = vadd.f32 %v356, %v848
      %v850 = vpop.f32.mrf.mxu0
      %851 = vmatprep.mubr.bf16.mxu0 0
      %852 = vmatmul.mubr.bf16.gmra.mxu0 %v595
      %v853 = vpop.f32.mrf.mxu0
      %v854 = vadd.f32 %v356, %v853
      %v855 = vpop.f32.mrf.mxu0
      %v856 = vpop.f32.mrf.mxu0
      %v857 = vadd.f32 %v356, %v856
      %v858 = vpop.f32.mrf.mxu0
      %859 = vmatprep.mubr.bf16.mxu0 0
      %860 = vmatmul.mubr.bf16.gmra.mxu0 %v598
      %v861 = vpop.f32.mrf.mxu0
      %v862 = vadd.f32 %v356, %v861
      %v863 = vpop.f32.mrf.mxu0
      %v864 = vpop.f32.mrf.mxu0
      %v865 = vadd.f32 %v356, %v864
      %v866 = vpop.f32.mrf.mxu0
      %867 = vmatprep.mubr.bf16.mxu0 0
      %868 = vmatmul.mubr.bf16.gmra.mxu0 %v601
      %v869 = vpop.f32.mrf.mxu0
      %v870 = vadd.f32 %v356, %v869
      %v871 = vpop.f32.mrf.mxu0
      %v872 = vpop.f32.mrf.mxu0
      %v873 = vadd.f32 %v356, %v872
      %v874 = vpop.f32.mrf.mxu0
      %875 = vmatprep.mubr.bf16.mxu0 0
      %876 = vmatmul.mubr.bf16.gmra.mxu0 %v604
      %v877 = vpop.f32.mrf.mxu0
      %v878 = vadd.f32 %v356, %v877
      %v879 = vpop.f32.mrf.mxu0
      %v880 = vpop.f32.mrf.mxu0
      %v881 = vadd.f32 %v356, %v880
      %v882 = vpop.f32.mrf.mxu0
      %883 = vmatprep.mubr.bf16.mxu0 0
      %884 = vmatmul.mubr.bf16.gmra.mxu0 %v607
      %v885 = vpop.f32.mrf.mxu0
      %v886 = vadd.f32 %v356, %v885
      %v887 = vpop.f32.mrf.mxu0
      %v888 = vpop.f32.mrf.mxu0
      %v889 = vadd.f32 %v356, %v888
      %v890 = vpop.f32.mrf.mxu0
      %891 = vmatprep.mubr.bf16.mxu0 0
      %892 = vmatmul.mubr.bf16.gmra.mxu0 %v610
      %v893 = vpop.f32.mrf.mxu0
      %v894 = vadd.f32 %v356, %v893
      %v895 = vpop.f32.mrf.mxu0
      %v896 = vpop.f32.mrf.mxu0
      %v897 = vadd.f32 %v356, %v896
      %v898 = vpop.f32.mrf.mxu0
      %899 = vmatprep.mubr.bf16.mxu0 0
      %900 = vmatmul.mubr.bf16.gmra.mxu0 %v613
      %v901 = vpop.f32.mrf.mxu0
      %v902 = vadd.f32 %v356, %v901
      %v903 = vpop.f32.mrf.mxu0
      %v904 = vpop.f32.mrf.mxu0
      %v905 = vadd.f32 %v356, %v904
      %v906 = vpop.f32.mrf.mxu0
      %907 = vdwg.mxu0
      %v908 = vmax.f32 %v654, 0.0
      %v909 = vmax.f32 %v657, 0.0
      %v910 = vmax.f32 %v662, 0.0
      %v911 = vmax.f32 %v665, 0.0
      %v912 = vmax.f32 %v670, 0.0
      %v913 = vmax.f32 %v673, 0.0
      %v914 = vmax.f32 %v678, 0.0
      %v915 = vmax.f32 %v681, 0.0
      %v916 = vmax.f32 %v686, 0.0
      %v917 = vmax.f32 %v689, 0.0
      %v918 = vmax.f32 %v694, 0.0
      %v919 = vmax.f32 %v697, 0.0
      %v920 = vmax.f32 %v702, 0.0
      %v921 = vmax.f32 %v705, 0.0
      %v922 = vmax.f32 %v710, 0.0
      %v923 = vmax.f32 %v713, 0.0
      %v924 = vmax.f32 %v718, 0.0
      %v925 = vmax.f32 %v721, 0.0
      %v926 = vmax.f32 %v726, 0.0
      %v927 = vmax.f32 %v729, 0.0
      %v928 = vmax.f32 %v734, 0.0
      %v929 = vmax.f32 %v737, 0.0
      %v930 = vmax.f32 %v742, 0.0
      %v931 = vmax.f32 %v745, 0.0
      %v932 = vmax.f32 %v750, 0.0
      %v933 = vmax.f32 %v753, 0.0
      %v934 = vmax.f32 %v758, 0.0
      %v935 = vmax.f32 %v761, 0.0
      %v936 = vmax.f32 %v766, 0.0
      %v937 = vmax.f32 %v769, 0.0
      %v938 = vmax.f32 %v774, 0.0
      %v939 = vmax.f32 %v777, 0.0
      %v940 = vmax.f32 %v782, 0.0
      %v941 = vmax.f32 %v785, 0.0
      %v942 = vmax.f32 %v790, 0.0
      %v943 = vmax.f32 %v793, 0.0
      %v944 = vmax.f32 %v798, 0.0
      %v945 = vmax.f32 %v801, 0.0
      %v946 = vmax.f32 %v806, 0.0
      %v947 = vmax.f32 %v809, 0.0
      %v948 = vmax.f32 %v814, 0.0
      %v949 = vmax.f32 %v817, 0.0
      %v950 = vmax.f32 %v822, 0.0
      %v951 = vmax.f32 %v825, 0.0
      %v952 = vmax.f32 %v830, 0.0
      %v953 = vmax.f32 %v833, 0.0
      %v954 = vmax.f32 %v838, 0.0
      %v955 = vmax.f32 %v841, 0.0
      %v956 = vmax.f32 %v846, 0.0
      %v957 = vmax.f32 %v849, 0.0
      %v958 = vmax.f32 %v854, 0.0
      %v959 = vmax.f32 %v857, 0.0
      %v960 = vmax.f32 %v862, 0.0
      %v961 = vmax.f32 %v865, 0.0
      %v962 = vmax.f32 %v870, 0.0
      %v963 = vmax.f32 %v873, 0.0
      %v964 = vmax.f32 %v878, 0.0
      %v965 = vmax.f32 %v881, 0.0
      %v966 = vmax.f32 %v886, 0.0
      %v967 = vmax.f32 %v889, 0.0
      %v968 = vmax.f32 %v894, 0.0
      %v969 = vmax.f32 %v897, 0.0
      %v970 = vmax.f32 %v902, 0.0
      %v971 = vmax.f32 %v905, 0.0
      %v972 = vld [vmem:[%s3] sm:$0xf]
      %v973 = vld [vmem:[%s3 + $0x4] sm:$0xf]
      %v974 = vld [vmem:[%s3 + $0x8] sm:$0xf]
      %v975 = vld [vmem:[%s3 + $0xc] sm:$0xf]
      %v976 = vld [vmem:[%s3 + $0x10] sm:$0xf]
      %v977 = vld [vmem:[%s3 + $0x14] sm:$0xf]
      %v978 = vld [vmem:[%s3 + $0x18] sm:$0xf]
      %v979 = vld [vmem:[%s3 + $0x1c] sm:$0xf]
      %v980 = vld [vmem:[%s3 + $0x20] sm:$0xf]
      %v981 = vld [vmem:[%s3 + $0x24] sm:$0xf]
      %v982 = vld [vmem:[%s3 + $0x28] sm:$0xf]
      %v983 = vld [vmem:[%s3 + $0x2c] sm:$0xf]
      %v984 = vld [vmem:[%s3 + $0x30] sm:$0xf]
      %v985 = vld [vmem:[%s3 + $0x34] sm:$0xf]
      %v986 = vld [vmem:[%s3 + $0x38] sm:$0xf]
      %v987 = vld [vmem:[%s3 + $0x3c] sm:$0xf]
      %v988 = vld [vmem:[%s4] sm:$0x1]
      %v989 = vpack.c.bf16 %v909, %v908
      %v990 = vpack.c.bf16 %v911, %v910
      %v991 = vpack.c.bf16 %v913, %v912
      %v992 = vpack.c.bf16 %v915, %v914
      %v993 = vpack.c.bf16 %v917, %v916
      %v994 = vpack.c.bf16 %v919, %v918
      %v995 = vpack.c.bf16 %v921, %v920
      %v996 = vpack.c.bf16 %v923, %v922
      %v997 = vpack.c.bf16 %v925, %v924
      %v998 = vpack.c.bf16 %v927, %v926
      %v999 = vpack.c.bf16 %v929, %v928
      %v1000 = vpack.c.bf16 %v931, %v930
      %v1001 = vpack.c.bf16 %v933, %v932
      %v1002 = vpack.c.bf16 %v935, %v934
      %v1003 = vpack.c.bf16 %v937, %v936
      %v1004 = vpack.c.bf16 %v939, %v938
      %v1005 = vpack.c.bf16 %v941, %v940
      %v1006 = vpack.c.bf16 %v943, %v942
      %v1007 = vpack.c.bf16 %v945, %v944
      %v1008 = vpack.c.bf16 %v947, %v946
      %v1009 = vpack.c.bf16 %v949, %v948
      %v1010 = vpack.c.bf16 %v951, %v950
      %v1011 = vpack.c.bf16 %v953, %v952
      %v1012 = vpack.c.bf16 %v955, %v954
      %v1013 = vpack.c.bf16 %v957, %v956
      %v1014 = vpack.c.bf16 %v959, %v958
      %v1015 = vpack.c.bf16 %v961, %v960
      %v1016 = vpack.c.bf16 %v963, %v962
      %v1017 = vpack.c.bf16 %v965, %v964
      %v1018 = vpack.c.bf16 %v967, %v966
      %v1019 = vpack.c.bf16 %v969, %v968
      %v1020 = vpack.c.bf16 %v971, %v970
      %v1022 = vlaneseq
      %v1023 = vshrl.u32 %v1022, 7
      %v1024 = vsub.s32 0, %v1023
      %v1025 = vrot.slane %v988, %v1024
      %v1043 = vunpack.c.l.b16 %v972
      %v1044 = vunpack.c.l.b16 %v973
      %v1045 = vunpack.c.l.b16 %v974
      %v1046 = vunpack.c.l.b16 %v975
      %v1047 = vunpack.c.l.b16 %v976
      %v1048 = vunpack.c.l.b16 %v977
      %v1049 = vunpack.c.l.b16 %v978
      %v1050 = vunpack.c.l.b16 %v979
      %v1051 = vunpack.c.l.b16 %v980
      %v1052 = vunpack.c.l.b16 %v981
      %v1053 = vunpack.c.l.b16 %v982
      %v1054 = vunpack.c.l.b16 %v983
      %v1055 = vunpack.c.l.b16 %v984
      %v1056 = vunpack.c.l.b16 %v985
      %v1057 = vunpack.c.l.b16 %v986
      %v1058 = vunpack.c.l.b16 %v987
      %v1059 = vpack.c.b16 %v1044, %v1043
      %v1060 = vpack.c.b16 %v1046, %v1045
      %v1061 = vpack.c.b16 %v1048, %v1047
      %v1062 = vpack.c.b16 %v1050, %v1049
      %v1063 = vpack.c.b16 %v1052, %v1051
      %v1064 = vpack.c.b16 %v1054, %v1053
      %v1065 = vpack.c.b16 %v1056, %v1055
      %v1066 = vpack.c.b16 %v1058, %v1057
      %1075 = vmatprep.subr.bf16.mxu0 0
      %1076 = vmatpush1.bf16.msra.mxu0 %v1066
      %1077 = vmatprep.subr.bf16.mxu0 0
      %1078 = vmatpush1.bf16.msra.mxu0 %v1065
      %1079 = vmatprep.subr.bf16.mxu0 0
      %1080 = vmatpush1.bf16.msra.mxu0 %v1064
      %1081 = vmatprep.subr.bf16.mxu0 0
      %1082 = vmatpush1.bf16.msra.mxu0 %v1063
      %1083 = vmatprep.subr.bf16.mxu0 0
      %1084 = vmatpush1.bf16.msra.mxu0 %v1062
      %1085 = vmatprep.subr.bf16.mxu0 0
      %1086 = vmatpush1.bf16.msra.mxu0 %v1061
      %1087 = vmatprep.subr.bf16.mxu0 0
      %1088 = vmatpush1.bf16.msra.mxu0 %v1060
      %1089 = vmatprep.subr.bf16.mxu0 0
      %1090 = vmatpush1.bf16.msra.mxu0 %v1059
      %1091 = vmatprep.subr.bf16.mxu0 0
      %1092 = vmatpush2.bf16.msra.mxu0 0
      %1093 = vmatprep.subr.bf16.mxu0 0
      %1094 = vmatpush2.bf16.msra.mxu0 0
      %1095 = vmatprep.subr.bf16.mxu0 0
      %1096 = vmatpush2.bf16.msra.mxu0 0
      %1097 = vmatprep.subr.bf16.mxu0 0
      %1098 = vmatpush2.bf16.msra.mxu0 0
      %1099 = vmatprep.subr.bf16.mxu0 0
      %1100 = vmatpush2.bf16.msra.mxu0 0
      %1101 = vmatprep.subr.bf16.mxu0 0
      %1102 = vmatpush2.bf16.msra.mxu0 0
      %1103 = vmatprep.subr.bf16.mxu0 0
      %1104 = vmatpush2.bf16.msra.mxu0 0
      %1105 = vmatprep.subr.bf16.mxu0 0
      %1106 = vmatpush2.bf16.msra.mxu0 0
      %1107 = vmatprep.mubr.bf16.mxu0 0
      %1108 = vmatmul.mubr.bf16.gmra.mxu0 %v989
      %v1109 = vpop.f32.mrf.mxu0
      %v1110 = vadd.f32 %v1025, %v1109
      %v1111 = vpop.f32.mrf.mxu0
      %v1112 = vpop.f32.mrf.mxu0
      %v1113 = vadd.f32 %v1025, %v1112
      %v1114 = vpop.f32.mrf.mxu0
      %1115 = vmatprep.mubr.bf16.mxu0 0
      %1116 = vmatmul.mubr.bf16.gmra.mxu0 %v990
      %v1117 = vpop.f32.mrf.mxu0
      %v1118 = vadd.f32 %v1025, %v1117
      %v1119 = vpop.f32.mrf.mxu0
      %v1120 = vpop.f32.mrf.mxu0
      %v1121 = vadd.f32 %v1025, %v1120
      %v1122 = vpop.f32.mrf.mxu0
      %1123 = vmatprep.mubr.bf16.mxu0 0
      %1124 = vmatmul.mubr.bf16.gmra.mxu0 %v991
      %v1125 = vpop.f32.mrf.mxu0
      %v1126 = vadd.f32 %v1025, %v1125
      %v1127 = vpop.f32.mrf.mxu0
      %v1128 = vpop.f32.mrf.mxu0
      %v1129 = vadd.f32 %v1025, %v1128
      %v1130 = vpop.f32.mrf.mxu0
      %1131 = vmatprep.mubr.bf16.mxu0 0
      %1132 = vmatmul.mubr.bf16.gmra.mxu0 %v992
      %v1133 = vpop.f32.mrf.mxu0
      %v1134 = vadd.f32 %v1025, %v1133
      %v1135 = vpop.f32.mrf.mxu0
      %v1136 = vpop.f32.mrf.mxu0
      %v1137 = vadd.f32 %v1025, %v1136
      %v1138 = vpop.f32.mrf.mxu0
      %1139 = vmatprep.mubr.bf16.mxu0 0
      %1140 = vmatmul.mubr.bf16.gmra.mxu0 %v993
      %v1141 = vpop.f32.mrf.mxu0
      %v1142 = vadd.f32 %v1025, %v1141
      %v1143 = vpop.f32.mrf.mxu0
      %v1144 = vpop.f32.mrf.mxu0
      %v1145 = vadd.f32 %v1025, %v1144
      %v1146 = vpop.f32.mrf.mxu0
      %1147 = vmatprep.mubr.bf16.mxu0 0
      %1148 = vmatmul.mubr.bf16.gmra.mxu0 %v994
      %v1149 = vpop.f32.mrf.mxu0
      %v1150 = vadd.f32 %v1025, %v1149
      %v1151 = vpop.f32.mrf.mxu0
      %v1152 = vpop.f32.mrf.mxu0
      %v1153 = vadd.f32 %v1025, %v1152
      %v1154 = vpop.f32.mrf.mxu0
      %1155 = vmatprep.mubr.bf16.mxu0 0
      %1156 = vmatmul.mubr.bf16.gmra.mxu0 %v995
      %v1157 = vpop.f32.mrf.mxu0
      %v1158 = vadd.f32 %v1025, %v1157
      %v1159 = vpop.f32.mrf.mxu0
      %v1160 = vpop.f32.mrf.mxu0
      %v1161 = vadd.f32 %v1025, %v1160
      %v1162 = vpop.f32.mrf.mxu0
      %1163 = vmatprep.mubr.bf16.mxu0 0
      %1164 = vmatmul.mubr.bf16.gmra.mxu0 %v996
      %v1165 = vpop.f32.mrf.mxu0
      %v1166 = vadd.f32 %v1025, %v1165
      %v1167 = vpop.f32.mrf.mxu0
      %v1168 = vpop.f32.mrf.mxu0
      %v1169 = vadd.f32 %v1025, %v1168
      %v1170 = vpop.f32.mrf.mxu0
      %1171 = vmatprep.mubr.bf16.mxu0 0
      %1172 = vmatmul.mubr.bf16.gmra.mxu0 %v997
      %v1173 = vpop.f32.mrf.mxu0
      %v1174 = vadd.f32 %v1025, %v1173
      %v1175 = vpop.f32.mrf.mxu0
      %v1176 = vpop.f32.mrf.mxu0
      %v1177 = vadd.f32 %v1025, %v1176
      %v1178 = vpop.f32.mrf.mxu0
      %1179 = vmatprep.mubr.bf16.mxu0 0
      %1180 = vmatmul.mubr.bf16.gmra.mxu0 %v998
      %v1181 = vpop.f32.mrf.mxu0
      %v1182 = vadd.f32 %v1025, %v1181
      %v1183 = vpop.f32.mrf.mxu0
      %v1184 = vpop.f32.mrf.mxu0
      %v1185 = vadd.f32 %v1025, %v1184
      %v1186 = vpop.f32.mrf.mxu0
      %1187 = vmatprep.mubr.bf16.mxu0 0
      %1188 = vmatmul.mubr.bf16.gmra.mxu0 %v999
      %v1189 = vpop.f32.mrf.mxu0
      %v1190 = vadd.f32 %v1025, %v1189
      %v1191 = vpop.f32.mrf.mxu0
      %v1192 = vpop.f32.mrf.mxu0
      %v1193 = vadd.f32 %v1025, %v1192
      %v1194 = vpop.f32.mrf.mxu0
      %1195 = vmatprep.mubr.bf16.mxu0 0
      %1196 = vmatmul.mubr.bf16.gmra.mxu0 %v1000
      %v1197 = vpop.f32.mrf.mxu0
      %v1198 = vadd.f32 %v1025, %v1197
      %v1199 = vpop.f32.mrf.mxu0
      %v1200 = vpop.f32.mrf.mxu0
      %v1201 = vadd.f32 %v1025, %v1200
      %v1202 = vpop.f32.mrf.mxu0
      %1203 = vmatprep.mubr.bf16.mxu0 0
      %1204 = vmatmul.mubr.bf16.gmra.mxu0 %v1001
      %v1205 = vpop.f32.mrf.mxu0
      %v1206 = vadd.f32 %v1025, %v1205
      %v1207 = vpop.f32.mrf.mxu0
      %v1208 = vpop.f32.mrf.mxu0
      %v1209 = vadd.f32 %v1025, %v1208
      %v1210 = vpop.f32.mrf.mxu0
      %1211 = vmatprep.mubr.bf16.mxu0 0
      %1212 = vmatmul.mubr.bf16.gmra.mxu0 %v1002
      %v1213 = vpop.f32.mrf.mxu0
      %v1214 = vadd.f32 %v1025, %v1213
      %v1215 = vpop.f32.mrf.mxu0
      %v1216 = vpop.f32.mrf.mxu0
      %v1217 = vadd.f32 %v1025, %v1216
      %v1218 = vpop.f32.mrf.mxu0
      %1219 = vmatprep.mubr.bf16.mxu0 0
      %1220 = vmatmul.mubr.bf16.gmra.mxu0 %v1003
      %v1221 = vpop.f32.mrf.mxu0
      %v1222 = vadd.f32 %v1025, %v1221
      %v1223 = vpop.f32.mrf.mxu0
      %v1224 = vpop.f32.mrf.mxu0
      %v1225 = vadd.f32 %v1025, %v1224
      %v1226 = vpop.f32.mrf.mxu0
      %1227 = vmatprep.mubr.bf16.mxu0 0
      %1228 = vmatmul.mubr.bf16.gmra.mxu0 %v1004
      %v1229 = vpop.f32.mrf.mxu0
      %v1230 = vadd.f32 %v1025, %v1229
      %v1231 = vpop.f32.mrf.mxu0
      %v1232 = vpop.f32.mrf.mxu0
      %v1233 = vadd.f32 %v1025, %v1232
      %v1234 = vpop.f32.mrf.mxu0
      %1235 = vmatprep.mubr.bf16.mxu0 0
      %1236 = vmatmul.mubr.bf16.gmra.mxu0 %v1005
      %v1237 = vpop.f32.mrf.mxu0
      %v1238 = vadd.f32 %v1025, %v1237
      %v1239 = vpop.f32.mrf.mxu0
      %v1240 = vpop.f32.mrf.mxu0
      %v1241 = vadd.f32 %v1025, %v1240
      %v1242 = vpop.f32.mrf.mxu0
      %1243 = vmatprep.mubr.bf16.mxu0 0
      %1244 = vmatmul.mubr.bf16.gmra.mxu0 %v1006
      %v1245 = vpop.f32.mrf.mxu0
      %v1246 = vadd.f32 %v1025, %v1245
      %v1247 = vpop.f32.mrf.mxu0
      %v1248 = vpop.f32.mrf.mxu0
      %v1249 = vadd.f32 %v1025, %v1248
      %v1250 = vpop.f32.mrf.mxu0
      %1251 = vmatprep.mubr.bf16.mxu0 0
      %1252 = vmatmul.mubr.bf16.gmra.mxu0 %v1007
      %v1253 = vpop.f32.mrf.mxu0
      %v1254 = vadd.f32 %v1025, %v1253
      %v1255 = vpop.f32.mrf.mxu0
      %v1256 = vpop.f32.mrf.mxu0
      %v1257 = vadd.f32 %v1025, %v1256
      %v1258 = vpop.f32.mrf.mxu0
      %1259 = vmatprep.mubr.bf16.mxu0 0
      %1260 = vmatmul.mubr.bf16.gmra.mxu0 %v1008
      %v1261 = vpop.f32.mrf.mxu0
      %v1262 = vadd.f32 %v1025, %v1261
      %v1263 = vpop.f32.mrf.mxu0
      %v1264 = vpop.f32.mrf.mxu0
      %v1265 = vadd.f32 %v1025, %v1264
      %v1266 = vpop.f32.mrf.mxu0
      %1267 = vmatprep.mubr.bf16.mxu0 0
      %1268 = vmatmul.mubr.bf16.gmra.mxu0 %v1009
      %v1269 = vpop.f32.mrf.mxu0
      %v1270 = vadd.f32 %v1025, %v1269
      %v1271 = vpop.f32.mrf.mxu0
      %v1272 = vpop.f32.mrf.mxu0
      %v1273 = vadd.f32 %v1025, %v1272
      %v1274 = vpop.f32.mrf.mxu0
      %1275 = vmatprep.mubr.bf16.mxu0 0
      %1276 = vmatmul.mubr.bf16.gmra.mxu0 %v1010
      %v1277 = vpop.f32.mrf.mxu0
      %v1278 = vadd.f32 %v1025, %v1277
      %v1279 = vpop.f32.mrf.mxu0
      %v1280 = vpop.f32.mrf.mxu0
      %v1281 = vadd.f32 %v1025, %v1280
      %v1282 = vpop.f32.mrf.mxu0
      %1283 = vmatprep.mubr.bf16.mxu0 0
      %1284 = vmatmul.mubr.bf16.gmra.mxu0 %v1011
      %v1285 = vpop.f32.mrf.mxu0
      %v1286 = vadd.f32 %v1025, %v1285
      %v1287 = vpop.f32.mrf.mxu0
      %v1288 = vpop.f32.mrf.mxu0
      %v1289 = vadd.f32 %v1025, %v1288
      %v1290 = vpop.f32.mrf.mxu0
      %1291 = vmatprep.mubr.bf16.mxu0 0
      %1292 = vmatmul.mubr.bf16.gmra.mxu0 %v1012
      %v1293 = vpop.f32.mrf.mxu0
      %v1294 = vadd.f32 %v1025, %v1293
      %v1295 = vpop.f32.mrf.mxu0
      %v1296 = vpop.f32.mrf.mxu0
      %v1297 = vadd.f32 %v1025, %v1296
      %v1298 = vpop.f32.mrf.mxu0
      %1299 = vmatprep.mubr.bf16.mxu0 0
      %1300 = vmatmul.mubr.bf16.gmra.mxu0 %v1013
      %v1301 = vpop.f32.mrf.mxu0
      %v1302 = vadd.f32 %v1025, %v1301
      %v1303 = vpop.f32.mrf.mxu0
      %v1304 = vpop.f32.mrf.mxu0
      %v1305 = vadd.f32 %v1025, %v1304
      %v1306 = vpop.f32.mrf.mxu0
      %1307 = vmatprep.mubr.bf16.mxu0 0
      %1308 = vmatmul.mubr.bf16.gmra.mxu0 %v1014
      %v1309 = vpop.f32.mrf.mxu0
      %v1310 = vadd.f32 %v1025, %v1309
      %v1311 = vpop.f32.mrf.mxu0
      %v1312 = vpop.f32.mrf.mxu0
      %v1313 = vadd.f32 %v1025, %v1312
      %v1314 = vpop.f32.mrf.mxu0
      %1315 = vmatprep.mubr.bf16.mxu0 0
      %1316 = vmatmul.mubr.bf16.gmra.mxu0 %v1015
      %v1317 = vpop.f32.mrf.mxu0
      %v1318 = vadd.f32 %v1025, %v1317
      %v1319 = vpop.f32.mrf.mxu0
      %v1320 = vpop.f32.mrf.mxu0
      %v1321 = vadd.f32 %v1025, %v1320
      %v1322 = vpop.f32.mrf.mxu0
      %1323 = vmatprep.mubr.bf16.mxu0 0
      %1324 = vmatmul.mubr.bf16.gmra.mxu0 %v1016
      %v1325 = vpop.f32.mrf.mxu0
      %v1326 = vadd.f32 %v1025, %v1325
      %v1327 = vpop.f32.mrf.mxu0
      %v1328 = vpop.f32.mrf.mxu0
      %v1329 = vadd.f32 %v1025, %v1328
      %v1330 = vpop.f32.mrf.mxu0
      %1331 = vmatprep.mubr.bf16.mxu0 0
      %1332 = vmatmul.mubr.bf16.gmra.mxu0 %v1017
      %v1333 = vpop.f32.mrf.mxu0
      %v1334 = vadd.f32 %v1025, %v1333
      %v1335 = vpop.f32.mrf.mxu0
      %v1336 = vpop.f32.mrf.mxu0
      %v1337 = vadd.f32 %v1025, %v1336
      %v1338 = vpop.f32.mrf.mxu0
      %1339 = vmatprep.mubr.bf16.mxu0 0
      %1340 = vmatmul.mubr.bf16.gmra.mxu0 %v1018
      %v1341 = vpop.f32.mrf.mxu0
      %v1342 = vadd.f32 %v1025, %v1341
      %v1343 = vpop.f32.mrf.mxu0
      %v1344 = vpop.f32.mrf.mxu0
      %v1345 = vadd.f32 %v1025, %v1344
      %v1346 = vpop.f32.mrf.mxu0
      %1347 = vmatprep.mubr.bf16.mxu0 0
      %1348 = vmatmul.mubr.bf16.gmra.mxu0 %v1019
      %v1349 = vpop.f32.mrf.mxu0
      %v1350 = vadd.f32 %v1025, %v1349
      %v1351 = vpop.f32.mrf.mxu0
      %v1352 = vpop.f32.mrf.mxu0
      %v1353 = vadd.f32 %v1025, %v1352
      %v1354 = vpop.f32.mrf.mxu0
      %1355 = vmatprep.mubr.bf16.mxu0 0
      %1356 = vmatmul.mubr.bf16.gmra.mxu0 %v1020
      %v1357 = vpop.f32.mrf.mxu0
      %v1358 = vadd.f32 %v1025, %v1357
      %v1359 = vpop.f32.mrf.mxu0
      %v1360 = vpop.f32.mrf.mxu0
      %v1361 = vadd.f32 %v1025, %v1360
      %v1362 = vpop.f32.mrf.mxu0
      %1363 = vdwg.mxu0
      %v1364 = vmax.f32 %v1110, 0.0
      %v1365 = vmax.f32 %v1113, 0.0
      %v1366 = vmax.f32 %v1118, 0.0
      %v1367 = vmax.f32 %v1121, 0.0
      %v1368 = vmax.f32 %v1126, 0.0
      %v1369 = vmax.f32 %v1129, 0.0
      %v1370 = vmax.f32 %v1134, 0.0
      %v1371 = vmax.f32 %v1137, 0.0
      %v1372 = vmax.f32 %v1142, 0.0
      %v1373 = vmax.f32 %v1145, 0.0
      %v1374 = vmax.f32 %v1150, 0.0
      %v1375 = vmax.f32 %v1153, 0.0
      %v1376 = vmax.f32 %v1158, 0.0
      %v1377 = vmax.f32 %v1161, 0.0
      %v1378 = vmax.f32 %v1166, 0.0
      %v1379 = vmax.f32 %v1169, 0.0
      %v1380 = vmax.f32 %v1174, 0.0
      %v1381 = vmax.f32 %v1177, 0.0
      %v1382 = vmax.f32 %v1182, 0.0
      %v1383 = vmax.f32 %v1185, 0.0
      %v1384 = vmax.f32 %v1190, 0.0
      %v1385 = vmax.f32 %v1193, 0.0
      %v1386 = vmax.f32 %v1198, 0.0
      %v1387 = vmax.f32 %v1201, 0.0
      %v1388 = vmax.f32 %v1206, 0.0
      %v1389 = vmax.f32 %v1209, 0.0
      %v1390 = vmax.f32 %v1214, 0.0
      %v1391 = vmax.f32 %v1217, 0.0
      %v1392 = vmax.f32 %v1222, 0.0
      %v1393 = vmax.f32 %v1225, 0.0
      %v1394 = vmax.f32 %v1230, 0.0
      %v1395 = vmax.f32 %v1233, 0.0
      %v1396 = vmax.f32 %v1238, 0.0
      %v1397 = vmax.f32 %v1241, 0.0
      %v1398 = vmax.f32 %v1246, 0.0
      %v1399 = vmax.f32 %v1249, 0.0
      %v1400 = vmax.f32 %v1254, 0.0
      %v1401 = vmax.f32 %v1257, 0.0
      %v1402 = vmax.f32 %v1262, 0.0
      %v1403 = vmax.f32 %v1265, 0.0
      %v1404 = vmax.f32 %v1270, 0.0
      %v1405 = vmax.f32 %v1273, 0.0
      %v1406 = vmax.f32 %v1278, 0.0
      %v1407 = vmax.f32 %v1281, 0.0
      %v1408 = vmax.f32 %v1286, 0.0
      %v1409 = vmax.f32 %v1289, 0.0
      %v1410 = vmax.f32 %v1294, 0.0
      %v1411 = vmax.f32 %v1297, 0.0
      %v1412 = vmax.f32 %v1302, 0.0
      %v1413 = vmax.f32 %v1305, 0.0
      %v1414 = vmax.f32 %v1310, 0.0
      %v1415 = vmax.f32 %v1313, 0.0
      %v1416 = vmax.f32 %v1318, 0.0
      %v1417 = vmax.f32 %v1321, 0.0
      %v1418 = vmax.f32 %v1326, 0.0
      %v1419 = vmax.f32 %v1329, 0.0
      %v1420 = vmax.f32 %v1334, 0.0
      %v1421 = vmax.f32 %v1337, 0.0
      %v1422 = vmax.f32 %v1342, 0.0
      %v1423 = vmax.f32 %v1345, 0.0
      %v1424 = vmax.f32 %v1350, 0.0
      %v1425 = vmax.f32 %v1353, 0.0
      %v1426 = vmax.f32 %v1358, 0.0
      %v1427 = vmax.f32 %v1361, 0.0
      %v1428 = vld [vmem:[%s5] sm:$0xf]
      %v1429 = vld [vmem:[%s5 + $0x4] sm:$0xf]
      %v1430 = vld [vmem:[%s5 + $0x8] sm:$0xf]
      %v1431 = vld [vmem:[%s5 + $0xc] sm:$0xf]
      %v1432 = vld [vmem:[%s5 + $0x10] sm:$0xf]
      %v1433 = vld [vmem:[%s5 + $0x14] sm:$0xf]
      %v1434 = vld [vmem:[%s5 + $0x18] sm:$0xf]
      %v1435 = vld [vmem:[%s5 + $0x1c] sm:$0xf]
      %v1436 = vld [vmem:[%s5 + $0x20] sm:$0xf]
      %v1437 = vld [vmem:[%s5 + $0x24] sm:$0xf]
      %v1438 = vld [vmem:[%s5 + $0x28] sm:$0xf]
      %v1439 = vld [vmem:[%s5 + $0x2c] sm:$0xf]
      %v1440 = vld [vmem:[%s5 + $0x30] sm:$0xf]
      %v1441 = vld [vmem:[%s5 + $0x34] sm:$0xf]
      %v1442 = vld [vmem:[%s5 + $0x38] sm:$0xf]
      %v1443 = vld [vmem:[%s5 + $0x3c] sm:$0xf]
      %v1444 = vld [vmem:[%s6] sm:$0x1]
      %v1445 = vpack.c.bf16 %v1365, %v1364
      %v1446 = vpack.c.bf16 %v1367, %v1366
      %v1447 = vpack.c.bf16 %v1369, %v1368
      %v1448 = vpack.c.bf16 %v1371, %v1370
      %v1449 = vpack.c.bf16 %v1373, %v1372
      %v1450 = vpack.c.bf16 %v1375, %v1374
      %v1451 = vpack.c.bf16 %v1377, %v1376
      %v1452 = vpack.c.bf16 %v1379, %v1378
      %v1453 = vpack.c.bf16 %v1381, %v1380
      %v1454 = vpack.c.bf16 %v1383, %v1382
      %v1455 = vpack.c.bf16 %v1385, %v1384
      %v1456 = vpack.c.bf16 %v1387, %v1386
      %v1457 = vpack.c.bf16 %v1389, %v1388
      %v1458 = vpack.c.bf16 %v1391, %v1390
      %v1459 = vpack.c.bf16 %v1393, %v1392
      %v1460 = vpack.c.bf16 %v1395, %v1394
      %v1461 = vpack.c.bf16 %v1397, %v1396
      %v1462 = vpack.c.bf16 %v1399, %v1398
      %v1463 = vpack.c.bf16 %v1401, %v1400
      %v1464 = vpack.c.bf16 %v1403, %v1402
      %v1465 = vpack.c.bf16 %v1405, %v1404
      %v1466 = vpack.c.bf16 %v1407, %v1406
      %v1467 = vpack.c.bf16 %v1409, %v1408
      %v1468 = vpack.c.bf16 %v1411, %v1410
      %v1469 = vpack.c.bf16 %v1413, %v1412
      %v1470 = vpack.c.bf16 %v1415, %v1414
      %v1471 = vpack.c.bf16 %v1417, %v1416
      %v1472 = vpack.c.bf16 %v1419, %v1418
      %v1473 = vpack.c.bf16 %v1421, %v1420
      %v1474 = vpack.c.bf16 %v1423, %v1422
      %v1475 = vpack.c.bf16 %v1425, %v1424
      %v1476 = vpack.c.bf16 %v1427, %v1426
      %v1478 = vlaneseq
      %v1479 = vshrl.u32 %v1478, 7
      %v1480 = vsub.s32 0, %v1479
      %v1481 = vrot.slane %v1444, %v1480
      %v1499 = vunpack.c.l.b16 %v1428
      %v1500 = vunpack.c.l.b16 %v1429
      %v1501 = vunpack.c.l.b16 %v1430
      %v1502 = vunpack.c.l.b16 %v1431
      %v1503 = vunpack.c.l.b16 %v1432
      %v1504 = vunpack.c.l.b16 %v1433
      %v1505 = vunpack.c.l.b16 %v1434
      %v1506 = vunpack.c.l.b16 %v1435
      %v1507 = vunpack.c.l.b16 %v1436
      %v1508 = vunpack.c.l.b16 %v1437
      %v1509 = vunpack.c.l.b16 %v1438
      %v1510 = vunpack.c.l.b16 %v1439
      %v1511 = vunpack.c.l.b16 %v1440
      %v1512 = vunpack.c.l.b16 %v1441
      %v1513 = vunpack.c.l.b16 %v1442
      %v1514 = vunpack.c.l.b16 %v1443
      %v1515 = vpack.c.b16 %v1500, %v1499
      %v1516 = vpack.c.b16 %v1502, %v1501
      %v1517 = vpack.c.b16 %v1504, %v1503
      %v1518 = vpack.c.b16 %v1506, %v1505
      %v1519 = vpack.c.b16 %v1508, %v1507
      %v1520 = vpack.c.b16 %v1510, %v1509
      %v1521 = vpack.c.b16 %v1512, %v1511
      %v1522 = vpack.c.b16 %v1514, %v1513
      %1531 = vmatprep.subr.bf16.mxu0 0
      %1532 = vmatpush1.bf16.msra.mxu0 %v1522
      %1533 = vmatprep.subr.bf16.mxu0 0
      %1534 = vmatpush1.bf16.msra.mxu0 %v1521
      %1535 = vmatprep.subr.bf16.mxu0 0
      %1536 = vmatpush1.bf16.msra.mxu0 %v1520
      %1537 = vmatprep.subr.bf16.mxu0 0
      %1538 = vmatpush1.bf16.msra.mxu0 %v1519
      %1539 = vmatprep.subr.bf16.mxu0 0
      %1540 = vmatpush1.bf16.msra.mxu0 %v1518
      %1541 = vmatprep.subr.bf16.mxu0 0
      %1542 = vmatpush1.bf16.msra.mxu0 %v1517
      %1543 = vmatprep.subr.bf16.mxu0 0
      %1544 = vmatpush1.bf16.msra.mxu0 %v1516
      %1545 = vmatprep.subr.bf16.mxu0 0
      %1546 = vmatpush1.bf16.msra.mxu0 %v1515
      %1547 = vmatprep.subr.bf16.mxu0 0
      %1548 = vmatpush2.bf16.msra.mxu0 0
      %1549 = vmatprep.subr.bf16.mxu0 0
      %1550 = vmatpush2.bf16.msra.mxu0 0
      %1551 = vmatprep.subr.bf16.mxu0 0
      %1552 = vmatpush2.bf16.msra.mxu0 0
      %1553 = vmatprep.subr.bf16.mxu0 0
      %1554 = vmatpush2.bf16.msra.mxu0 0
      %1555 = vmatprep.subr.bf16.mxu0 0
      %1556 = vmatpush2.bf16.msra.mxu0 0
      %1557 = vmatprep.subr.bf16.mxu0 0
      %1558 = vmatpush2.bf16.msra.mxu0 0
      %1559 = vmatprep.subr.bf16.mxu0 0
      %1560 = vmatpush2.bf16.msra.mxu0 0
      %1561 = vmatprep.subr.bf16.mxu0 0
      %1562 = vmatpush2.bf16.msra.mxu0 0
      %1563 = vmatprep.mubr.bf16.mxu0 0
      %1564 = vmatmul.mubr.bf16.gmra.mxu0 %v1445
      %v1565 = vpop.f32.mrf.mxu0
      %v1566 = vadd.f32 %v1481, %v1565
      %v1567 = vpop.f32.mrf.mxu0
      %v1568 = vpop.f32.mrf.mxu0
      %v1569 = vadd.f32 %v1481, %v1568
      %v1570 = vpop.f32.mrf.mxu0
      %1571 = vmatprep.mubr.bf16.mxu0 0
      %1572 = vmatmul.mubr.bf16.gmra.mxu0 %v1446
      %v1573 = vpop.f32.mrf.mxu0
      %v1574 = vadd.f32 %v1481, %v1573
      %v1575 = vpop.f32.mrf.mxu0
      %v1576 = vpop.f32.mrf.mxu0
      %v1577 = vadd.f32 %v1481, %v1576
      %v1578 = vpop.f32.mrf.mxu0
      %1579 = vmatprep.mubr.bf16.mxu0 0
      %1580 = vmatmul.mubr.bf16.gmra.mxu0 %v1447
      %v1581 = vpop.f32.mrf.mxu0
      %v1582 = vadd.f32 %v1481, %v1581
      %v1583 = vpop.f32.mrf.mxu0
      %v1584 = vpop.f32.mrf.mxu0
      %v1585 = vadd.f32 %v1481, %v1584
      %v1586 = vpop.f32.mrf.mxu0
      %1587 = vmatprep.mubr.bf16.mxu0 0
      %1588 = vmatmul.mubr.bf16.gmra.mxu0 %v1448
      %v1589 = vpop.f32.mrf.mxu0
      %v1590 = vadd.f32 %v1481, %v1589
      %v1591 = vpop.f32.mrf.mxu0
      %v1592 = vpop.f32.mrf.mxu0
      %v1593 = vadd.f32 %v1481, %v1592
      %v1594 = vpop.f32.mrf.mxu0
      %1595 = vmatprep.mubr.bf16.mxu0 0
      %1596 = vmatmul.mubr.bf16.gmra.mxu0 %v1449
      %v1597 = vpop.f32.mrf.mxu0
      %v1598 = vadd.f32 %v1481, %v1597
      %v1599 = vpop.f32.mrf.mxu0
      %v1600 = vpop.f32.mrf.mxu0
      %v1601 = vadd.f32 %v1481, %v1600
      %v1602 = vpop.f32.mrf.mxu0
      %1603 = vmatprep.mubr.bf16.mxu0 0
      %1604 = vmatmul.mubr.bf16.gmra.mxu0 %v1450
      %v1605 = vpop.f32.mrf.mxu0
      %v1606 = vadd.f32 %v1481, %v1605
      %v1607 = vpop.f32.mrf.mxu0
      %v1608 = vpop.f32.mrf.mxu0
      %v1609 = vadd.f32 %v1481, %v1608
      %v1610 = vpop.f32.mrf.mxu0
      %1611 = vmatprep.mubr.bf16.mxu0 0
      %1612 = vmatmul.mubr.bf16.gmra.mxu0 %v1451
      %v1613 = vpop.f32.mrf.mxu0
      %v1614 = vadd.f32 %v1481, %v1613
      %v1615 = vpop.f32.mrf.mxu0
      %v1616 = vpop.f32.mrf.mxu0
      %v1617 = vadd.f32 %v1481, %v1616
      %v1618 = vpop.f32.mrf.mxu0
      %1619 = vmatprep.mubr.bf16.mxu0 0
      %1620 = vmatmul.mubr.bf16.gmra.mxu0 %v1452
      %v1621 = vpop.f32.mrf.mxu0
      %v1622 = vadd.f32 %v1481, %v1621
      %v1623 = vpop.f32.mrf.mxu0
      %v1624 = vpop.f32.mrf.mxu0
      %v1625 = vadd.f32 %v1481, %v1624
      %v1626 = vpop.f32.mrf.mxu0
      %1627 = vmatprep.mubr.bf16.mxu0 0
      %1628 = vmatmul.mubr.bf16.gmra.mxu0 %v1453
      %v1629 = vpop.f32.mrf.mxu0
      %v1630 = vadd.f32 %v1481, %v1629
      %v1631 = vpop.f32.mrf.mxu0
      %v1632 = vpop.f32.mrf.mxu0
      %v1633 = vadd.f32 %v1481, %v1632
      %v1634 = vpop.f32.mrf.mxu0
      %1635 = vmatprep.mubr.bf16.mxu0 0
      %1636 = vmatmul.mubr.bf16.gmra.mxu0 %v1454
      %v1637 = vpop.f32.mrf.mxu0
      %v1638 = vadd.f32 %v1481, %v1637
      %v1639 = vpop.f32.mrf.mxu0
      %v1640 = vpop.f32.mrf.mxu0
      %v1641 = vadd.f32 %v1481, %v1640
      %v1642 = vpop.f32.mrf.mxu0
      %1643 = vmatprep.mubr.bf16.mxu0 0
      %1644 = vmatmul.mubr.bf16.gmra.mxu0 %v1455
      %v1645 = vpop.f32.mrf.mxu0
      %v1646 = vadd.f32 %v1481, %v1645
      %v1647 = vpop.f32.mrf.mxu0
      %v1648 = vpop.f32.mrf.mxu0
      %v1649 = vadd.f32 %v1481, %v1648
      %v1650 = vpop.f32.mrf.mxu0
      %1651 = vmatprep.mubr.bf16.mxu0 0
      %1652 = vmatmul.mubr.bf16.gmra.mxu0 %v1456
      %v1653 = vpop.f32.mrf.mxu0
      %v1654 = vadd.f32 %v1481, %v1653
      %v1655 = vpop.f32.mrf.mxu0
      %v1656 = vpop.f32.mrf.mxu0
      %v1657 = vadd.f32 %v1481, %v1656
      %v1658 = vpop.f32.mrf.mxu0
      %1659 = vmatprep.mubr.bf16.mxu0 0
      %1660 = vmatmul.mubr.bf16.gmra.mxu0 %v1457
      %v1661 = vpop.f32.mrf.mxu0
      %v1662 = vadd.f32 %v1481, %v1661
      %v1663 = vpop.f32.mrf.mxu0
      %v1664 = vpop.f32.mrf.mxu0
      %v1665 = vadd.f32 %v1481, %v1664
      %v1666 = vpop.f32.mrf.mxu0
      %1667 = vmatprep.mubr.bf16.mxu0 0
      %1668 = vmatmul.mubr.bf16.gmra.mxu0 %v1458
      %v1669 = vpop.f32.mrf.mxu0
      %v1670 = vadd.f32 %v1481, %v1669
      %v1671 = vpop.f32.mrf.mxu0
      %v1672 = vpop.f32.mrf.mxu0
      %v1673 = vadd.f32 %v1481, %v1672
      %v1674 = vpop.f32.mrf.mxu0
      %1675 = vmatprep.mubr.bf16.mxu0 0
      %1676 = vmatmul.mubr.bf16.gmra.mxu0 %v1459
      %v1677 = vpop.f32.mrf.mxu0
      %v1678 = vadd.f32 %v1481, %v1677
      %v1679 = vpop.f32.mrf.mxu0
      %v1680 = vpop.f32.mrf.mxu0
      %v1681 = vadd.f32 %v1481, %v1680
      %v1682 = vpop.f32.mrf.mxu0
      %1683 = vmatprep.mubr.bf16.mxu0 0
      %1684 = vmatmul.mubr.bf16.gmra.mxu0 %v1460
      %v1685 = vpop.f32.mrf.mxu0
      %v1686 = vadd.f32 %v1481, %v1685
      %v1687 = vpop.f32.mrf.mxu0
      %v1688 = vpop.f32.mrf.mxu0
      %v1689 = vadd.f32 %v1481, %v1688
      %v1690 = vpop.f32.mrf.mxu0
      %1691 = vmatprep.mubr.bf16.mxu0 0
      %1692 = vmatmul.mubr.bf16.gmra.mxu0 %v1461
      %v1693 = vpop.f32.mrf.mxu0
      %v1694 = vadd.f32 %v1481, %v1693
      %v1695 = vpop.f32.mrf.mxu0
      %v1696 = vpop.f32.mrf.mxu0
      %v1697 = vadd.f32 %v1481, %v1696
      %v1698 = vpop.f32.mrf.mxu0
      %1699 = vmatprep.mubr.bf16.mxu0 0
      %1700 = vmatmul.mubr.bf16.gmra.mxu0 %v1462
      %v1701 = vpop.f32.mrf.mxu0
      %v1702 = vadd.f32 %v1481, %v1701
      %v1703 = vpop.f32.mrf.mxu0
      %v1704 = vpop.f32.mrf.mxu0
      %v1705 = vadd.f32 %v1481, %v1704
      %v1706 = vpop.f32.mrf.mxu0
      %1707 = vmatprep.mubr.bf16.mxu0 0
      %1708 = vmatmul.mubr.bf16.gmra.mxu0 %v1463
      %v1709 = vpop.f32.mrf.mxu0
      %v1710 = vadd.f32 %v1481, %v1709
      %v1711 = vpop.f32.mrf.mxu0
      %v1712 = vpop.f32.mrf.mxu0
      %v1713 = vadd.f32 %v1481, %v1712
      %v1714 = vpop.f32.mrf.mxu0
      %1715 = vmatprep.mubr.bf16.mxu0 0
      %1716 = vmatmul.mubr.bf16.gmra.mxu0 %v1464
      %v1717 = vpop.f32.mrf.mxu0
      %v1718 = vadd.f32 %v1481, %v1717
      %v1719 = vpop.f32.mrf.mxu0
      %v1720 = vpop.f32.mrf.mxu0
      %v1721 = vadd.f32 %v1481, %v1720
      %v1722 = vpop.f32.mrf.mxu0
      %1723 = vmatprep.mubr.bf16.mxu0 0
      %1724 = vmatmul.mubr.bf16.gmra.mxu0 %v1465
      %v1725 = vpop.f32.mrf.mxu0
      %v1726 = vadd.f32 %v1481, %v1725
      %v1727 = vpop.f32.mrf.mxu0
      %v1728 = vpop.f32.mrf.mxu0
      %v1729 = vadd.f32 %v1481, %v1728
      %v1730 = vpop.f32.mrf.mxu0
      %1731 = vmatprep.mubr.bf16.mxu0 0
      %1732 = vmatmul.mubr.bf16.gmra.mxu0 %v1466
      %v1733 = vpop.f32.mrf.mxu0
      %v1734 = vadd.f32 %v1481, %v1733
      %v1735 = vpop.f32.mrf.mxu0
      %v1736 = vpop.f32.mrf.mxu0
      %v1737 = vadd.f32 %v1481, %v1736
      %v1738 = vpop.f32.mrf.mxu0
      %1739 = vmatprep.mubr.bf16.mxu0 0
      %1740 = vmatmul.mubr.bf16.gmra.mxu0 %v1467
      %v1741 = vpop.f32.mrf.mxu0
      %v1742 = vadd.f32 %v1481, %v1741
      %v1743 = vpop.f32.mrf.mxu0
      %v1744 = vpop.f32.mrf.mxu0
      %v1745 = vadd.f32 %v1481, %v1744
      %v1746 = vpop.f32.mrf.mxu0
      %1747 = vmatprep.mubr.bf16.mxu0 0
      %1748 = vmatmul.mubr.bf16.gmra.mxu0 %v1468
      %v1749 = vpop.f32.mrf.mxu0
      %v1750 = vadd.f32 %v1481, %v1749
      %v1751 = vpop.f32.mrf.mxu0
      %v1752 = vpop.f32.mrf.mxu0
      %v1753 = vadd.f32 %v1481, %v1752
      %v1754 = vpop.f32.mrf.mxu0
      %1755 = vmatprep.mubr.bf16.mxu0 0
      %1756 = vmatmul.mubr.bf16.gmra.mxu0 %v1469
      %v1757 = vpop.f32.mrf.mxu0
      %v1758 = vadd.f32 %v1481, %v1757
      %v1759 = vpop.f32.mrf.mxu0
      %v1760 = vpop.f32.mrf.mxu0
      %v1761 = vadd.f32 %v1481, %v1760
      %v1762 = vpop.f32.mrf.mxu0
      %1763 = vmatprep.mubr.bf16.mxu0 0
      %1764 = vmatmul.mubr.bf16.gmra.mxu0 %v1470
      %v1765 = vpop.f32.mrf.mxu0
      %v1766 = vadd.f32 %v1481, %v1765
      %v1767 = vpop.f32.mrf.mxu0
      %v1768 = vpop.f32.mrf.mxu0
      %v1769 = vadd.f32 %v1481, %v1768
      %v1770 = vpop.f32.mrf.mxu0
      %1771 = vmatprep.mubr.bf16.mxu0 0
      %1772 = vmatmul.mubr.bf16.gmra.mxu0 %v1471
      %v1773 = vpop.f32.mrf.mxu0
      %v1774 = vadd.f32 %v1481, %v1773
      %v1775 = vpop.f32.mrf.mxu0
      %v1776 = vpop.f32.mrf.mxu0
      %v1777 = vadd.f32 %v1481, %v1776
      %v1778 = vpop.f32.mrf.mxu0
      %1779 = vmatprep.mubr.bf16.mxu0 0
      %1780 = vmatmul.mubr.bf16.gmra.mxu0 %v1472
      %v1781 = vpop.f32.mrf.mxu0
      %v1782 = vadd.f32 %v1481, %v1781
      %v1783 = vpop.f32.mrf.mxu0
      %v1784 = vpop.f32.mrf.mxu0
      %v1785 = vadd.f32 %v1481, %v1784
      %v1786 = vpop.f32.mrf.mxu0
      %1787 = vmatprep.mubr.bf16.mxu0 0
      %1788 = vmatmul.mubr.bf16.gmra.mxu0 %v1473
      %v1789 = vpop.f32.mrf.mxu0
      %v1790 = vadd.f32 %v1481, %v1789
      %v1791 = vpop.f32.mrf.mxu0
      %v1792 = vpop.f32.mrf.mxu0
      %v1793 = vadd.f32 %v1481, %v1792
      %v1794 = vpop.f32.mrf.mxu0
      %1795 = vmatprep.mubr.bf16.mxu0 0
      %1796 = vmatmul.mubr.bf16.gmra.mxu0 %v1474
      %v1797 = vpop.f32.mrf.mxu0
      %v1798 = vadd.f32 %v1481, %v1797
      %v1799 = vpop.f32.mrf.mxu0
      %v1800 = vpop.f32.mrf.mxu0
      %v1801 = vadd.f32 %v1481, %v1800
      %v1802 = vpop.f32.mrf.mxu0
      %1803 = vmatprep.mubr.bf16.mxu0 0
      %1804 = vmatmul.mubr.bf16.gmra.mxu0 %v1475
      %v1805 = vpop.f32.mrf.mxu0
      %v1806 = vadd.f32 %v1481, %v1805
      %v1807 = vpop.f32.mrf.mxu0
      %v1808 = vpop.f32.mrf.mxu0
      %v1809 = vadd.f32 %v1481, %v1808
      %v1810 = vpop.f32.mrf.mxu0
      %1811 = vmatprep.mubr.bf16.mxu0 0
      %1812 = vmatmul.mubr.bf16.gmra.mxu0 %v1476
      %v1813 = vpop.f32.mrf.mxu0
      %v1814 = vadd.f32 %v1481, %v1813
      %v1815 = vpop.f32.mrf.mxu0
      %v1816 = vpop.f32.mrf.mxu0
      %v1817 = vadd.f32 %v1481, %v1816
      %v1818 = vpop.f32.mrf.mxu0
      %1819 = vdwg.mxu0
      %v1820 = vmax.f32 %v1566, 0.0
      %v1821 = vmax.f32 %v1569, 0.0
      %v1822 = vmax.f32 %v1574, 0.0
      %v1823 = vmax.f32 %v1577, 0.0
      %v1824 = vmax.f32 %v1582, 0.0
      %v1825 = vmax.f32 %v1585, 0.0
      %v1826 = vmax.f32 %v1590, 0.0
      %v1827 = vmax.f32 %v1593, 0.0
      %v1828 = vmax.f32 %v1598, 0.0
      %v1829 = vmax.f32 %v1601, 0.0
      %v1830 = vmax.f32 %v1606, 0.0
      %v1831 = vmax.f32 %v1609, 0.0
      %v1832 = vmax.f32 %v1614, 0.0
      %v1833 = vmax.f32 %v1617, 0.0
      %v1834 = vmax.f32 %v1622, 0.0
      %v1835 = vmax.f32 %v1625, 0.0
      %v1836 = vmax.f32 %v1630, 0.0
      %v1837 = vmax.f32 %v1633, 0.0
      %v1838 = vmax.f32 %v1638, 0.0
      %v1839 = vmax.f32 %v1641, 0.0
      %v1840 = vmax.f32 %v1646, 0.0
      %v1841 = vmax.f32 %v1649, 0.0
      %v1842 = vmax.f32 %v1654, 0.0
      %v1843 = vmax.f32 %v1657, 0.0
      %v1844 = vmax.f32 %v1662, 0.0
      %v1845 = vmax.f32 %v1665, 0.0
      %v1846 = vmax.f32 %v1670, 0.0
      %v1847 = vmax.f32 %v1673, 0.0
      %v1848 = vmax.f32 %v1678, 0.0
      %v1849 = vmax.f32 %v1681, 0.0
      %v1850 = vmax.f32 %v1686, 0.0
      %v1851 = vmax.f32 %v1689, 0.0
      %v1852 = vmax.f32 %v1694, 0.0
      %v1853 = vmax.f32 %v1697, 0.0
      %v1854 = vmax.f32 %v1702, 0.0
      %v1855 = vmax.f32 %v1705, 0.0
      %v1856 = vmax.f32 %v1710, 0.0
      %v1857 = vmax.f32 %v1713, 0.0
      %v1858 = vmax.f32 %v1718, 0.0
      %v1859 = vmax.f32 %v1721, 0.0
      %v1860 = vmax.f32 %v1726, 0.0
      %v1861 = vmax.f32 %v1729, 0.0
      %v1862 = vmax.f32 %v1734, 0.0
      %v1863 = vmax.f32 %v1737, 0.0
      %v1864 = vmax.f32 %v1742, 0.0
      %v1865 = vmax.f32 %v1745, 0.0
      %v1866 = vmax.f32 %v1750, 0.0
      %v1867 = vmax.f32 %v1753, 0.0
      %v1868 = vmax.f32 %v1758, 0.0
      %v1869 = vmax.f32 %v1761, 0.0
      %v1870 = vmax.f32 %v1766, 0.0
      %v1871 = vmax.f32 %v1769, 0.0
      %v1872 = vmax.f32 %v1774, 0.0
      %v1873 = vmax.f32 %v1777, 0.0
      %v1874 = vmax.f32 %v1782, 0.0
      %v1875 = vmax.f32 %v1785, 0.0
      %v1876 = vmax.f32 %v1790, 0.0
      %v1877 = vmax.f32 %v1793, 0.0
      %v1878 = vmax.f32 %v1798, 0.0
      %v1879 = vmax.f32 %v1801, 0.0
      %v1880 = vmax.f32 %v1806, 0.0
      %v1881 = vmax.f32 %v1809, 0.0
      %v1882 = vmax.f32 %v1814, 0.0
      %v1883 = vmax.f32 %v1817, 0.0
      %v1884 = vmax.f32 %v1820, %v1821
      %v1885 = vrot.slane %v1884, 4
      %v1886 = vmax.f32 %v1884, %v1885
      %v1887 = vrot.slane %v1886, 2
      %v1888 = vmax.f32 %v1886, %v1887
      %v1889 = vrot.slane %v1888, 1
      %v1890 = vmax.f32 %v1888, %v1889
      %v1891 = vmax.f32 %v1822, %v1823
      %v1892 = vrot.slane %v1891, 4
      %v1893 = vmax.f32 %v1891, %v1892
      %v1894 = vrot.slane %v1893, 2
      %v1895 = vmax.f32 %v1893, %v1894
      %v1896 = vrot.slane %v1895, 1
      %v1897 = vmax.f32 %v1895, %v1896
      %v1898 = vmax.f32 %v1824, %v1825
      %v1899 = vrot.slane %v1898, 4
      %v1900 = vmax.f32 %v1898, %v1899
      %v1901 = vrot.slane %v1900, 2
      %v1902 = vmax.f32 %v1900, %v1901
      %v1903 = vrot.slane %v1902, 1
      %v1904 = vmax.f32 %v1902, %v1903
      %v1905 = vmax.f32 %v1826, %v1827
      %v1906 = vrot.slane %v1905, 4
      %v1907 = vmax.f32 %v1905, %v1906
      %v1908 = vrot.slane %v1907, 2
      %v1909 = vmax.f32 %v1907, %v1908
      %v1910 = vrot.slane %v1909, 1
      %v1911 = vmax.f32 %v1909, %v1910
      %v1912 = vmax.f32 %v1828, %v1829
      %v1913 = vrot.slane %v1912, 4
      %v1914 = vmax.f32 %v1912, %v1913
      %v1915 = vrot.slane %v1914, 2
      %v1916 = vmax.f32 %v1914, %v1915
      %v1917 = vrot.slane %v1916, 1
      %v1918 = vmax.f32 %v1916, %v1917
      %v1919 = vmax.f32 %v1830, %v1831
      %v1920 = vrot.slane %v1919, 4
      %v1921 = vmax.f32 %v1919, %v1920
      %v1922 = vrot.slane %v1921, 2
      %v1923 = vmax.f32 %v1921, %v1922
      %v1924 = vrot.slane %v1923, 1
      %v1925 = vmax.f32 %v1923, %v1924
      %v1926 = vmax.f32 %v1832, %v1833
      %v1927 = vrot.slane %v1926, 4
      %v1928 = vmax.f32 %v1926, %v1927
      %v1929 = vrot.slane %v1928, 2
      %v1930 = vmax.f32 %v1928, %v1929
      %v1931 = vrot.slane %v1930, 1
      %v1932 = vmax.f32 %v1930, %v1931
      %v1933 = vmax.f32 %v1834, %v1835
      %v1934 = vrot.slane %v1933, 4
      %v1935 = vmax.f32 %v1933, %v1934
      %v1936 = vrot.slane %v1935, 2
      %v1937 = vmax.f32 %v1935, %v1936
      %v1938 = vrot.slane %v1937, 1
      %v1939 = vmax.f32 %v1937, %v1938
      %v1940 = vmax.f32 %v1836, %v1837
      %v1941 = vrot.slane %v1940, 4
      %v1942 = vmax.f32 %v1940, %v1941
      %v1943 = vrot.slane %v1942, 2
      %v1944 = vmax.f32 %v1942, %v1943
      %v1945 = vrot.slane %v1944, 1
      %v1946 = vmax.f32 %v1944, %v1945
      %v1947 = vmax.f32 %v1838, %v1839
      %v1948 = vrot.slane %v1947, 4
      %v1949 = vmax.f32 %v1947, %v1948
      %v1950 = vrot.slane %v1949, 2
      %v1951 = vmax.f32 %v1949, %v1950
      %v1952 = vrot.slane %v1951, 1
      %v1953 = vmax.f32 %v1951, %v1952
      %v1954 = vmax.f32 %v1840, %v1841
      %v1955 = vrot.slane %v1954, 4
      %v1956 = vmax.f32 %v1954, %v1955
      %v1957 = vrot.slane %v1956, 2
      %v1958 = vmax.f32 %v1956, %v1957
      %v1959 = vrot.slane %v1958, 1
      %v1960 = vmax.f32 %v1958, %v1959
      %v1961 = vmax.f32 %v1842, %v1843
      %v1962 = vrot.slane %v1961, 4
      %v1963 = vmax.f32 %v1961, %v1962
      %v1964 = vrot.slane %v1963, 2
      %v1965 = vmax.f32 %v1963, %v1964
      %v1966 = vrot.slane %v1965, 1
      %v1967 = vmax.f32 %v1965, %v1966
      %v1968 = vmax.f32 %v1844, %v1845
      %v1969 = vrot.slane %v1968, 4
      %v1970 = vmax.f32 %v1968, %v1969
      %v1971 = vrot.slane %v1970, 2
      %v1972 = vmax.f32 %v1970, %v1971
      %v1973 = vrot.slane %v1972, 1
      %v1974 = vmax.f32 %v1972, %v1973
      %v1975 = vmax.f32 %v1846, %v1847
      %v1976 = vrot.slane %v1975, 4
      %v1977 = vmax.f32 %v1975, %v1976
      %v1978 = vrot.slane %v1977, 2
      %v1979 = vmax.f32 %v1977, %v1978
      %v1980 = vrot.slane %v1979, 1
      %v1981 = vmax.f32 %v1979, %v1980
      %v1982 = vmax.f32 %v1848, %v1849
      %v1983 = vrot.slane %v1982, 4
      %v1984 = vmax.f32 %v1982, %v1983
      %v1985 = vrot.slane %v1984, 2
      %v1986 = vmax.f32 %v1984, %v1985
      %v1987 = vrot.slane %v1986, 1
      %v1988 = vmax.f32 %v1986, %v1987
      %v1989 = vmax.f32 %v1850, %v1851
      %v1990 = vrot.slane %v1989, 4
      %v1991 = vmax.f32 %v1989, %v1990
      %v1992 = vrot.slane %v1991, 2
      %v1993 = vmax.f32 %v1991, %v1992
      %v1994 = vrot.slane %v1993, 1
      %v1995 = vmax.f32 %v1993, %v1994
      %v1996 = vmax.f32 %v1852, %v1853
      %v1997 = vrot.slane %v1996, 4
      %v1998 = vmax.f32 %v1996, %v1997
      %v1999 = vrot.slane %v1998, 2
      %v2000 = vmax.f32 %v1998, %v1999
      %v2001 = vrot.slane %v2000, 1
      %v2002 = vmax.f32 %v2000, %v2001
      %v2003 = vmax.f32 %v1854, %v1855
      %v2004 = vrot.slane %v2003, 4
      %v2005 = vmax.f32 %v2003, %v2004
      %v2006 = vrot.slane %v2005, 2
      %v2007 = vmax.f32 %v2005, %v2006
      %v2008 = vrot.slane %v2007, 1
      %v2009 = vmax.f32 %v2007, %v2008
      %v2010 = vmax.f32 %v1856, %v1857
      %v2011 = vrot.slane %v2010, 4
      %v2012 = vmax.f32 %v2010, %v2011
      %v2013 = vrot.slane %v2012, 2
      %v2014 = vmax.f32 %v2012, %v2013
      %v2015 = vrot.slane %v2014, 1
      %v2016 = vmax.f32 %v2014, %v2015
      %v2017 = vmax.f32 %v1858, %v1859
      %v2018 = vrot.slane %v2017, 4
      %v2019 = vmax.f32 %v2017, %v2018
      %v2020 = vrot.slane %v2019, 2
      %v2021 = vmax.f32 %v2019, %v2020
      %v2022 = vrot.slane %v2021, 1
      %v2023 = vmax.f32 %v2021, %v2022
      %v2024 = vmax.f32 %v1860, %v1861
      %v2025 = vrot.slane %v2024, 4
      %v2026 = vmax.f32 %v2024, %v2025
      %v2027 = vrot.slane %v2026, 2
      %v2028 = vmax.f32 %v2026, %v2027
      %v2029 = vrot.slane %v2028, 1
      %v2030 = vmax.f32 %v2028, %v2029
      %v2031 = vmax.f32 %v1862, %v1863
      %v2032 = vrot.slane %v2031, 4
      %v2033 = vmax.f32 %v2031, %v2032
      %v2034 = vrot.slane %v2033, 2
      %v2035 = vmax.f32 %v2033, %v2034
      %v2036 = vrot.slane %v2035, 1
      %v2037 = vmax.f32 %v2035, %v2036
      %v2038 = vmax.f32 %v1864, %v1865
      %v2039 = vrot.slane %v2038, 4
      %v2040 = vmax.f32 %v2038, %v2039
      %v2041 = vrot.slane %v2040, 2
      %v2042 = vmax.f32 %v2040, %v2041
      %v2043 = vrot.slane %v2042, 1
      %v2044 = vmax.f32 %v2042, %v2043
      %v2045 = vmax.f32 %v1866, %v1867
      %v2046 = vrot.slane %v2045, 4
      %v2047 = vmax.f32 %v2045, %v2046
      %v2048 = vrot.slane %v2047, 2
      %v2049 = vmax.f32 %v2047, %v2048
      %v2050 = vrot.slane %v2049, 1
      %v2051 = vmax.f32 %v2049, %v2050
      %v2052 = vmax.f32 %v1868, %v1869
      %v2053 = vrot.slane %v2052, 4
      %v2054 = vmax.f32 %v2052, %v2053
      %v2055 = vrot.slane %v2054, 2
      %v2056 = vmax.f32 %v2054, %v2055
      %v2057 = vrot.slane %v2056, 1
      %v2058 = vmax.f32 %v2056, %v2057
      %v2059 = vmax.f32 %v1870, %v1871
      %v2060 = vrot.slane %v2059, 4
      %v2061 = vmax.f32 %v2059, %v2060
      %v2062 = vrot.slane %v2061, 2
      %v2063 = vmax.f32 %v2061, %v2062
      %v2064 = vrot.slane %v2063, 1
      %v2065 = vmax.f32 %v2063, %v2064
      %v2066 = vmax.f32 %v1872, %v1873
      %v2067 = vrot.slane %v2066, 4
      %v2068 = vmax.f32 %v2066, %v2067
      %v2069 = vrot.slane %v2068, 2
      %v2070 = vmax.f32 %v2068, %v2069
      %v2071 = vrot.slane %v2070, 1
      %v2072 = vmax.f32 %v2070, %v2071
      %v2073 = vmax.f32 %v1874, %v1875
      %v2074 = vrot.slane %v2073, 4
      %v2075 = vmax.f32 %v2073, %v2074
      %v2076 = vrot.slane %v2075, 2
      %v2077 = vmax.f32 %v2075, %v2076
      %v2078 = vrot.slane %v2077, 1
      %v2079 = vmax.f32 %v2077, %v2078
      %v2080 = vmax.f32 %v1876, %v1877
      %v2081 = vrot.slane %v2080, 4
      %v2082 = vmax.f32 %v2080, %v2081
      %v2083 = vrot.slane %v2082, 2
      %v2084 = vmax.f32 %v2082, %v2083
      %v2085 = vrot.slane %v2084, 1
      %v2086 = vmax.f32 %v2084, %v2085
      %v2087 = vmax.f32 %v1878, %v1879
      %v2088 = vrot.slane %v2087, 4
      %v2089 = vmax.f32 %v2087, %v2088
      %v2090 = vrot.slane %v2089, 2
      %v2091 = vmax.f32 %v2089, %v2090
      %v2092 = vrot.slane %v2091, 1
      %v2093 = vmax.f32 %v2091, %v2092
      %v2094 = vmax.f32 %v1880, %v1881
      %v2095 = vrot.slane %v2094, 4
      %v2096 = vmax.f32 %v2094, %v2095
      %v2097 = vrot.slane %v2096, 2
      %v2098 = vmax.f32 %v2096, %v2097
      %v2099 = vrot.slane %v2098, 1
      %v2100 = vmax.f32 %v2098, %v2099
      %v2101 = vmax.f32 %v1882, %v1883
      %v2102 = vrot.slane %v2101, 4
      %v2103 = vmax.f32 %v2101, %v2102
      %v2104 = vrot.slane %v2103, 2
      %v2105 = vmax.f32 %v2103, %v2104
      %v2106 = vrot.slane %v2105, 1
      %v2107 = vmax.f32 %v2105, %v2106
      %vm2140 = vcmask 1041409
      %v2141 = vsel %vm2140, %v1897, %v1890
      %vm2142 = vcmask 1042434
      %v2143 = vsel %vm2142, %v1904, %v2141
      %vm2144 = vcmask 1043459
      %v2145 = vsel %vm2144, %v1911, %v2143
      %vm2146 = vcmask 1044484
      %v2147 = vsel %vm2146, %v1918, %v2145
      %vm2148 = vcmask 1045509
      %v2149 = vsel %vm2148, %v1925, %v2147
      %vm2150 = vcmask 1046534
      %v2151 = vsel %vm2150, %v1932, %v2149
      %vm2152 = vcmask 1047559
      %v2153 = vsel %vm2152, %v1939, %v2151
      %v2154 = vsel %vm2140, %v1953, %v1946
      %v2155 = vsel %vm2142, %v1960, %v2154
      %v2156 = vsel %vm2144, %v1967, %v2155
      %v2157 = vsel %vm2146, %v1974, %v2156
      %v2158 = vsel %vm2148, %v1981, %v2157
      %v2159 = vsel %vm2150, %v1988, %v2158
      %v2160 = vsel %vm2152, %v1995, %v2159
      %v2161 = vsel %vm2140, %v2009, %v2002
      %v2162 = vsel %vm2142, %v2016, %v2161
      %v2163 = vsel %vm2144, %v2023, %v2162
      %v2164 = vsel %vm2146, %v2030, %v2163
      %v2165 = vsel %vm2148, %v2037, %v2164
      %v2166 = vsel %vm2150, %v2044, %v2165
      %v2167 = vsel %vm2152, %v2051, %v2166
      %v2168 = vsel %vm2140, %v2065, %v2058
      %v2169 = vsel %vm2142, %v2072, %v2168
      %v2170 = vsel %vm2144, %v2079, %v2169
      %v2171 = vsel %vm2146, %v2086, %v2170
      %v2172 = vsel %vm2148, %v2093, %v2171
      %v2173 = vsel %vm2150, %v2100, %v2172
      %v2174 = vsel %vm2152, %v2107, %v2173
      %2179 = vst [vmem:[%s283] sm:$0xff] %v2153
      %2180 = vst [vmem:[%s283 + $0x8] sm:$0xff] %v2160
      %2181 = vst [vmem:[%s283 + $0x10] sm:$0xff] %v2167
      %2182 = vst [vmem:[%s283 + $0x18] sm:$0xff] %v2174
      %s2183 = smul.u32 4, %s18
      %p2184 = scmp.lt.s32.totalorder %s2183, 7
      %s2185 = scalar_select %p2184, %s2183, 7
      %s2186 = smul.addr %s2185, 8
      %s2187 = scalar_lea.vmem %s7, %s2186
      // Predicated region
      $region49: #{pointnet2_msg_forward.10} parent=47 // pred_check
        %p2188 = pneg %p188
      $region50: #{pointnet2_msg_forward.10} parent=47 // pred_check_branch
        %2190 = sbr.rel (%p2188) target = $region52
      $region51: #{pointnet2_msg_forward.10} parent=47 // pred_region
        %s2191 = smul.u32 4, %s18
      $region52: #{pointnet2_msg_forward.10} parent=47 // pred_fallthru
        _
    $region48: #{pointnet2_msg_forward.10} parent=5 // pred_fallthru
      _
    %p2192 = scmp.le.s32.totalorder 2, %s13
    // Predicated region
    $region53: #{pointnet2_msg_forward.10} parent=5 // pred_check
      %p2193 = pneg %p2192
    $region54: #{pointnet2_msg_forward.10} parent=5 // pred_check_branch
      %2195 = sbr.rel (%p2193) target = $region56
    $region55: #{pointnet2_msg_forward.10} parent=5 // pred_region
      %s2196 = ssub.s32 %s13, 2
      // Predicated region
      $region57: #{pointnet2_msg_forward.10} parent=55 // pred_check
        %p2197 = pneg %p194
      $region58: #{pointnet2_msg_forward.10} parent=55 // pred_check_branch
        %2199 = sbr.rel (%p2197) target = $region60
      $region59: #{pointnet2_msg_forward.10} parent=55 // pred_region
        %s2200 = smul.u32 4, %s19
        %p2201 = scmp.lt.s32.totalorder %s2200, 7
        %s2202 = scalar_select %p2201, %s2200, 7
        %s2203 = smul.addr %s2202, 8
        %s2204 = scalar_lea.vmem %s7, %s2203
      $region60: #{pointnet2_msg_forward.10} parent=55 // pred_fallthru
        _
    $region56: #{pointnet2_msg_forward.10} parent=5 // pred_fallthru
      _
  $region6: #{pointnet2_msg_forward.10} parent=0 // loop_footer
    %s17 = sadd.s32 1, %s13
  $region7: #{pointnet2_msg_forward.10} parent=0 // loop_footer_branch
    %12 = sbr.rel target = $region3
  $region8: #{pointnet2_msg_forward.10} parent=0 // loop_exit
    _

// kernel: pointnet2_msg_forward.9
$region0: #{pointnet2_msg_forward.9}
  #allocation0 [shape = 'u32[]', space=smem, size = 0x4, offset = 0x4, fixed_abs, tag = 'smem constant byte address 0x4 - core index']
  #allocation1 [shape = 'u32[144,128]{1,0:T(1,128)}', space=vmem, size = 0x12000, scoped, tag = 'internal scratch']
  %s0 = inlined_call_operand.vmem [shape: bf16[64,8,6], index: 0, kind: input, shape index: {}]
  %s1 = inlined_call_operand.vmem [shape: bf16[6,128], index: 1, kind: input, shape index: {}]
  %s2 = inlined_call_operand.vmem [shape: f32[1,128], index: 2, kind: input, shape index: {}]
  %s3 = inlined_call_operand.vmem [shape: bf16[128,128], index: 3, kind: input, shape index: {}]
  %s4 = inlined_call_operand.vmem [shape: f32[1,128], index: 4, kind: input, shape index: {}]
  %s5 = inlined_call_operand.vmem [shape: bf16[128,128], index: 5, kind: input, shape index: {}]
  %s6 = inlined_call_operand.vmem [shape: f32[1,128], index: 6, kind: input, shape index: {}]
  %s7 = inlined_call_operand.vmem [shape: f32[64,128], index: 7, kind: output, shape index: {}]
  %s8 = sld [smem:[#allocation0]]
  $region61: #{pointnet2_msg_forward.9} parent=0
    _
  %s10 = ssub.s32 1, %s8
  %s11 = scalar_select 0, %s10, %s8
  loop: start=0, step=1, limit=4
  $region2: #{pointnet2_msg_forward.9} parent=0 // loop_pre_header
    _
  $region3: #{pointnet2_msg_forward.9} parent=0 // loop_header
    %s13 = sphi 0, %s17
    %p14 = scmp.ge.s32.totalorder %s13, 4
    %s23 = sphi 0, %s25
    %s26 = sphi 0, %s23
    %s27 = sphi 0, %s26
    %s43 = sphi 0, %s27
    %s47 = sphi 0, %s47
    %s49 = sphi 0, %s47
    %s50 = sphi 0, %s49
    %s64 = sphi 0, %s50
    %s68 = sphi 0, %s68
    %s70 = sphi 0, %s68
    %s71 = sphi 0, %s70
    %s85 = sphi 0, %s71
    %s89 = sphi 0, %s89
    %s91 = sphi 0, %s89
    %s92 = sphi 0, %s91
    %s106 = sphi 0, %s92
    %s110 = sphi 0, %s110
    %s112 = sphi 0, %s110
    %s113 = sphi 0, %s112
    %s127 = sphi 0, %s113
    %s131 = sphi 0, %s131
    %s133 = sphi 0, %s131
    %s134 = sphi 0, %s133
    %s148 = sphi 0, %s134
    %s152 = sphi 0, %s152
    %s154 = sphi 0, %s152
    %s155 = sphi 0, %s154
    %s169 = sphi 0, %s155
    %s175 = sphi 0, %s177
    %s178 = sphi 0, %s175
    %s179 = sphi 0, %s178
    %s195 = sphi 0, %s179
  $region4: #{pointnet2_msg_forward.9} parent=0 // loop_header_branch
    %16 = sbr.rel (%p14) target = $region8
  $region5: #{pointnet2_msg_forward.9} parent=0 // loop_body
    %s18 = ssub.s32 %s13, 1
    %s19 = ssub.s32 %s13, 2
    %s20 = sadd.s32 %s13, 1
    %s21 = ssub.s32 %s13, %s20
    %p22 = scmp.eq.s32.totalorder %s21, 0
    %s24 = sadd.s32 %s23, 1
    %s25 = scalar_select %p22, %s23, %s24
    %p28 = pneg %p22
    %p29 = scmp.eq.s32.totalorder %s13, 1
    %p30 = por %p28, %p29
    %p31 = scmp.ne.s32.totalorder %s23, %s26
    %p32 = scmp.eq.s32.totalorder %s13, 0
    %p33 = por %p31, %p32
    %p34 = scmp.ne.s32.totalorder %s23, %s26
    %p35 = scmp.eq.s32.totalorder %s18, 1
    %p36 = por %p34, %p35
    %p37 = scmp.ne.s32.totalorder %s26, %s27
    %p38 = scmp.eq.s32.totalorder %s18, 0
    %p39 = por %p37, %p38
    %p40 = scmp.ne.s32.totalorder %s26, %s27
    %p41 = scmp.eq.s32.totalorder %s19, 1
    %p42 = por %p40, %p41
    %p44 = scmp.ne.s32.totalorder %s27, %s43
    %p45 = scmp.eq.s32.totalorder %s19, 0
    %p46 = por %p44, %p45
    %s48 = sadd.s32 %s47, 1
    %p51 = scmp.eq.s32.totalorder %s13, 1
    %p52 = scmp.ne.s32.totalorder %s47, %s49
    %p53 = scmp.eq.s32.totalorder %s13, 0
    %p54 = por %p52, %p53
    %p55 = scmp.ne.s32.totalorder %s47, %s49
    %p56 = scmp.eq.s32.totalorder %s18, 1
    %p57 = por %p55, %p56
    %p58 = scmp.ne.s32.totalorder %s49, %s50
    %p59 = scmp.eq.s32.totalorder %s18, 0
    %p60 = por %p58, %p59
    %p61 = scmp.ne.s32.totalorder %s49, %s50
    %p62 = scmp.eq.s32.totalorder %s19, 1
    %p63 = por %p61, %p62
    %p65 = scmp.ne.s32.totalorder %s50, %s64
    %p66 = scmp.eq.s32.totalorder %s19, 0
    %p67 = por %p65, %p66
    %s69 = sadd.s32 %s68, 1
    %p72 = scmp.eq.s32.totalorder %s13, 1
    %p73 = scmp.ne.s32.totalorder %s68, %s70
    %p74 = scmp.eq.s32.totalorder %s13, 0
    %p75 = por %p73, %p74
    %p76 = scmp.ne.s32.totalorder %s68, %s70
    %p77 = scmp.eq.s32.totalorder %s18, 1
    %p78 = por %p76, %p77
    %p79 = scmp.ne.s32.totalorder %s70, %s71
    %p80 = scmp.eq.s32.totalorder %s18, 0
    %p81 = por %p79, %p80
    %p82 = scmp.ne.s32.totalorder %s70, %s71
    %p83 = scmp.eq.s32.totalorder %s19, 1
    %p84 = por %p82, %p83
    %p86 = scmp.ne.s32.totalorder %s71, %s85
    %p87 = scmp.eq.s32.totalorder %s19, 0
    %p88 = por %p86, %p87
    %s90 = sadd.s32 %s89, 1
    %p93 = scmp.eq.s32.totalorder %s13, 1
    %p94 = scmp.ne.s32.totalorder %s89, %s91
    %p95 = scmp.eq.s32.totalorder %s13, 0
    %p96 = por %p94, %p95
    %p97 = scmp.ne.s32.totalorder %s89, %s91
    %p98 = scmp.eq.s32.totalorder %s18, 1
    %p99 = por %p97, %p98
    %p100 = scmp.ne.s32.totalorder %s91, %s92
    %p101 = scmp.eq.s32.totalorder %s18, 0
    %p102 = por %p100, %p101
    %p103 = scmp.ne.s32.totalorder %s91, %s92
    %p104 = scmp.eq.s32.totalorder %s19, 1
    %p105 = por %p103, %p104
    %p107 = scmp.ne.s32.totalorder %s92, %s106
    %p108 = scmp.eq.s32.totalorder %s19, 0
    %p109 = por %p107, %p108
    %s111 = sadd.s32 %s110, 1
    %p114 = scmp.eq.s32.totalorder %s13, 1
    %p115 = scmp.ne.s32.totalorder %s110, %s112
    %p116 = scmp.eq.s32.totalorder %s13, 0
    %p117 = por %p115, %p116
    %p118 = scmp.ne.s32.totalorder %s110, %s112
    %p119 = scmp.eq.s32.totalorder %s18, 1
    %p120 = por %p118, %p119
    %p121 = scmp.ne.s32.totalorder %s112, %s113
    %p122 = scmp.eq.s32.totalorder %s18, 0
    %p123 = por %p121, %p122
    %p124 = scmp.ne.s32.totalorder %s112, %s113
    %p125 = scmp.eq.s32.totalorder %s19, 1
    %p126 = por %p124, %p125
    %p128 = scmp.ne.s32.totalorder %s113, %s127
    %p129 = scmp.eq.s32.totalorder %s19, 0
    %p130 = por %p128, %p129
    %s132 = sadd.s32 %s131, 1
    %p135 = scmp.eq.s32.totalorder %s13, 1
    %p136 = scmp.ne.s32.totalorder %s131, %s133
    %p137 = scmp.eq.s32.totalorder %s13, 0
    %p138 = por %p136, %p137
    %p139 = scmp.ne.s32.totalorder %s131, %s133
    %p140 = scmp.eq.s32.totalorder %s18, 1
    %p141 = por %p139, %p140
    %p142 = scmp.ne.s32.totalorder %s133, %s134
    %p143 = scmp.eq.s32.totalorder %s18, 0
    %p144 = por %p142, %p143
    %p145 = scmp.ne.s32.totalorder %s133, %s134
    %p146 = scmp.eq.s32.totalorder %s19, 1
    %p147 = por %p145, %p146
    %p149 = scmp.ne.s32.totalorder %s134, %s148
    %p150 = scmp.eq.s32.totalorder %s19, 0
    %p151 = por %p149, %p150
    %s153 = sadd.s32 %s152, 1
    %p156 = scmp.eq.s32.totalorder %s13, 1
    %p157 = scmp.ne.s32.totalorder %s152, %s154
    %p158 = scmp.eq.s32.totalorder %s13, 0
    %p159 = por %p157, %p158
    %p160 = scmp.ne.s32.totalorder %s152, %s154
    %p161 = scmp.eq.s32.totalorder %s18, 1
    %p162 = por %p160, %p161
    %p163 = scmp.ne.s32.totalorder %s154, %s155
    %p164 = scmp.eq.s32.totalorder %s18, 0
    %p165 = por %p163, %p164
    %p166 = scmp.ne.s32.totalorder %s154, %s155
    %p167 = scmp.eq.s32.totalorder %s19, 1
    %p168 = por %p166, %p167
    %p170 = scmp.ne.s32.totalorder %s155, %s169
    %p171 = scmp.eq.s32.totalorder %s19, 0
    %p172 = por %p170, %p171
    %s173 = ssub.s32 %s13, %s20
    %p174 = scmp.eq.s32.totalorder %s173, 0
    %s176 = sadd.s32 %s175, 1
    %s177 = scalar_select %p174, %s175, %s176
    %p180 = pneg %p174
    %p181 = scmp.eq.s32.totalorder %s13, 1
    %p182 = por %p180, %p181
    %p183 = scmp.ne.s32.totalorder %s175, %s178
    %p184 = scmp.eq.s32.totalorder %s13, 0
    %p185 = por %p183, %p184
    %p186 = scmp.ne.s32.totalorder %s175, %s178
    %p187 = scmp.eq.s32.totalorder %s18, 1
    %p188 = por %p186, %p187
    %p189 = scmp.ne.s32.totalorder %s178, %s179
    %p190 = scmp.eq.s32.totalorder %s18, 0
    %p191 = por %p189, %p190
    %p192 = scmp.ne.s32.totalorder %s178, %s179
    %p193 = scmp.eq.s32.totalorder %s19, 1
    %p194 = por %p192, %p193
    %p196 = scmp.ne.s32.totalorder %s179, %s195
    %p197 = scmp.eq.s32.totalorder %s19, 0
    %p198 = por %p196, %p197
    %p199 = scmp.le.s32.totalorder 1, %s13
    %p200 = scmp.lt.s32.totalorder %s13, 3
    %p201 = pnand %p199, %p200
    %p202 = pneg %p201
    // Predicated region
    $region9: #{pointnet2_msg_forward.9} parent=5 // pred_check
      _
    $region10: #{pointnet2_msg_forward.9} parent=5 // pred_check_branch
      %204 = sbr.rel (%p201) target = $region12
    $region11: #{pointnet2_msg_forward.9} parent=5 // pred_region
      %s205 = ssub.s32 %s13, 1
      // Predicated region
      $region13: #{pointnet2_msg_forward.9} parent=11 // pred_check
        %p206 = pneg %p60
      $region14: #{pointnet2_msg_forward.9} parent=11 // pred_check_branch
        %208 = sbr.rel (%p206) target = $region16
      $region15: #{pointnet2_msg_forward.9} parent=11 // pred_region
        _
      $region16: #{pointnet2_msg_forward.9} parent=11 // pred_fallthru
        _
      // Predicated region
      $region17: #{pointnet2_msg_forward.9} parent=11 // pred_check
        %p209 = pneg %p81
      $region18: #{pointnet2_msg_forward.9} parent=11 // pred_check_branch
        %211 = sbr.rel (%p209) target = $region20
      $region19: #{pointnet2_msg_forward.9} parent=11 // pred_region
        _
      $region20: #{pointnet2_msg_forward.9} parent=11 // pred_fallthru
        _
      // Predicated region
      $region21: #{pointnet2_msg_forward.9} parent=11 // pred_check
        %p212 = pneg %p102
      $region22: #{pointnet2_msg_forward.9} parent=11 // pred_check_branch
        %214 = sbr.rel (%p212) target = $region24
      $region23: #{pointnet2_msg_forward.9} parent=11 // pred_region
        _
      $region24: #{pointnet2_msg_forward.9} parent=11 // pred_fallthru
        _
      // Predicated region
      $region25: #{pointnet2_msg_forward.9} parent=11 // pred_check
        %p215 = pneg %p123
      $region26: #{pointnet2_msg_forward.9} parent=11 // pred_check_branch
        %217 = sbr.rel (%p215) target = $region28
      $region27: #{pointnet2_msg_forward.9} parent=11 // pred_region
        _
      $region28: #{pointnet2_msg_forward.9} parent=11 // pred_fallthru
        _
      // Predicated region
      $region29: #{pointnet2_msg_forward.9} parent=11 // pred_check
        %p218 = pneg %p144
      $region30: #{pointnet2_msg_forward.9} parent=11 // pred_check_branch
        %220 = sbr.rel (%p218) target = $region32
      $region31: #{pointnet2_msg_forward.9} parent=11 // pred_region
        _
      $region32: #{pointnet2_msg_forward.9} parent=11 // pred_fallthru
        _
      // Predicated region
      $region33: #{pointnet2_msg_forward.9} parent=11 // pred_check
        %p221 = pneg %p165
      $region34: #{pointnet2_msg_forward.9} parent=11 // pred_check_branch
        %223 = sbr.rel (%p221) target = $region36
      $region35: #{pointnet2_msg_forward.9} parent=11 // pred_region
        _
      $region36: #{pointnet2_msg_forward.9} parent=11 // pred_fallthru
        _
    $region12: #{pointnet2_msg_forward.9} parent=5 // pred_fallthru
      _
    %p224 = scmp.lt.s32.totalorder %s13, 2
    // Predicated region
    $region37: #{pointnet2_msg_forward.9} parent=5 // pred_check
      %p225 = pneg %p224
    $region38: #{pointnet2_msg_forward.9} parent=5 // pred_check_branch
      %227 = sbr.rel (%p225) target = $region40
    $region39: #{pointnet2_msg_forward.9} parent=5 // pred_region
      // Predicated region
      $region41: #{pointnet2_msg_forward.9} parent=39 // pred_check
        %p228 = pneg %p33
      $region42: #{pointnet2_msg_forward.9} parent=39 // pred_check_branch
        %230 = sbr.rel (%p228) target = $region44
      $region43: #{pointnet2_msg_forward.9} parent=39 // pred_region
        %s231 = smul.u32 32, %s13
        %p232 = scmp.lt.s32.totalorder %s231, 63
        %s233 = scalar_select %p232, %s231, 63
        %s234 = smul.addr %s233, 4
        %s235 = scalar_lea.vmem %s0, %s234
        %s236 = smul.u32 32, %s13
      $region44: #{pointnet2_msg_forward.9} parent=39 // pred_fallthru
        _
    $region40: #{pointnet2_msg_forward.9} parent=5 // pred_fallthru
      _
    %p237 = scmp.le.s32.totalorder 1, %s13
    %p238 = scmp.lt.s32.totalorder %s13, 3
    %p239 = pnand %p237, %p238
    %p240 = pneg %p239
    // Predicated region
    $region45: #{pointnet2_msg_forward.9} parent=5 // pred_check
      _
    $region46: #{pointnet2_msg_forward.9} parent=5 // pred_check_branch
      %242 = sbr.rel (%p239) target = $region48
    $region47: #{pointnet2_msg_forward.9} parent=5 // pred_region
      %s243 = ssub.s32 %s13, 1
      %s244 = smul.u32 32, %s18
      %p245 = scmp.lt.s32.totalorder %s244, 63
      %s246 = scalar_select %p245, %s244, 63
      %s247 = smul.addr %s246, 4
      %s248 = scalar_lea.vmem %s0, %s247
      %p249 = pneg %p39
      %p250 = pneg %p36
      %p251 = pneg %p60
      %p252 = pneg %p57
      %p253 = pneg %p81
      %p254 = pneg %p78
      %p255 = pneg %p102
      %p256 = pneg %p99
      %p257 = pneg %p123
      %p258 = pneg %p120
      %p259 = pneg %p144
      %p260 = pneg %p141
      %p261 = pneg %p165
      %p262 = pneg %p162
      %p263 = pneg %p191
      %p264 = pneg %p188
      %s265 = smul.u32 4, %s18
      %p266 = scmp.lt.s32.totalorder %s265, 7
      %s267 = scalar_select %p266, %s265, 7
      %s268 = smul.addr %s267, 8
      %s269 = scalar_lea.vmem %s7, %s268
      %s270 = smul.u32 32, %s18
      %p271 = scmp.lt.s32.totalorder %s270, 63
      %s272 = scalar_select %p271, %s270, 63
      %s273 = smul.addr %s272, 4
      %s274 = scalar_lea.vmem %s0, %s273
      %s275 = smul.u32 32, %s18
      %s276 = smul.u32 4, %s18
      %p277 = scmp.lt.s32.totalorder %s276, 7
      %s278 = scalar_select %p277, %s276, 7
      %s279 = smul.addr %s278, 8
      %s280 = scalar_lea.vmem %s7, %s279
      %s281 = smul.u32 4, %s18
      %v283 = vld [vmem:[%s274] sm:$0xf]
      %v284 = vld [vmem:[%s274 + $0x4] sm:$0xf]
      %v285 = vld [vmem:[%s274 + $0x8] sm:$0xf]
      %v286 = vld [vmem:[%s274 + $0xc] sm:$0xf]
      %v287 = vld [vmem:[%s274 + $0x10] sm:$0xf]
      %v288 = vld [vmem:[%s274 + $0x14] sm:$0xf]
      %v289 = vld [vmem:[%s274 + $0x18] sm:$0xf]
      %v290 = vld [vmem:[%s274 + $0x1c] sm:$0xf]
      %v291 = vld [vmem:[%s274 + $0x20] sm:$0xf]
      %v292 = vld [vmem:[%s274 + $0x24] sm:$0xf]
      %v293 = vld [vmem:[%s274 + $0x28] sm:$0xf]
      %v294 = vld [vmem:[%s274 + $0x2c] sm:$0xf]
      %v295 = vld [vmem:[%s274 + $0x30] sm:$0xf]
      %v296 = vld [vmem:[%s274 + $0x34] sm:$0xf]
      %v297 = vld [vmem:[%s274 + $0x38] sm:$0xf]
      %v298 = vld [vmem:[%s274 + $0x3c] sm:$0xf]
      %v299 = vld [vmem:[%s274 + $0x40] sm:$0xf]
      %v300 = vld [vmem:[%s274 + $0x44] sm:$0xf]
      %v301 = vld [vmem:[%s274 + $0x48] sm:$0xf]
      %v302 = vld [vmem:[%s274 + $0x4c] sm:$0xf]
      %v303 = vld [vmem:[%s274 + $0x50] sm:$0xf]
      %v304 = vld [vmem:[%s274 + $0x54] sm:$0xf]
      %v305 = vld [vmem:[%s274 + $0x58] sm:$0xf]
      %v306 = vld [vmem:[%s274 + $0x5c] sm:$0xf]
      %v307 = vld [vmem:[%s274 + $0x60] sm:$0xf]
      %v308 = vld [vmem:[%s274 + $0x64] sm:$0xf]
      %v309 = vld [vmem:[%s274 + $0x68] sm:$0xf]
      %v310 = vld [vmem:[%s274 + $0x6c] sm:$0xf]
      %v311 = vld [vmem:[%s274 + $0x70] sm:$0xf]
      %v312 = vld [vmem:[%s274 + $0x74] sm:$0xf]
      %v313 = vld [vmem:[%s274 + $0x78] sm:$0xf]
      %v314 = vld [vmem:[%s274 + $0x7c] sm:$0xf]
      %v315 = vld [vmem:[%s1] sm:$0x7]
      %v316 = vld [vmem:[%s2] sm:$0x1]
      %v318 = vlaneseq
      %v319 = vshrl.u32 %v318, 7
      %v320 = vsub.s32 0, %v319
      %v321 = vrot.slane %v316, %v320
      %v355 = vunpack.c.l.b16 %v283
      %v356 = vunpack.c.l.b16 %v284
      %v357 = vunpack.c.l.b16 %v285
      %v358 = vunpack.c.l.b16 %v286
      %v359 = vunpack.c.l.b16 %v287
      %v360 = vunpack.c.l.b16 %v288
      %v361 = vunpack.c.l.b16 %v289
      %v362 = vunpack.c.l.b16 %v290
      %v363 = vunpack.c.l.b16 %v291
      %v364 = vunpack.c.l.b16 %v292
      %v365 = vunpack.c.l.b16 %v293
      %v366 = vunpack.c.l.b16 %v294
      %v367 = vunpack.c.l.b16 %v295
      %v368 = vunpack.c.l.b16 %v296
      %v369 = vunpack.c.l.b16 %v297
      %v370 = vunpack.c.l.b16 %v298
      %v371 = vunpack.c.l.b16 %v299
      %v372 = vunpack.c.l.b16 %v300
      %v373 = vunpack.c.l.b16 %v301
      %v374 = vunpack.c.l.b16 %v302
      %v375 = vunpack.c.l.b16 %v303
      %v376 = vunpack.c.l.b16 %v304
      %v377 = vunpack.c.l.b16 %v305
      %v378 = vunpack.c.l.b16 %v306
      %v379 = vunpack.c.l.b16 %v307
      %v380 = vunpack.c.l.b16 %v308
      %v381 = vunpack.c.l.b16 %v309
      %v382 = vunpack.c.l.b16 %v310
      %v383 = vunpack.c.l.b16 %v311
      %v384 = vunpack.c.l.b16 %v312
      %v385 = vunpack.c.l.b16 %v313
      %v386 = vunpack.c.l.b16 %v314
      %v387 = vpack.c.b16 %v356, %v355
      %v388 = vpack.c.b16 %v358, %v357
      %v389 = vpack.c.b16 %v360, %v359
      %v390 = vpack.c.b16 %v362, %v361
      %v391 = vpack.c.b16 %v364, %v363
      %v392 = vpack.c.b16 %v366, %v365
      %v393 = vpack.c.b16 %v368, %v367
      %v394 = vpack.c.b16 %v370, %v369
      %v395 = vpack.c.b16 %v372, %v371
      %v396 = vpack.c.b16 %v374, %v373
      %v397 = vpack.c.b16 %v376, %v375
      %v398 = vpack.c.b16 %v378, %v377
      %v399 = vpack.c.b16 %v380, %v379
      %v400 = vpack.c.b16 %v382, %v381
      %v401 = vpack.c.b16 %v384, %v383
      %v402 = vpack.c.b16 %v386, %v385
      %vm403 = vcmask 48128
      %v405 = vsel %vm403, %v387, 0
      %v408 = vsel %vm403, %v388, 0
      %v411 = vsel %vm403, %v389, 0
      %v414 = vsel %vm403, %v390, 0
      %v417 = vsel %vm403, %v391, 0
      %v420 = vsel %vm403, %v392, 0
      %v423 = vsel %vm403, %v393, 0
      %v426 = vsel %vm403, %v394, 0
      %v429 = vsel %vm403, %v395, 0
      %v432 = vsel %vm403, %v396, 0
      %v435 = vsel %vm403, %v397, 0
      %v438 = vsel %vm403, %v398, 0
      %v441 = vsel %vm403, %v399, 0
      %v444 = vsel %vm403, %v400, 0
      %v447 = vsel %vm403, %v401, 0
      %v450 = vsel %vm403, %v402, 0
      %vm452 = vcmask 1042432
      %v454 = vsel %vm452, %v315, 0
      %456 = vmatprep.subr.bf16.mxu0 0
      %457 = vmatpush1.bf16.msra.mxu0 0
      %458 = vmatprep.subr.bf16.mxu0 0
      %459 = vmatpush1.bf16.msra.mxu0 0
      %460 = vmatprep.subr.bf16.mxu0 0
      %461 = vmatpush1.bf16.msra.mxu0 0
      %462 = vmatprep.subr.bf16.mxu0 0
      %463 = vmatpush1.bf16.msra.mxu0 0
      %464 = vmatprep.subr.bf16.mxu0 0
      %465 = vmatpush1.bf16.msra.mxu0 0
      %466 = vmatprep.subr.bf16.mxu0 0
      %467 = vmatpush1.bf16.msra.mxu0 0
      %468 = vmatprep.subr.bf16.mxu0 0
      %469 = vmatpush1.bf16.msra.mxu0 0
      %470 = vmatprep.subr.bf16.mxu0 0
      %471 = vmatpush1.bf16.msra.mxu0 %v454
      %472 = vmatprep.subr.bf16.mxu0 0
      %473 = vmatpush2.bf16.msra.mxu0 0
      %474 = vmatprep.subr.bf16.mxu0 0
      %475 = vmatpush2.bf16.msra.mxu0 0
      %476 = vmatprep.subr.bf16.mxu0 0
      %477 = vmatpush2.bf16.msra.mxu0 0
      %478 = vmatprep.subr.bf16.mxu0 0
      %479 = vmatpush2.bf16.msra.mxu0 0
      %480 = vmatprep.subr.bf16.mxu0 0
      %481 = vmatpush2.bf16.msra.mxu0 0
      %482 = vmatprep.subr.bf16.mxu0 0
      %483 = vmatpush2.bf16.msra.mxu0 0
      %484 = vmatprep.subr.bf16.mxu0 0
      %485 = vmatpush2.bf16.msra.mxu0 0
      %486 = vmatprep.subr.bf16.mxu0 0
      %487 = vmatpush2.bf16.msra.mxu0 0
      %488 = vmatprep.mubr.bf16.mxu0 0
      %489 = vmatmul.mubr.bf16.gmra.mxu0 %v405
      %v490 = vpop.f32.mrf.mxu0
      %v491 = vadd.f32 %v321, %v490
      %v492 = vpop.f32.mrf.mxu0
      %v493 = vpop.f32.mrf.mxu0
      %v494 = vadd.f32 %v321, %v493
      %v495 = vpop.f32.mrf.mxu0
      %496 = vmatprep.mubr.bf16.mxu0 0
      %497 = vmatmul.mubr.bf16.gmra.mxu0 %v408
      %v498 = vpop.f32.mrf.mxu0
      %v499 = vadd.f32 %v321, %v498
      %v500 = vpop.f32.mrf.mxu0
      %v501 = vpop.f32.mrf.mxu0
      %v502 = vadd.f32 %v321, %v501
      %v503 = vpop.f32.mrf.mxu0
      %504 = vmatprep.mubr.bf16.mxu0 0
      %505 = vmatmul.mubr.bf16.gmra.mxu0 %v411
      %v506 = vpop.f32.mrf.mxu0
      %v507 = vadd.f32 %v321, %v506
      %v508 = vpop.f32.mrf.mxu0
      %v509 = vpop.f32.mrf.mxu0
      %v510 = vadd.f32 %v321, %v509
      %v511 = vpop.f32.mrf.mxu0
      %512 = vmatprep.mubr.bf16.mxu0 0
      %513 = vmatmul.mubr.bf16.gmra.mxu0 %v414
      %v514 = vpop.f32.mrf.mxu0
      %v515 = vadd.f32 %v321, %v514
      %v516 = vpop.f32.mrf.mxu0
      %v517 = vpop.f32.mrf.mxu0
      %v518 = vadd.f32 %v321, %v517
      %v519 = vpop.f32.mrf.mxu0
      %520 = vmatprep.mubr.bf16.mxu0 0
      %521 = vmatmul.mubr.bf16.gmra.mxu0 %v417
      %v522 = vpop.f32.mrf.mxu0
      %v523 = vadd.f32 %v321, %v522
      %v524 = vpop.f32.mrf.mxu0
      %v525 = vpop.f32.mrf.mxu0
      %v526 = vadd.f32 %v321, %v525
      %v527 = vpop.f32.mrf.mxu0
      %528 = vmatprep.mubr.bf16.mxu0 0
      %529 = vmatmul.mubr.bf16.gmra.mxu0 %v420
      %v530 = vpop.f32.mrf.mxu0
      %v531 = vadd.f32 %v321, %v530
      %v532 = vpop.f32.mrf.mxu0
      %v533 = vpop.f32.mrf.mxu0
      %v534 = vadd.f32 %v321, %v533
      %v535 = vpop.f32.mrf.mxu0
      %536 = vmatprep.mubr.bf16.mxu0 0
      %537 = vmatmul.mubr.bf16.gmra.mxu0 %v423
      %v538 = vpop.f32.mrf.mxu0
      %v539 = vadd.f32 %v321, %v538
      %v540 = vpop.f32.mrf.mxu0
      %v541 = vpop.f32.mrf.mxu0
      %v542 = vadd.f32 %v321, %v541
      %v543 = vpop.f32.mrf.mxu0
      %544 = vmatprep.mubr.bf16.mxu0 0
      %545 = vmatmul.mubr.bf16.gmra.mxu0 %v426
      %v546 = vpop.f32.mrf.mxu0
      %v547 = vadd.f32 %v321, %v546
      %v548 = vpop.f32.mrf.mxu0
      %v549 = vpop.f32.mrf.mxu0
      %v550 = vadd.f32 %v321, %v549
      %v551 = vpop.f32.mrf.mxu0
      %552 = vmatprep.mubr.bf16.mxu0 0
      %553 = vmatmul.mubr.bf16.gmra.mxu0 %v429
      %v554 = vpop.f32.mrf.mxu0
      %v555 = vadd.f32 %v321, %v554
      %v556 = vpop.f32.mrf.mxu0
      %v557 = vpop.f32.mrf.mxu0
      %v558 = vadd.f32 %v321, %v557
      %v559 = vpop.f32.mrf.mxu0
      %560 = vmatprep.mubr.bf16.mxu0 0
      %561 = vmatmul.mubr.bf16.gmra.mxu0 %v432
      %v562 = vpop.f32.mrf.mxu0
      %v563 = vadd.f32 %v321, %v562
      %v564 = vpop.f32.mrf.mxu0
      %v565 = vpop.f32.mrf.mxu0
      %v566 = vadd.f32 %v321, %v565
      %v567 = vpop.f32.mrf.mxu0
      %568 = vmatprep.mubr.bf16.mxu0 0
      %569 = vmatmul.mubr.bf16.gmra.mxu0 %v435
      %v570 = vpop.f32.mrf.mxu0
      %v571 = vadd.f32 %v321, %v570
      %v572 = vpop.f32.mrf.mxu0
      %v573 = vpop.f32.mrf.mxu0
      %v574 = vadd.f32 %v321, %v573
      %v575 = vpop.f32.mrf.mxu0
      %576 = vmatprep.mubr.bf16.mxu0 0
      %577 = vmatmul.mubr.bf16.gmra.mxu0 %v438
      %v578 = vpop.f32.mrf.mxu0
      %v579 = vadd.f32 %v321, %v578
      %v580 = vpop.f32.mrf.mxu0
      %v581 = vpop.f32.mrf.mxu0
      %v582 = vadd.f32 %v321, %v581
      %v583 = vpop.f32.mrf.mxu0
      %584 = vmatprep.mubr.bf16.mxu0 0
      %585 = vmatmul.mubr.bf16.gmra.mxu0 %v441
      %v586 = vpop.f32.mrf.mxu0
      %v587 = vadd.f32 %v321, %v586
      %v588 = vpop.f32.mrf.mxu0
      %v589 = vpop.f32.mrf.mxu0
      %v590 = vadd.f32 %v321, %v589
      %v591 = vpop.f32.mrf.mxu0
      %592 = vmatprep.mubr.bf16.mxu0 0
      %593 = vmatmul.mubr.bf16.gmra.mxu0 %v444
      %v594 = vpop.f32.mrf.mxu0
      %v595 = vadd.f32 %v321, %v594
      %v596 = vpop.f32.mrf.mxu0
      %v597 = vpop.f32.mrf.mxu0
      %v598 = vadd.f32 %v321, %v597
      %v599 = vpop.f32.mrf.mxu0
      %600 = vmatprep.mubr.bf16.mxu0 0
      %601 = vmatmul.mubr.bf16.gmra.mxu0 %v447
      %v602 = vpop.f32.mrf.mxu0
      %v603 = vadd.f32 %v321, %v602
      %v604 = vpop.f32.mrf.mxu0
      %v605 = vpop.f32.mrf.mxu0
      %v606 = vadd.f32 %v321, %v605
      %v607 = vpop.f32.mrf.mxu0
      %608 = vmatprep.mubr.bf16.mxu0 0
      %609 = vmatmul.mubr.bf16.gmra.mxu0 %v450
      %v610 = vpop.f32.mrf.mxu0
      %v611 = vadd.f32 %v321, %v610
      %v612 = vpop.f32.mrf.mxu0
      %v613 = vpop.f32.mrf.mxu0
      %v614 = vadd.f32 %v321, %v613
      %v615 = vpop.f32.mrf.mxu0
      %616 = vdwg.mxu0
      %v617 = vmax.f32 %v491, 0.0
      %v618 = vmax.f32 %v494, 0.0
      %v619 = vmax.f32 %v499, 0.0
      %v620 = vmax.f32 %v502, 0.0
      %v621 = vmax.f32 %v507, 0.0
      %v622 = vmax.f32 %v510, 0.0
      %v623 = vmax.f32 %v515, 0.0
      %v624 = vmax.f32 %v518, 0.0
      %v625 = vmax.f32 %v523, 0.0
      %v626 = vmax.f32 %v526, 0.0
      %v627 = vmax.f32 %v531, 0.0
      %v628 = vmax.f32 %v534, 0.0
      %v629 = vmax.f32 %v539, 0.0
      %v630 = vmax.f32 %v542, 0.0
      %v631 = vmax.f32 %v547, 0.0
      %v632 = vmax.f32 %v550, 0.0
      %v633 = vmax.f32 %v555, 0.0
      %v634 = vmax.f32 %v558, 0.0
      %v635 = vmax.f32 %v563, 0.0
      %v636 = vmax.f32 %v566, 0.0
      %v637 = vmax.f32 %v571, 0.0
      %v638 = vmax.f32 %v574, 0.0
      %v639 = vmax.f32 %v579, 0.0
      %v640 = vmax.f32 %v582, 0.0
      %v641 = vmax.f32 %v587, 0.0
      %v642 = vmax.f32 %v590, 0.0
      %v643 = vmax.f32 %v595, 0.0
      %v644 = vmax.f32 %v598, 0.0
      %v645 = vmax.f32 %v603, 0.0
      %v646 = vmax.f32 %v606, 0.0
      %v647 = vmax.f32 %v611, 0.0
      %v648 = vmax.f32 %v614, 0.0
      %v649 = vld [vmem:[%s3] sm:$0xf]
      %v650 = vld [vmem:[%s3 + $0x4] sm:$0xf]
      %v651 = vld [vmem:[%s3 + $0x8] sm:$0xf]
      %v652 = vld [vmem:[%s3 + $0xc] sm:$0xf]
      %v653 = vld [vmem:[%s3 + $0x10] sm:$0xf]
      %v654 = vld [vmem:[%s3 + $0x14] sm:$0xf]
      %v655 = vld [vmem:[%s3 + $0x18] sm:$0xf]
      %v656 = vld [vmem:[%s3 + $0x1c] sm:$0xf]
      %v657 = vld [vmem:[%s3 + $0x20] sm:$0xf]
      %v658 = vld [vmem:[%s3 + $0x24] sm:$0xf]
      %v659 = vld [vmem:[%s3 + $0x28] sm:$0xf]
      %v660 = vld [vmem:[%s3 + $0x2c] sm:$0xf]
      %v661 = vld [vmem:[%s3 + $0x30] sm:$0xf]
      %v662 = vld [vmem:[%s3 + $0x34] sm:$0xf]
      %v663 = vld [vmem:[%s3 + $0x38] sm:$0xf]
      %v664 = vld [vmem:[%s3 + $0x3c] sm:$0xf]
      %v665 = vld [vmem:[%s4] sm:$0x1]
      %v666 = vpack.c.bf16 %v618, %v617
      %v667 = vpack.c.bf16 %v620, %v619
      %v668 = vpack.c.bf16 %v622, %v621
      %v669 = vpack.c.bf16 %v624, %v623
      %v670 = vpack.c.bf16 %v626, %v625
      %v671 = vpack.c.bf16 %v628, %v627
      %v672 = vpack.c.bf16 %v630, %v629
      %v673 = vpack.c.bf16 %v632, %v631
      %v674 = vpack.c.bf16 %v634, %v633
      %v675 = vpack.c.bf16 %v636, %v635
      %v676 = vpack.c.bf16 %v638, %v637
      %v677 = vpack.c.bf16 %v640, %v639
      %v678 = vpack.c.bf16 %v642, %v641
      %v679 = vpack.c.bf16 %v644, %v643
      %v680 = vpack.c.bf16 %v646, %v645
      %v681 = vpack.c.bf16 %v648, %v647
      %v683 = vlaneseq
      %v684 = vshrl.u32 %v683, 7
      %v685 = vsub.s32 0, %v684
      %v686 = vrot.slane %v665, %v685
      %v704 = vunpack.c.l.b16 %v649
      %v705 = vunpack.c.l.b16 %v650
      %v706 = vunpack.c.l.b16 %v651
      %v707 = vunpack.c.l.b16 %v652
      %v708 = vunpack.c.l.b16 %v653
      %v709 = vunpack.c.l.b16 %v654
      %v710 = vunpack.c.l.b16 %v655
      %v711 = vunpack.c.l.b16 %v656
      %v712 = vunpack.c.l.b16 %v657
      %v713 = vunpack.c.l.b16 %v658
      %v714 = vunpack.c.l.b16 %v659
      %v715 = vunpack.c.l.b16 %v660
      %v716 = vunpack.c.l.b16 %v661
      %v717 = vunpack.c.l.b16 %v662
      %v718 = vunpack.c.l.b16 %v663
      %v719 = vunpack.c.l.b16 %v664
      %v720 = vpack.c.b16 %v705, %v704
      %v721 = vpack.c.b16 %v707, %v706
      %v722 = vpack.c.b16 %v709, %v708
      %v723 = vpack.c.b16 %v711, %v710
      %v724 = vpack.c.b16 %v713, %v712
      %v725 = vpack.c.b16 %v715, %v714
      %v726 = vpack.c.b16 %v717, %v716
      %v727 = vpack.c.b16 %v719, %v718
      %736 = vmatprep.subr.bf16.mxu0 0
      %737 = vmatpush1.bf16.msra.mxu0 %v727
      %738 = vmatprep.subr.bf16.mxu0 0
      %739 = vmatpush1.bf16.msra.mxu0 %v726
      %740 = vmatprep.subr.bf16.mxu0 0
      %741 = vmatpush1.bf16.msra.mxu0 %v725
      %742 = vmatprep.subr.bf16.mxu0 0
      %743 = vmatpush1.bf16.msra.mxu0 %v724
      %744 = vmatprep.subr.bf16.mxu0 0
      %745 = vmatpush1.bf16.msra.mxu0 %v723
      %746 = vmatprep.subr.bf16.mxu0 0
      %747 = vmatpush1.bf16.msra.mxu0 %v722
      %748 = vmatprep.subr.bf16.mxu0 0
      %749 = vmatpush1.bf16.msra.mxu0 %v721
      %750 = vmatprep.subr.bf16.mxu0 0
      %751 = vmatpush1.bf16.msra.mxu0 %v720
      %752 = vmatprep.subr.bf16.mxu0 0
      %753 = vmatpush2.bf16.msra.mxu0 0
      %754 = vmatprep.subr.bf16.mxu0 0
      %755 = vmatpush2.bf16.msra.mxu0 0
      %756 = vmatprep.subr.bf16.mxu0 0
      %757 = vmatpush2.bf16.msra.mxu0 0
      %758 = vmatprep.subr.bf16.mxu0 0
      %759 = vmatpush2.bf16.msra.mxu0 0
      %760 = vmatprep.subr.bf16.mxu0 0
      %761 = vmatpush2.bf16.msra.mxu0 0
      %762 = vmatprep.subr.bf16.mxu0 0
      %763 = vmatpush2.bf16.msra.mxu0 0
      %764 = vmatprep.subr.bf16.mxu0 0
      %765 = vmatpush2.bf16.msra.mxu0 0
      %766 = vmatprep.subr.bf16.mxu0 0
      %767 = vmatpush2.bf16.msra.mxu0 0
      %768 = vmatprep.mubr.bf16.mxu0 0
      %769 = vmatmul.mubr.bf16.gmra.mxu0 %v666
      %v770 = vpop.f32.mrf.mxu0
      %v771 = vadd.f32 %v686, %v770
      %v772 = vpop.f32.mrf.mxu0
      %v773 = vpop.f32.mrf.mxu0
      %v774 = vadd.f32 %v686, %v773
      %v775 = vpop.f32.mrf.mxu0
      %776 = vmatprep.mubr.bf16.mxu0 0
      %777 = vmatmul.mubr.bf16.gmra.mxu0 %v667
      %v778 = vpop.f32.mrf.mxu0
      %v779 = vadd.f32 %v686, %v778
      %v780 = vpop.f32.mrf.mxu0
      %v781 = vpop.f32.mrf.mxu0
      %v782 = vadd.f32 %v686, %v781
      %v783 = vpop.f32.mrf.mxu0
      %784 = vmatprep.mubr.bf16.mxu0 0
      %785 = vmatmul.mubr.bf16.gmra.mxu0 %v668
      %v786 = vpop.f32.mrf.mxu0
      %v787 = vadd.f32 %v686, %v786
      %v788 = vpop.f32.mrf.mxu0
      %v789 = vpop.f32.mrf.mxu0
      %v790 = vadd.f32 %v686, %v789
      %v791 = vpop.f32.mrf.mxu0
      %792 = vmatprep.mubr.bf16.mxu0 0
      %793 = vmatmul.mubr.bf16.gmra.mxu0 %v669
      %v794 = vpop.f32.mrf.mxu0
      %v795 = vadd.f32 %v686, %v794
      %v796 = vpop.f32.mrf.mxu0
      %v797 = vpop.f32.mrf.mxu0
      %v798 = vadd.f32 %v686, %v797
      %v799 = vpop.f32.mrf.mxu0
      %800 = vmatprep.mubr.bf16.mxu0 0
      %801 = vmatmul.mubr.bf16.gmra.mxu0 %v670
      %v802 = vpop.f32.mrf.mxu0
      %v803 = vadd.f32 %v686, %v802
      %v804 = vpop.f32.mrf.mxu0
      %v805 = vpop.f32.mrf.mxu0
      %v806 = vadd.f32 %v686, %v805
      %v807 = vpop.f32.mrf.mxu0
      %808 = vmatprep.mubr.bf16.mxu0 0
      %809 = vmatmul.mubr.bf16.gmra.mxu0 %v671
      %v810 = vpop.f32.mrf.mxu0
      %v811 = vadd.f32 %v686, %v810
      %v812 = vpop.f32.mrf.mxu0
      %v813 = vpop.f32.mrf.mxu0
      %v814 = vadd.f32 %v686, %v813
      %v815 = vpop.f32.mrf.mxu0
      %816 = vmatprep.mubr.bf16.mxu0 0
      %817 = vmatmul.mubr.bf16.gmra.mxu0 %v672
      %v818 = vpop.f32.mrf.mxu0
      %v819 = vadd.f32 %v686, %v818
      %v820 = vpop.f32.mrf.mxu0
      %v821 = vpop.f32.mrf.mxu0
      %v822 = vadd.f32 %v686, %v821
      %v823 = vpop.f32.mrf.mxu0
      %824 = vmatprep.mubr.bf16.mxu0 0
      %825 = vmatmul.mubr.bf16.gmra.mxu0 %v673
      %v826 = vpop.f32.mrf.mxu0
      %v827 = vadd.f32 %v686, %v826
      %v828 = vpop.f32.mrf.mxu0
      %v829 = vpop.f32.mrf.mxu0
      %v830 = vadd.f32 %v686, %v829
      %v831 = vpop.f32.mrf.mxu0
      %832 = vmatprep.mubr.bf16.mxu0 0
      %833 = vmatmul.mubr.bf16.gmra.mxu0 %v674
      %v834 = vpop.f32.mrf.mxu0
      %v835 = vadd.f32 %v686, %v834
      %v836 = vpop.f32.mrf.mxu0
      %v837 = vpop.f32.mrf.mxu0
      %v838 = vadd.f32 %v686, %v837
      %v839 = vpop.f32.mrf.mxu0
      %840 = vmatprep.mubr.bf16.mxu0 0
      %841 = vmatmul.mubr.bf16.gmra.mxu0 %v675
      %v842 = vpop.f32.mrf.mxu0
      %v843 = vadd.f32 %v686, %v842
      %v844 = vpop.f32.mrf.mxu0
      %v845 = vpop.f32.mrf.mxu0
      %v846 = vadd.f32 %v686, %v845
      %v847 = vpop.f32.mrf.mxu0
      %848 = vmatprep.mubr.bf16.mxu0 0
      %849 = vmatmul.mubr.bf16.gmra.mxu0 %v676
      %v850 = vpop.f32.mrf.mxu0
      %v851 = vadd.f32 %v686, %v850
      %v852 = vpop.f32.mrf.mxu0
      %v853 = vpop.f32.mrf.mxu0
      %v854 = vadd.f32 %v686, %v853
      %v855 = vpop.f32.mrf.mxu0
      %856 = vmatprep.mubr.bf16.mxu0 0
      %857 = vmatmul.mubr.bf16.gmra.mxu0 %v677
      %v858 = vpop.f32.mrf.mxu0
      %v859 = vadd.f32 %v686, %v858
      %v860 = vpop.f32.mrf.mxu0
      %v861 = vpop.f32.mrf.mxu0
      %v862 = vadd.f32 %v686, %v861
      %v863 = vpop.f32.mrf.mxu0
      %864 = vmatprep.mubr.bf16.mxu0 0
      %865 = vmatmul.mubr.bf16.gmra.mxu0 %v678
      %v866 = vpop.f32.mrf.mxu0
      %v867 = vadd.f32 %v686, %v866
      %v868 = vpop.f32.mrf.mxu0
      %v869 = vpop.f32.mrf.mxu0
      %v870 = vadd.f32 %v686, %v869
      %v871 = vpop.f32.mrf.mxu0
      %872 = vmatprep.mubr.bf16.mxu0 0
      %873 = vmatmul.mubr.bf16.gmra.mxu0 %v679
      %v874 = vpop.f32.mrf.mxu0
      %v875 = vadd.f32 %v686, %v874
      %v876 = vpop.f32.mrf.mxu0
      %v877 = vpop.f32.mrf.mxu0
      %v878 = vadd.f32 %v686, %v877
      %v879 = vpop.f32.mrf.mxu0
      %880 = vmatprep.mubr.bf16.mxu0 0
      %881 = vmatmul.mubr.bf16.gmra.mxu0 %v680
      %v882 = vpop.f32.mrf.mxu0
      %v883 = vadd.f32 %v686, %v882
      %v884 = vpop.f32.mrf.mxu0
      %v885 = vpop.f32.mrf.mxu0
      %v886 = vadd.f32 %v686, %v885
      %v887 = vpop.f32.mrf.mxu0
      %888 = vmatprep.mubr.bf16.mxu0 0
      %889 = vmatmul.mubr.bf16.gmra.mxu0 %v681
      %v890 = vpop.f32.mrf.mxu0
      %v891 = vadd.f32 %v686, %v890
      %v892 = vpop.f32.mrf.mxu0
      %v893 = vpop.f32.mrf.mxu0
      %v894 = vadd.f32 %v686, %v893
      %v895 = vpop.f32.mrf.mxu0
      %896 = vdwg.mxu0
      %v897 = vmax.f32 %v771, 0.0
      %v898 = vmax.f32 %v774, 0.0
      %v899 = vmax.f32 %v779, 0.0
      %v900 = vmax.f32 %v782, 0.0
      %v901 = vmax.f32 %v787, 0.0
      %v902 = vmax.f32 %v790, 0.0
      %v903 = vmax.f32 %v795, 0.0
      %v904 = vmax.f32 %v798, 0.0
      %v905 = vmax.f32 %v803, 0.0
      %v906 = vmax.f32 %v806, 0.0
      %v907 = vmax.f32 %v811, 0.0
      %v908 = vmax.f32 %v814, 0.0
      %v909 = vmax.f32 %v819, 0.0
      %v910 = vmax.f32 %v822, 0.0
      %v911 = vmax.f32 %v827, 0.0
      %v912 = vmax.f32 %v830, 0.0
      %v913 = vmax.f32 %v835, 0.0
      %v914 = vmax.f32 %v838, 0.0
      %v915 = vmax.f32 %v843, 0.0
      %v916 = vmax.f32 %v846, 0.0
      %v917 = vmax.f32 %v851, 0.0
      %v918 = vmax.f32 %v854, 0.0
      %v919 = vmax.f32 %v859, 0.0
      %v920 = vmax.f32 %v862, 0.0
      %v921 = vmax.f32 %v867, 0.0
      %v922 = vmax.f32 %v870, 0.0
      %v923 = vmax.f32 %v875, 0.0
      %v924 = vmax.f32 %v878, 0.0
      %v925 = vmax.f32 %v883, 0.0
      %v926 = vmax.f32 %v886, 0.0
      %v927 = vmax.f32 %v891, 0.0
      %v928 = vmax.f32 %v894, 0.0
      %v929 = vld [vmem:[%s5] sm:$0xf]
      %v930 = vld [vmem:[%s5 + $0x4] sm:$0xf]
      %v931 = vld [vmem:[%s5 + $0x8] sm:$0xf]
      %v932 = vld [vmem:[%s5 + $0xc] sm:$0xf]
      %v933 = vld [vmem:[%s5 + $0x10] sm:$0xf]
      %v934 = vld [vmem:[%s5 + $0x14] sm:$0xf]
      %v935 = vld [vmem:[%s5 + $0x18] sm:$0xf]
      %v936 = vld [vmem:[%s5 + $0x1c] sm:$0xf]
      %v937 = vld [vmem:[%s5 + $0x20] sm:$0xf]
      %v938 = vld [vmem:[%s5 + $0x24] sm:$0xf]
      %v939 = vld [vmem:[%s5 + $0x28] sm:$0xf]
      %v940 = vld [vmem:[%s5 + $0x2c] sm:$0xf]
      %v941 = vld [vmem:[%s5 + $0x30] sm:$0xf]
      %v942 = vld [vmem:[%s5 + $0x34] sm:$0xf]
      %v943 = vld [vmem:[%s5 + $0x38] sm:$0xf]
      %v944 = vld [vmem:[%s5 + $0x3c] sm:$0xf]
      %v945 = vld [vmem:[%s6] sm:$0x1]
      %v946 = vpack.c.bf16 %v898, %v897
      %v947 = vpack.c.bf16 %v900, %v899
      %v948 = vpack.c.bf16 %v902, %v901
      %v949 = vpack.c.bf16 %v904, %v903
      %v950 = vpack.c.bf16 %v906, %v905
      %v951 = vpack.c.bf16 %v908, %v907
      %v952 = vpack.c.bf16 %v910, %v909
      %v953 = vpack.c.bf16 %v912, %v911
      %v954 = vpack.c.bf16 %v914, %v913
      %v955 = vpack.c.bf16 %v916, %v915
      %v956 = vpack.c.bf16 %v918, %v917
      %v957 = vpack.c.bf16 %v920, %v919
      %v958 = vpack.c.bf16 %v922, %v921
      %v959 = vpack.c.bf16 %v924, %v923
      %v960 = vpack.c.bf16 %v926, %v925
      %v961 = vpack.c.bf16 %v928, %v927
      %v963 = vlaneseq
      %v964 = vshrl.u32 %v963, 7
      %v965 = vsub.s32 0, %v964
      %v966 = vrot.slane %v945, %v965
      %v984 = vunpack.c.l.b16 %v929
      %v985 = vunpack.c.l.b16 %v930
      %v986 = vunpack.c.l.b16 %v931
      %v987 = vunpack.c.l.b16 %v932
      %v988 = vunpack.c.l.b16 %v933
      %v989 = vunpack.c.l.b16 %v934
      %v990 = vunpack.c.l.b16 %v935
      %v991 = vunpack.c.l.b16 %v936
      %v992 = vunpack.c.l.b16 %v937
      %v993 = vunpack.c.l.b16 %v938
      %v994 = vunpack.c.l.b16 %v939
      %v995 = vunpack.c.l.b16 %v940
      %v996 = vunpack.c.l.b16 %v941
      %v997 = vunpack.c.l.b16 %v942
      %v998 = vunpack.c.l.b16 %v943
      %v999 = vunpack.c.l.b16 %v944
      %v1000 = vpack.c.b16 %v985, %v984
      %v1001 = vpack.c.b16 %v987, %v986
      %v1002 = vpack.c.b16 %v989, %v988
      %v1003 = vpack.c.b16 %v991, %v990
      %v1004 = vpack.c.b16 %v993, %v992
      %v1005 = vpack.c.b16 %v995, %v994
      %v1006 = vpack.c.b16 %v997, %v996
      %v1007 = vpack.c.b16 %v999, %v998
      %1016 = vmatprep.subr.bf16.mxu0 0
      %1017 = vmatpush1.bf16.msra.mxu0 %v1007
      %1018 = vmatprep.subr.bf16.mxu0 0
      %1019 = vmatpush1.bf16.msra.mxu0 %v1006
      %1020 = vmatprep.subr.bf16.mxu0 0
      %1021 = vmatpush1.bf16.msra.mxu0 %v1005
      %1022 = vmatprep.subr.bf16.mxu0 0
      %1023 = vmatpush1.bf16.msra.mxu0 %v1004
      %1024 = vmatprep.subr.bf16.mxu0 0
      %1025 = vmatpush1.bf16.msra.mxu0 %v1003
      %1026 = vmatprep.subr.bf16.mxu0 0
      %1027 = vmatpush1.bf16.msra.mxu0 %v1002
      %1028 = vmatprep.subr.bf16.mxu0 0
      %1029 = vmatpush1.bf16.msra.mxu0 %v1001
      %1030 = vmatprep.subr.bf16.mxu0 0
      %1031 = vmatpush1.bf16.msra.mxu0 %v1000
      %1032 = vmatprep.subr.bf16.mxu0 0
      %1033 = vmatpush2.bf16.msra.mxu0 0
      %1034 = vmatprep.subr.bf16.mxu0 0
      %1035 = vmatpush2.bf16.msra.mxu0 0
      %1036 = vmatprep.subr.bf16.mxu0 0
      %1037 = vmatpush2.bf16.msra.mxu0 0
      %1038 = vmatprep.subr.bf16.mxu0 0
      %1039 = vmatpush2.bf16.msra.mxu0 0
      %1040 = vmatprep.subr.bf16.mxu0 0
      %1041 = vmatpush2.bf16.msra.mxu0 0
      %1042 = vmatprep.subr.bf16.mxu0 0
      %1043 = vmatpush2.bf16.msra.mxu0 0
      %1044 = vmatprep.subr.bf16.mxu0 0
      %1045 = vmatpush2.bf16.msra.mxu0 0
      %1046 = vmatprep.subr.bf16.mxu0 0
      %1047 = vmatpush2.bf16.msra.mxu0 0
      %1048 = vmatprep.mubr.bf16.mxu0 0
      %1049 = vmatmul.mubr.bf16.gmra.mxu0 %v946
      %v1050 = vpop.f32.mrf.mxu0
      %v1051 = vadd.f32 %v966, %v1050
      %v1052 = vpop.f32.mrf.mxu0
      %v1053 = vpop.f32.mrf.mxu0
      %v1054 = vadd.f32 %v966, %v1053
      %v1055 = vpop.f32.mrf.mxu0
      %1056 = vmatprep.mubr.bf16.mxu0 0
      %1057 = vmatmul.mubr.bf16.gmra.mxu0 %v947
      %v1058 = vpop.f32.mrf.mxu0
      %v1059 = vadd.f32 %v966, %v1058
      %v1060 = vpop.f32.mrf.mxu0
      %v1061 = vpop.f32.mrf.mxu0
      %v1062 = vadd.f32 %v966, %v1061
      %v1063 = vpop.f32.mrf.mxu0
      %1064 = vmatprep.mubr.bf16.mxu0 0
      %1065 = vmatmul.mubr.bf16.gmra.mxu0 %v948
      %v1066 = vpop.f32.mrf.mxu0
      %v1067 = vadd.f32 %v966, %v1066
      %v1068 = vpop.f32.mrf.mxu0
      %v1069 = vpop.f32.mrf.mxu0
      %v1070 = vadd.f32 %v966, %v1069
      %v1071 = vpop.f32.mrf.mxu0
      %1072 = vmatprep.mubr.bf16.mxu0 0
      %1073 = vmatmul.mubr.bf16.gmra.mxu0 %v949
      %v1074 = vpop.f32.mrf.mxu0
      %v1075 = vadd.f32 %v966, %v1074
      %v1076 = vpop.f32.mrf.mxu0
      %v1077 = vpop.f32.mrf.mxu0
      %v1078 = vadd.f32 %v966, %v1077
      %v1079 = vpop.f32.mrf.mxu0
      %1080 = vmatprep.mubr.bf16.mxu0 0
      %1081 = vmatmul.mubr.bf16.gmra.mxu0 %v950
      %v1082 = vpop.f32.mrf.mxu0
      %v1083 = vadd.f32 %v966, %v1082
      %v1084 = vpop.f32.mrf.mxu0
      %v1085 = vpop.f32.mrf.mxu0
      %v1086 = vadd.f32 %v966, %v1085
      %v1087 = vpop.f32.mrf.mxu0
      %1088 = vmatprep.mubr.bf16.mxu0 0
      %1089 = vmatmul.mubr.bf16.gmra.mxu0 %v951
      %v1090 = vpop.f32.mrf.mxu0
      %v1091 = vadd.f32 %v966, %v1090
      %v1092 = vpop.f32.mrf.mxu0
      %v1093 = vpop.f32.mrf.mxu0
      %v1094 = vadd.f32 %v966, %v1093
      %v1095 = vpop.f32.mrf.mxu0
      %1096 = vmatprep.mubr.bf16.mxu0 0
      %1097 = vmatmul.mubr.bf16.gmra.mxu0 %v952
      %v1098 = vpop.f32.mrf.mxu0
      %v1099 = vadd.f32 %v966, %v1098
      %v1100 = vpop.f32.mrf.mxu0
      %v1101 = vpop.f32.mrf.mxu0
      %v1102 = vadd.f32 %v966, %v1101
      %v1103 = vpop.f32.mrf.mxu0
      %1104 = vmatprep.mubr.bf16.mxu0 0
      %1105 = vmatmul.mubr.bf16.gmra.mxu0 %v953
      %v1106 = vpop.f32.mrf.mxu0
      %v1107 = vadd.f32 %v966, %v1106
      %v1108 = vpop.f32.mrf.mxu0
      %v1109 = vpop.f32.mrf.mxu0
      %v1110 = vadd.f32 %v966, %v1109
      %v1111 = vpop.f32.mrf.mxu0
      %1112 = vmatprep.mubr.bf16.mxu0 0
      %1113 = vmatmul.mubr.bf16.gmra.mxu0 %v954
      %v1114 = vpop.f32.mrf.mxu0
      %v1115 = vadd.f32 %v966, %v1114
      %v1116 = vpop.f32.mrf.mxu0
      %v1117 = vpop.f32.mrf.mxu0
      %v1118 = vadd.f32 %v966, %v1117
      %v1119 = vpop.f32.mrf.mxu0
      %1120 = vmatprep.mubr.bf16.mxu0 0
      %1121 = vmatmul.mubr.bf16.gmra.mxu0 %v955
      %v1122 = vpop.f32.mrf.mxu0
      %v1123 = vadd.f32 %v966, %v1122
      %v1124 = vpop.f32.mrf.mxu0
      %v1125 = vpop.f32.mrf.mxu0
      %v1126 = vadd.f32 %v966, %v1125
      %v1127 = vpop.f32.mrf.mxu0
      %1128 = vmatprep.mubr.bf16.mxu0 0
      %1129 = vmatmul.mubr.bf16.gmra.mxu0 %v956
      %v1130 = vpop.f32.mrf.mxu0
      %v1131 = vadd.f32 %v966, %v1130
      %v1132 = vpop.f32.mrf.mxu0
      %v1133 = vpop.f32.mrf.mxu0
      %v1134 = vadd.f32 %v966, %v1133
      %v1135 = vpop.f32.mrf.mxu0
      %1136 = vmatprep.mubr.bf16.mxu0 0
      %1137 = vmatmul.mubr.bf16.gmra.mxu0 %v957
      %v1138 = vpop.f32.mrf.mxu0
      %v1139 = vadd.f32 %v966, %v1138
      %v1140 = vpop.f32.mrf.mxu0
      %v1141 = vpop.f32.mrf.mxu0
      %v1142 = vadd.f32 %v966, %v1141
      %v1143 = vpop.f32.mrf.mxu0
      %1144 = vmatprep.mubr.bf16.mxu0 0
      %1145 = vmatmul.mubr.bf16.gmra.mxu0 %v958
      %v1146 = vpop.f32.mrf.mxu0
      %v1147 = vadd.f32 %v966, %v1146
      %v1148 = vpop.f32.mrf.mxu0
      %v1149 = vpop.f32.mrf.mxu0
      %v1150 = vadd.f32 %v966, %v1149
      %v1151 = vpop.f32.mrf.mxu0
      %1152 = vmatprep.mubr.bf16.mxu0 0
      %1153 = vmatmul.mubr.bf16.gmra.mxu0 %v959
      %v1154 = vpop.f32.mrf.mxu0
      %v1155 = vadd.f32 %v966, %v1154
      %v1156 = vpop.f32.mrf.mxu0
      %v1157 = vpop.f32.mrf.mxu0
      %v1158 = vadd.f32 %v966, %v1157
      %v1159 = vpop.f32.mrf.mxu0
      %1160 = vmatprep.mubr.bf16.mxu0 0
      %1161 = vmatmul.mubr.bf16.gmra.mxu0 %v960
      %v1162 = vpop.f32.mrf.mxu0
      %v1163 = vadd.f32 %v966, %v1162
      %v1164 = vpop.f32.mrf.mxu0
      %v1165 = vpop.f32.mrf.mxu0
      %v1166 = vadd.f32 %v966, %v1165
      %v1167 = vpop.f32.mrf.mxu0
      %1168 = vmatprep.mubr.bf16.mxu0 0
      %1169 = vmatmul.mubr.bf16.gmra.mxu0 %v961
      %v1170 = vpop.f32.mrf.mxu0
      %v1171 = vadd.f32 %v966, %v1170
      %v1172 = vpop.f32.mrf.mxu0
      %v1173 = vpop.f32.mrf.mxu0
      %v1174 = vadd.f32 %v966, %v1173
      %v1175 = vpop.f32.mrf.mxu0
      %1176 = vdwg.mxu0
      %v1177 = vmax.f32 %v1051, 0.0
      %v1178 = vmax.f32 %v1054, 0.0
      %v1179 = vmax.f32 %v1059, 0.0
      %v1180 = vmax.f32 %v1062, 0.0
      %v1181 = vmax.f32 %v1067, 0.0
      %v1182 = vmax.f32 %v1070, 0.0
      %v1183 = vmax.f32 %v1075, 0.0
      %v1184 = vmax.f32 %v1078, 0.0
      %v1185 = vmax.f32 %v1083, 0.0
      %v1186 = vmax.f32 %v1086, 0.0
      %v1187 = vmax.f32 %v1091, 0.0
      %v1188 = vmax.f32 %v1094, 0.0
      %v1189 = vmax.f32 %v1099, 0.0
      %v1190 = vmax.f32 %v1102, 0.0
      %v1191 = vmax.f32 %v1107, 0.0
      %v1192 = vmax.f32 %v1110, 0.0
      %v1193 = vmax.f32 %v1115, 0.0
      %v1194 = vmax.f32 %v1118, 0.0
      %v1195 = vmax.f32 %v1123, 0.0
      %v1196 = vmax.f32 %v1126, 0.0
      %v1197 = vmax.f32 %v1131, 0.0
      %v1198 = vmax.f32 %v1134, 0.0
      %v1199 = vmax.f32 %v1139, 0.0
      %v1200 = vmax.f32 %v1142, 0.0
      %v1201 = vmax.f32 %v1147, 0.0
      %v1202 = vmax.f32 %v1150, 0.0
      %v1203 = vmax.f32 %v1155, 0.0
      %v1204 = vmax.f32 %v1158, 0.0
      %v1205 = vmax.f32 %v1163, 0.0
      %v1206 = vmax.f32 %v1166, 0.0
      %v1207 = vmax.f32 %v1171, 0.0
      %v1208 = vmax.f32 %v1174, 0.0
      %v1209 = vrot.slane %v1177, 4
      %v1210 = vmax.f32 %v1177, %v1209
      %v1211 = vrot.slane %v1210, 2
      %v1212 = vmax.f32 %v1210, %v1211
      %v1213 = vrot.slane %v1212, 1
      %v1214 = vmax.f32 %v1212, %v1213
      %v1215 = vrot.slane %v1178, 4
      %v1216 = vmax.f32 %v1178, %v1215
      %v1217 = vrot.slane %v1216, 2
      %v1218 = vmax.f32 %v1216, %v1217
      %v1219 = vrot.slane %v1218, 1
      %v1220 = vmax.f32 %v1218, %v1219
      %v1221 = vrot.slane %v1179, 4
      %v1222 = vmax.f32 %v1179, %v1221
      %v1223 = vrot.slane %v1222, 2
      %v1224 = vmax.f32 %v1222, %v1223
      %v1225 = vrot.slane %v1224, 1
      %v1226 = vmax.f32 %v1224, %v1225
      %v1227 = vrot.slane %v1180, 4
      %v1228 = vmax.f32 %v1180, %v1227
      %v1229 = vrot.slane %v1228, 2
      %v1230 = vmax.f32 %v1228, %v1229
      %v1231 = vrot.slane %v1230, 1
      %v1232 = vmax.f32 %v1230, %v1231
      %v1233 = vrot.slane %v1181, 4
      %v1234 = vmax.f32 %v1181, %v1233
      %v1235 = vrot.slane %v1234, 2
      %v1236 = vmax.f32 %v1234, %v1235
      %v1237 = vrot.slane %v1236, 1
      %v1238 = vmax.f32 %v1236, %v1237
      %v1239 = vrot.slane %v1182, 4
      %v1240 = vmax.f32 %v1182, %v1239
      %v1241 = vrot.slane %v1240, 2
      %v1242 = vmax.f32 %v1240, %v1241
      %v1243 = vrot.slane %v1242, 1
      %v1244 = vmax.f32 %v1242, %v1243
      %v1245 = vrot.slane %v1183, 4
      %v1246 = vmax.f32 %v1183, %v1245
      %v1247 = vrot.slane %v1246, 2
      %v1248 = vmax.f32 %v1246, %v1247
      %v1249 = vrot.slane %v1248, 1
      %v1250 = vmax.f32 %v1248, %v1249
      %v1251 = vrot.slane %v1184, 4
      %v1252 = vmax.f32 %v1184, %v1251
      %v1253 = vrot.slane %v1252, 2
      %v1254 = vmax.f32 %v1252, %v1253
      %v1255 = vrot.slane %v1254, 1
      %v1256 = vmax.f32 %v1254, %v1255
      %v1257 = vrot.slane %v1185, 4
      %v1258 = vmax.f32 %v1185, %v1257
      %v1259 = vrot.slane %v1258, 2
      %v1260 = vmax.f32 %v1258, %v1259
      %v1261 = vrot.slane %v1260, 1
      %v1262 = vmax.f32 %v1260, %v1261
      %v1263 = vrot.slane %v1186, 4
      %v1264 = vmax.f32 %v1186, %v1263
      %v1265 = vrot.slane %v1264, 2
      %v1266 = vmax.f32 %v1264, %v1265
      %v1267 = vrot.slane %v1266, 1
      %v1268 = vmax.f32 %v1266, %v1267
      %v1269 = vrot.slane %v1187, 4
      %v1270 = vmax.f32 %v1187, %v1269
      %v1271 = vrot.slane %v1270, 2
      %v1272 = vmax.f32 %v1270, %v1271
      %v1273 = vrot.slane %v1272, 1
      %v1274 = vmax.f32 %v1272, %v1273
      %v1275 = vrot.slane %v1188, 4
      %v1276 = vmax.f32 %v1188, %v1275
      %v1277 = vrot.slane %v1276, 2
      %v1278 = vmax.f32 %v1276, %v1277
      %v1279 = vrot.slane %v1278, 1
      %v1280 = vmax.f32 %v1278, %v1279
      %v1281 = vrot.slane %v1189, 4
      %v1282 = vmax.f32 %v1189, %v1281
      %v1283 = vrot.slane %v1282, 2
      %v1284 = vmax.f32 %v1282, %v1283
      %v1285 = vrot.slane %v1284, 1
      %v1286 = vmax.f32 %v1284, %v1285
      %v1287 = vrot.slane %v1190, 4
      %v1288 = vmax.f32 %v1190, %v1287
      %v1289 = vrot.slane %v1288, 2
      %v1290 = vmax.f32 %v1288, %v1289
      %v1291 = vrot.slane %v1290, 1
      %v1292 = vmax.f32 %v1290, %v1291
      %v1293 = vrot.slane %v1191, 4
      %v1294 = vmax.f32 %v1191, %v1293
      %v1295 = vrot.slane %v1294, 2
      %v1296 = vmax.f32 %v1294, %v1295
      %v1297 = vrot.slane %v1296, 1
      %v1298 = vmax.f32 %v1296, %v1297
      %v1299 = vrot.slane %v1192, 4
      %v1300 = vmax.f32 %v1192, %v1299
      %v1301 = vrot.slane %v1300, 2
      %v1302 = vmax.f32 %v1300, %v1301
      %v1303 = vrot.slane %v1302, 1
      %v1304 = vmax.f32 %v1302, %v1303
      %v1305 = vrot.slane %v1193, 4
      %v1306 = vmax.f32 %v1193, %v1305
      %v1307 = vrot.slane %v1306, 2
      %v1308 = vmax.f32 %v1306, %v1307
      %v1309 = vrot.slane %v1308, 1
      %v1310 = vmax.f32 %v1308, %v1309
      %v1311 = vrot.slane %v1194, 4
      %v1312 = vmax.f32 %v1194, %v1311
      %v1313 = vrot.slane %v1312, 2
      %v1314 = vmax.f32 %v1312, %v1313
      %v1315 = vrot.slane %v1314, 1
      %v1316 = vmax.f32 %v1314, %v1315
      %v1317 = vrot.slane %v1195, 4
      %v1318 = vmax.f32 %v1195, %v1317
      %v1319 = vrot.slane %v1318, 2
      %v1320 = vmax.f32 %v1318, %v1319
      %v1321 = vrot.slane %v1320, 1
      %v1322 = vmax.f32 %v1320, %v1321
      %v1323 = vrot.slane %v1196, 4
      %v1324 = vmax.f32 %v1196, %v1323
      %v1325 = vrot.slane %v1324, 2
      %v1326 = vmax.f32 %v1324, %v1325
      %v1327 = vrot.slane %v1326, 1
      %v1328 = vmax.f32 %v1326, %v1327
      %v1329 = vrot.slane %v1197, 4
      %v1330 = vmax.f32 %v1197, %v1329
      %v1331 = vrot.slane %v1330, 2
      %v1332 = vmax.f32 %v1330, %v1331
      %v1333 = vrot.slane %v1332, 1
      %v1334 = vmax.f32 %v1332, %v1333
      %v1335 = vrot.slane %v1198, 4
      %v1336 = vmax.f32 %v1198, %v1335
      %v1337 = vrot.slane %v1336, 2
      %v1338 = vmax.f32 %v1336, %v1337
      %v1339 = vrot.slane %v1338, 1
      %v1340 = vmax.f32 %v1338, %v1339
      %v1341 = vrot.slane %v1199, 4
      %v1342 = vmax.f32 %v1199, %v1341
      %v1343 = vrot.slane %v1342, 2
      %v1344 = vmax.f32 %v1342, %v1343
      %v1345 = vrot.slane %v1344, 1
      %v1346 = vmax.f32 %v1344, %v1345
      %v1347 = vrot.slane %v1200, 4
      %v1348 = vmax.f32 %v1200, %v1347
      %v1349 = vrot.slane %v1348, 2
      %v1350 = vmax.f32 %v1348, %v1349
      %v1351 = vrot.slane %v1350, 1
      %v1352 = vmax.f32 %v1350, %v1351
      %v1353 = vrot.slane %v1201, 4
      %v1354 = vmax.f32 %v1201, %v1353
      %v1355 = vrot.slane %v1354, 2
      %v1356 = vmax.f32 %v1354, %v1355
      %v1357 = vrot.slane %v1356, 1
      %v1358 = vmax.f32 %v1356, %v1357
      %v1359 = vrot.slane %v1202, 4
      %v1360 = vmax.f32 %v1202, %v1359
      %v1361 = vrot.slane %v1360, 2
      %v1362 = vmax.f32 %v1360, %v1361
      %v1363 = vrot.slane %v1362, 1
      %v1364 = vmax.f32 %v1362, %v1363
      %v1365 = vrot.slane %v1203, 4
      %v1366 = vmax.f32 %v1203, %v1365
      %v1367 = vrot.slane %v1366, 2
      %v1368 = vmax.f32 %v1366, %v1367
      %v1369 = vrot.slane %v1368, 1
      %v1370 = vmax.f32 %v1368, %v1369
      %v1371 = vrot.slane %v1204, 4
      %v1372 = vmax.f32 %v1204, %v1371
      %v1373 = vrot.slane %v1372, 2
      %v1374 = vmax.f32 %v1372, %v1373
      %v1375 = vrot.slane %v1374, 1
      %v1376 = vmax.f32 %v1374, %v1375
      %v1377 = vrot.slane %v1205, 4
      %v1378 = vmax.f32 %v1205, %v1377
      %v1379 = vrot.slane %v1378, 2
      %v1380 = vmax.f32 %v1378, %v1379
      %v1381 = vrot.slane %v1380, 1
      %v1382 = vmax.f32 %v1380, %v1381
      %v1383 = vrot.slane %v1206, 4
      %v1384 = vmax.f32 %v1206, %v1383
      %v1385 = vrot.slane %v1384, 2
      %v1386 = vmax.f32 %v1384, %v1385
      %v1387 = vrot.slane %v1386, 1
      %v1388 = vmax.f32 %v1386, %v1387
      %v1389 = vrot.slane %v1207, 4
      %v1390 = vmax.f32 %v1207, %v1389
      %v1391 = vrot.slane %v1390, 2
      %v1392 = vmax.f32 %v1390, %v1391
      %v1393 = vrot.slane %v1392, 1
      %v1394 = vmax.f32 %v1392, %v1393
      %v1395 = vrot.slane %v1208, 4
      %v1396 = vmax.f32 %v1208, %v1395
      %v1397 = vrot.slane %v1396, 2
      %v1398 = vmax.f32 %v1396, %v1397
      %v1399 = vrot.slane %v1398, 1
      %v1400 = vmax.f32 %v1398, %v1399
      %vm1433 = vcmask 1041409
      %v1434 = vsel %vm1433, %v1220, %v1214
      %vm1435 = vcmask 1042434
      %v1436 = vsel %vm1435, %v1226, %v1434
      %vm1437 = vcmask 1043459
      %v1438 = vsel %vm1437, %v1232, %v1436
      %vm1439 = vcmask 1044484
      %v1440 = vsel %vm1439, %v1238, %v1438
      %vm1441 = vcmask 1045509
      %v1442 = vsel %vm1441, %v1244, %v1440
      %vm1443 = vcmask 1046534
      %v1444 = vsel %vm1443, %v1250, %v1442
      %vm1445 = vcmask 1047559
      %v1446 = vsel %vm1445, %v1256, %v1444
      %v1447 = vsel %vm1433, %v1268, %v1262
      %v1448 = vsel %vm1435, %v1274, %v1447
      %v1449 = vsel %vm1437, %v1280, %v1448
      %v1450 = vsel %vm1439, %v1286, %v1449
      %v1451 = vsel %vm1441, %v1292, %v1450
      %v1452 = vsel %vm1443, %v1298, %v1451
      %v1453 = vsel %vm1445, %v1304, %v1452
      %v1454 = vsel %vm1433, %v1316, %v1310
      %v1455 = vsel %vm1435, %v1322, %v1454
      %v1456 = vsel %vm1437, %v1328, %v1455
      %v1457 = vsel %vm1439, %v1334, %v1456
      %v1458 = vsel %vm1441, %v1340, %v1457
      %v1459 = vsel %vm1443, %v1346, %v1458
      %v1460 = vsel %vm1445, %v1352, %v1459
      %v1461 = vsel %vm1433, %v1364, %v1358
      %v1462 = vsel %vm1435, %v1370, %v1461
      %v1463 = vsel %vm1437, %v1376, %v1462
      %v1464 = vsel %vm1439, %v1382, %v1463
      %v1465 = vsel %vm1441, %v1388, %v1464
      %v1466 = vsel %vm1443, %v1394, %v1465
      %v1467 = vsel %vm1445, %v1400, %v1466
      %1472 = vst [vmem:[%s280] sm:$0xff] %v1446
      %1473 = vst [vmem:[%s280 + $0x8] sm:$0xff] %v1453
      %1474 = vst [vmem:[%s280 + $0x10] sm:$0xff] %v1460
      %1475 = vst [vmem:[%s280 + $0x18] sm:$0xff] %v1467
      %s1476 = smul.u32 4, %s18
      %p1477 = scmp.lt.s32.totalorder %s1476, 7
      %s1478 = scalar_select %p1477, %s1476, 7
      %s1479 = smul.addr %s1478, 8
      %s1480 = scalar_lea.vmem %s7, %s1479
      // Predicated region
      $region49: #{pointnet2_msg_forward.9} parent=47 // pred_check
        %p1481 = pneg %p188
      $region50: #{pointnet2_msg_forward.9} parent=47 // pred_check_branch
        %1483 = sbr.rel (%p1481) target = $region52
      $region51: #{pointnet2_msg_forward.9} parent=47 // pred_region
        %s1484 = smul.u32 4, %s18
      $region52: #{pointnet2_msg_forward.9} parent=47 // pred_fallthru
        _
    $region48: #{pointnet2_msg_forward.9} parent=5 // pred_fallthru
      _
    %p1485 = scmp.le.s32.totalorder 2, %s13
    // Predicated region
    $region53: #{pointnet2_msg_forward.9} parent=5 // pred_check
      %p1486 = pneg %p1485
    $region54: #{pointnet2_msg_forward.9} parent=5 // pred_check_branch
      %1488 = sbr.rel (%p1486) target = $region56
    $region55: #{pointnet2_msg_forward.9} parent=5 // pred_region
      %s1489 = ssub.s32 %s13, 2
      // Predicated region
      $region57: #{pointnet2_msg_forward.9} parent=55 // pred_check
        %p1490 = pneg %p194
      $region58: #{pointnet2_msg_forward.9} parent=55 // pred_check_branch
        %1492 = sbr.rel (%p1490) target = $region60
      $region59: #{pointnet2_msg_forward.9} parent=55 // pred_region
        %s1493 = smul.u32 4, %s19
        %p1494 = scmp.lt.s32.totalorder %s1493, 7
        %s1495 = scalar_select %p1494, %s1493, 7
        %s1496 = smul.addr %s1495, 8
        %s1497 = scalar_lea.vmem %s7, %s1496
      $region60: #{pointnet2_msg_forward.9} parent=55 // pred_fallthru
        _
    $region56: #{pointnet2_msg_forward.9} parent=5 // pred_fallthru
      _
  $region6: #{pointnet2_msg_forward.9} parent=0 // loop_footer
    %s17 = sadd.s32 1, %s13
  $region7: #{pointnet2_msg_forward.9} parent=0 // loop_footer_branch
    %12 = sbr.rel target = $region3
  $region8: #{pointnet2_msg_forward.9} parent=0 // loop_exit
    _

// kernel: pointnet2_msg_forward.11
$region0: #{pointnet2_msg_forward.11}
  #allocation0 [shape = 'u32[]', space=smem, size = 0x4, offset = 0x4, fixed_abs, tag = 'smem constant byte address 0x4 - core index']
  #allocation1 [shape = 'u32[144,128]{1,0:T(1,128)}', space=vmem, size = 0x12000, scoped, tag = 'internal scratch']
  %s0 = inlined_call_operand.vmem [shape: bf16[32,8,67], index: 0, kind: input, shape index: {}]
  %s1 = inlined_call_operand.vmem [shape: bf16[67,128], index: 1, kind: input, shape index: {}]
  %s2 = inlined_call_operand.vmem [shape: f32[1,128], index: 2, kind: input, shape index: {}]
  %s3 = inlined_call_operand.vmem [shape: bf16[128,128], index: 3, kind: input, shape index: {}]
  %s4 = inlined_call_operand.vmem [shape: f32[1,128], index: 4, kind: input, shape index: {}]
  %s5 = inlined_call_operand.vmem [shape: bf16[128,128], index: 5, kind: input, shape index: {}]
  %s6 = inlined_call_operand.vmem [shape: f32[1,128], index: 6, kind: input, shape index: {}]
  %s7 = inlined_call_operand.vmem [shape: f32[32,128], index: 7, kind: output, shape index: {}]
  %s8 = sld [smem:[#allocation0]]
  $region61: #{pointnet2_msg_forward.11} parent=0
    _
  %s10 = ssub.s32 1, %s8
  %s11 = scalar_select 0, %s10, %s8
  loop: start=0, step=1, limit=4
  $region2: #{pointnet2_msg_forward.11} parent=0 // loop_pre_header
    _
  $region3: #{pointnet2_msg_forward.11} parent=0 // loop_header
    %s13 = sphi 0, %s17
    %p14 = scmp.ge.s32.totalorder %s13, 4
    %s23 = sphi 0, %s25
    %s26 = sphi 0, %s23
    %s27 = sphi 0, %s26
    %s43 = sphi 0, %s27
    %s47 = sphi 0, %s47
    %s49 = sphi 0, %s47
    %s50 = sphi 0, %s49
    %s64 = sphi 0, %s50
    %s68 = sphi 0, %s68
    %s70 = sphi 0, %s68
    %s71 = sphi 0, %s70
    %s85 = sphi 0, %s71
    %s89 = sphi 0, %s89
    %s91 = sphi 0, %s89
    %s92 = sphi 0, %s91
    %s106 = sphi 0, %s92
    %s110 = sphi 0, %s110
    %s112 = sphi 0, %s110
    %s113 = sphi 0, %s112
    %s127 = sphi 0, %s113
    %s131 = sphi 0, %s131
    %s133 = sphi 0, %s131
    %s134 = sphi 0, %s133
    %s148 = sphi 0, %s134
    %s152 = sphi 0, %s152
    %s154 = sphi 0, %s152
    %s155 = sphi 0, %s154
    %s169 = sphi 0, %s155
    %s175 = sphi 0, %s177
    %s178 = sphi 0, %s175
    %s179 = sphi 0, %s178
    %s195 = sphi 0, %s179
  $region4: #{pointnet2_msg_forward.11} parent=0 // loop_header_branch
    %16 = sbr.rel (%p14) target = $region8
  $region5: #{pointnet2_msg_forward.11} parent=0 // loop_body
    %s18 = ssub.s32 %s13, 1
    %s19 = ssub.s32 %s13, 2
    %s20 = sadd.s32 %s13, 1
    %s21 = ssub.s32 %s13, %s20
    %p22 = scmp.eq.s32.totalorder %s21, 0
    %s24 = sadd.s32 %s23, 1
    %s25 = scalar_select %p22, %s23, %s24
    %p28 = pneg %p22
    %p29 = scmp.eq.s32.totalorder %s13, 1
    %p30 = por %p28, %p29
    %p31 = scmp.ne.s32.totalorder %s23, %s26
    %p32 = scmp.eq.s32.totalorder %s13, 0
    %p33 = por %p31, %p32
    %p34 = scmp.ne.s32.totalorder %s23, %s26
    %p35 = scmp.eq.s32.totalorder %s18, 1
    %p36 = por %p34, %p35
    %p37 = scmp.ne.s32.totalorder %s26, %s27
    %p38 = scmp.eq.s32.totalorder %s18, 0
    %p39 = por %p37, %p38
    %p40 = scmp.ne.s32.totalorder %s26, %s27
    %p41 = scmp.eq.s32.totalorder %s19, 1
    %p42 = por %p40, %p41
    %p44 = scmp.ne.s32.totalorder %s27, %s43
    %p45 = scmp.eq.s32.totalorder %s19, 0
    %p46 = por %p44, %p45
    %s48 = sadd.s32 %s47, 1
    %p51 = scmp.eq.s32.totalorder %s13, 1
    %p52 = scmp.ne.s32.totalorder %s47, %s49
    %p53 = scmp.eq.s32.totalorder %s13, 0
    %p54 = por %p52, %p53
    %p55 = scmp.ne.s32.totalorder %s47, %s49
    %p56 = scmp.eq.s32.totalorder %s18, 1
    %p57 = por %p55, %p56
    %p58 = scmp.ne.s32.totalorder %s49, %s50
    %p59 = scmp.eq.s32.totalorder %s18, 0
    %p60 = por %p58, %p59
    %p61 = scmp.ne.s32.totalorder %s49, %s50
    %p62 = scmp.eq.s32.totalorder %s19, 1
    %p63 = por %p61, %p62
    %p65 = scmp.ne.s32.totalorder %s50, %s64
    %p66 = scmp.eq.s32.totalorder %s19, 0
    %p67 = por %p65, %p66
    %s69 = sadd.s32 %s68, 1
    %p72 = scmp.eq.s32.totalorder %s13, 1
    %p73 = scmp.ne.s32.totalorder %s68, %s70
    %p74 = scmp.eq.s32.totalorder %s13, 0
    %p75 = por %p73, %p74
    %p76 = scmp.ne.s32.totalorder %s68, %s70
    %p77 = scmp.eq.s32.totalorder %s18, 1
    %p78 = por %p76, %p77
    %p79 = scmp.ne.s32.totalorder %s70, %s71
    %p80 = scmp.eq.s32.totalorder %s18, 0
    %p81 = por %p79, %p80
    %p82 = scmp.ne.s32.totalorder %s70, %s71
    %p83 = scmp.eq.s32.totalorder %s19, 1
    %p84 = por %p82, %p83
    %p86 = scmp.ne.s32.totalorder %s71, %s85
    %p87 = scmp.eq.s32.totalorder %s19, 0
    %p88 = por %p86, %p87
    %s90 = sadd.s32 %s89, 1
    %p93 = scmp.eq.s32.totalorder %s13, 1
    %p94 = scmp.ne.s32.totalorder %s89, %s91
    %p95 = scmp.eq.s32.totalorder %s13, 0
    %p96 = por %p94, %p95
    %p97 = scmp.ne.s32.totalorder %s89, %s91
    %p98 = scmp.eq.s32.totalorder %s18, 1
    %p99 = por %p97, %p98
    %p100 = scmp.ne.s32.totalorder %s91, %s92
    %p101 = scmp.eq.s32.totalorder %s18, 0
    %p102 = por %p100, %p101
    %p103 = scmp.ne.s32.totalorder %s91, %s92
    %p104 = scmp.eq.s32.totalorder %s19, 1
    %p105 = por %p103, %p104
    %p107 = scmp.ne.s32.totalorder %s92, %s106
    %p108 = scmp.eq.s32.totalorder %s19, 0
    %p109 = por %p107, %p108
    %s111 = sadd.s32 %s110, 1
    %p114 = scmp.eq.s32.totalorder %s13, 1
    %p115 = scmp.ne.s32.totalorder %s110, %s112
    %p116 = scmp.eq.s32.totalorder %s13, 0
    %p117 = por %p115, %p116
    %p118 = scmp.ne.s32.totalorder %s110, %s112
    %p119 = scmp.eq.s32.totalorder %s18, 1
    %p120 = por %p118, %p119
    %p121 = scmp.ne.s32.totalorder %s112, %s113
    %p122 = scmp.eq.s32.totalorder %s18, 0
    %p123 = por %p121, %p122
    %p124 = scmp.ne.s32.totalorder %s112, %s113
    %p125 = scmp.eq.s32.totalorder %s19, 1
    %p126 = por %p124, %p125
    %p128 = scmp.ne.s32.totalorder %s113, %s127
    %p129 = scmp.eq.s32.totalorder %s19, 0
    %p130 = por %p128, %p129
    %s132 = sadd.s32 %s131, 1
    %p135 = scmp.eq.s32.totalorder %s13, 1
    %p136 = scmp.ne.s32.totalorder %s131, %s133
    %p137 = scmp.eq.s32.totalorder %s13, 0
    %p138 = por %p136, %p137
    %p139 = scmp.ne.s32.totalorder %s131, %s133
    %p140 = scmp.eq.s32.totalorder %s18, 1
    %p141 = por %p139, %p140
    %p142 = scmp.ne.s32.totalorder %s133, %s134
    %p143 = scmp.eq.s32.totalorder %s18, 0
    %p144 = por %p142, %p143
    %p145 = scmp.ne.s32.totalorder %s133, %s134
    %p146 = scmp.eq.s32.totalorder %s19, 1
    %p147 = por %p145, %p146
    %p149 = scmp.ne.s32.totalorder %s134, %s148
    %p150 = scmp.eq.s32.totalorder %s19, 0
    %p151 = por %p149, %p150
    %s153 = sadd.s32 %s152, 1
    %p156 = scmp.eq.s32.totalorder %s13, 1
    %p157 = scmp.ne.s32.totalorder %s152, %s154
    %p158 = scmp.eq.s32.totalorder %s13, 0
    %p159 = por %p157, %p158
    %p160 = scmp.ne.s32.totalorder %s152, %s154
    %p161 = scmp.eq.s32.totalorder %s18, 1
    %p162 = por %p160, %p161
    %p163 = scmp.ne.s32.totalorder %s154, %s155
    %p164 = scmp.eq.s32.totalorder %s18, 0
    %p165 = por %p163, %p164
    %p166 = scmp.ne.s32.totalorder %s154, %s155
    %p167 = scmp.eq.s32.totalorder %s19, 1
    %p168 = por %p166, %p167
    %p170 = scmp.ne.s32.totalorder %s155, %s169
    %p171 = scmp.eq.s32.totalorder %s19, 0
    %p172 = por %p170, %p171
    %s173 = ssub.s32 %s13, %s20
    %p174 = scmp.eq.s32.totalorder %s173, 0
    %s176 = sadd.s32 %s175, 1
    %s177 = scalar_select %p174, %s175, %s176
    %p180 = pneg %p174
    %p181 = scmp.eq.s32.totalorder %s13, 1
    %p182 = por %p180, %p181
    %p183 = scmp.ne.s32.totalorder %s175, %s178
    %p184 = scmp.eq.s32.totalorder %s13, 0
    %p185 = por %p183, %p184
    %p186 = scmp.ne.s32.totalorder %s175, %s178
    %p187 = scmp.eq.s32.totalorder %s18, 1
    %p188 = por %p186, %p187
    %p189 = scmp.ne.s32.totalorder %s178, %s179
    %p190 = scmp.eq.s32.totalorder %s18, 0
    %p191 = por %p189, %p190
    %p192 = scmp.ne.s32.totalorder %s178, %s179
    %p193 = scmp.eq.s32.totalorder %s19, 1
    %p194 = por %p192, %p193
    %p196 = scmp.ne.s32.totalorder %s179, %s195
    %p197 = scmp.eq.s32.totalorder %s19, 0
    %p198 = por %p196, %p197
    %p199 = scmp.le.s32.totalorder 1, %s13
    %p200 = scmp.lt.s32.totalorder %s13, 3
    %p201 = pnand %p199, %p200
    %p202 = pneg %p201
    // Predicated region
    $region9: #{pointnet2_msg_forward.11} parent=5 // pred_check
      _
    $region10: #{pointnet2_msg_forward.11} parent=5 // pred_check_branch
      %204 = sbr.rel (%p201) target = $region12
    $region11: #{pointnet2_msg_forward.11} parent=5 // pred_region
      %s205 = ssub.s32 %s13, 1
      // Predicated region
      $region13: #{pointnet2_msg_forward.11} parent=11 // pred_check
        %p206 = pneg %p60
      $region14: #{pointnet2_msg_forward.11} parent=11 // pred_check_branch
        %208 = sbr.rel (%p206) target = $region16
      $region15: #{pointnet2_msg_forward.11} parent=11 // pred_region
        _
      $region16: #{pointnet2_msg_forward.11} parent=11 // pred_fallthru
        _
      // Predicated region
      $region17: #{pointnet2_msg_forward.11} parent=11 // pred_check
        %p209 = pneg %p81
      $region18: #{pointnet2_msg_forward.11} parent=11 // pred_check_branch
        %211 = sbr.rel (%p209) target = $region20
      $region19: #{pointnet2_msg_forward.11} parent=11 // pred_region
        _
      $region20: #{pointnet2_msg_forward.11} parent=11 // pred_fallthru
        _
      // Predicated region
      $region21: #{pointnet2_msg_forward.11} parent=11 // pred_check
        %p212 = pneg %p102
      $region22: #{pointnet2_msg_forward.11} parent=11 // pred_check_branch
        %214 = sbr.rel (%p212) target = $region24
      $region23: #{pointnet2_msg_forward.11} parent=11 // pred_region
        _
      $region24: #{pointnet2_msg_forward.11} parent=11 // pred_fallthru
        _
      // Predicated region
      $region25: #{pointnet2_msg_forward.11} parent=11 // pred_check
        %p215 = pneg %p123
      $region26: #{pointnet2_msg_forward.11} parent=11 // pred_check_branch
        %217 = sbr.rel (%p215) target = $region28
      $region27: #{pointnet2_msg_forward.11} parent=11 // pred_region
        _
      $region28: #{pointnet2_msg_forward.11} parent=11 // pred_fallthru
        _
      // Predicated region
      $region29: #{pointnet2_msg_forward.11} parent=11 // pred_check
        %p218 = pneg %p144
      $region30: #{pointnet2_msg_forward.11} parent=11 // pred_check_branch
        %220 = sbr.rel (%p218) target = $region32
      $region31: #{pointnet2_msg_forward.11} parent=11 // pred_region
        _
      $region32: #{pointnet2_msg_forward.11} parent=11 // pred_fallthru
        _
      // Predicated region
      $region33: #{pointnet2_msg_forward.11} parent=11 // pred_check
        %p221 = pneg %p165
      $region34: #{pointnet2_msg_forward.11} parent=11 // pred_check_branch
        %223 = sbr.rel (%p221) target = $region36
      $region35: #{pointnet2_msg_forward.11} parent=11 // pred_region
        _
      $region36: #{pointnet2_msg_forward.11} parent=11 // pred_fallthru
        _
    $region12: #{pointnet2_msg_forward.11} parent=5 // pred_fallthru
      _
    %p224 = scmp.lt.s32.totalorder %s13, 2
    // Predicated region
    $region37: #{pointnet2_msg_forward.11} parent=5 // pred_check
      %p225 = pneg %p224
    $region38: #{pointnet2_msg_forward.11} parent=5 // pred_check_branch
      %227 = sbr.rel (%p225) target = $region40
    $region39: #{pointnet2_msg_forward.11} parent=5 // pred_region
      // Predicated region
      $region41: #{pointnet2_msg_forward.11} parent=39 // pred_check
        %p228 = pneg %p33
      $region42: #{pointnet2_msg_forward.11} parent=39 // pred_check_branch
        %230 = sbr.rel (%p228) target = $region44
      $region43: #{pointnet2_msg_forward.11} parent=39 // pred_region
        %s231 = smul.u32 16, %s13
        %p232 = scmp.lt.s32.totalorder %s231, 31
        %s233 = scalar_select %p232, %s231, 31
        %s234 = smul.addr %s233, 4
        %s235 = scalar_lea.vmem %s0, %s234
        %s236 = smul.u32 16, %s13
      $region44: #{pointnet2_msg_forward.11} parent=39 // pred_fallthru
        _
    $region40: #{pointnet2_msg_forward.11} parent=5 // pred_fallthru
      _
    %p237 = scmp.le.s32.totalorder 1, %s13
    %p238 = scmp.lt.s32.totalorder %s13, 3
    %p239 = pnand %p237, %p238
    %p240 = pneg %p239
    // Predicated region
    $region45: #{pointnet2_msg_forward.11} parent=5 // pred_check
      _
    $region46: #{pointnet2_msg_forward.11} parent=5 // pred_check_branch
      %242 = sbr.rel (%p239) target = $region48
    $region47: #{pointnet2_msg_forward.11} parent=5 // pred_region
      %s243 = ssub.s32 %s13, 1
      %s244 = smul.u32 16, %s18
      %p245 = scmp.lt.s32.totalorder %s244, 31
      %s246 = scalar_select %p245, %s244, 31
      %s247 = smul.addr %s246, 4
      %s248 = scalar_lea.vmem %s0, %s247
      %p249 = pneg %p39
      %p250 = pneg %p36
      %p251 = pneg %p60
      %p252 = pneg %p57
      %p253 = pneg %p81
      %p254 = pneg %p78
      %p255 = pneg %p102
      %p256 = pneg %p99
      %p257 = pneg %p123
      %p258 = pneg %p120
      %p259 = pneg %p144
      %p260 = pneg %p141
      %p261 = pneg %p165
      %p262 = pneg %p162
      %p263 = pneg %p191
      %p264 = pneg %p188
      %s265 = smul.u32 2, %s18
      %p266 = scmp.lt.s32.totalorder %s265, 3
      %s267 = scalar_select %p266, %s265, 3
      %s268 = smul.addr %s267, 8
      %s269 = scalar_lea.vmem %s7, %s268
      %s270 = smul.u32 16, %s18
      %p271 = scmp.lt.s32.totalorder %s270, 31
      %s272 = scalar_select %p271, %s270, 31
      %s273 = smul.addr %s272, 4
      %s274 = scalar_lea.vmem %s0, %s273
      %s275 = smul.u32 16, %s18
      %s276 = smul.u32 2, %s18
      %p277 = scmp.lt.s32.totalorder %s276, 3
      %s278 = scalar_select %p277, %s276, 3
      %s279 = smul.addr %s278, 8
      %s280 = scalar_lea.vmem %s7, %s279
      %s281 = smul.u32 2, %s18
      %v283 = vld [vmem:[%s274] sm:$0xf]
      %v284 = vld [vmem:[%s274 + $0x4] sm:$0xf]
      %v285 = vld [vmem:[%s274 + $0x8] sm:$0xf]
      %v286 = vld [vmem:[%s274 + $0xc] sm:$0xf]
      %v287 = vld [vmem:[%s274 + $0x10] sm:$0xf]
      %v288 = vld [vmem:[%s274 + $0x14] sm:$0xf]
      %v289 = vld [vmem:[%s274 + $0x18] sm:$0xf]
      %v290 = vld [vmem:[%s274 + $0x1c] sm:$0xf]
      %v291 = vld [vmem:[%s274 + $0x20] sm:$0xf]
      %v292 = vld [vmem:[%s274 + $0x24] sm:$0xf]
      %v293 = vld [vmem:[%s274 + $0x28] sm:$0xf]
      %v294 = vld [vmem:[%s274 + $0x2c] sm:$0xf]
      %v295 = vld [vmem:[%s274 + $0x30] sm:$0xf]
      %v296 = vld [vmem:[%s274 + $0x34] sm:$0xf]
      %v297 = vld [vmem:[%s274 + $0x38] sm:$0xf]
      %v298 = vld [vmem:[%s274 + $0x3c] sm:$0xf]
      %v299 = vld [vmem:[%s1] sm:$0xf]
      %v300 = vld [vmem:[%s1 + $0x4] sm:$0xf]
      %v301 = vld [vmem:[%s1 + $0x8] sm:$0xf]
      %v302 = vld [vmem:[%s1 + $0xc] sm:$0xf]
      %v303 = vld [vmem:[%s1 + $0x10] sm:$0xf]
      %v304 = vld [vmem:[%s1 + $0x14] sm:$0xf]
      %v305 = vld [vmem:[%s1 + $0x18] sm:$0xf]
      %v306 = vld [vmem:[%s1 + $0x1c] sm:$0xf]
      %v307 = vld [vmem:[%s1 + $0x20] sm:$0x3]
      %v308 = vld [vmem:[%s2] sm:$0x1]
      %v310 = vlaneseq
      %v311 = vshrl.u32 %v310, 7
      %v312 = vsub.s32 0, %v311
      %v313 = vrot.slane %v308, %v312
      %v331 = vunpack.c.l.b16 %v283
      %v332 = vunpack.c.l.b16 %v284
      %v333 = vunpack.c.l.b16 %v285
      %v334 = vunpack.c.l.b16 %v286
      %v335 = vunpack.c.l.b16 %v287
      %v336 = vunpack.c.l.b16 %v288
      %v337 = vunpack.c.l.b16 %v289
      %v338 = vunpack.c.l.b16 %v290
      %v339 = vunpack.c.l.b16 %v291
      %v340 = vunpack.c.l.b16 %v292
      %v341 = vunpack.c.l.b16 %v293
      %v342 = vunpack.c.l.b16 %v294
      %v343 = vunpack.c.l.b16 %v295
      %v344 = vunpack.c.l.b16 %v296
      %v345 = vunpack.c.l.b16 %v297
      %v346 = vunpack.c.l.b16 %v298
      %v347 = vpack.c.b16 %v332, %v331
      %v348 = vpack.c.b16 %v334, %v333
      %v349 = vpack.c.b16 %v336, %v335
      %v350 = vpack.c.b16 %v338, %v337
      %v351 = vpack.c.b16 %v340, %v339
      %v352 = vpack.c.b16 %v342, %v341
      %v353 = vpack.c.b16 %v344, %v343
      %v354 = vpack.c.b16 %v346, %v345
      %v364 = vunpack.c.l.b16 %v299
      %v365 = vunpack.c.l.b16 %v300
      %v366 = vunpack.c.l.b16 %v301
      %v367 = vunpack.c.l.b16 %v302
      %v368 = vunpack.c.l.b16 %v303
      %v369 = vunpack.c.l.b16 %v304
      %v370 = vunpack.c.l.b16 %v305
      %v371 = vunpack.c.l.b16 %v306
      %v372 = vunpack.c.l.b16 %v307
      %v373 = vpack.c.b16 %v365, %v364
      %v374 = vpack.c.b16 %v367, %v366
      %v375 = vpack.c.b16 %v369, %v368
      %v376 = vpack.c.b16 %v371, %v370
      %v377 = vpack.c.b16 %v372, %v372
      %vm382 = vcmask 547840
      %v384 = vsel %vm382, %v347, 0
      %v387 = vsel %vm382, %v348, 0
      %v390 = vsel %vm382, %v349, 0
      %v393 = vsel %vm382, %v350, 0
      %v396 = vsel %vm382, %v351, 0
      %v399 = vsel %vm382, %v352, 0
      %v402 = vsel %vm382, %v353, 0
      %v405 = vsel %vm382, %v354, 0
      %vm407 = vcmask 1040384
      %vm408 = vcmask 1041408
      %v409 = vsel %vm407, 4294967295, 65535
      %v410 = vsel %vm408, %v409, 0
      %v412 = vand.u32 %v377, %v410
      %414 = vmatprep.subr.bf16.mxu0 0
      %415 = vmatpush1.bf16.msra.mxu0 0
      %416 = vmatprep.subr.bf16.mxu0 0
      %417 = vmatpush1.bf16.msra.mxu0 0
      %418 = vmatprep.subr.bf16.mxu0 0
      %419 = vmatpush1.bf16.msra.mxu0 0
      %420 = vmatprep.subr.bf16.mxu0 0
      %421 = vmatpush1.bf16.msra.mxu0 %v412
      %422 = vmatprep.subr.bf16.mxu0 0
      %423 = vmatpush1.bf16.msra.mxu0 %v376
      %424 = vmatprep.subr.bf16.mxu0 0
      %425 = vmatpush1.bf16.msra.mxu0 %v375
      %426 = vmatprep.subr.bf16.mxu0 0
      %427 = vmatpush1.bf16.msra.mxu0 %v374
      %428 = vmatprep.subr.bf16.mxu0 0
      %429 = vmatpush1.bf16.msra.mxu0 %v373
      %430 = vmatprep.subr.bf16.mxu0 0
      %431 = vmatpush2.bf16.msra.mxu0 0
      %432 = vmatprep.subr.bf16.mxu0 0
      %433 = vmatpush2.bf16.msra.mxu0 0
      %434 = vmatprep.subr.bf16.mxu0 0
      %435 = vmatpush2.bf16.msra.mxu0 0
      %436 = vmatprep.subr.bf16.mxu0 0
      %437 = vmatpush2.bf16.msra.mxu0 0
      %438 = vmatprep.subr.bf16.mxu0 0
      %439 = vmatpush2.bf16.msra.mxu0 0
      %440 = vmatprep.subr.bf16.mxu0 0
      %441 = vmatpush2.bf16.msra.mxu0 0
      %442 = vmatprep.subr.bf16.mxu0 0
      %443 = vmatpush2.bf16.msra.mxu0 0
      %444 = vmatprep.subr.bf16.mxu0 0
      %445 = vmatpush2.bf16.msra.mxu0 0
      %446 = vmatprep.mubr.bf16.mxu0 0
      %447 = vmatmul.mubr.bf16.gmra.mxu0 %v384
      %v448 = vpop.f32.mrf.mxu0
      %v449 = vadd.f32 %v313, %v448
      %v450 = vpop.f32.mrf.mxu0
      %v451 = vpop.f32.mrf.mxu0
      %v452 = vadd.f32 %v313, %v451
      %v453 = vpop.f32.mrf.mxu0
      %454 = vmatprep.mubr.bf16.mxu0 0
      %455 = vmatmul.mubr.bf16.gmra.mxu0 %v387
      %v456 = vpop.f32.mrf.mxu0
      %v457 = vadd.f32 %v313, %v456
      %v458 = vpop.f32.mrf.mxu0
      %v459 = vpop.f32.mrf.mxu0
      %v460 = vadd.f32 %v313, %v459
      %v461 = vpop.f32.mrf.mxu0
      %462 = vmatprep.mubr.bf16.mxu0 0
      %463 = vmatmul.mubr.bf16.gmra.mxu0 %v390
      %v464 = vpop.f32.mrf.mxu0
      %v465 = vadd.f32 %v313, %v464
      %v466 = vpop.f32.mrf.mxu0
      %v467 = vpop.f32.mrf.mxu0
      %v468 = vadd.f32 %v313, %v467
      %v469 = vpop.f32.mrf.mxu0
      %470 = vmatprep.mubr.bf16.mxu0 0
      %471 = vmatmul.mubr.bf16.gmra.mxu0 %v393
      %v472 = vpop.f32.mrf.mxu0
      %v473 = vadd.f32 %v313, %v472
      %v474 = vpop.f32.mrf.mxu0
      %v475 = vpop.f32.mrf.mxu0
      %v476 = vadd.f32 %v313, %v475
      %v477 = vpop.f32.mrf.mxu0
      %478 = vmatprep.mubr.bf16.mxu0 0
      %479 = vmatmul.mubr.bf16.gmra.mxu0 %v396
      %v480 = vpop.f32.mrf.mxu0
      %v481 = vadd.f32 %v313, %v480
      %v482 = vpop.f32.mrf.mxu0
      %v483 = vpop.f32.mrf.mxu0
      %v484 = vadd.f32 %v313, %v483
      %v485 = vpop.f32.mrf.mxu0
      %486 = vmatprep.mubr.bf16.mxu0 0
      %487 = vmatmul.mubr.bf16.gmra.mxu0 %v399
      %v488 = vpop.f32.mrf.mxu0
      %v489 = vadd.f32 %v313, %v488
      %v490 = vpop.f32.mrf.mxu0
      %v491 = vpop.f32.mrf.mxu0
      %v492 = vadd.f32 %v313, %v491
      %v493 = vpop.f32.mrf.mxu0
      %494 = vmatprep.mubr.bf16.mxu0 0
      %495 = vmatmul.mubr.bf16.gmra.mxu0 %v402
      %v496 = vpop.f32.mrf.mxu0
      %v497 = vadd.f32 %v313, %v496
      %v498 = vpop.f32.mrf.mxu0
      %v499 = vpop.f32.mrf.mxu0
      %v500 = vadd.f32 %v313, %v499
      %v501 = vpop.f32.mrf.mxu0
      %502 = vmatprep.mubr.bf16.mxu0 0
      %503 = vmatmul.mubr.bf16.gmra.mxu0 %v405
      %v504 = vpop.f32.mrf.mxu0
      %v505 = vadd.f32 %v313, %v504
      %v506 = vpop.f32.mrf.mxu0
      %v507 = vpop.f32.mrf.mxu0
      %v508 = vadd.f32 %v313, %v507
      %v509 = vpop.f32.mrf.mxu0
      %510 = vdwg.mxu0
      %v511 = vmax.f32 %v449, 0.0
      %v512 = vmax.f32 %v452, 0.0
      %v513 = vmax.f32 %v457, 0.0
      %v514 = vmax.f32 %v460, 0.0
      %v515 = vmax.f32 %v465, 0.0
      %v516 = vmax.f32 %v468, 0.0
      %v517 = vmax.f32 %v473, 0.0
      %v518 = vmax.f32 %v476, 0.0
      %v519 = vmax.f32 %v481, 0.0
      %v520 = vmax.f32 %v484, 0.0
      %v521 = vmax.f32 %v489, 0.0
      %v522 = vmax.f32 %v492, 0.0
      %v523 = vmax.f32 %v497, 0.0
      %v524 = vmax.f32 %v500, 0.0
      %v525 = vmax.f32 %v505, 0.0
      %v526 = vmax.f32 %v508, 0.0
      %v527 = vld [vmem:[%s3] sm:$0xf]
      %v528 = vld [vmem:[%s3 + $0x4] sm:$0xf]
      %v529 = vld [vmem:[%s3 + $0x8] sm:$0xf]
      %v530 = vld [vmem:[%s3 + $0xc] sm:$0xf]
      %v531 = vld [vmem:[%s3 + $0x10] sm:$0xf]
      %v532 = vld [vmem:[%s3 + $0x14] sm:$0xf]
      %v533 = vld [vmem:[%s3 + $0x18] sm:$0xf]
      %v534 = vld [vmem:[%s3 + $0x1c] sm:$0xf]
      %v535 = vld [vmem:[%s3 + $0x20] sm:$0xf]
      %v536 = vld [vmem:[%s3 + $0x24] sm:$0xf]
      %v537 = vld [vmem:[%s3 + $0x28] sm:$0xf]
      %v538 = vld [vmem:[%s3 + $0x2c] sm:$0xf]
      %v539 = vld [vmem:[%s3 + $0x30] sm:$0xf]
      %v540 = vld [vmem:[%s3 + $0x34] sm:$0xf]
      %v541 = vld [vmem:[%s3 + $0x38] sm:$0xf]
      %v542 = vld [vmem:[%s3 + $0x3c] sm:$0xf]
      %v543 = vld [vmem:[%s4] sm:$0x1]
      %v544 = vpack.c.bf16 %v512, %v511
      %v545 = vpack.c.bf16 %v514, %v513
      %v546 = vpack.c.bf16 %v516, %v515
      %v547 = vpack.c.bf16 %v518, %v517
      %v548 = vpack.c.bf16 %v520, %v519
      %v549 = vpack.c.bf16 %v522, %v521
      %v550 = vpack.c.bf16 %v524, %v523
      %v551 = vpack.c.bf16 %v526, %v525
      %v553 = vlaneseq
      %v554 = vshrl.u32 %v553, 7
      %v555 = vsub.s32 0, %v554
      %v556 = vrot.slane %v543, %v555
      %v574 = vunpack.c.l.b16 %v527
      %v575 = vunpack.c.l.b16 %v528
      %v576 = vunpack.c.l.b16 %v529
      %v577 = vunpack.c.l.b16 %v530
      %v578 = vunpack.c.l.b16 %v531
      %v579 = vunpack.c.l.b16 %v532
      %v580 = vunpack.c.l.b16 %v533
      %v581 = vunpack.c.l.b16 %v534
      %v582 = vunpack.c.l.b16 %v535
      %v583 = vunpack.c.l.b16 %v536
      %v584 = vunpack.c.l.b16 %v537
      %v585 = vunpack.c.l.b16 %v538
      %v586 = vunpack.c.l.b16 %v539
      %v587 = vunpack.c.l.b16 %v540
      %v588 = vunpack.c.l.b16 %v541
      %v589 = vunpack.c.l.b16 %v542
      %v590 = vpack.c.b16 %v575, %v574
      %v591 = vpack.c.b16 %v577, %v576
      %v592 = vpack.c.b16 %v579, %v578
      %v593 = vpack.c.b16 %v581, %v580
      %v594 = vpack.c.b16 %v583, %v582
      %v595 = vpack.c.b16 %v585, %v584
      %v596 = vpack.c.b16 %v587, %v586
      %v597 = vpack.c.b16 %v589, %v588
      %606 = vmatprep.subr.bf16.mxu0 0
      %607 = vmatpush1.bf16.msra.mxu0 %v597
      %608 = vmatprep.subr.bf16.mxu0 0
      %609 = vmatpush1.bf16.msra.mxu0 %v596
      %610 = vmatprep.subr.bf16.mxu0 0
      %611 = vmatpush1.bf16.msra.mxu0 %v595
      %612 = vmatprep.subr.bf16.mxu0 0
      %613 = vmatpush1.bf16.msra.mxu0 %v594
      %614 = vmatprep.subr.bf16.mxu0 0
      %615 = vmatpush1.bf16.msra.mxu0 %v593
      %616 = vmatprep.subr.bf16.mxu0 0
      %617 = vmatpush1.bf16.msra.mxu0 %v592
      %618 = vmatprep.subr.bf16.mxu0 0
      %619 = vmatpush1.bf16.msra.mxu0 %v591
      %620 = vmatprep.subr.bf16.mxu0 0
      %621 = vmatpush1.bf16.msra.mxu0 %v590
      %622 = vmatprep.subr.bf16.mxu0 0
      %623 = vmatpush2.bf16.msra.mxu0 0
      %624 = vmatprep.subr.bf16.mxu0 0
      %625 = vmatpush2.bf16.msra.mxu0 0
      %626 = vmatprep.subr.bf16.mxu0 0
      %627 = vmatpush2.bf16.msra.mxu0 0
      %628 = vmatprep.subr.bf16.mxu0 0
      %629 = vmatpush2.bf16.msra.mxu0 0
      %630 = vmatprep.subr.bf16.mxu0 0
      %631 = vmatpush2.bf16.msra.mxu0 0
      %632 = vmatprep.subr.bf16.mxu0 0
      %633 = vmatpush2.bf16.msra.mxu0 0
      %634 = vmatprep.subr.bf16.mxu0 0
      %635 = vmatpush2.bf16.msra.mxu0 0
      %636 = vmatprep.subr.bf16.mxu0 0
      %637 = vmatpush2.bf16.msra.mxu0 0
      %638 = vmatprep.mubr.bf16.mxu0 0
      %639 = vmatmul.mubr.bf16.gmra.mxu0 %v544
      %v640 = vpop.f32.mrf.mxu0
      %v641 = vadd.f32 %v556, %v640
      %v642 = vpop.f32.mrf.mxu0
      %v643 = vpop.f32.mrf.mxu0
      %v644 = vadd.f32 %v556, %v643
      %v645 = vpop.f32.mrf.mxu0
      %646 = vmatprep.mubr.bf16.mxu0 0
      %647 = vmatmul.mubr.bf16.gmra.mxu0 %v545
      %v648 = vpop.f32.mrf.mxu0
      %v649 = vadd.f32 %v556, %v648
      %v650 = vpop.f32.mrf.mxu0
      %v651 = vpop.f32.mrf.mxu0
      %v652 = vadd.f32 %v556, %v651
      %v653 = vpop.f32.mrf.mxu0
      %654 = vmatprep.mubr.bf16.mxu0 0
      %655 = vmatmul.mubr.bf16.gmra.mxu0 %v546
      %v656 = vpop.f32.mrf.mxu0
      %v657 = vadd.f32 %v556, %v656
      %v658 = vpop.f32.mrf.mxu0
      %v659 = vpop.f32.mrf.mxu0
      %v660 = vadd.f32 %v556, %v659
      %v661 = vpop.f32.mrf.mxu0
      %662 = vmatprep.mubr.bf16.mxu0 0
      %663 = vmatmul.mubr.bf16.gmra.mxu0 %v547
      %v664 = vpop.f32.mrf.mxu0
      %v665 = vadd.f32 %v556, %v664
      %v666 = vpop.f32.mrf.mxu0
      %v667 = vpop.f32.mrf.mxu0
      %v668 = vadd.f32 %v556, %v667
      %v669 = vpop.f32.mrf.mxu0
      %670 = vmatprep.mubr.bf16.mxu0 0
      %671 = vmatmul.mubr.bf16.gmra.mxu0 %v548
      %v672 = vpop.f32.mrf.mxu0
      %v673 = vadd.f32 %v556, %v672
      %v674 = vpop.f32.mrf.mxu0
      %v675 = vpop.f32.mrf.mxu0
      %v676 = vadd.f32 %v556, %v675
      %v677 = vpop.f32.mrf.mxu0
      %678 = vmatprep.mubr.bf16.mxu0 0
      %679 = vmatmul.mubr.bf16.gmra.mxu0 %v549
      %v680 = vpop.f32.mrf.mxu0
      %v681 = vadd.f32 %v556, %v680
      %v682 = vpop.f32.mrf.mxu0
      %v683 = vpop.f32.mrf.mxu0
      %v684 = vadd.f32 %v556, %v683
      %v685 = vpop.f32.mrf.mxu0
      %686 = vmatprep.mubr.bf16.mxu0 0
      %687 = vmatmul.mubr.bf16.gmra.mxu0 %v550
      %v688 = vpop.f32.mrf.mxu0
      %v689 = vadd.f32 %v556, %v688
      %v690 = vpop.f32.mrf.mxu0
      %v691 = vpop.f32.mrf.mxu0
      %v692 = vadd.f32 %v556, %v691
      %v693 = vpop.f32.mrf.mxu0
      %694 = vmatprep.mubr.bf16.mxu0 0
      %695 = vmatmul.mubr.bf16.gmra.mxu0 %v551
      %v696 = vpop.f32.mrf.mxu0
      %v697 = vadd.f32 %v556, %v696
      %v698 = vpop.f32.mrf.mxu0
      %v699 = vpop.f32.mrf.mxu0
      %v700 = vadd.f32 %v556, %v699
      %v701 = vpop.f32.mrf.mxu0
      %702 = vdwg.mxu0
      %v703 = vmax.f32 %v641, 0.0
      %v704 = vmax.f32 %v644, 0.0
      %v705 = vmax.f32 %v649, 0.0
      %v706 = vmax.f32 %v652, 0.0
      %v707 = vmax.f32 %v657, 0.0
      %v708 = vmax.f32 %v660, 0.0
      %v709 = vmax.f32 %v665, 0.0
      %v710 = vmax.f32 %v668, 0.0
      %v711 = vmax.f32 %v673, 0.0
      %v712 = vmax.f32 %v676, 0.0
      %v713 = vmax.f32 %v681, 0.0
      %v714 = vmax.f32 %v684, 0.0
      %v715 = vmax.f32 %v689, 0.0
      %v716 = vmax.f32 %v692, 0.0
      %v717 = vmax.f32 %v697, 0.0
      %v718 = vmax.f32 %v700, 0.0
      %v719 = vld [vmem:[%s5] sm:$0xf]
      %v720 = vld [vmem:[%s5 + $0x4] sm:$0xf]
      %v721 = vld [vmem:[%s5 + $0x8] sm:$0xf]
      %v722 = vld [vmem:[%s5 + $0xc] sm:$0xf]
      %v723 = vld [vmem:[%s5 + $0x10] sm:$0xf]
      %v724 = vld [vmem:[%s5 + $0x14] sm:$0xf]
      %v725 = vld [vmem:[%s5 + $0x18] sm:$0xf]
      %v726 = vld [vmem:[%s5 + $0x1c] sm:$0xf]
      %v727 = vld [vmem:[%s5 + $0x20] sm:$0xf]
      %v728 = vld [vmem:[%s5 + $0x24] sm:$0xf]
      %v729 = vld [vmem:[%s5 + $0x28] sm:$0xf]
      %v730 = vld [vmem:[%s5 + $0x2c] sm:$0xf]
      %v731 = vld [vmem:[%s5 + $0x30] sm:$0xf]
      %v732 = vld [vmem:[%s5 + $0x34] sm:$0xf]
      %v733 = vld [vmem:[%s5 + $0x38] sm:$0xf]
      %v734 = vld [vmem:[%s5 + $0x3c] sm:$0xf]
      %v735 = vld [vmem:[%s6] sm:$0x1]
      %v736 = vpack.c.bf16 %v704, %v703
      %v737 = vpack.c.bf16 %v706, %v705
      %v738 = vpack.c.bf16 %v708, %v707
      %v739 = vpack.c.bf16 %v710, %v709
      %v740 = vpack.c.bf16 %v712, %v711
      %v741 = vpack.c.bf16 %v714, %v713
      %v742 = vpack.c.bf16 %v716, %v715
      %v743 = vpack.c.bf16 %v718, %v717
      %v745 = vlaneseq
      %v746 = vshrl.u32 %v745, 7
      %v747 = vsub.s32 0, %v746
      %v748 = vrot.slane %v735, %v747
      %v766 = vunpack.c.l.b16 %v719
      %v767 = vunpack.c.l.b16 %v720
      %v768 = vunpack.c.l.b16 %v721
      %v769 = vunpack.c.l.b16 %v722
      %v770 = vunpack.c.l.b16 %v723
      %v771 = vunpack.c.l.b16 %v724
      %v772 = vunpack.c.l.b16 %v725
      %v773 = vunpack.c.l.b16 %v726
      %v774 = vunpack.c.l.b16 %v727
      %v775 = vunpack.c.l.b16 %v728
      %v776 = vunpack.c.l.b16 %v729
      %v777 = vunpack.c.l.b16 %v730
      %v778 = vunpack.c.l.b16 %v731
      %v779 = vunpack.c.l.b16 %v732
      %v780 = vunpack.c.l.b16 %v733
      %v781 = vunpack.c.l.b16 %v734
      %v782 = vpack.c.b16 %v767, %v766
      %v783 = vpack.c.b16 %v769, %v768
      %v784 = vpack.c.b16 %v771, %v770
      %v785 = vpack.c.b16 %v773, %v772
      %v786 = vpack.c.b16 %v775, %v774
      %v787 = vpack.c.b16 %v777, %v776
      %v788 = vpack.c.b16 %v779, %v778
      %v789 = vpack.c.b16 %v781, %v780
      %798 = vmatprep.subr.bf16.mxu0 0
      %799 = vmatpush1.bf16.msra.mxu0 %v789
      %800 = vmatprep.subr.bf16.mxu0 0
      %801 = vmatpush1.bf16.msra.mxu0 %v788
      %802 = vmatprep.subr.bf16.mxu0 0
      %803 = vmatpush1.bf16.msra.mxu0 %v787
      %804 = vmatprep.subr.bf16.mxu0 0
      %805 = vmatpush1.bf16.msra.mxu0 %v786
      %806 = vmatprep.subr.bf16.mxu0 0
      %807 = vmatpush1.bf16.msra.mxu0 %v785
      %808 = vmatprep.subr.bf16.mxu0 0
      %809 = vmatpush1.bf16.msra.mxu0 %v784
      %810 = vmatprep.subr.bf16.mxu0 0
      %811 = vmatpush1.bf16.msra.mxu0 %v783
      %812 = vmatprep.subr.bf16.mxu0 0
      %813 = vmatpush1.bf16.msra.mxu0 %v782
      %814 = vmatprep.subr.bf16.mxu0 0
      %815 = vmatpush2.bf16.msra.mxu0 0
      %816 = vmatprep.subr.bf16.mxu0 0
      %817 = vmatpush2.bf16.msra.mxu0 0
      %818 = vmatprep.subr.bf16.mxu0 0
      %819 = vmatpush2.bf16.msra.mxu0 0
      %820 = vmatprep.subr.bf16.mxu0 0
      %821 = vmatpush2.bf16.msra.mxu0 0
      %822 = vmatprep.subr.bf16.mxu0 0
      %823 = vmatpush2.bf16.msra.mxu0 0
      %824 = vmatprep.subr.bf16.mxu0 0
      %825 = vmatpush2.bf16.msra.mxu0 0
      %826 = vmatprep.subr.bf16.mxu0 0
      %827 = vmatpush2.bf16.msra.mxu0 0
      %828 = vmatprep.subr.bf16.mxu0 0
      %829 = vmatpush2.bf16.msra.mxu0 0
      %830 = vmatprep.mubr.bf16.mxu0 0
      %831 = vmatmul.mubr.bf16.gmra.mxu0 %v736
      %v832 = vpop.f32.mrf.mxu0
      %v833 = vadd.f32 %v748, %v832
      %v834 = vpop.f32.mrf.mxu0
      %v835 = vpop.f32.mrf.mxu0
      %v836 = vadd.f32 %v748, %v835
      %v837 = vpop.f32.mrf.mxu0
      %838 = vmatprep.mubr.bf16.mxu0 0
      %839 = vmatmul.mubr.bf16.gmra.mxu0 %v737
      %v840 = vpop.f32.mrf.mxu0
      %v841 = vadd.f32 %v748, %v840
      %v842 = vpop.f32.mrf.mxu0
      %v843 = vpop.f32.mrf.mxu0
      %v844 = vadd.f32 %v748, %v843
      %v845 = vpop.f32.mrf.mxu0
      %846 = vmatprep.mubr.bf16.mxu0 0
      %847 = vmatmul.mubr.bf16.gmra.mxu0 %v738
      %v848 = vpop.f32.mrf.mxu0
      %v849 = vadd.f32 %v748, %v848
      %v850 = vpop.f32.mrf.mxu0
      %v851 = vpop.f32.mrf.mxu0
      %v852 = vadd.f32 %v748, %v851
      %v853 = vpop.f32.mrf.mxu0
      %854 = vmatprep.mubr.bf16.mxu0 0
      %855 = vmatmul.mubr.bf16.gmra.mxu0 %v739
      %v856 = vpop.f32.mrf.mxu0
      %v857 = vadd.f32 %v748, %v856
      %v858 = vpop.f32.mrf.mxu0
      %v859 = vpop.f32.mrf.mxu0
      %v860 = vadd.f32 %v748, %v859
      %v861 = vpop.f32.mrf.mxu0
      %862 = vmatprep.mubr.bf16.mxu0 0
      %863 = vmatmul.mubr.bf16.gmra.mxu0 %v740
      %v864 = vpop.f32.mrf.mxu0
      %v865 = vadd.f32 %v748, %v864
      %v866 = vpop.f32.mrf.mxu0
      %v867 = vpop.f32.mrf.mxu0
      %v868 = vadd.f32 %v748, %v867
      %v869 = vpop.f32.mrf.mxu0
      %870 = vmatprep.mubr.bf16.mxu0 0
      %871 = vmatmul.mubr.bf16.gmra.mxu0 %v741
      %v872 = vpop.f32.mrf.mxu0
      %v873 = vadd.f32 %v748, %v872
      %v874 = vpop.f32.mrf.mxu0
      %v875 = vpop.f32.mrf.mxu0
      %v876 = vadd.f32 %v748, %v875
      %v877 = vpop.f32.mrf.mxu0
      %878 = vmatprep.mubr.bf16.mxu0 0
      %879 = vmatmul.mubr.bf16.gmra.mxu0 %v742
      %v880 = vpop.f32.mrf.mxu0
      %v881 = vadd.f32 %v748, %v880
      %v882 = vpop.f32.mrf.mxu0
      %v883 = vpop.f32.mrf.mxu0
      %v884 = vadd.f32 %v748, %v883
      %v885 = vpop.f32.mrf.mxu0
      %886 = vmatprep.mubr.bf16.mxu0 0
      %887 = vmatmul.mubr.bf16.gmra.mxu0 %v743
      %v888 = vpop.f32.mrf.mxu0
      %v889 = vadd.f32 %v748, %v888
      %v890 = vpop.f32.mrf.mxu0
      %v891 = vpop.f32.mrf.mxu0
      %v892 = vadd.f32 %v748, %v891
      %v893 = vpop.f32.mrf.mxu0
      %894 = vdwg.mxu0
      %v895 = vmax.f32 %v833, 0.0
      %v896 = vmax.f32 %v836, 0.0
      %v897 = vmax.f32 %v841, 0.0
      %v898 = vmax.f32 %v844, 0.0
      %v899 = vmax.f32 %v849, 0.0
      %v900 = vmax.f32 %v852, 0.0
      %v901 = vmax.f32 %v857, 0.0
      %v902 = vmax.f32 %v860, 0.0
      %v903 = vmax.f32 %v865, 0.0
      %v904 = vmax.f32 %v868, 0.0
      %v905 = vmax.f32 %v873, 0.0
      %v906 = vmax.f32 %v876, 0.0
      %v907 = vmax.f32 %v881, 0.0
      %v908 = vmax.f32 %v884, 0.0
      %v909 = vmax.f32 %v889, 0.0
      %v910 = vmax.f32 %v892, 0.0
      %v911 = vrot.slane %v895, 4
      %v912 = vmax.f32 %v895, %v911
      %v913 = vrot.slane %v912, 2
      %v914 = vmax.f32 %v912, %v913
      %v915 = vrot.slane %v914, 1
      %v916 = vmax.f32 %v914, %v915
      %v917 = vrot.slane %v896, 4
      %v918 = vmax.f32 %v896, %v917
      %v919 = vrot.slane %v918, 2
      %v920 = vmax.f32 %v918, %v919
      %v921 = vrot.slane %v920, 1
      %v922 = vmax.f32 %v920, %v921
      %v923 = vrot.slane %v897, 4
      %v924 = vmax.f32 %v897, %v923
      %v925 = vrot.slane %v924, 2
      %v926 = vmax.f32 %v924, %v925
      %v927 = vrot.slane %v926, 1
      %v928 = vmax.f32 %v926, %v927
      %v929 = vrot.slane %v898, 4
      %v930 = vmax.f32 %v898, %v929
      %v931 = vrot.slane %v930, 2
      %v932 = vmax.f32 %v930, %v931
      %v933 = vrot.slane %v932, 1
      %v934 = vmax.f32 %v932, %v933
      %v935 = vrot.slane %v899, 4
      %v936 = vmax.f32 %v899, %v935
      %v937 = vrot.slane %v936, 2
      %v938 = vmax.f32 %v936, %v937
      %v939 = vrot.slane %v938, 1
      %v940 = vmax.f32 %v938, %v939
      %v941 = vrot.slane %v900, 4
      %v942 = vmax.f32 %v900, %v941
      %v943 = vrot.slane %v942, 2
      %v944 = vmax.f32 %v942, %v943
      %v945 = vrot.slane %v944, 1
      %v946 = vmax.f32 %v944, %v945
      %v947 = vrot.slane %v901, 4
      %v948 = vmax.f32 %v901, %v947
      %v949 = vrot.slane %v948, 2
      %v950 = vmax.f32 %v948, %v949
      %v951 = vrot.slane %v950, 1
      %v952 = vmax.f32 %v950, %v951
      %v953 = vrot.slane %v902, 4
      %v954 = vmax.f32 %v902, %v953
      %v955 = vrot.slane %v954, 2
      %v956 = vmax.f32 %v954, %v955
      %v957 = vrot.slane %v956, 1
      %v958 = vmax.f32 %v956, %v957
      %v959 = vrot.slane %v903, 4
      %v960 = vmax.f32 %v903, %v959
      %v961 = vrot.slane %v960, 2
      %v962 = vmax.f32 %v960, %v961
      %v963 = vrot.slane %v962, 1
      %v964 = vmax.f32 %v962, %v963
      %v965 = vrot.slane %v904, 4
      %v966 = vmax.f32 %v904, %v965
      %v967 = vrot.slane %v966, 2
      %v968 = vmax.f32 %v966, %v967
      %v969 = vrot.slane %v968, 1
      %v970 = vmax.f32 %v968, %v969
      %v971 = vrot.slane %v905, 4
      %v972 = vmax.f32 %v905, %v971
      %v973 = vrot.slane %v972, 2
      %v974 = vmax.f32 %v972, %v973
      %v975 = vrot.slane %v974, 1
      %v976 = vmax.f32 %v974, %v975
      %v977 = vrot.slane %v906, 4
      %v978 = vmax.f32 %v906, %v977
      %v979 = vrot.slane %v978, 2
      %v980 = vmax.f32 %v978, %v979
      %v981 = vrot.slane %v980, 1
      %v982 = vmax.f32 %v980, %v981
      %v983 = vrot.slane %v907, 4
      %v984 = vmax.f32 %v907, %v983
      %v985 = vrot.slane %v984, 2
      %v986 = vmax.f32 %v984, %v985
      %v987 = vrot.slane %v986, 1
      %v988 = vmax.f32 %v986, %v987
      %v989 = vrot.slane %v908, 4
      %v990 = vmax.f32 %v908, %v989
      %v991 = vrot.slane %v990, 2
      %v992 = vmax.f32 %v990, %v991
      %v993 = vrot.slane %v992, 1
      %v994 = vmax.f32 %v992, %v993
      %v995 = vrot.slane %v909, 4
      %v996 = vmax.f32 %v909, %v995
      %v997 = vrot.slane %v996, 2
      %v998 = vmax.f32 %v996, %v997
      %v999 = vrot.slane %v998, 1
      %v1000 = vmax.f32 %v998, %v999
      %v1001 = vrot.slane %v910, 4
      %v1002 = vmax.f32 %v910, %v1001
      %v1003 = vrot.slane %v1002, 2
      %v1004 = vmax.f32 %v1002, %v1003
      %v1005 = vrot.slane %v1004, 1
      %v1006 = vmax.f32 %v1004, %v1005
      %vm1023 = vcmask 1041409
      %v1024 = vsel %vm1023, %v922, %v916
      %vm1025 = vcmask 1042434
      %v1026 = vsel %vm1025, %v928, %v1024
      %vm1027 = vcmask 1043459
      %v1028 = vsel %vm1027, %v934, %v1026
      %vm1029 = vcmask 1044484
      %v1030 = vsel %vm1029, %v940, %v1028
      %vm1031 = vcmask 1045509
      %v1032 = vsel %vm1031, %v946, %v1030
      %vm1033 = vcmask 1046534
      %v1034 = vsel %vm1033, %v952, %v1032
      %vm1035 = vcmask 1047559
      %v1036 = vsel %vm1035, %v958, %v1034
      %v1037 = vsel %vm1023, %v970, %v964
      %v1038 = vsel %vm1025, %v976, %v1037
      %v1039 = vsel %vm1027, %v982, %v1038
      %v1040 = vsel %vm1029, %v988, %v1039
      %v1041 = vsel %vm1031, %v994, %v1040
      %v1042 = vsel %vm1033, %v1000, %v1041
      %v1043 = vsel %vm1035, %v1006, %v1042
      %1046 = vst [vmem:[%s280] sm:$0xff] %v1036
      %1047 = vst [vmem:[%s280 + $0x8] sm:$0xff] %v1043
      %s1048 = smul.u32 2, %s18
      %p1049 = scmp.lt.s32.totalorder %s1048, 3
      %s1050 = scalar_select %p1049, %s1048, 3
      %s1051 = smul.addr %s1050, 8
      %s1052 = scalar_lea.vmem %s7, %s1051
      // Predicated region
      $region49: #{pointnet2_msg_forward.11} parent=47 // pred_check
        %p1053 = pneg %p188
      $region50: #{pointnet2_msg_forward.11} parent=47 // pred_check_branch
        %1055 = sbr.rel (%p1053) target = $region52
      $region51: #{pointnet2_msg_forward.11} parent=47 // pred_region
        %s1056 = smul.u32 2, %s18
      $region52: #{pointnet2_msg_forward.11} parent=47 // pred_fallthru
        _
    $region48: #{pointnet2_msg_forward.11} parent=5 // pred_fallthru
      _
    %p1057 = scmp.le.s32.totalorder 2, %s13
    // Predicated region
    $region53: #{pointnet2_msg_forward.11} parent=5 // pred_check
      %p1058 = pneg %p1057
    $region54: #{pointnet2_msg_forward.11} parent=5 // pred_check_branch
      %1060 = sbr.rel (%p1058) target = $region56
    $region55: #{pointnet2_msg_forward.11} parent=5 // pred_region
      %s1061 = ssub.s32 %s13, 2
      // Predicated region
      $region57: #{pointnet2_msg_forward.11} parent=55 // pred_check
        %p1062 = pneg %p194
      $region58: #{pointnet2_msg_forward.11} parent=55 // pred_check_branch
        %1064 = sbr.rel (%p1062) target = $region60
      $region59: #{pointnet2_msg_forward.11} parent=55 // pred_region
        %s1065 = smul.u32 2, %s19
        %p1066 = scmp.lt.s32.totalorder %s1065, 3
        %s1067 = scalar_select %p1066, %s1065, 3
        %s1068 = smul.addr %s1067, 8
        %s1069 = scalar_lea.vmem %s7, %s1068
      $region60: #{pointnet2_msg_forward.11} parent=55 // pred_fallthru
        _
    $region56: #{pointnet2_msg_forward.11} parent=5 // pred_fallthru
      _
  $region6: #{pointnet2_msg_forward.11} parent=0 // loop_footer
    %s17 = sadd.s32 1, %s13
  $region7: #{pointnet2_msg_forward.11} parent=0 // loop_footer_branch
    %12 = sbr.rel target = $region3
  $region8: #{pointnet2_msg_forward.11} parent=0 // loop_exit
    _

// kernel: pointnet2_msg_forward.12
$region0: #{pointnet2_msg_forward.12}
  #allocation0 [shape = 'u32[]', space=smem, size = 0x4, offset = 0x4, fixed_abs, tag = 'smem constant byte address 0x4 - core index']
  #allocation1 [shape = 'u32[144,128]{1,0:T(1,128)}', space=vmem, size = 0x12000, scoped, tag = 'internal scratch']
  %s0 = inlined_call_operand.vmem [shape: bf16[32,16,67], index: 0, kind: input, shape index: {}]
  %s1 = inlined_call_operand.vmem [shape: bf16[67,128], index: 1, kind: input, shape index: {}]
  %s2 = inlined_call_operand.vmem [shape: f32[1,128], index: 2, kind: input, shape index: {}]
  %s3 = inlined_call_operand.vmem [shape: bf16[128,128], index: 3, kind: input, shape index: {}]
  %s4 = inlined_call_operand.vmem [shape: f32[1,128], index: 4, kind: input, shape index: {}]
  %s5 = inlined_call_operand.vmem [shape: bf16[128,128], index: 5, kind: input, shape index: {}]
  %s6 = inlined_call_operand.vmem [shape: f32[1,128], index: 6, kind: input, shape index: {}]
  %s7 = inlined_call_operand.vmem [shape: f32[32,128], index: 7, kind: output, shape index: {}]
  %s8 = sld [smem:[#allocation0]]
  $region61: #{pointnet2_msg_forward.12} parent=0
    _
  %s10 = ssub.s32 1, %s8
  %s11 = scalar_select 0, %s10, %s8
  loop: start=0, step=1, limit=4
  $region2: #{pointnet2_msg_forward.12} parent=0 // loop_pre_header
    _
  $region3: #{pointnet2_msg_forward.12} parent=0 // loop_header
    %s13 = sphi 0, %s17
    %p14 = scmp.ge.s32.totalorder %s13, 4
    %s23 = sphi 0, %s25
    %s26 = sphi 0, %s23
    %s27 = sphi 0, %s26
    %s43 = sphi 0, %s27
    %s47 = sphi 0, %s47
    %s49 = sphi 0, %s47
    %s50 = sphi 0, %s49
    %s64 = sphi 0, %s50
    %s68 = sphi 0, %s68
    %s70 = sphi 0, %s68
    %s71 = sphi 0, %s70
    %s85 = sphi 0, %s71
    %s89 = sphi 0, %s89
    %s91 = sphi 0, %s89
    %s92 = sphi 0, %s91
    %s106 = sphi 0, %s92
    %s110 = sphi 0, %s110
    %s112 = sphi 0, %s110
    %s113 = sphi 0, %s112
    %s127 = sphi 0, %s113
    %s131 = sphi 0, %s131
    %s133 = sphi 0, %s131
    %s134 = sphi 0, %s133
    %s148 = sphi 0, %s134
    %s152 = sphi 0, %s152
    %s154 = sphi 0, %s152
    %s155 = sphi 0, %s154
    %s169 = sphi 0, %s155
    %s175 = sphi 0, %s177
    %s178 = sphi 0, %s175
    %s179 = sphi 0, %s178
    %s195 = sphi 0, %s179
  $region4: #{pointnet2_msg_forward.12} parent=0 // loop_header_branch
    %16 = sbr.rel (%p14) target = $region8
  $region5: #{pointnet2_msg_forward.12} parent=0 // loop_body
    %s18 = ssub.s32 %s13, 1
    %s19 = ssub.s32 %s13, 2
    %s20 = sadd.s32 %s13, 1
    %s21 = ssub.s32 %s13, %s20
    %p22 = scmp.eq.s32.totalorder %s21, 0
    %s24 = sadd.s32 %s23, 1
    %s25 = scalar_select %p22, %s23, %s24
    %p28 = pneg %p22
    %p29 = scmp.eq.s32.totalorder %s13, 1
    %p30 = por %p28, %p29
    %p31 = scmp.ne.s32.totalorder %s23, %s26
    %p32 = scmp.eq.s32.totalorder %s13, 0
    %p33 = por %p31, %p32
    %p34 = scmp.ne.s32.totalorder %s23, %s26
    %p35 = scmp.eq.s32.totalorder %s18, 1
    %p36 = por %p34, %p35
    %p37 = scmp.ne.s32.totalorder %s26, %s27
    %p38 = scmp.eq.s32.totalorder %s18, 0
    %p39 = por %p37, %p38
    %p40 = scmp.ne.s32.totalorder %s26, %s27
    %p41 = scmp.eq.s32.totalorder %s19, 1
    %p42 = por %p40, %p41
    %p44 = scmp.ne.s32.totalorder %s27, %s43
    %p45 = scmp.eq.s32.totalorder %s19, 0
    %p46 = por %p44, %p45
    %s48 = sadd.s32 %s47, 1
    %p51 = scmp.eq.s32.totalorder %s13, 1
    %p52 = scmp.ne.s32.totalorder %s47, %s49
    %p53 = scmp.eq.s32.totalorder %s13, 0
    %p54 = por %p52, %p53
    %p55 = scmp.ne.s32.totalorder %s47, %s49
    %p56 = scmp.eq.s32.totalorder %s18, 1
    %p57 = por %p55, %p56
    %p58 = scmp.ne.s32.totalorder %s49, %s50
    %p59 = scmp.eq.s32.totalorder %s18, 0
    %p60 = por %p58, %p59
    %p61 = scmp.ne.s32.totalorder %s49, %s50
    %p62 = scmp.eq.s32.totalorder %s19, 1
    %p63 = por %p61, %p62
    %p65 = scmp.ne.s32.totalorder %s50, %s64
    %p66 = scmp.eq.s32.totalorder %s19, 0
    %p67 = por %p65, %p66
    %s69 = sadd.s32 %s68, 1
    %p72 = scmp.eq.s32.totalorder %s13, 1
    %p73 = scmp.ne.s32.totalorder %s68, %s70
    %p74 = scmp.eq.s32.totalorder %s13, 0
    %p75 = por %p73, %p74
    %p76 = scmp.ne.s32.totalorder %s68, %s70
    %p77 = scmp.eq.s32.totalorder %s18, 1
    %p78 = por %p76, %p77
    %p79 = scmp.ne.s32.totalorder %s70, %s71
    %p80 = scmp.eq.s32.totalorder %s18, 0
    %p81 = por %p79, %p80
    %p82 = scmp.ne.s32.totalorder %s70, %s71
    %p83 = scmp.eq.s32.totalorder %s19, 1
    %p84 = por %p82, %p83
    %p86 = scmp.ne.s32.totalorder %s71, %s85
    %p87 = scmp.eq.s32.totalorder %s19, 0
    %p88 = por %p86, %p87
    %s90 = sadd.s32 %s89, 1
    %p93 = scmp.eq.s32.totalorder %s13, 1
    %p94 = scmp.ne.s32.totalorder %s89, %s91
    %p95 = scmp.eq.s32.totalorder %s13, 0
    %p96 = por %p94, %p95
    %p97 = scmp.ne.s32.totalorder %s89, %s91
    %p98 = scmp.eq.s32.totalorder %s18, 1
    %p99 = por %p97, %p98
    %p100 = scmp.ne.s32.totalorder %s91, %s92
    %p101 = scmp.eq.s32.totalorder %s18, 0
    %p102 = por %p100, %p101
    %p103 = scmp.ne.s32.totalorder %s91, %s92
    %p104 = scmp.eq.s32.totalorder %s19, 1
    %p105 = por %p103, %p104
    %p107 = scmp.ne.s32.totalorder %s92, %s106
    %p108 = scmp.eq.s32.totalorder %s19, 0
    %p109 = por %p107, %p108
    %s111 = sadd.s32 %s110, 1
    %p114 = scmp.eq.s32.totalorder %s13, 1
    %p115 = scmp.ne.s32.totalorder %s110, %s112
    %p116 = scmp.eq.s32.totalorder %s13, 0
    %p117 = por %p115, %p116
    %p118 = scmp.ne.s32.totalorder %s110, %s112
    %p119 = scmp.eq.s32.totalorder %s18, 1
    %p120 = por %p118, %p119
    %p121 = scmp.ne.s32.totalorder %s112, %s113
    %p122 = scmp.eq.s32.totalorder %s18, 0
    %p123 = por %p121, %p122
    %p124 = scmp.ne.s32.totalorder %s112, %s113
    %p125 = scmp.eq.s32.totalorder %s19, 1
    %p126 = por %p124, %p125
    %p128 = scmp.ne.s32.totalorder %s113, %s127
    %p129 = scmp.eq.s32.totalorder %s19, 0
    %p130 = por %p128, %p129
    %s132 = sadd.s32 %s131, 1
    %p135 = scmp.eq.s32.totalorder %s13, 1
    %p136 = scmp.ne.s32.totalorder %s131, %s133
    %p137 = scmp.eq.s32.totalorder %s13, 0
    %p138 = por %p136, %p137
    %p139 = scmp.ne.s32.totalorder %s131, %s133
    %p140 = scmp.eq.s32.totalorder %s18, 1
    %p141 = por %p139, %p140
    %p142 = scmp.ne.s32.totalorder %s133, %s134
    %p143 = scmp.eq.s32.totalorder %s18, 0
    %p144 = por %p142, %p143
    %p145 = scmp.ne.s32.totalorder %s133, %s134
    %p146 = scmp.eq.s32.totalorder %s19, 1
    %p147 = por %p145, %p146
    %p149 = scmp.ne.s32.totalorder %s134, %s148
    %p150 = scmp.eq.s32.totalorder %s19, 0
    %p151 = por %p149, %p150
    %s153 = sadd.s32 %s152, 1
    %p156 = scmp.eq.s32.totalorder %s13, 1
    %p157 = scmp.ne.s32.totalorder %s152, %s154
    %p158 = scmp.eq.s32.totalorder %s13, 0
    %p159 = por %p157, %p158
    %p160 = scmp.ne.s32.totalorder %s152, %s154
    %p161 = scmp.eq.s32.totalorder %s18, 1
    %p162 = por %p160, %p161
    %p163 = scmp.ne.s32.totalorder %s154, %s155
    %p164 = scmp.eq.s32.totalorder %s18, 0
    %p165 = por %p163, %p164
    %p166 = scmp.ne.s32.totalorder %s154, %s155
    %p167 = scmp.eq.s32.totalorder %s19, 1
    %p168 = por %p166, %p167
    %p170 = scmp.ne.s32.totalorder %s155, %s169
    %p171 = scmp.eq.s32.totalorder %s19, 0
    %p172 = por %p170, %p171
    %s173 = ssub.s32 %s13, %s20
    %p174 = scmp.eq.s32.totalorder %s173, 0
    %s176 = sadd.s32 %s175, 1
    %s177 = scalar_select %p174, %s175, %s176
    %p180 = pneg %p174
    %p181 = scmp.eq.s32.totalorder %s13, 1
    %p182 = por %p180, %p181
    %p183 = scmp.ne.s32.totalorder %s175, %s178
    %p184 = scmp.eq.s32.totalorder %s13, 0
    %p185 = por %p183, %p184
    %p186 = scmp.ne.s32.totalorder %s175, %s178
    %p187 = scmp.eq.s32.totalorder %s18, 1
    %p188 = por %p186, %p187
    %p189 = scmp.ne.s32.totalorder %s178, %s179
    %p190 = scmp.eq.s32.totalorder %s18, 0
    %p191 = por %p189, %p190
    %p192 = scmp.ne.s32.totalorder %s178, %s179
    %p193 = scmp.eq.s32.totalorder %s19, 1
    %p194 = por %p192, %p193
    %p196 = scmp.ne.s32.totalorder %s179, %s195
    %p197 = scmp.eq.s32.totalorder %s19, 0
    %p198 = por %p196, %p197
    %p199 = scmp.le.s32.totalorder 1, %s13
    %p200 = scmp.lt.s32.totalorder %s13, 3
    %p201 = pnand %p199, %p200
    %p202 = pneg %p201
    // Predicated region
    $region9: #{pointnet2_msg_forward.12} parent=5 // pred_check
      _
    $region10: #{pointnet2_msg_forward.12} parent=5 // pred_check_branch
      %204 = sbr.rel (%p201) target = $region12
    $region11: #{pointnet2_msg_forward.12} parent=5 // pred_region
      %s205 = ssub.s32 %s13, 1
      // Predicated region
      $region13: #{pointnet2_msg_forward.12} parent=11 // pred_check
        %p206 = pneg %p60
      $region14: #{pointnet2_msg_forward.12} parent=11 // pred_check_branch
        %208 = sbr.rel (%p206) target = $region16
      $region15: #{pointnet2_msg_forward.12} parent=11 // pred_region
        _
      $region16: #{pointnet2_msg_forward.12} parent=11 // pred_fallthru
        _
      // Predicated region
      $region17: #{pointnet2_msg_forward.12} parent=11 // pred_check
        %p209 = pneg %p81
      $region18: #{pointnet2_msg_forward.12} parent=11 // pred_check_branch
        %211 = sbr.rel (%p209) target = $region20
      $region19: #{pointnet2_msg_forward.12} parent=11 // pred_region
        _
      $region20: #{pointnet2_msg_forward.12} parent=11 // pred_fallthru
        _
      // Predicated region
      $region21: #{pointnet2_msg_forward.12} parent=11 // pred_check
        %p212 = pneg %p102
      $region22: #{pointnet2_msg_forward.12} parent=11 // pred_check_branch
        %214 = sbr.rel (%p212) target = $region24
      $region23: #{pointnet2_msg_forward.12} parent=11 // pred_region
        _
      $region24: #{pointnet2_msg_forward.12} parent=11 // pred_fallthru
        _
      // Predicated region
      $region25: #{pointnet2_msg_forward.12} parent=11 // pred_check
        %p215 = pneg %p123
      $region26: #{pointnet2_msg_forward.12} parent=11 // pred_check_branch
        %217 = sbr.rel (%p215) target = $region28
      $region27: #{pointnet2_msg_forward.12} parent=11 // pred_region
        _
      $region28: #{pointnet2_msg_forward.12} parent=11 // pred_fallthru
        _
      // Predicated region
      $region29: #{pointnet2_msg_forward.12} parent=11 // pred_check
        %p218 = pneg %p144
      $region30: #{pointnet2_msg_forward.12} parent=11 // pred_check_branch
        %220 = sbr.rel (%p218) target = $region32
      $region31: #{pointnet2_msg_forward.12} parent=11 // pred_region
        _
      $region32: #{pointnet2_msg_forward.12} parent=11 // pred_fallthru
        _
      // Predicated region
      $region33: #{pointnet2_msg_forward.12} parent=11 // pred_check
        %p221 = pneg %p165
      $region34: #{pointnet2_msg_forward.12} parent=11 // pred_check_branch
        %223 = sbr.rel (%p221) target = $region36
      $region35: #{pointnet2_msg_forward.12} parent=11 // pred_region
        _
      $region36: #{pointnet2_msg_forward.12} parent=11 // pred_fallthru
        _
    $region12: #{pointnet2_msg_forward.12} parent=5 // pred_fallthru
      _
    %p224 = scmp.lt.s32.totalorder %s13, 2
    // Predicated region
    $region37: #{pointnet2_msg_forward.12} parent=5 // pred_check
      %p225 = pneg %p224
    $region38: #{pointnet2_msg_forward.12} parent=5 // pred_check_branch
      %227 = sbr.rel (%p225) target = $region40
    $region39: #{pointnet2_msg_forward.12} parent=5 // pred_region
      // Predicated region
      $region41: #{pointnet2_msg_forward.12} parent=39 // pred_check
        %p228 = pneg %p33
      $region42: #{pointnet2_msg_forward.12} parent=39 // pred_check_branch
        %230 = sbr.rel (%p228) target = $region44
      $region43: #{pointnet2_msg_forward.12} parent=39 // pred_region
        %s231 = smul.u32 16, %s13
        %p232 = scmp.lt.s32.totalorder %s231, 31
        %s233 = scalar_select %p232, %s231, 31
        %s234 = smul.addr %s233, 2
        %s235 = smul.addr %s234, 4
        %s236 = scalar_lea.vmem %s0, %s235
        %s237 = smul.u32 16, %s13
      $region44: #{pointnet2_msg_forward.12} parent=39 // pred_fallthru
        _
    $region40: #{pointnet2_msg_forward.12} parent=5 // pred_fallthru
      _
    %p238 = scmp.le.s32.totalorder 1, %s13
    %p239 = scmp.lt.s32.totalorder %s13, 3
    %p240 = pnand %p238, %p239
    %p241 = pneg %p240
    // Predicated region
    $region45: #{pointnet2_msg_forward.12} parent=5 // pred_check
      _
    $region46: #{pointnet2_msg_forward.12} parent=5 // pred_check_branch
      %243 = sbr.rel (%p240) target = $region48
    $region47: #{pointnet2_msg_forward.12} parent=5 // pred_region
      %s244 = ssub.s32 %s13, 1
      %s245 = smul.u32 16, %s18
      %p246 = scmp.lt.s32.totalorder %s245, 31
      %s247 = scalar_select %p246, %s245, 31
      %s248 = smul.addr %s247, 2
      %s249 = smul.addr %s248, 4
      %s250 = scalar_lea.vmem %s0, %s249
      %p251 = pneg %p39
      %p252 = pneg %p36
      %p253 = pneg %p60
      %p254 = pneg %p57
      %p255 = pneg %p81
      %p256 = pneg %p78
      %p257 = pneg %p102
      %p258 = pneg %p99
      %p259 = pneg %p123
      %p260 = pneg %p120
      %p261 = pneg %p144
      %p262 = pneg %p141
      %p263 = pneg %p165
      %p264 = pneg %p162
      %p265 = pneg %p191
      %p266 = pneg %p188
      %s267 = smul.u32 2, %s18
      %p268 = scmp.lt.s32.totalorder %s267, 3
      %s269 = scalar_select %p268, %s267, 3
      %s270 = smul.addr %s269, 8
      %s271 = scalar_lea.vmem %s7, %s270
      %s272 = smul.u32 16, %s18
      %p273 = scmp.lt.s32.totalorder %s272, 31
      %s274 = scalar_select %p273, %s272, 31
      %s275 = smul.addr %s274, 2
      %s276 = smul.addr %s275, 4
      %s277 = scalar_lea.vmem %s0, %s276
      %s278 = smul.u32 16, %s18
      %s279 = smul.u32 2, %s18
      %p280 = scmp.lt.s32.totalorder %s279, 3
      %s281 = scalar_select %p280, %s279, 3
      %s282 = smul.addr %s281, 8
      %s283 = scalar_lea.vmem %s7, %s282
      %s284 = smul.u32 2, %s18
      %v286 = vld [vmem:[%s277] sm:$0xf]
      %v287 = vld [vmem:[%s277 + $0x4] sm:$0xf]
      %v288 = vld [vmem:[%s277 + $0x8] sm:$0xf]
      %v289 = vld [vmem:[%s277 + $0xc] sm:$0xf]
      %v290 = vld [vmem:[%s277 + $0x10] sm:$0xf]
      %v291 = vld [vmem:[%s277 + $0x14] sm:$0xf]
      %v292 = vld [vmem:[%s277 + $0x18] sm:$0xf]
      %v293 = vld [vmem:[%s277 + $0x1c] sm:$0xf]
      %v294 = vld [vmem:[%s277 + $0x20] sm:$0xf]
      %v295 = vld [vmem:[%s277 + $0x24] sm:$0xf]
      %v296 = vld [vmem:[%s277 + $0x28] sm:$0xf]
      %v297 = vld [vmem:[%s277 + $0x2c] sm:$0xf]
      %v298 = vld [vmem:[%s277 + $0x30] sm:$0xf]
      %v299 = vld [vmem:[%s277 + $0x34] sm:$0xf]
      %v300 = vld [vmem:[%s277 + $0x38] sm:$0xf]
      %v301 = vld [vmem:[%s277 + $0x3c] sm:$0xf]
      %v302 = vld [vmem:[%s277 + $0x40] sm:$0xf]
      %v303 = vld [vmem:[%s277 + $0x44] sm:$0xf]
      %v304 = vld [vmem:[%s277 + $0x48] sm:$0xf]
      %v305 = vld [vmem:[%s277 + $0x4c] sm:$0xf]
      %v306 = vld [vmem:[%s277 + $0x50] sm:$0xf]
      %v307 = vld [vmem:[%s277 + $0x54] sm:$0xf]
      %v308 = vld [vmem:[%s277 + $0x58] sm:$0xf]
      %v309 = vld [vmem:[%s277 + $0x5c] sm:$0xf]
      %v310 = vld [vmem:[%s277 + $0x60] sm:$0xf]
      %v311 = vld [vmem:[%s277 + $0x64] sm:$0xf]
      %v312 = vld [vmem:[%s277 + $0x68] sm:$0xf]
      %v313 = vld [vmem:[%s277 + $0x6c] sm:$0xf]
      %v314 = vld [vmem:[%s277 + $0x70] sm:$0xf]
      %v315 = vld [vmem:[%s277 + $0x74] sm:$0xf]
      %v316 = vld [vmem:[%s277 + $0x78] sm:$0xf]
      %v317 = vld [vmem:[%s277 + $0x7c] sm:$0xf]
      %v318 = vld [vmem:[%s1] sm:$0xf]
      %v319 = vld [vmem:[%s1 + $0x4] sm:$0xf]
      %v320 = vld [vmem:[%s1 + $0x8] sm:$0xf]
      %v321 = vld [vmem:[%s1 + $0xc] sm:$0xf]
      %v322 = vld [vmem:[%s1 + $0x10] sm:$0xf]
      %v323 = vld [vmem:[%s1 + $0x14] sm:$0xf]
      %v324 = vld [vmem:[%s1 + $0x18] sm:$0xf]
      %v325 = vld [vmem:[%s1 + $0x1c] sm:$0xf]
      %v326 = vld [vmem:[%s1 + $0x20] sm:$0x3]
      %v327 = vld [vmem:[%s2] sm:$0x1]
      %v329 = vlaneseq
      %v330 = vshrl.u32 %v329, 7
      %v331 = vsub.s32 0, %v330
      %v332 = vrot.slane %v327, %v331
      %v366 = vunpack.c.l.b16 %v286
      %v367 = vunpack.c.l.b16 %v287
      %v368 = vunpack.c.l.b16 %v288
      %v369 = vunpack.c.l.b16 %v289
      %v370 = vunpack.c.l.b16 %v290
      %v371 = vunpack.c.l.b16 %v291
      %v372 = vunpack.c.l.b16 %v292
      %v373 = vunpack.c.l.b16 %v293
      %v374 = vunpack.c.l.b16 %v294
      %v375 = vunpack.c.l.b16 %v295
      %v376 = vunpack.c.l.b16 %v296
      %v377 = vunpack.c.l.b16 %v297
      %v378 = vunpack.c.l.b16 %v298
      %v379 = vunpack.c.l.b16 %v299
      %v380 = vunpack.c.l.b16 %v300
      %v381 = vunpack.c.l.b16 %v301
      %v382 = vunpack.c.l.b16 %v302
      %v383 = vunpack.c.l.b16 %v303
      %v384 = vunpack.c.l.b16 %v304
      %v385 = vunpack.c.l.b16 %v305
      %v386 = vunpack.c.l.b16 %v306
      %v387 = vunpack.c.l.b16 %v307
      %v388 = vunpack.c.l.b16 %v308
      %v389 = vunpack.c.l.b16 %v309
      %v390 = vunpack.c.l.b16 %v310
      %v391 = vunpack.c.l.b16 %v311
      %v392 = vunpack.c.l.b16 %v312
      %v393 = vunpack.c.l.b16 %v313
      %v394 = vunpack.c.l.b16 %v314
      %v395 = vunpack.c.l.b16 %v315
      %v396 = vunpack.c.l.b16 %v316
      %v397 = vunpack.c.l.b16 %v317
      %v398 = vpack.c.b16 %v367, %v366
      %v399 = vpack.c.b16 %v369, %v368
      %v400 = vpack.c.b16 %v371, %v370
      %v401 = vpack.c.b16 %v373, %v372
      %v402 = vpack.c.b16 %v375, %v374
      %v403 = vpack.c.b16 %v377, %v376
      %v404 = vpack.c.b16 %v379, %v378
      %v405 = vpack.c.b16 %v381, %v380
      %v406 = vpack.c.b16 %v383, %v382
      %v407 = vpack.c.b16 %v385, %v384
      %v408 = vpack.c.b16 %v387, %v386
      %v409 = vpack.c.b16 %v389, %v388
      %v410 = vpack.c.b16 %v391, %v390
      %v411 = vpack.c.b16 %v393, %v392
      %v412 = vpack.c.b16 %v395, %v394
      %v413 = vpack.c.b16 %v397, %v396
      %v423 = vunpack.c.l.b16 %v318
      %v424 = vunpack.c.l.b16 %v319
      %v425 = vunpack.c.l.b16 %v320
      %v426 = vunpack.c.l.b16 %v321
      %v427 = vunpack.c.l.b16 %v322
      %v428 = vunpack.c.l.b16 %v323
      %v429 = vunpack.c.l.b16 %v324
      %v430 = vunpack.c.l.b16 %v325
      %v431 = vunpack.c.l.b16 %v326
      %v432 = vpack.c.b16 %v424, %v423
      %v433 = vpack.c.b16 %v426, %v425
      %v434 = vpack.c.b16 %v428, %v427
      %v435 = vpack.c.b16 %v430, %v429
      %v436 = vpack.c.b16 %v431, %v431
      %vm441 = vcmask 547840
      %v443 = vsel %vm441, %v398, 0
      %v446 = vsel %vm441, %v399, 0
      %v449 = vsel %vm441, %v400, 0
      %v452 = vsel %vm441, %v401, 0
      %v455 = vsel %vm441, %v402, 0
      %v458 = vsel %vm441, %v403, 0
      %v461 = vsel %vm441, %v404, 0
      %v464 = vsel %vm441, %v405, 0
      %v467 = vsel %vm441, %v406, 0
      %v470 = vsel %vm441, %v407, 0
      %v473 = vsel %vm441, %v408, 0
      %v476 = vsel %vm441, %v409, 0
      %v479 = vsel %vm441, %v410, 0
      %v482 = vsel %vm441, %v411, 0
      %v485 = vsel %vm441, %v412, 0
      %v488 = vsel %vm441, %v413, 0
      %vm490 = vcmask 1040384
      %vm491 = vcmask 1041408
      %v492 = vsel %vm490, 4294967295, 65535
      %v493 = vsel %vm491, %v492, 0
      %v495 = vand.u32 %v436, %v493
      %497 = vmatprep.subr.bf16.mxu0 0
      %498 = vmatpush1.bf16.msra.mxu0 0
      %499 = vmatprep.subr.bf16.mxu0 0
      %500 = vmatpush1.bf16.msra.mxu0 0
      %501 = vmatprep.subr.bf16.mxu0 0
      %502 = vmatpush1.bf16.msra.mxu0 0
      %503 = vmatprep.subr.bf16.mxu0 0
      %504 = vmatpush1.bf16.msra.mxu0 %v495
      %505 = vmatprep.subr.bf16.mxu0 0
      %506 = vmatpush1.bf16.msra.mxu0 %v435
      %507 = vmatprep.subr.bf16.mxu0 0
      %508 = vmatpush1.bf16.msra.mxu0 %v434
      %509 = vmatprep.subr.bf16.mxu0 0
      %510 = vmatpush1.bf16.msra.mxu0 %v433
      %511 = vmatprep.subr.bf16.mxu0 0
      %512 = vmatpush1.bf16.msra.mxu0 %v432
      %513 = vmatprep.subr.bf16.mxu0 0
      %514 = vmatpush2.bf16.msra.mxu0 0
      %515 = vmatprep.subr.bf16.mxu0 0
      %516 = vmatpush2.bf16.msra.mxu0 0
      %517 = vmatprep.subr.bf16.mxu0 0
      %518 = vmatpush2.bf16.msra.mxu0 0
      %519 = vmatprep.subr.bf16.mxu0 0
      %520 = vmatpush2.bf16.msra.mxu0 0
      %521 = vmatprep.subr.bf16.mxu0 0
      %522 = vmatpush2.bf16.msra.mxu0 0
      %523 = vmatprep.subr.bf16.mxu0 0
      %524 = vmatpush2.bf16.msra.mxu0 0
      %525 = vmatprep.subr.bf16.mxu0 0
      %526 = vmatpush2.bf16.msra.mxu0 0
      %527 = vmatprep.subr.bf16.mxu0 0
      %528 = vmatpush2.bf16.msra.mxu0 0
      %529 = vmatprep.mubr.bf16.mxu0 0
      %530 = vmatmul.mubr.bf16.gmra.mxu0 %v443
      %v531 = vpop.f32.mrf.mxu0
      %v532 = vadd.f32 %v332, %v531
      %v533 = vpop.f32.mrf.mxu0
      %v534 = vpop.f32.mrf.mxu0
      %v535 = vadd.f32 %v332, %v534
      %v536 = vpop.f32.mrf.mxu0
      %537 = vmatprep.mubr.bf16.mxu0 0
      %538 = vmatmul.mubr.bf16.gmra.mxu0 %v446
      %v539 = vpop.f32.mrf.mxu0
      %v540 = vadd.f32 %v332, %v539
      %v541 = vpop.f32.mrf.mxu0
      %v542 = vpop.f32.mrf.mxu0
      %v543 = vadd.f32 %v332, %v542
      %v544 = vpop.f32.mrf.mxu0
      %545 = vmatprep.mubr.bf16.mxu0 0
      %546 = vmatmul.mubr.bf16.gmra.mxu0 %v449
      %v547 = vpop.f32.mrf.mxu0
      %v548 = vadd.f32 %v332, %v547
      %v549 = vpop.f32.mrf.mxu0
      %v550 = vpop.f32.mrf.mxu0
      %v551 = vadd.f32 %v332, %v550
      %v552 = vpop.f32.mrf.mxu0
      %553 = vmatprep.mubr.bf16.mxu0 0
      %554 = vmatmul.mubr.bf16.gmra.mxu0 %v452
      %v555 = vpop.f32.mrf.mxu0
      %v556 = vadd.f32 %v332, %v555
      %v557 = vpop.f32.mrf.mxu0
      %v558 = vpop.f32.mrf.mxu0
      %v559 = vadd.f32 %v332, %v558
      %v560 = vpop.f32.mrf.mxu0
      %561 = vmatprep.mubr.bf16.mxu0 0
      %562 = vmatmul.mubr.bf16.gmra.mxu0 %v455
      %v563 = vpop.f32.mrf.mxu0
      %v564 = vadd.f32 %v332, %v563
      %v565 = vpop.f32.mrf.mxu0
      %v566 = vpop.f32.mrf.mxu0
      %v567 = vadd.f32 %v332, %v566
      %v568 = vpop.f32.mrf.mxu0
      %569 = vmatprep.mubr.bf16.mxu0 0
      %570 = vmatmul.mubr.bf16.gmra.mxu0 %v458
      %v571 = vpop.f32.mrf.mxu0
      %v572 = vadd.f32 %v332, %v571
      %v573 = vpop.f32.mrf.mxu0
      %v574 = vpop.f32.mrf.mxu0
      %v575 = vadd.f32 %v332, %v574
      %v576 = vpop.f32.mrf.mxu0
      %577 = vmatprep.mubr.bf16.mxu0 0
      %578 = vmatmul.mubr.bf16.gmra.mxu0 %v461
      %v579 = vpop.f32.mrf.mxu0
      %v580 = vadd.f32 %v332, %v579
      %v581 = vpop.f32.mrf.mxu0
      %v582 = vpop.f32.mrf.mxu0
      %v583 = vadd.f32 %v332, %v582
      %v584 = vpop.f32.mrf.mxu0
      %585 = vmatprep.mubr.bf16.mxu0 0
      %586 = vmatmul.mubr.bf16.gmra.mxu0 %v464
      %v587 = vpop.f32.mrf.mxu0
      %v588 = vadd.f32 %v332, %v587
      %v589 = vpop.f32.mrf.mxu0
      %v590 = vpop.f32.mrf.mxu0
      %v591 = vadd.f32 %v332, %v590
      %v592 = vpop.f32.mrf.mxu0
      %593 = vmatprep.mubr.bf16.mxu0 0
      %594 = vmatmul.mubr.bf16.gmra.mxu0 %v467
      %v595 = vpop.f32.mrf.mxu0
      %v596 = vadd.f32 %v332, %v595
      %v597 = vpop.f32.mrf.mxu0
      %v598 = vpop.f32.mrf.mxu0
      %v599 = vadd.f32 %v332, %v598
      %v600 = vpop.f32.mrf.mxu0
      %601 = vmatprep.mubr.bf16.mxu0 0
      %602 = vmatmul.mubr.bf16.gmra.mxu0 %v470
      %v603 = vpop.f32.mrf.mxu0
      %v604 = vadd.f32 %v332, %v603
      %v605 = vpop.f32.mrf.mxu0
      %v606 = vpop.f32.mrf.mxu0
      %v607 = vadd.f32 %v332, %v606
      %v608 = vpop.f32.mrf.mxu0
      %609 = vmatprep.mubr.bf16.mxu0 0
      %610 = vmatmul.mubr.bf16.gmra.mxu0 %v473
      %v611 = vpop.f32.mrf.mxu0
      %v612 = vadd.f32 %v332, %v611
      %v613 = vpop.f32.mrf.mxu0
      %v614 = vpop.f32.mrf.mxu0
      %v615 = vadd.f32 %v332, %v614
      %v616 = vpop.f32.mrf.mxu0
      %617 = vmatprep.mubr.bf16.mxu0 0
      %618 = vmatmul.mubr.bf16.gmra.mxu0 %v476
      %v619 = vpop.f32.mrf.mxu0
      %v620 = vadd.f32 %v332, %v619
      %v621 = vpop.f32.mrf.mxu0
      %v622 = vpop.f32.mrf.mxu0
      %v623 = vadd.f32 %v332, %v622
      %v624 = vpop.f32.mrf.mxu0
      %625 = vmatprep.mubr.bf16.mxu0 0
      %626 = vmatmul.mubr.bf16.gmra.mxu0 %v479
      %v627 = vpop.f32.mrf.mxu0
      %v628 = vadd.f32 %v332, %v627
      %v629 = vpop.f32.mrf.mxu0
      %v630 = vpop.f32.mrf.mxu0
      %v631 = vadd.f32 %v332, %v630
      %v632 = vpop.f32.mrf.mxu0
      %633 = vmatprep.mubr.bf16.mxu0 0
      %634 = vmatmul.mubr.bf16.gmra.mxu0 %v482
      %v635 = vpop.f32.mrf.mxu0
      %v636 = vadd.f32 %v332, %v635
      %v637 = vpop.f32.mrf.mxu0
      %v638 = vpop.f32.mrf.mxu0
      %v639 = vadd.f32 %v332, %v638
      %v640 = vpop.f32.mrf.mxu0
      %641 = vmatprep.mubr.bf16.mxu0 0
      %642 = vmatmul.mubr.bf16.gmra.mxu0 %v485
      %v643 = vpop.f32.mrf.mxu0
      %v644 = vadd.f32 %v332, %v643
      %v645 = vpop.f32.mrf.mxu0
      %v646 = vpop.f32.mrf.mxu0
      %v647 = vadd.f32 %v332, %v646
      %v648 = vpop.f32.mrf.mxu0
      %649 = vmatprep.mubr.bf16.mxu0 0
      %650 = vmatmul.mubr.bf16.gmra.mxu0 %v488
      %v651 = vpop.f32.mrf.mxu0
      %v652 = vadd.f32 %v332, %v651
      %v653 = vpop.f32.mrf.mxu0
      %v654 = vpop.f32.mrf.mxu0
      %v655 = vadd.f32 %v332, %v654
      %v656 = vpop.f32.mrf.mxu0
      %657 = vdwg.mxu0
      %v658 = vmax.f32 %v532, 0.0
      %v659 = vmax.f32 %v535, 0.0
      %v660 = vmax.f32 %v540, 0.0
      %v661 = vmax.f32 %v543, 0.0
      %v662 = vmax.f32 %v548, 0.0
      %v663 = vmax.f32 %v551, 0.0
      %v664 = vmax.f32 %v556, 0.0
      %v665 = vmax.f32 %v559, 0.0
      %v666 = vmax.f32 %v564, 0.0
      %v667 = vmax.f32 %v567, 0.0
      %v668 = vmax.f32 %v572, 0.0
      %v669 = vmax.f32 %v575, 0.0
      %v670 = vmax.f32 %v580, 0.0
      %v671 = vmax.f32 %v583, 0.0
      %v672 = vmax.f32 %v588, 0.0
      %v673 = vmax.f32 %v591, 0.0
      %v674 = vmax.f32 %v596, 0.0
      %v675 = vmax.f32 %v599, 0.0
      %v676 = vmax.f32 %v604, 0.0
      %v677 = vmax.f32 %v607, 0.0
      %v678 = vmax.f32 %v612, 0.0
      %v679 = vmax.f32 %v615, 0.0
      %v680 = vmax.f32 %v620, 0.0
      %v681 = vmax.f32 %v623, 0.0
      %v682 = vmax.f32 %v628, 0.0
      %v683 = vmax.f32 %v631, 0.0
      %v684 = vmax.f32 %v636, 0.0
      %v685 = vmax.f32 %v639, 0.0
      %v686 = vmax.f32 %v644, 0.0
      %v687 = vmax.f32 %v647, 0.0
      %v688 = vmax.f32 %v652, 0.0
      %v689 = vmax.f32 %v655, 0.0
      %v690 = vld [vmem:[%s3] sm:$0xf]
      %v691 = vld [vmem:[%s3 + $0x4] sm:$0xf]
      %v692 = vld [vmem:[%s3 + $0x8] sm:$0xf]
      %v693 = vld [vmem:[%s3 + $0xc] sm:$0xf]
      %v694 = vld [vmem:[%s3 + $0x10] sm:$0xf]
      %v695 = vld [vmem:[%s3 + $0x14] sm:$0xf]
      %v696 = vld [vmem:[%s3 + $0x18] sm:$0xf]
      %v697 = vld [vmem:[%s3 + $0x1c] sm:$0xf]
      %v698 = vld [vmem:[%s3 + $0x20] sm:$0xf]
      %v699 = vld [vmem:[%s3 + $0x24] sm:$0xf]
      %v700 = vld [vmem:[%s3 + $0x28] sm:$0xf]
      %v701 = vld [vmem:[%s3 + $0x2c] sm:$0xf]
      %v702 = vld [vmem:[%s3 + $0x30] sm:$0xf]
      %v703 = vld [vmem:[%s3 + $0x34] sm:$0xf]
      %v704 = vld [vmem:[%s3 + $0x38] sm:$0xf]
      %v705 = vld [vmem:[%s3 + $0x3c] sm:$0xf]
      %v706 = vld [vmem:[%s4] sm:$0x1]
      %v707 = vpack.c.bf16 %v659, %v658
      %v708 = vpack.c.bf16 %v661, %v660
      %v709 = vpack.c.bf16 %v663, %v662
      %v710 = vpack.c.bf16 %v665, %v664
      %v711 = vpack.c.bf16 %v667, %v666
      %v712 = vpack.c.bf16 %v669, %v668
      %v713 = vpack.c.bf16 %v671, %v670
      %v714 = vpack.c.bf16 %v673, %v672
      %v715 = vpack.c.bf16 %v675, %v674
      %v716 = vpack.c.bf16 %v677, %v676
      %v717 = vpack.c.bf16 %v679, %v678
      %v718 = vpack.c.bf16 %v681, %v680
      %v719 = vpack.c.bf16 %v683, %v682
      %v720 = vpack.c.bf16 %v685, %v684
      %v721 = vpack.c.bf16 %v687, %v686
      %v722 = vpack.c.bf16 %v689, %v688
      %v724 = vlaneseq
      %v725 = vshrl.u32 %v724, 7
      %v726 = vsub.s32 0, %v725
      %v727 = vrot.slane %v706, %v726
      %v745 = vunpack.c.l.b16 %v690
      %v746 = vunpack.c.l.b16 %v691
      %v747 = vunpack.c.l.b16 %v692
      %v748 = vunpack.c.l.b16 %v693
      %v749 = vunpack.c.l.b16 %v694
      %v750 = vunpack.c.l.b16 %v695
      %v751 = vunpack.c.l.b16 %v696
      %v752 = vunpack.c.l.b16 %v697
      %v753 = vunpack.c.l.b16 %v698
      %v754 = vunpack.c.l.b16 %v699
      %v755 = vunpack.c.l.b16 %v700
      %v756 = vunpack.c.l.b16 %v701
      %v757 = vunpack.c.l.b16 %v702
      %v758 = vunpack.c.l.b16 %v703
      %v759 = vunpack.c.l.b16 %v704
      %v760 = vunpack.c.l.b16 %v705
      %v761 = vpack.c.b16 %v746, %v745
      %v762 = vpack.c.b16 %v748, %v747
      %v763 = vpack.c.b16 %v750, %v749
      %v764 = vpack.c.b16 %v752, %v751
      %v765 = vpack.c.b16 %v754, %v753
      %v766 = vpack.c.b16 %v756, %v755
      %v767 = vpack.c.b16 %v758, %v757
      %v768 = vpack.c.b16 %v760, %v759
      %777 = vmatprep.subr.bf16.mxu0 0
      %778 = vmatpush1.bf16.msra.mxu0 %v768
      %779 = vmatprep.subr.bf16.mxu0 0
      %780 = vmatpush1.bf16.msra.mxu0 %v767
      %781 = vmatprep.subr.bf16.mxu0 0
      %782 = vmatpush1.bf16.msra.mxu0 %v766
      %783 = vmatprep.subr.bf16.mxu0 0
      %784 = vmatpush1.bf16.msra.mxu0 %v765
      %785 = vmatprep.subr.bf16.mxu0 0
      %786 = vmatpush1.bf16.msra.mxu0 %v764
      %787 = vmatprep.subr.bf16.mxu0 0
      %788 = vmatpush1.bf16.msra.mxu0 %v763
      %789 = vmatprep.subr.bf16.mxu0 0
      %790 = vmatpush1.bf16.msra.mxu0 %v762
      %791 = vmatprep.subr.bf16.mxu0 0
      %792 = vmatpush1.bf16.msra.mxu0 %v761
      %793 = vmatprep.subr.bf16.mxu0 0
      %794 = vmatpush2.bf16.msra.mxu0 0
      %795 = vmatprep.subr.bf16.mxu0 0
      %796 = vmatpush2.bf16.msra.mxu0 0
      %797 = vmatprep.subr.bf16.mxu0 0
      %798 = vmatpush2.bf16.msra.mxu0 0
      %799 = vmatprep.subr.bf16.mxu0 0
      %800 = vmatpush2.bf16.msra.mxu0 0
      %801 = vmatprep.subr.bf16.mxu0 0
      %802 = vmatpush2.bf16.msra.mxu0 0
      %803 = vmatprep.subr.bf16.mxu0 0
      %804 = vmatpush2.bf16.msra.mxu0 0
      %805 = vmatprep.subr.bf16.mxu0 0
      %806 = vmatpush2.bf16.msra.mxu0 0
      %807 = vmatprep.subr.bf16.mxu0 0
      %808 = vmatpush2.bf16.msra.mxu0 0
      %809 = vmatprep.mubr.bf16.mxu0 0
      %810 = vmatmul.mubr.bf16.gmra.mxu0 %v707
      %v811 = vpop.f32.mrf.mxu0
      %v812 = vadd.f32 %v727, %v811
      %v813 = vpop.f32.mrf.mxu0
      %v814 = vpop.f32.mrf.mxu0
      %v815 = vadd.f32 %v727, %v814
      %v816 = vpop.f32.mrf.mxu0
      %817 = vmatprep.mubr.bf16.mxu0 0
      %818 = vmatmul.mubr.bf16.gmra.mxu0 %v708
      %v819 = vpop.f32.mrf.mxu0
      %v820 = vadd.f32 %v727, %v819
      %v821 = vpop.f32.mrf.mxu0
      %v822 = vpop.f32.mrf.mxu0
      %v823 = vadd.f32 %v727, %v822
      %v824 = vpop.f32.mrf.mxu0
      %825 = vmatprep.mubr.bf16.mxu0 0
      %826 = vmatmul.mubr.bf16.gmra.mxu0 %v709
      %v827 = vpop.f32.mrf.mxu0
      %v828 = vadd.f32 %v727, %v827
      %v829 = vpop.f32.mrf.mxu0
      %v830 = vpop.f32.mrf.mxu0
      %v831 = vadd.f32 %v727, %v830
      %v832 = vpop.f32.mrf.mxu0
      %833 = vmatprep.mubr.bf16.mxu0 0
      %834 = vmatmul.mubr.bf16.gmra.mxu0 %v710
      %v835 = vpop.f32.mrf.mxu0
      %v836 = vadd.f32 %v727, %v835
      %v837 = vpop.f32.mrf.mxu0
      %v838 = vpop.f32.mrf.mxu0
      %v839 = vadd.f32 %v727, %v838
      %v840 = vpop.f32.mrf.mxu0
      %841 = vmatprep.mubr.bf16.mxu0 0
      %842 = vmatmul.mubr.bf16.gmra.mxu0 %v711
      %v843 = vpop.f32.mrf.mxu0
      %v844 = vadd.f32 %v727, %v843
      %v845 = vpop.f32.mrf.mxu0
      %v846 = vpop.f32.mrf.mxu0
      %v847 = vadd.f32 %v727, %v846
      %v848 = vpop.f32.mrf.mxu0
      %849 = vmatprep.mubr.bf16.mxu0 0
      %850 = vmatmul.mubr.bf16.gmra.mxu0 %v712
      %v851 = vpop.f32.mrf.mxu0
      %v852 = vadd.f32 %v727, %v851
      %v853 = vpop.f32.mrf.mxu0
      %v854 = vpop.f32.mrf.mxu0
      %v855 = vadd.f32 %v727, %v854
      %v856 = vpop.f32.mrf.mxu0
      %857 = vmatprep.mubr.bf16.mxu0 0
      %858 = vmatmul.mubr.bf16.gmra.mxu0 %v713
      %v859 = vpop.f32.mrf.mxu0
      %v860 = vadd.f32 %v727, %v859
      %v861 = vpop.f32.mrf.mxu0
      %v862 = vpop.f32.mrf.mxu0
      %v863 = vadd.f32 %v727, %v862
      %v864 = vpop.f32.mrf.mxu0
      %865 = vmatprep.mubr.bf16.mxu0 0
      %866 = vmatmul.mubr.bf16.gmra.mxu0 %v714
      %v867 = vpop.f32.mrf.mxu0
      %v868 = vadd.f32 %v727, %v867
      %v869 = vpop.f32.mrf.mxu0
      %v870 = vpop.f32.mrf.mxu0
      %v871 = vadd.f32 %v727, %v870
      %v872 = vpop.f32.mrf.mxu0
      %873 = vmatprep.mubr.bf16.mxu0 0
      %874 = vmatmul.mubr.bf16.gmra.mxu0 %v715
      %v875 = vpop.f32.mrf.mxu0
      %v876 = vadd.f32 %v727, %v875
      %v877 = vpop.f32.mrf.mxu0
      %v878 = vpop.f32.mrf.mxu0
      %v879 = vadd.f32 %v727, %v878
      %v880 = vpop.f32.mrf.mxu0
      %881 = vmatprep.mubr.bf16.mxu0 0
      %882 = vmatmul.mubr.bf16.gmra.mxu0 %v716
      %v883 = vpop.f32.mrf.mxu0
      %v884 = vadd.f32 %v727, %v883
      %v885 = vpop.f32.mrf.mxu0
      %v886 = vpop.f32.mrf.mxu0
      %v887 = vadd.f32 %v727, %v886
      %v888 = vpop.f32.mrf.mxu0
      %889 = vmatprep.mubr.bf16.mxu0 0
      %890 = vmatmul.mubr.bf16.gmra.mxu0 %v717
      %v891 = vpop.f32.mrf.mxu0
      %v892 = vadd.f32 %v727, %v891
      %v893 = vpop.f32.mrf.mxu0
      %v894 = vpop.f32.mrf.mxu0
      %v895 = vadd.f32 %v727, %v894
      %v896 = vpop.f32.mrf.mxu0
      %897 = vmatprep.mubr.bf16.mxu0 0
      %898 = vmatmul.mubr.bf16.gmra.mxu0 %v718
      %v899 = vpop.f32.mrf.mxu0
      %v900 = vadd.f32 %v727, %v899
      %v901 = vpop.f32.mrf.mxu0
      %v902 = vpop.f32.mrf.mxu0
      %v903 = vadd.f32 %v727, %v902
      %v904 = vpop.f32.mrf.mxu0
      %905 = vmatprep.mubr.bf16.mxu0 0
      %906 = vmatmul.mubr.bf16.gmra.mxu0 %v719
      %v907 = vpop.f32.mrf.mxu0
      %v908 = vadd.f32 %v727, %v907
      %v909 = vpop.f32.mrf.mxu0
      %v910 = vpop.f32.mrf.mxu0
      %v911 = vadd.f32 %v727, %v910
      %v912 = vpop.f32.mrf.mxu0
      %913 = vmatprep.mubr.bf16.mxu0 0
      %914 = vmatmul.mubr.bf16.gmra.mxu0 %v720
      %v915 = vpop.f32.mrf.mxu0
      %v916 = vadd.f32 %v727, %v915
      %v917 = vpop.f32.mrf.mxu0
      %v918 = vpop.f32.mrf.mxu0
      %v919 = vadd.f32 %v727, %v918
      %v920 = vpop.f32.mrf.mxu0
      %921 = vmatprep.mubr.bf16.mxu0 0
      %922 = vmatmul.mubr.bf16.gmra.mxu0 %v721
      %v923 = vpop.f32.mrf.mxu0
      %v924 = vadd.f32 %v727, %v923
      %v925 = vpop.f32.mrf.mxu0
      %v926 = vpop.f32.mrf.mxu0
      %v927 = vadd.f32 %v727, %v926
      %v928 = vpop.f32.mrf.mxu0
      %929 = vmatprep.mubr.bf16.mxu0 0
      %930 = vmatmul.mubr.bf16.gmra.mxu0 %v722
      %v931 = vpop.f32.mrf.mxu0
      %v932 = vadd.f32 %v727, %v931
      %v933 = vpop.f32.mrf.mxu0
      %v934 = vpop.f32.mrf.mxu0
      %v935 = vadd.f32 %v727, %v934
      %v936 = vpop.f32.mrf.mxu0
      %937 = vdwg.mxu0
      %v938 = vmax.f32 %v812, 0.0
      %v939 = vmax.f32 %v815, 0.0
      %v940 = vmax.f32 %v820, 0.0
      %v941 = vmax.f32 %v823, 0.0
      %v942 = vmax.f32 %v828, 0.0
      %v943 = vmax.f32 %v831, 0.0
      %v944 = vmax.f32 %v836, 0.0
      %v945 = vmax.f32 %v839, 0.0
      %v946 = vmax.f32 %v844, 0.0
      %v947 = vmax.f32 %v847, 0.0
      %v948 = vmax.f32 %v852, 0.0
      %v949 = vmax.f32 %v855, 0.0
      %v950 = vmax.f32 %v860, 0.0
      %v951 = vmax.f32 %v863, 0.0
      %v952 = vmax.f32 %v868, 0.0
      %v953 = vmax.f32 %v871, 0.0
      %v954 = vmax.f32 %v876, 0.0
      %v955 = vmax.f32 %v879, 0.0
      %v956 = vmax.f32 %v884, 0.0
      %v957 = vmax.f32 %v887, 0.0
      %v958 = vmax.f32 %v892, 0.0
      %v959 = vmax.f32 %v895, 0.0
      %v960 = vmax.f32 %v900, 0.0
      %v961 = vmax.f32 %v903, 0.0
      %v962 = vmax.f32 %v908, 0.0
      %v963 = vmax.f32 %v911, 0.0
      %v964 = vmax.f32 %v916, 0.0
      %v965 = vmax.f32 %v919, 0.0
      %v966 = vmax.f32 %v924, 0.0
      %v967 = vmax.f32 %v927, 0.0
      %v968 = vmax.f32 %v932, 0.0
      %v969 = vmax.f32 %v935, 0.0
      %v970 = vld [vmem:[%s5] sm:$0xf]
      %v971 = vld [vmem:[%s5 + $0x4] sm:$0xf]
      %v972 = vld [vmem:[%s5 + $0x8] sm:$0xf]
      %v973 = vld [vmem:[%s5 + $0xc] sm:$0xf]
      %v974 = vld [vmem:[%s5 + $0x10] sm:$0xf]
      %v975 = vld [vmem:[%s5 + $0x14] sm:$0xf]
      %v976 = vld [vmem:[%s5 + $0x18] sm:$0xf]
      %v977 = vld [vmem:[%s5 + $0x1c] sm:$0xf]
      %v978 = vld [vmem:[%s5 + $0x20] sm:$0xf]
      %v979 = vld [vmem:[%s5 + $0x24] sm:$0xf]
      %v980 = vld [vmem:[%s5 + $0x28] sm:$0xf]
      %v981 = vld [vmem:[%s5 + $0x2c] sm:$0xf]
      %v982 = vld [vmem:[%s5 + $0x30] sm:$0xf]
      %v983 = vld [vmem:[%s5 + $0x34] sm:$0xf]
      %v984 = vld [vmem:[%s5 + $0x38] sm:$0xf]
      %v985 = vld [vmem:[%s5 + $0x3c] sm:$0xf]
      %v986 = vld [vmem:[%s6] sm:$0x1]
      %v987 = vpack.c.bf16 %v939, %v938
      %v988 = vpack.c.bf16 %v941, %v940
      %v989 = vpack.c.bf16 %v943, %v942
      %v990 = vpack.c.bf16 %v945, %v944
      %v991 = vpack.c.bf16 %v947, %v946
      %v992 = vpack.c.bf16 %v949, %v948
      %v993 = vpack.c.bf16 %v951, %v950
      %v994 = vpack.c.bf16 %v953, %v952
      %v995 = vpack.c.bf16 %v955, %v954
      %v996 = vpack.c.bf16 %v957, %v956
      %v997 = vpack.c.bf16 %v959, %v958
      %v998 = vpack.c.bf16 %v961, %v960
      %v999 = vpack.c.bf16 %v963, %v962
      %v1000 = vpack.c.bf16 %v965, %v964
      %v1001 = vpack.c.bf16 %v967, %v966
      %v1002 = vpack.c.bf16 %v969, %v968
      %v1004 = vlaneseq
      %v1005 = vshrl.u32 %v1004, 7
      %v1006 = vsub.s32 0, %v1005
      %v1007 = vrot.slane %v986, %v1006
      %v1025 = vunpack.c.l.b16 %v970
      %v1026 = vunpack.c.l.b16 %v971
      %v1027 = vunpack.c.l.b16 %v972
      %v1028 = vunpack.c.l.b16 %v973
      %v1029 = vunpack.c.l.b16 %v974
      %v1030 = vunpack.c.l.b16 %v975
      %v1031 = vunpack.c.l.b16 %v976
      %v1032 = vunpack.c.l.b16 %v977
      %v1033 = vunpack.c.l.b16 %v978
      %v1034 = vunpack.c.l.b16 %v979
      %v1035 = vunpack.c.l.b16 %v980
      %v1036 = vunpack.c.l.b16 %v981
      %v1037 = vunpack.c.l.b16 %v982
      %v1038 = vunpack.c.l.b16 %v983
      %v1039 = vunpack.c.l.b16 %v984
      %v1040 = vunpack.c.l.b16 %v985
      %v1041 = vpack.c.b16 %v1026, %v1025
      %v1042 = vpack.c.b16 %v1028, %v1027
      %v1043 = vpack.c.b16 %v1030, %v1029
      %v1044 = vpack.c.b16 %v1032, %v1031
      %v1045 = vpack.c.b16 %v1034, %v1033
      %v1046 = vpack.c.b16 %v1036, %v1035
      %v1047 = vpack.c.b16 %v1038, %v1037
      %v1048 = vpack.c.b16 %v1040, %v1039
      %1057 = vmatprep.subr.bf16.mxu0 0
      %1058 = vmatpush1.bf16.msra.mxu0 %v1048
      %1059 = vmatprep.subr.bf16.mxu0 0
      %1060 = vmatpush1.bf16.msra.mxu0 %v1047
      %1061 = vmatprep.subr.bf16.mxu0 0
      %1062 = vmatpush1.bf16.msra.mxu0 %v1046
      %1063 = vmatprep.subr.bf16.mxu0 0
      %1064 = vmatpush1.bf16.msra.mxu0 %v1045
      %1065 = vmatprep.subr.bf16.mxu0 0
      %1066 = vmatpush1.bf16.msra.mxu0 %v1044
      %1067 = vmatprep.subr.bf16.mxu0 0
      %1068 = vmatpush1.bf16.msra.mxu0 %v1043
      %1069 = vmatprep.subr.bf16.mxu0 0
      %1070 = vmatpush1.bf16.msra.mxu0 %v1042
      %1071 = vmatprep.subr.bf16.mxu0 0
      %1072 = vmatpush1.bf16.msra.mxu0 %v1041
      %1073 = vmatprep.subr.bf16.mxu0 0
      %1074 = vmatpush2.bf16.msra.mxu0 0
      %1075 = vmatprep.subr.bf16.mxu0 0
      %1076 = vmatpush2.bf16.msra.mxu0 0
      %1077 = vmatprep.subr.bf16.mxu0 0
      %1078 = vmatpush2.bf16.msra.mxu0 0
      %1079 = vmatprep.subr.bf16.mxu0 0
      %1080 = vmatpush2.bf16.msra.mxu0 0
      %1081 = vmatprep.subr.bf16.mxu0 0
      %1082 = vmatpush2.bf16.msra.mxu0 0
      %1083 = vmatprep.subr.bf16.mxu0 0
      %1084 = vmatpush2.bf16.msra.mxu0 0
      %1085 = vmatprep.subr.bf16.mxu0 0
      %1086 = vmatpush2.bf16.msra.mxu0 0
      %1087 = vmatprep.subr.bf16.mxu0 0
      %1088 = vmatpush2.bf16.msra.mxu0 0
      %1089 = vmatprep.mubr.bf16.mxu0 0
      %1090 = vmatmul.mubr.bf16.gmra.mxu0 %v987
      %v1091 = vpop.f32.mrf.mxu0
      %v1092 = vadd.f32 %v1007, %v1091
      %v1093 = vpop.f32.mrf.mxu0
      %v1094 = vpop.f32.mrf.mxu0
      %v1095 = vadd.f32 %v1007, %v1094
      %v1096 = vpop.f32.mrf.mxu0
      %1097 = vmatprep.mubr.bf16.mxu0 0
      %1098 = vmatmul.mubr.bf16.gmra.mxu0 %v988
      %v1099 = vpop.f32.mrf.mxu0
      %v1100 = vadd.f32 %v1007, %v1099
      %v1101 = vpop.f32.mrf.mxu0
      %v1102 = vpop.f32.mrf.mxu0
      %v1103 = vadd.f32 %v1007, %v1102
      %v1104 = vpop.f32.mrf.mxu0
      %1105 = vmatprep.mubr.bf16.mxu0 0
      %1106 = vmatmul.mubr.bf16.gmra.mxu0 %v989
      %v1107 = vpop.f32.mrf.mxu0
      %v1108 = vadd.f32 %v1007, %v1107
      %v1109 = vpop.f32.mrf.mxu0
      %v1110 = vpop.f32.mrf.mxu0
      %v1111 = vadd.f32 %v1007, %v1110
      %v1112 = vpop.f32.mrf.mxu0
      %1113 = vmatprep.mubr.bf16.mxu0 0
      %1114 = vmatmul.mubr.bf16.gmra.mxu0 %v990
      %v1115 = vpop.f32.mrf.mxu0
      %v1116 = vadd.f32 %v1007, %v1115
      %v1117 = vpop.f32.mrf.mxu0
      %v1118 = vpop.f32.mrf.mxu0
      %v1119 = vadd.f32 %v1007, %v1118
      %v1120 = vpop.f32.mrf.mxu0
      %1121 = vmatprep.mubr.bf16.mxu0 0
      %1122 = vmatmul.mubr.bf16.gmra.mxu0 %v991
      %v1123 = vpop.f32.mrf.mxu0
      %v1124 = vadd.f32 %v1007, %v1123
      %v1125 = vpop.f32.mrf.mxu0
      %v1126 = vpop.f32.mrf.mxu0
      %v1127 = vadd.f32 %v1007, %v1126
      %v1128 = vpop.f32.mrf.mxu0
      %1129 = vmatprep.mubr.bf16.mxu0 0
      %1130 = vmatmul.mubr.bf16.gmra.mxu0 %v992
      %v1131 = vpop.f32.mrf.mxu0
      %v1132 = vadd.f32 %v1007, %v1131
      %v1133 = vpop.f32.mrf.mxu0
      %v1134 = vpop.f32.mrf.mxu0
      %v1135 = vadd.f32 %v1007, %v1134
      %v1136 = vpop.f32.mrf.mxu0
      %1137 = vmatprep.mubr.bf16.mxu0 0
      %1138 = vmatmul.mubr.bf16.gmra.mxu0 %v993
      %v1139 = vpop.f32.mrf.mxu0
      %v1140 = vadd.f32 %v1007, %v1139
      %v1141 = vpop.f32.mrf.mxu0
      %v1142 = vpop.f32.mrf.mxu0
      %v1143 = vadd.f32 %v1007, %v1142
      %v1144 = vpop.f32.mrf.mxu0
      %1145 = vmatprep.mubr.bf16.mxu0 0
      %1146 = vmatmul.mubr.bf16.gmra.mxu0 %v994
      %v1147 = vpop.f32.mrf.mxu0
      %v1148 = vadd.f32 %v1007, %v1147
      %v1149 = vpop.f32.mrf.mxu0
      %v1150 = vpop.f32.mrf.mxu0
      %v1151 = vadd.f32 %v1007, %v1150
      %v1152 = vpop.f32.mrf.mxu0
      %1153 = vmatprep.mubr.bf16.mxu0 0
      %1154 = vmatmul.mubr.bf16.gmra.mxu0 %v995
      %v1155 = vpop.f32.mrf.mxu0
      %v1156 = vadd.f32 %v1007, %v1155
      %v1157 = vpop.f32.mrf.mxu0
      %v1158 = vpop.f32.mrf.mxu0
      %v1159 = vadd.f32 %v1007, %v1158
      %v1160 = vpop.f32.mrf.mxu0
      %1161 = vmatprep.mubr.bf16.mxu0 0
      %1162 = vmatmul.mubr.bf16.gmra.mxu0 %v996
      %v1163 = vpop.f32.mrf.mxu0
      %v1164 = vadd.f32 %v1007, %v1163
      %v1165 = vpop.f32.mrf.mxu0
      %v1166 = vpop.f32.mrf.mxu0
      %v1167 = vadd.f32 %v1007, %v1166
      %v1168 = vpop.f32.mrf.mxu0
      %1169 = vmatprep.mubr.bf16.mxu0 0
      %1170 = vmatmul.mubr.bf16.gmra.mxu0 %v997
      %v1171 = vpop.f32.mrf.mxu0
      %v1172 = vadd.f32 %v1007, %v1171
      %v1173 = vpop.f32.mrf.mxu0
      %v1174 = vpop.f32.mrf.mxu0
      %v1175 = vadd.f32 %v1007, %v1174
      %v1176 = vpop.f32.mrf.mxu0
      %1177 = vmatprep.mubr.bf16.mxu0 0
      %1178 = vmatmul.mubr.bf16.gmra.mxu0 %v998
      %v1179 = vpop.f32.mrf.mxu0
      %v1180 = vadd.f32 %v1007, %v1179
      %v1181 = vpop.f32.mrf.mxu0
      %v1182 = vpop.f32.mrf.mxu0
      %v1183 = vadd.f32 %v1007, %v1182
      %v1184 = vpop.f32.mrf.mxu0
      %1185 = vmatprep.mubr.bf16.mxu0 0
      %1186 = vmatmul.mubr.bf16.gmra.mxu0 %v999
      %v1187 = vpop.f32.mrf.mxu0
      %v1188 = vadd.f32 %v1007, %v1187
      %v1189 = vpop.f32.mrf.mxu0
      %v1190 = vpop.f32.mrf.mxu0
      %v1191 = vadd.f32 %v1007, %v1190
      %v1192 = vpop.f32.mrf.mxu0
      %1193 = vmatprep.mubr.bf16.mxu0 0
      %1194 = vmatmul.mubr.bf16.gmra.mxu0 %v1000
      %v1195 = vpop.f32.mrf.mxu0
      %v1196 = vadd.f32 %v1007, %v1195
      %v1197 = vpop.f32.mrf.mxu0
      %v1198 = vpop.f32.mrf.mxu0
      %v1199 = vadd.f32 %v1007, %v1198
      %v1200 = vpop.f32.mrf.mxu0
      %1201 = vmatprep.mubr.bf16.mxu0 0
      %1202 = vmatmul.mubr.bf16.gmra.mxu0 %v1001
      %v1203 = vpop.f32.mrf.mxu0
      %v1204 = vadd.f32 %v1007, %v1203
      %v1205 = vpop.f32.mrf.mxu0
      %v1206 = vpop.f32.mrf.mxu0
      %v1207 = vadd.f32 %v1007, %v1206
      %v1208 = vpop.f32.mrf.mxu0
      %1209 = vmatprep.mubr.bf16.mxu0 0
      %1210 = vmatmul.mubr.bf16.gmra.mxu0 %v1002
      %v1211 = vpop.f32.mrf.mxu0
      %v1212 = vadd.f32 %v1007, %v1211
      %v1213 = vpop.f32.mrf.mxu0
      %v1214 = vpop.f32.mrf.mxu0
      %v1215 = vadd.f32 %v1007, %v1214
      %v1216 = vpop.f32.mrf.mxu0
      %1217 = vdwg.mxu0
      %v1218 = vmax.f32 %v1092, 0.0
      %v1219 = vmax.f32 %v1095, 0.0
      %v1220 = vmax.f32 %v1100, 0.0
      %v1221 = vmax.f32 %v1103, 0.0
      %v1222 = vmax.f32 %v1108, 0.0
      %v1223 = vmax.f32 %v1111, 0.0
      %v1224 = vmax.f32 %v1116, 0.0
      %v1225 = vmax.f32 %v1119, 0.0
      %v1226 = vmax.f32 %v1124, 0.0
      %v1227 = vmax.f32 %v1127, 0.0
      %v1228 = vmax.f32 %v1132, 0.0
      %v1229 = vmax.f32 %v1135, 0.0
      %v1230 = vmax.f32 %v1140, 0.0
      %v1231 = vmax.f32 %v1143, 0.0
      %v1232 = vmax.f32 %v1148, 0.0
      %v1233 = vmax.f32 %v1151, 0.0
      %v1234 = vmax.f32 %v1156, 0.0
      %v1235 = vmax.f32 %v1159, 0.0
      %v1236 = vmax.f32 %v1164, 0.0
      %v1237 = vmax.f32 %v1167, 0.0
      %v1238 = vmax.f32 %v1172, 0.0
      %v1239 = vmax.f32 %v1175, 0.0
      %v1240 = vmax.f32 %v1180, 0.0
      %v1241 = vmax.f32 %v1183, 0.0
      %v1242 = vmax.f32 %v1188, 0.0
      %v1243 = vmax.f32 %v1191, 0.0
      %v1244 = vmax.f32 %v1196, 0.0
      %v1245 = vmax.f32 %v1199, 0.0
      %v1246 = vmax.f32 %v1204, 0.0
      %v1247 = vmax.f32 %v1207, 0.0
      %v1248 = vmax.f32 %v1212, 0.0
      %v1249 = vmax.f32 %v1215, 0.0
      %v1250 = vmax.f32 %v1218, %v1219
      %v1251 = vrot.slane %v1250, 4
      %v1252 = vmax.f32 %v1250, %v1251
      %v1253 = vrot.slane %v1252, 2
      %v1254 = vmax.f32 %v1252, %v1253
      %v1255 = vrot.slane %v1254, 1
      %v1256 = vmax.f32 %v1254, %v1255
      %v1257 = vmax.f32 %v1220, %v1221
      %v1258 = vrot.slane %v1257, 4
      %v1259 = vmax.f32 %v1257, %v1258
      %v1260 = vrot.slane %v1259, 2
      %v1261 = vmax.f32 %v1259, %v1260
      %v1262 = vrot.slane %v1261, 1
      %v1263 = vmax.f32 %v1261, %v1262
      %v1264 = vmax.f32 %v1222, %v1223
      %v1265 = vrot.slane %v1264, 4
      %v1266 = vmax.f32 %v1264, %v1265
      %v1267 = vrot.slane %v1266, 2
      %v1268 = vmax.f32 %v1266, %v1267
      %v1269 = vrot.slane %v1268, 1
      %v1270 = vmax.f32 %v1268, %v1269
      %v1271 = vmax.f32 %v1224, %v1225
      %v1272 = vrot.slane %v1271, 4
      %v1273 = vmax.f32 %v1271, %v1272
      %v1274 = vrot.slane %v1273, 2
      %v1275 = vmax.f32 %v1273, %v1274
      %v1276 = vrot.slane %v1275, 1
      %v1277 = vmax.f32 %v1275, %v1276
      %v1278 = vmax.f32 %v1226, %v1227
      %v1279 = vrot.slane %v1278, 4
      %v1280 = vmax.f32 %v1278, %v1279
      %v1281 = vrot.slane %v1280, 2
      %v1282 = vmax.f32 %v1280, %v1281
      %v1283 = vrot.slane %v1282, 1
      %v1284 = vmax.f32 %v1282, %v1283
      %v1285 = vmax.f32 %v1228, %v1229
      %v1286 = vrot.slane %v1285, 4
      %v1287 = vmax.f32 %v1285, %v1286
      %v1288 = vrot.slane %v1287, 2
      %v1289 = vmax.f32 %v1287, %v1288
      %v1290 = vrot.slane %v1289, 1
      %v1291 = vmax.f32 %v1289, %v1290
      %v1292 = vmax.f32 %v1230, %v1231
      %v1293 = vrot.slane %v1292, 4
      %v1294 = vmax.f32 %v1292, %v1293
      %v1295 = vrot.slane %v1294, 2
      %v1296 = vmax.f32 %v1294, %v1295
      %v1297 = vrot.slane %v1296, 1
      %v1298 = vmax.f32 %v1296, %v1297
      %v1299 = vmax.f32 %v1232, %v1233
      %v1300 = vrot.slane %v1299, 4
      %v1301 = vmax.f32 %v1299, %v1300
      %v1302 = vrot.slane %v1301, 2
      %v1303 = vmax.f32 %v1301, %v1302
      %v1304 = vrot.slane %v1303, 1
      %v1305 = vmax.f32 %v1303, %v1304
      %v1306 = vmax.f32 %v1234, %v1235
      %v1307 = vrot.slane %v1306, 4
      %v1308 = vmax.f32 %v1306, %v1307
      %v1309 = vrot.slane %v1308, 2
      %v1310 = vmax.f32 %v1308, %v1309
      %v1311 = vrot.slane %v1310, 1
      %v1312 = vmax.f32 %v1310, %v1311
      %v1313 = vmax.f32 %v1236, %v1237
      %v1314 = vrot.slane %v1313, 4
      %v1315 = vmax.f32 %v1313, %v1314
      %v1316 = vrot.slane %v1315, 2
      %v1317 = vmax.f32 %v1315, %v1316
      %v1318 = vrot.slane %v1317, 1
      %v1319 = vmax.f32 %v1317, %v1318
      %v1320 = vmax.f32 %v1238, %v1239
      %v1321 = vrot.slane %v1320, 4
      %v1322 = vmax.f32 %v1320, %v1321
      %v1323 = vrot.slane %v1322, 2
      %v1324 = vmax.f32 %v1322, %v1323
      %v1325 = vrot.slane %v1324, 1
      %v1326 = vmax.f32 %v1324, %v1325
      %v1327 = vmax.f32 %v1240, %v1241
      %v1328 = vrot.slane %v1327, 4
      %v1329 = vmax.f32 %v1327, %v1328
      %v1330 = vrot.slane %v1329, 2
      %v1331 = vmax.f32 %v1329, %v1330
      %v1332 = vrot.slane %v1331, 1
      %v1333 = vmax.f32 %v1331, %v1332
      %v1334 = vmax.f32 %v1242, %v1243
      %v1335 = vrot.slane %v1334, 4
      %v1336 = vmax.f32 %v1334, %v1335
      %v1337 = vrot.slane %v1336, 2
      %v1338 = vmax.f32 %v1336, %v1337
      %v1339 = vrot.slane %v1338, 1
      %v1340 = vmax.f32 %v1338, %v1339
      %v1341 = vmax.f32 %v1244, %v1245
      %v1342 = vrot.slane %v1341, 4
      %v1343 = vmax.f32 %v1341, %v1342
      %v1344 = vrot.slane %v1343, 2
      %v1345 = vmax.f32 %v1343, %v1344
      %v1346 = vrot.slane %v1345, 1
      %v1347 = vmax.f32 %v1345, %v1346
      %v1348 = vmax.f32 %v1246, %v1247
      %v1349 = vrot.slane %v1348, 4
      %v1350 = vmax.f32 %v1348, %v1349
      %v1351 = vrot.slane %v1350, 2
      %v1352 = vmax.f32 %v1350, %v1351
      %v1353 = vrot.slane %v1352, 1
      %v1354 = vmax.f32 %v1352, %v1353
      %v1355 = vmax.f32 %v1248, %v1249
      %v1356 = vrot.slane %v1355, 4
      %v1357 = vmax.f32 %v1355, %v1356
      %v1358 = vrot.slane %v1357, 2
      %v1359 = vmax.f32 %v1357, %v1358
      %v1360 = vrot.slane %v1359, 1
      %v1361 = vmax.f32 %v1359, %v1360
      %vm1378 = vcmask 1041409
      %v1379 = vsel %vm1378, %v1263, %v1256
      %vm1380 = vcmask 1042434
      %v1381 = vsel %vm1380, %v1270, %v1379
      %vm1382 = vcmask 1043459
      %v1383 = vsel %vm1382, %v1277, %v1381
      %vm1384 = vcmask 1044484
      %v1385 = vsel %vm1384, %v1284, %v1383
      %vm1386 = vcmask 1045509
      %v1387 = vsel %vm1386, %v1291, %v1385
      %vm1388 = vcmask 1046534
      %v1389 = vsel %vm1388, %v1298, %v1387
      %vm1390 = vcmask 1047559
      %v1391 = vsel %vm1390, %v1305, %v1389
      %v1392 = vsel %vm1378, %v1319, %v1312
      %v1393 = vsel %vm1380, %v1326, %v1392
      %v1394 = vsel %vm1382, %v1333, %v1393
      %v1395 = vsel %vm1384, %v1340, %v1394
      %v1396 = vsel %vm1386, %v1347, %v1395
      %v1397 = vsel %vm1388, %v1354, %v1396
      %v1398 = vsel %vm1390, %v1361, %v1397
      %1401 = vst [vmem:[%s283] sm:$0xff] %v1391
      %1402 = vst [vmem:[%s283 + $0x8] sm:$0xff] %v1398
      %s1403 = smul.u32 2, %s18
      %p1404 = scmp.lt.s32.totalorder %s1403, 3
      %s1405 = scalar_select %p1404, %s1403, 3
      %s1406 = smul.addr %s1405, 8
      %s1407 = scalar_lea.vmem %s7, %s1406
      // Predicated region
      $region49: #{pointnet2_msg_forward.12} parent=47 // pred_check
        %p1408 = pneg %p188
      $region50: #{pointnet2_msg_forward.12} parent=47 // pred_check_branch
        %1410 = sbr.rel (%p1408) target = $region52
      $region51: #{pointnet2_msg_forward.12} parent=47 // pred_region
        %s1411 = smul.u32 2, %s18
      $region52: #{pointnet2_msg_forward.12} parent=47 // pred_fallthru
        _
    $region48: #{pointnet2_msg_forward.12} parent=5 // pred_fallthru
      _
    %p1412 = scmp.le.s32.totalorder 2, %s13
    // Predicated region
    $region53: #{pointnet2_msg_forward.12} parent=5 // pred_check
      %p1413 = pneg %p1412
    $region54: #{pointnet2_msg_forward.12} parent=5 // pred_check_branch
      %1415 = sbr.rel (%p1413) target = $region56
    $region55: #{pointnet2_msg_forward.12} parent=5 // pred_region
      %s1416 = ssub.s32 %s13, 2
      // Predicated region
      $region57: #{pointnet2_msg_forward.12} parent=55 // pred_check
        %p1417 = pneg %p194
      $region58: #{pointnet2_msg_forward.12} parent=55 // pred_check_branch
        %1419 = sbr.rel (%p1417) target = $region60
      $region59: #{pointnet2_msg_forward.12} parent=55 // pred_region
        %s1420 = smul.u32 2, %s19
        %p1421 = scmp.lt.s32.totalorder %s1420, 3
        %s1422 = scalar_select %p1421, %s1420, 3
        %s1423 = smul.addr %s1422, 8
        %s1424 = scalar_lea.vmem %s7, %s1423
      $region60: #{pointnet2_msg_forward.12} parent=55 // pred_fallthru
        _
    $region56: #{pointnet2_msg_forward.12} parent=5 // pred_fallthru
      _
  $region6: #{pointnet2_msg_forward.12} parent=0 // loop_footer
    %s17 = sadd.s32 1, %s13
  $region7: #{pointnet2_msg_forward.12} parent=0 // loop_footer_branch
    %12 = sbr.rel target = $region3
  $region8: #{pointnet2_msg_forward.12} parent=0 // loop_exit
    _

// kernel: pointnet2_msg_forward.13
$region0: #{pointnet2_msg_forward.13}
  #allocation0 [shape = 'u32[]', space=smem, size = 0x4, offset = 0x4, fixed_abs, tag = 'smem constant byte address 0x4 - core index']
  #allocation1 [shape = 'u32[144,128]{1,0:T(1,128)}', space=vmem, size = 0x12000, scoped, tag = 'internal scratch']
  %s0 = inlined_call_operand.vmem [shape: bf16[2,16,131], index: 0, kind: input, shape index: {}]
  %s1 = inlined_call_operand.vmem [shape: bf16[131,128], index: 1, kind: input, shape index: {}]
  %s2 = inlined_call_operand.vmem [shape: f32[1,128], index: 2, kind: input, shape index: {}]
  %s3 = inlined_call_operand.vmem [shape: bf16[128,128], index: 3, kind: input, shape index: {}]
  %s4 = inlined_call_operand.vmem [shape: f32[1,128], index: 4, kind: input, shape index: {}]
  %s5 = inlined_call_operand.vmem [shape: bf16[128,128], index: 5, kind: input, shape index: {}]
  %s6 = inlined_call_operand.vmem [shape: f32[1,128], index: 6, kind: input, shape index: {}]
  %s7 = inlined_call_operand.vmem [shape: f32[2,128], index: 7, kind: output, shape index: {}]
  %s8 = sld [smem:[#allocation0]]
  $region38: #{pointnet2_msg_forward.13} parent=0
    _
  %s10 = ssub.s32 1, %s8
  %s11 = scalar_select 0, %s10, %s8
  // Predicated region
  $region2: #{pointnet2_msg_forward.13} parent=0 // pred_check
    _
  $region3: #{pointnet2_msg_forward.13} parent=0 // pred_check_branch
    %13 = sbr.rel (0) target = $region5
  $region4: #{pointnet2_msg_forward.13} parent=0 // pred_region
    _
  $region5: #{pointnet2_msg_forward.13} parent=0 // pred_fallthru
    _
  // Predicated region
  $region6: #{pointnet2_msg_forward.13} parent=0 // pred_check
    _
  $region7: #{pointnet2_msg_forward.13} parent=0 // pred_check_branch
    %15 = sbr.rel (0) target = $region9
  $region8: #{pointnet2_msg_forward.13} parent=0 // pred_region
    _
  $region9: #{pointnet2_msg_forward.13} parent=0 // pred_fallthru
    _
  // Predicated region
  $region10: #{pointnet2_msg_forward.13} parent=0 // pred_check
    _
  $region11: #{pointnet2_msg_forward.13} parent=0 // pred_check_branch
    %17 = sbr.rel (0) target = $region13
  $region12: #{pointnet2_msg_forward.13} parent=0 // pred_region
    _
  $region13: #{pointnet2_msg_forward.13} parent=0 // pred_fallthru
    _
  // Predicated region
  $region14: #{pointnet2_msg_forward.13} parent=0 // pred_check
    _
  $region15: #{pointnet2_msg_forward.13} parent=0 // pred_check_branch
    %19 = sbr.rel (0) target = $region17
  $region16: #{pointnet2_msg_forward.13} parent=0 // pred_region
    _
  $region17: #{pointnet2_msg_forward.13} parent=0 // pred_fallthru
    _
  // Predicated region
  $region18: #{pointnet2_msg_forward.13} parent=0 // pred_check
    _
  $region19: #{pointnet2_msg_forward.13} parent=0 // pred_check_branch
    %21 = sbr.rel (0) target = $region21
  $region20: #{pointnet2_msg_forward.13} parent=0 // pred_region
    _
  $region21: #{pointnet2_msg_forward.13} parent=0 // pred_fallthru
    _
  // Predicated region
  $region22: #{pointnet2_msg_forward.13} parent=0 // pred_check
    _
  $region23: #{pointnet2_msg_forward.13} parent=0 // pred_check_branch
    %23 = sbr.rel (0) target = $region25
  $region24: #{pointnet2_msg_forward.13} parent=0 // pred_region
    _
  $region25: #{pointnet2_msg_forward.13} parent=0 // pred_fallthru
    _
  // Predicated region
  $region26: #{pointnet2_msg_forward.13} parent=0 // pred_check
    _
  $region27: #{pointnet2_msg_forward.13} parent=0 // pred_check_branch
    %25 = sbr.rel (0) target = $region29
  $region28: #{pointnet2_msg_forward.13} parent=0 // pred_region
    _
  $region29: #{pointnet2_msg_forward.13} parent=0 // pred_fallthru
    _
  %v27 = vld [vmem:[%s0] sm:$0xff]
  %v28 = vld [vmem:[%s0 + $0x8] sm:$0xff]
  %v29 = vld [vmem:[%s0 + $0x10] sm:$0xff]
  %v30 = vld [vmem:[%s0 + $0x18] sm:$0xff]
  %v31 = vld [vmem:[%s1] sm:$0xf]
  %v32 = vld [vmem:[%s1 + $0x4] sm:$0xf]
  %v33 = vld [vmem:[%s1 + $0x8] sm:$0xf]
  %v34 = vld [vmem:[%s1 + $0xc] sm:$0xf]
  %v35 = vld [vmem:[%s1 + $0x10] sm:$0xf]
  %v36 = vld [vmem:[%s1 + $0x14] sm:$0xf]
  %v37 = vld [vmem:[%s1 + $0x18] sm:$0xf]
  %v38 = vld [vmem:[%s1 + $0x1c] sm:$0xf]
  %v39 = vld [vmem:[%s1 + $0x20] sm:$0xf]
  %v40 = vld [vmem:[%s1 + $0x24] sm:$0xf]
  %v41 = vld [vmem:[%s1 + $0x28] sm:$0xf]
  %v42 = vld [vmem:[%s1 + $0x2c] sm:$0xf]
  %v43 = vld [vmem:[%s1 + $0x30] sm:$0xf]
  %v44 = vld [vmem:[%s1 + $0x34] sm:$0xf]
  %v45 = vld [vmem:[%s1 + $0x38] sm:$0xf]
  %v46 = vld [vmem:[%s1 + $0x3c] sm:$0xf]
  %v47 = vld [vmem:[%s1 + $0x40] sm:$0x3]
  %v48 = vld [vmem:[%s2] sm:$0x1]
  %v50 = vlaneseq
  %v51 = vshrl.u32 %v50, 7
  %v52 = vsub.s32 0, %v51
  %v53 = vrot.slane %v48, %v52
  %v59 = vunpack.c.l.b16 %v27
  %v60 = vunpack.c.h.b16 %v27
  %v61 = vunpack.c.l.b16 %v28
  %v62 = vunpack.c.h.b16 %v28
  %v63 = vunpack.c.l.b16 %v29
  %v64 = vunpack.c.h.b16 %v29
  %v65 = vunpack.c.l.b16 %v30
  %v66 = vunpack.c.h.b16 %v30
  %v67 = vpack.c.b16 %v61, %v59
  %v68 = vpack.c.b16 %v62, %v60
  %v69 = vpack.c.b16 %v65, %v63
  %v70 = vpack.c.b16 %v66, %v64
  %v90 = vunpack.c.l.b16 %v31
  %v91 = vunpack.c.l.b16 %v32
  %v92 = vunpack.c.l.b16 %v33
  %v93 = vunpack.c.l.b16 %v34
  %v94 = vunpack.c.l.b16 %v35
  %v95 = vunpack.c.l.b16 %v36
  %v96 = vunpack.c.l.b16 %v37
  %v97 = vunpack.c.l.b16 %v38
  %v98 = vunpack.c.l.b16 %v39
  %v99 = vunpack.c.l.b16 %v40
  %v100 = vunpack.c.l.b16 %v41
  %v101 = vunpack.c.l.b16 %v42
  %v102 = vunpack.c.l.b16 %v43
  %v103 = vunpack.c.l.b16 %v44
  %v104 = vunpack.c.l.b16 %v45
  %v105 = vunpack.c.l.b16 %v46
  %v106 = vunpack.c.l.b16 %v47
  %v107 = vpack.c.b16 %v91, %v90
  %v108 = vpack.c.b16 %v93, %v92
  %v109 = vpack.c.b16 %v95, %v94
  %v110 = vpack.c.b16 %v97, %v96
  %v111 = vpack.c.b16 %v99, %v98
  %v112 = vpack.c.b16 %v101, %v100
  %v113 = vpack.c.b16 %v103, %v102
  %v114 = vpack.c.b16 %v105, %v104
  %v115 = vpack.c.b16 %v106, %v106
  %vm124 = vcmask 23552
  %v126 = vsel %vm124, %v68, 0
  %v129 = vsel %vm124, %v70, 0
  %vm131 = vcmask 1040384
  %vm132 = vcmask 1041408
  %v133 = vsel %vm131, 4294967295, 65535
  %v134 = vsel %vm132, %v133, 0
  %v136 = vand.u32 %v115, %v134
  %138 = vmatprep.subr.bf16.mxu0 0
  %139 = vmatpush1.bf16.msra.mxu0 %v114
  %140 = vmatprep.subr.bf16.mxu0 0
  %141 = vmatpush1.bf16.msra.mxu0 %v113
  %142 = vmatprep.subr.bf16.mxu0 0
  %143 = vmatpush1.bf16.msra.mxu0 %v112
  %144 = vmatprep.subr.bf16.mxu0 0
  %145 = vmatpush1.bf16.msra.mxu0 %v111
  %146 = vmatprep.subr.bf16.mxu0 0
  %147 = vmatpush1.bf16.msra.mxu0 %v110
  %148 = vmatprep.subr.bf16.mxu0 0
  %149 = vmatpush1.bf16.msra.mxu0 %v109
  %150 = vmatprep.subr.bf16.mxu0 0
  %151 = vmatpush1.bf16.msra.mxu0 %v108
  %152 = vmatprep.subr.bf16.mxu0 0
  %153 = vmatpush1.bf16.msra.mxu0 %v107
  %154 = vmatprep.subr.bf16.mxu0 0
  %155 = vmatpush2.bf16.msra.mxu0 0
  %156 = vmatprep.subr.bf16.mxu0 0
  %157 = vmatpush2.bf16.msra.mxu0 0
  %158 = vmatprep.subr.bf16.mxu0 0
  %159 = vmatpush2.bf16.msra.mxu0 0
  %160 = vmatprep.subr.bf16.mxu0 0
  %161 = vmatpush2.bf16.msra.mxu0 0
  %162 = vmatprep.subr.bf16.mxu0 0
  %163 = vmatpush2.bf16.msra.mxu0 0
  %164 = vmatprep.subr.bf16.mxu0 0
  %165 = vmatpush2.bf16.msra.mxu0 0
  %166 = vmatprep.subr.bf16.mxu0 0
  %167 = vmatpush2.bf16.msra.mxu0 0
  %168 = vmatprep.subr.bf16.mxu0 0
  %169 = vmatpush2.bf16.msra.mxu0 %v136
  %170 = vmatprep.mubr.bf16.mxu0 %v126
  %171 = vmatmul.mubr.bf16.gmra.mxu0 %v67
  %v172 = vpop.f32.mrf.mxu0
  %v173 = vadd.f32 %v53, %v172
  %v174 = vpop.f32.mrf.mxu0
  %v175 = vpop.f32.mrf.mxu0
  %v176 = vadd.f32 %v53, %v175
  %v177 = vpop.f32.mrf.mxu0
  %178 = vmatprep.mubr.bf16.mxu0 %v129
  %179 = vmatmul.mubr.bf16.gmra.mxu0 %v69
  %v180 = vpop.f32.mrf.mxu0
  %v181 = vadd.f32 %v53, %v180
  %v182 = vpop.f32.mrf.mxu0
  %v183 = vpop.f32.mrf.mxu0
  %v184 = vadd.f32 %v53, %v183
  %v185 = vpop.f32.mrf.mxu0
  %186 = vdwg.mxu0
  %v187 = vmax.f32 %v173, 0.0
  %v188 = vmax.f32 %v176, 0.0
  %v189 = vmax.f32 %v181, 0.0
  %v190 = vmax.f32 %v184, 0.0
  %v191 = vld [vmem:[%s3] sm:$0xf]
  %v192 = vld [vmem:[%s3 + $0x4] sm:$0xf]
  %v193 = vld [vmem:[%s3 + $0x8] sm:$0xf]
  %v194 = vld [vmem:[%s3 + $0xc] sm:$0xf]
  %v195 = vld [vmem:[%s3 + $0x10] sm:$0xf]
  %v196 = vld [vmem:[%s3 + $0x14] sm:$0xf]
  %v197 = vld [vmem:[%s3 + $0x18] sm:$0xf]
  %v198 = vld [vmem:[%s3 + $0x1c] sm:$0xf]
  %v199 = vld [vmem:[%s3 + $0x20] sm:$0xf]
  %v200 = vld [vmem:[%s3 + $0x24] sm:$0xf]
  %v201 = vld [vmem:[%s3 + $0x28] sm:$0xf]
  %v202 = vld [vmem:[%s3 + $0x2c] sm:$0xf]
  %v203 = vld [vmem:[%s3 + $0x30] sm:$0xf]
  %v204 = vld [vmem:[%s3 + $0x34] sm:$0xf]
  %v205 = vld [vmem:[%s3 + $0x38] sm:$0xf]
  %v206 = vld [vmem:[%s3 + $0x3c] sm:$0xf]
  %v207 = vld [vmem:[%s4] sm:$0x1]
  %v208 = vpack.c.bf16 %v188, %v187
  %v209 = vpack.c.bf16 %v190, %v189
  %v211 = vlaneseq
  %v212 = vshrl.u32 %v211, 7
  %v213 = vsub.s32 0, %v212
  %v214 = vrot.slane %v207, %v213
  %v232 = vunpack.c.l.b16 %v191
  %v233 = vunpack.c.l.b16 %v192
  %v234 = vunpack.c.l.b16 %v193
  %v235 = vunpack.c.l.b16 %v194
  %v236 = vunpack.c.l.b16 %v195
  %v237 = vunpack.c.l.b16 %v196
  %v238 = vunpack.c.l.b16 %v197
  %v239 = vunpack.c.l.b16 %v198
  %v240 = vunpack.c.l.b16 %v199
  %v241 = vunpack.c.l.b16 %v200
  %v242 = vunpack.c.l.b16 %v201
  %v243 = vunpack.c.l.b16 %v202
  %v244 = vunpack.c.l.b16 %v203
  %v245 = vunpack.c.l.b16 %v204
  %v246 = vunpack.c.l.b16 %v205
  %v247 = vunpack.c.l.b16 %v206
  %v248 = vpack.c.b16 %v233, %v232
  %v249 = vpack.c.b16 %v235, %v234
  %v250 = vpack.c.b16 %v237, %v236
  %v251 = vpack.c.b16 %v239, %v238
  %v252 = vpack.c.b16 %v241, %v240
  %v253 = vpack.c.b16 %v243, %v242
  %v254 = vpack.c.b16 %v245, %v244
  %v255 = vpack.c.b16 %v247, %v246
  %264 = vmatprep.subr.bf16.mxu0 0
  %265 = vmatpush1.bf16.msra.mxu0 %v255
  %266 = vmatprep.subr.bf16.mxu0 0
  %267 = vmatpush1.bf16.msra.mxu0 %v254
  %268 = vmatprep.subr.bf16.mxu0 0
  %269 = vmatpush1.bf16.msra.mxu0 %v253
  %270 = vmatprep.subr.bf16.mxu0 0
  %271 = vmatpush1.bf16.msra.mxu0 %v252
  %272 = vmatprep.subr.bf16.mxu0 0
  %273 = vmatpush1.bf16.msra.mxu0 %v251
  %274 = vmatprep.subr.bf16.mxu0 0
  %275 = vmatpush1.bf16.msra.mxu0 %v250
  %276 = vmatprep.subr.bf16.mxu0 0
  %277 = vmatpush1.bf16.msra.mxu0 %v249
  %278 = vmatprep.subr.bf16.mxu0 0
  %279 = vmatpush1.bf16.msra.mxu0 %v248
  %280 = vmatprep.subr.bf16.mxu0 0
  %281 = vmatpush2.bf16.msra.mxu0 0
  %282 = vmatprep.subr.bf16.mxu0 0
  %283 = vmatpush2.bf16.msra.mxu0 0
  %284 = vmatprep.subr.bf16.mxu0 0
  %285 = vmatpush2.bf16.msra.mxu0 0
  %286 = vmatprep.subr.bf16.mxu0 0
  %287 = vmatpush2.bf16.msra.mxu0 0
  %288 = vmatprep.subr.bf16.mxu0 0
  %289 = vmatpush2.bf16.msra.mxu0 0
  %290 = vmatprep.subr.bf16.mxu0 0
  %291 = vmatpush2.bf16.msra.mxu0 0
  %292 = vmatprep.subr.bf16.mxu0 0
  %293 = vmatpush2.bf16.msra.mxu0 0
  %294 = vmatprep.subr.bf16.mxu0 0
  %295 = vmatpush2.bf16.msra.mxu0 0
  %296 = vmatprep.mubr.bf16.mxu0 0
  %297 = vmatmul.mubr.bf16.gmra.mxu0 %v208
  %v298 = vpop.f32.mrf.mxu0
  %v299 = vadd.f32 %v214, %v298
  %v300 = vpop.f32.mrf.mxu0
  %v301 = vpop.f32.mrf.mxu0
  %v302 = vadd.f32 %v214, %v301
  %v303 = vpop.f32.mrf.mxu0
  %304 = vmatprep.mubr.bf16.mxu0 0
  %305 = vmatmul.mubr.bf16.gmra.mxu0 %v209
  %v306 = vpop.f32.mrf.mxu0
  %v307 = vadd.f32 %v214, %v306
  %v308 = vpop.f32.mrf.mxu0
  %v309 = vpop.f32.mrf.mxu0
  %v310 = vadd.f32 %v214, %v309
  %v311 = vpop.f32.mrf.mxu0
  %312 = vdwg.mxu0
  %v313 = vmax.f32 %v299, 0.0
  %v314 = vmax.f32 %v302, 0.0
  %v315 = vmax.f32 %v307, 0.0
  %v316 = vmax.f32 %v310, 0.0
  %v317 = vld [vmem:[%s5] sm:$0xf]
  %v318 = vld [vmem:[%s5 + $0x4] sm:$0xf]
  %v319 = vld [vmem:[%s5 + $0x8] sm:$0xf]
  %v320 = vld [vmem:[%s5 + $0xc] sm:$0xf]
  %v321 = vld [vmem:[%s5 + $0x10] sm:$0xf]
  %v322 = vld [vmem:[%s5 + $0x14] sm:$0xf]
  %v323 = vld [vmem:[%s5 + $0x18] sm:$0xf]
  %v324 = vld [vmem:[%s5 + $0x1c] sm:$0xf]
  %v325 = vld [vmem:[%s5 + $0x20] sm:$0xf]
  %v326 = vld [vmem:[%s5 + $0x24] sm:$0xf]
  %v327 = vld [vmem:[%s5 + $0x28] sm:$0xf]
  %v328 = vld [vmem:[%s5 + $0x2c] sm:$0xf]
  %v329 = vld [vmem:[%s5 + $0x30] sm:$0xf]
  %v330 = vld [vmem:[%s5 + $0x34] sm:$0xf]
  %v331 = vld [vmem:[%s5 + $0x38] sm:$0xf]
  %v332 = vld [vmem:[%s5 + $0x3c] sm:$0xf]
  %v333 = vld [vmem:[%s6] sm:$0x1]
  %v334 = vpack.c.bf16 %v314, %v313
  %v335 = vpack.c.bf16 %v316, %v315
  %v337 = vlaneseq
  %v338 = vshrl.u32 %v337, 7
  %v339 = vsub.s32 0, %v338
  %v340 = vrot.slane %v333, %v339
  %v358 = vunpack.c.l.b16 %v317
  %v359 = vunpack.c.l.b16 %v318
  %v360 = vunpack.c.l.b16 %v319
  %v361 = vunpack.c.l.b16 %v320
  %v362 = vunpack.c.l.b16 %v321
  %v363 = vunpack.c.l.b16 %v322
  %v364 = vunpack.c.l.b16 %v323
  %v365 = vunpack.c.l.b16 %v324
  %v366 = vunpack.c.l.b16 %v325
  %v367 = vunpack.c.l.b16 %v326
  %v368 = vunpack.c.l.b16 %v327
  %v369 = vunpack.c.l.b16 %v328
  %v370 = vunpack.c.l.b16 %v329
  %v371 = vunpack.c.l.b16 %v330
  %v372 = vunpack.c.l.b16 %v331
  %v373 = vunpack.c.l.b16 %v332
  %v374 = vpack.c.b16 %v359, %v358
  %v375 = vpack.c.b16 %v361, %v360
  %v376 = vpack.c.b16 %v363, %v362
  %v377 = vpack.c.b16 %v365, %v364
  %v378 = vpack.c.b16 %v367, %v366
  %v379 = vpack.c.b16 %v369, %v368
  %v380 = vpack.c.b16 %v371, %v370
  %v381 = vpack.c.b16 %v373, %v372
  %390 = vmatprep.subr.bf16.mxu0 0
  %391 = vmatpush1.bf16.msra.mxu0 %v381
  %392 = vmatprep.subr.bf16.mxu0 0
  %393 = vmatpush1.bf16.msra.mxu0 %v380
  %394 = vmatprep.subr.bf16.mxu0 0
  %395 = vmatpush1.bf16.msra.mxu0 %v379
  %396 = vmatprep.subr.bf16.mxu0 0
  %397 = vmatpush1.bf16.msra.mxu0 %v378
  %398 = vmatprep.subr.bf16.mxu0 0
  %399 = vmatpush1.bf16.msra.mxu0 %v377
  %400 = vmatprep.subr.bf16.mxu0 0
  %401 = vmatpush1.bf16.msra.mxu0 %v376
  %402 = vmatprep.subr.bf16.mxu0 0
  %403 = vmatpush1.bf16.msra.mxu0 %v375
  %404 = vmatprep.subr.bf16.mxu0 0
  %405 = vmatpush1.bf16.msra.mxu0 %v374
  %406 = vmatprep.subr.bf16.mxu0 0
  %407 = vmatpush2.bf16.msra.mxu0 0
  %408 = vmatprep.subr.bf16.mxu0 0
  %409 = vmatpush2.bf16.msra.mxu0 0
  %410 = vmatprep.subr.bf16.mxu0 0
  %411 = vmatpush2.bf16.msra.mxu0 0
  %412 = vmatprep.subr.bf16.mxu0 0
  %413 = vmatpush2.bf16.msra.mxu0 0
  %414 = vmatprep.subr.bf16.mxu0 0
  %415 = vmatpush2.bf16.msra.mxu0 0
  %416 = vmatprep.subr.bf16.mxu0 0
  %417 = vmatpush2.bf16.msra.mxu0 0
  %418 = vmatprep.subr.bf16.mxu0 0
  %419 = vmatpush2.bf16.msra.mxu0 0
  %420 = vmatprep.subr.bf16.mxu0 0
  %421 = vmatpush2.bf16.msra.mxu0 0
  %422 = vmatprep.mubr.bf16.mxu0 0
  %423 = vmatmul.mubr.bf16.gmra.mxu0 %v334
  %v424 = vpop.f32.mrf.mxu0
  %v425 = vadd.f32 %v340, %v424
  %v426 = vpop.f32.mrf.mxu0
  %v427 = vpop.f32.mrf.mxu0
  %v428 = vadd.f32 %v340, %v427
  %v429 = vpop.f32.mrf.mxu0
  %430 = vmatprep.mubr.bf16.mxu0 0
  %431 = vmatmul.mubr.bf16.gmra.mxu0 %v335
  %v432 = vpop.f32.mrf.mxu0
  %v433 = vadd.f32 %v340, %v432
  %v434 = vpop.f32.mrf.mxu0
  %v435 = vpop.f32.mrf.mxu0
  %v436 = vadd.f32 %v340, %v435
  %v437 = vpop.f32.mrf.mxu0
  %438 = vdwg.mxu0
  %v439 = vmax.f32 %v425, 0.0
  %v440 = vmax.f32 %v428, 0.0
  %v441 = vmax.f32 %v433, 0.0
  %v442 = vmax.f32 %v436, 0.0
  %v443 = vmax.f32 %v439, %v440
  %v444 = vrot.slane %v443, 4
  %v445 = vmax.f32 %v443, %v444
  %v446 = vrot.slane %v445, 2
  %v447 = vmax.f32 %v445, %v446
  %v448 = vrot.slane %v447, 1
  %v449 = vmax.f32 %v447, %v448
  %v450 = vmax.f32 %v441, %v442
  %v451 = vrot.slane %v450, 4
  %v452 = vmax.f32 %v450, %v451
  %v453 = vrot.slane %v452, 2
  %v454 = vmax.f32 %v452, %v453
  %v455 = vrot.slane %v454, 1
  %v456 = vmax.f32 %v454, %v455
  %vm459 = vcmask 1041409
  %v460 = vsel %vm459, %v456, %v449
  %462 = vst [vmem:[%s7] sm:$0x3] %v460
  // Predicated region
  $region30: #{pointnet2_msg_forward.13} parent=0 // pred_check
    _
  $region31: #{pointnet2_msg_forward.13} parent=0 // pred_check_branch
    %464 = sbr.rel (0) target = $region33
  $region32: #{pointnet2_msg_forward.13} parent=0 // pred_region
    _
  $region33: #{pointnet2_msg_forward.13} parent=0 // pred_fallthru
    _
  // Predicated region
  $region34: #{pointnet2_msg_forward.13} parent=0 // pred_check
    _
  $region35: #{pointnet2_msg_forward.13} parent=0 // pred_check_branch
    %466 = sbr.rel (0) target = $region37
  $region36: #{pointnet2_msg_forward.13} parent=0 // pred_region
    _
  $region37: #{pointnet2_msg_forward.13} parent=0 // pred_fallthru
    _

// kernel: pointnet2_msg_forward.14
$region0: #{pointnet2_msg_forward.14}
  #allocation0 [shape = 'u32[]', space=smem, size = 0x4, offset = 0x4, fixed_abs, tag = 'smem constant byte address 0x4 - core index']
  #allocation1 [shape = 'u32[144,128]{1,0:T(1,128)}', space=vmem, size = 0x12000, scoped, tag = 'internal scratch']
  %s0 = inlined_call_operand.vmem [shape: bf16[32,256], index: 0, kind: input, shape index: {}]
  %s1 = inlined_call_operand.vmem [shape: bf16[256,128], index: 1, kind: input, shape index: {}]
  %s2 = inlined_call_operand.vmem [shape: f32[1,128], index: 2, kind: input, shape index: {}]
  %s3 = inlined_call_operand.vmem [shape: bf16[128,128], index: 3, kind: input, shape index: {}]
  %s4 = inlined_call_operand.vmem [shape: f32[1,128], index: 4, kind: input, shape index: {}]
  %s5 = inlined_call_operand.vmem [shape: f32[32,128], index: 5, kind: output, shape index: {}]
  %s6 = sld [smem:[#allocation0]]
  $region53: #{pointnet2_msg_forward.14} parent=0
    _
  %s8 = ssub.s32 1, %s6
  %s9 = scalar_select 0, %s8, %s6
  loop: start=0, step=1, limit=4
  $region2: #{pointnet2_msg_forward.14} parent=0 // loop_pre_header
    _
  $region3: #{pointnet2_msg_forward.14} parent=0 // loop_header
    %s11 = sphi 0, %s15
    %p12 = scmp.ge.s32.totalorder %s11, 4
    %s21 = sphi 0, %s23
    %s24 = sphi 0, %s21
    %s25 = sphi 0, %s24
    %s41 = sphi 0, %s25
    %s45 = sphi 0, %s45
    %s47 = sphi 0, %s45
    %s48 = sphi 0, %s47
    %s62 = sphi 0, %s48
    %s66 = sphi 0, %s66
    %s68 = sphi 0, %s66
    %s69 = sphi 0, %s68
    %s83 = sphi 0, %s69
    %s87 = sphi 0, %s87
    %s89 = sphi 0, %s87
    %s90 = sphi 0, %s89
    %s104 = sphi 0, %s90
    %s108 = sphi 0, %s108
    %s110 = sphi 0, %s108
    %s111 = sphi 0, %s110
    %s125 = sphi 0, %s111
    %s131 = sphi 0, %s133
    %s134 = sphi 0, %s131
    %s135 = sphi 0, %s134
    %s151 = sphi 0, %s135
  $region4: #{pointnet2_msg_forward.14} parent=0 // loop_header_branch
    %14 = sbr.rel (%p12) target = $region8
  $region5: #{pointnet2_msg_forward.14} parent=0 // loop_body
    %s16 = ssub.s32 %s11, 1
    %s17 = ssub.s32 %s11, 2
    %s18 = sadd.s32 %s11, 1
    %s19 = ssub.s32 %s11, %s18
    %p20 = scmp.eq.s32.totalorder %s19, 0
    %s22 = sadd.s32 %s21, 1
    %s23 = scalar_select %p20, %s21, %s22
    %p26 = pneg %p20
    %p27 = scmp.eq.s32.totalorder %s11, 1
    %p28 = por %p26, %p27
    %p29 = scmp.ne.s32.totalorder %s21, %s24
    %p30 = scmp.eq.s32.totalorder %s11, 0
    %p31 = por %p29, %p30
    %p32 = scmp.ne.s32.totalorder %s21, %s24
    %p33 = scmp.eq.s32.totalorder %s16, 1
    %p34 = por %p32, %p33
    %p35 = scmp.ne.s32.totalorder %s24, %s25
    %p36 = scmp.eq.s32.totalorder %s16, 0
    %p37 = por %p35, %p36
    %p38 = scmp.ne.s32.totalorder %s24, %s25
    %p39 = scmp.eq.s32.totalorder %s17, 1
    %p40 = por %p38, %p39
    %p42 = scmp.ne.s32.totalorder %s25, %s41
    %p43 = scmp.eq.s32.totalorder %s17, 0
    %p44 = por %p42, %p43
    %s46 = sadd.s32 %s45, 1
    %p49 = scmp.eq.s32.totalorder %s11, 1
    %p50 = scmp.ne.s32.totalorder %s45, %s47
    %p51 = scmp.eq.s32.totalorder %s11, 0
    %p52 = por %p50, %p51
    %p53 = scmp.ne.s32.totalorder %s45, %s47
    %p54 = scmp.eq.s32.totalorder %s16, 1
    %p55 = por %p53, %p54
    %p56 = scmp.ne.s32.totalorder %s47, %s48
    %p57 = scmp.eq.s32.totalorder %s16, 0
    %p58 = por %p56, %p57
    %p59 = scmp.ne.s32.totalorder %s47, %s48
    %p60 = scmp.eq.s32.totalorder %s17, 1
    %p61 = por %p59, %p60
    %p63 = scmp.ne.s32.totalorder %s48, %s62
    %p64 = scmp.eq.s32.totalorder %s17, 0
    %p65 = por %p63, %p64
    %s67 = sadd.s32 %s66, 1
    %p70 = scmp.eq.s32.totalorder %s11, 1
    %p71 = scmp.ne.s32.totalorder %s66, %s68
    %p72 = scmp.eq.s32.totalorder %s11, 0
    %p73 = por %p71, %p72
    %p74 = scmp.ne.s32.totalorder %s66, %s68
    %p75 = scmp.eq.s32.totalorder %s16, 1
    %p76 = por %p74, %p75
    %p77 = scmp.ne.s32.totalorder %s68, %s69
    %p78 = scmp.eq.s32.totalorder %s16, 0
    %p79 = por %p77, %p78
    %p80 = scmp.ne.s32.totalorder %s68, %s69
    %p81 = scmp.eq.s32.totalorder %s17, 1
    %p82 = por %p80, %p81
    %p84 = scmp.ne.s32.totalorder %s69, %s83
    %p85 = scmp.eq.s32.totalorder %s17, 0
    %p86 = por %p84, %p85
    %s88 = sadd.s32 %s87, 1
    %p91 = scmp.eq.s32.totalorder %s11, 1
    %p92 = scmp.ne.s32.totalorder %s87, %s89
    %p93 = scmp.eq.s32.totalorder %s11, 0
    %p94 = por %p92, %p93
    %p95 = scmp.ne.s32.totalorder %s87, %s89
    %p96 = scmp.eq.s32.totalorder %s16, 1
    %p97 = por %p95, %p96
    %p98 = scmp.ne.s32.totalorder %s89, %s90
    %p99 = scmp.eq.s32.totalorder %s16, 0
    %p100 = por %p98, %p99
    %p101 = scmp.ne.s32.totalorder %s89, %s90
    %p102 = scmp.eq.s32.totalorder %s17, 1
    %p103 = por %p101, %p102
    %p105 = scmp.ne.s32.totalorder %s90, %s104
    %p106 = scmp.eq.s32.totalorder %s17, 0
    %p107 = por %p105, %p106
    %s109 = sadd.s32 %s108, 1
    %p112 = scmp.eq.s32.totalorder %s11, 1
    %p113 = scmp.ne.s32.totalorder %s108, %s110
    %p114 = scmp.eq.s32.totalorder %s11, 0
    %p115 = por %p113, %p114
    %p116 = scmp.ne.s32.totalorder %s108, %s110
    %p117 = scmp.eq.s32.totalorder %s16, 1
    %p118 = por %p116, %p117
    %p119 = scmp.ne.s32.totalorder %s110, %s111
    %p120 = scmp.eq.s32.totalorder %s16, 0
    %p121 = por %p119, %p120
    %p122 = scmp.ne.s32.totalorder %s110, %s111
    %p123 = scmp.eq.s32.totalorder %s17, 1
    %p124 = por %p122, %p123
    %p126 = scmp.ne.s32.totalorder %s111, %s125
    %p127 = scmp.eq.s32.totalorder %s17, 0
    %p128 = por %p126, %p127
    %s129 = ssub.s32 %s11, %s18
    %p130 = scmp.eq.s32.totalorder %s129, 0
    %s132 = sadd.s32 %s131, 1
    %s133 = scalar_select %p130, %s131, %s132
    %p136 = pneg %p130
    %p137 = scmp.eq.s32.totalorder %s11, 1
    %p138 = por %p136, %p137
    %p139 = scmp.ne.s32.totalorder %s131, %s134
    %p140 = scmp.eq.s32.totalorder %s11, 0
    %p141 = por %p139, %p140
    %p142 = scmp.ne.s32.totalorder %s131, %s134
    %p143 = scmp.eq.s32.totalorder %s16, 1
    %p144 = por %p142, %p143
    %p145 = scmp.ne.s32.totalorder %s134, %s135
    %p146 = scmp.eq.s32.totalorder %s16, 0
    %p147 = por %p145, %p146
    %p148 = scmp.ne.s32.totalorder %s134, %s135
    %p149 = scmp.eq.s32.totalorder %s17, 1
    %p150 = por %p148, %p149
    %p152 = scmp.ne.s32.totalorder %s135, %s151
    %p153 = scmp.eq.s32.totalorder %s17, 0
    %p154 = por %p152, %p153
    %p155 = scmp.le.s32.totalorder 1, %s11
    %p156 = scmp.lt.s32.totalorder %s11, 3
    %p157 = pnand %p155, %p156
    %p158 = pneg %p157
    // Predicated region
    $region9: #{pointnet2_msg_forward.14} parent=5 // pred_check
      _
    $region10: #{pointnet2_msg_forward.14} parent=5 // pred_check_branch
      %160 = sbr.rel (%p157) target = $region12
    $region11: #{pointnet2_msg_forward.14} parent=5 // pred_region
      %s161 = ssub.s32 %s11, 1
      // Predicated region
      $region13: #{pointnet2_msg_forward.14} parent=11 // pred_check
        %p162 = pneg %p58
      $region14: #{pointnet2_msg_forward.14} parent=11 // pred_check_branch
        %164 = sbr.rel (%p162) target = $region16
      $region15: #{pointnet2_msg_forward.14} parent=11 // pred_region
        _
      $region16: #{pointnet2_msg_forward.14} parent=11 // pred_fallthru
        _
      // Predicated region
      $region17: #{pointnet2_msg_forward.14} parent=11 // pred_check
        %p165 = pneg %p79
      $region18: #{pointnet2_msg_forward.14} parent=11 // pred_check_branch
        %167 = sbr.rel (%p165) target = $region20
      $region19: #{pointnet2_msg_forward.14} parent=11 // pred_region
        _
      $region20: #{pointnet2_msg_forward.14} parent=11 // pred_fallthru
        _
      // Predicated region
      $region21: #{pointnet2_msg_forward.14} parent=11 // pred_check
        %p168 = pneg %p100
      $region22: #{pointnet2_msg_forward.14} parent=11 // pred_check_branch
        %170 = sbr.rel (%p168) target = $region24
      $region23: #{pointnet2_msg_forward.14} parent=11 // pred_region
        _
      $region24: #{pointnet2_msg_forward.14} parent=11 // pred_fallthru
        _
      // Predicated region
      $region25: #{pointnet2_msg_forward.14} parent=11 // pred_check
        %p171 = pneg %p121
      $region26: #{pointnet2_msg_forward.14} parent=11 // pred_check_branch
        %173 = sbr.rel (%p171) target = $region28
      $region27: #{pointnet2_msg_forward.14} parent=11 // pred_region
        _
      $region28: #{pointnet2_msg_forward.14} parent=11 // pred_fallthru
        _
    $region12: #{pointnet2_msg_forward.14} parent=5 // pred_fallthru
      _
    %p174 = scmp.lt.s32.totalorder %s11, 2
    // Predicated region
    $region29: #{pointnet2_msg_forward.14} parent=5 // pred_check
      %p175 = pneg %p174
    $region30: #{pointnet2_msg_forward.14} parent=5 // pred_check_branch
      %177 = sbr.rel (%p175) target = $region32
    $region31: #{pointnet2_msg_forward.14} parent=5 // pred_region
      // Predicated region
      $region33: #{pointnet2_msg_forward.14} parent=31 // pred_check
        %p178 = pneg %p31
      $region34: #{pointnet2_msg_forward.14} parent=31 // pred_check_branch
        %180 = sbr.rel (%p178) target = $region36
      $region35: #{pointnet2_msg_forward.14} parent=31 // pred_region
        %s181 = smul.u32 2, %s11
        %p182 = scmp.lt.s32.totalorder %s181, 3
        %s183 = scalar_select %p182, %s181, 3
        %s184 = smul.addr %s183, 2
        %s185 = smul.addr %s184, 4
        %s186 = scalar_lea.vmem %s0, %s185
        %s187 = smul.u32 2, %s11
      $region36: #{pointnet2_msg_forward.14} parent=31 // pred_fallthru
        _
    $region32: #{pointnet2_msg_forward.14} parent=5 // pred_fallthru
      _
    %p188 = scmp.le.s32.totalorder 1, %s11
    %p189 = scmp.lt.s32.totalorder %s11, 3
    %p190 = pnand %p188, %p189
    %p191 = pneg %p190
    // Predicated region
    $region37: #{pointnet2_msg_forward.14} parent=5 // pred_check
      _
    $region38: #{pointnet2_msg_forward.14} parent=5 // pred_check_branch
      %193 = sbr.rel (%p190) target = $region40
    $region39: #{pointnet2_msg_forward.14} parent=5 // pred_region
      %s194 = ssub.s32 %s11, 1
      %s195 = smul.u32 2, %s16
      %p196 = scmp.lt.s32.totalorder %s195, 3
      %s197 = scalar_select %p196, %s195, 3
      %s198 = smul.addr %s197, 2
      %s199 = smul.addr %s198, 4
      %s200 = scalar_lea.vmem %s0, %s199
      %p201 = pneg %p37
      %p202 = pneg %p34
      %p203 = pneg %p58
      %p204 = pneg %p55
      %p205 = pneg %p79
      %p206 = pneg %p76
      %p207 = pneg %p100
      %p208 = pneg %p97
      %p209 = pneg %p121
      %p210 = pneg %p118
      %p211 = pneg %p147
      %p212 = pneg %p144
      %s213 = smul.u32 2, %s16
      %p214 = scmp.lt.s32.totalorder %s213, 3
      %s215 = scalar_select %p214, %s213, 3
      %s216 = smul.addr %s215, 8
      %s217 = scalar_lea.vmem %s5, %s216
      %s218 = smul.u32 2, %s16
      %p219 = scmp.lt.s32.totalorder %s218, 3
      %s220 = scalar_select %p219, %s218, 3
      %s221 = smul.addr %s220, 2
      %s222 = smul.addr %s221, 4
      %s223 = scalar_lea.vmem %s0, %s222
      %s224 = smul.u32 2, %s16
      %s225 = smul.u32 2, %s16
      %p226 = scmp.lt.s32.totalorder %s225, 3
      %s227 = scalar_select %p226, %s225, 3
      %s228 = smul.addr %s227, 8
      %s229 = scalar_lea.vmem %s5, %s228
      %s230 = smul.u32 2, %s16
      %v232 = vld [vmem:[%s223] sm:$0xff]
      %v233 = vld [vmem:[%s223 + $0x8] sm:$0xff]
      %v234 = vld [vmem:[%s1] sm:$0xf]
      %v235 = vld [vmem:[%s1 + $0x4] sm:$0xf]
      %v236 = vld [vmem:[%s1 + $0x8] sm:$0xf]
      %v237 = vld [vmem:[%s1 + $0xc] sm:$0xf]
      %v238 = vld [vmem:[%s1 + $0x10] sm:$0xf]
      %v239 = vld [vmem:[%s1 + $0x14] sm:$0xf]
      %v240 = vld [vmem:[%s1 + $0x18] sm:$0xf]
      %v241 = vld [vmem:[%s1 + $0x1c] sm:$0xf]
      %v242 = vld [vmem:[%s1 + $0x20] sm:$0xf]
      %v243 = vld [vmem:[%s1 + $0x24] sm:$0xf]
      %v244 = vld [vmem:[%s1 + $0x28] sm:$0xf]
      %v245 = vld [vmem:[%s1 + $0x2c] sm:$0xf]
      %v246 = vld [vmem:[%s1 + $0x30] sm:$0xf]
      %v247 = vld [vmem:[%s1 + $0x34] sm:$0xf]
      %v248 = vld [vmem:[%s1 + $0x38] sm:$0xf]
      %v249 = vld [vmem:[%s1 + $0x3c] sm:$0xf]
      %v250 = vld [vmem:[%s1 + $0x40] sm:$0xf]
      %v251 = vld [vmem:[%s1 + $0x44] sm:$0xf]
      %v252 = vld [vmem:[%s1 + $0x48] sm:$0xf]
      %v253 = vld [vmem:[%s1 + $0x4c] sm:$0xf]
      %v254 = vld [vmem:[%s1 + $0x50] sm:$0xf]
      %v255 = vld [vmem:[%s1 + $0x54] sm:$0xf]
      %v256 = vld [vmem:[%s1 + $0x58] sm:$0xf]
      %v257 = vld [vmem:[%s1 + $0x5c] sm:$0xf]
      %v258 = vld [vmem:[%s1 + $0x60] sm:$0xf]
      %v259 = vld [vmem:[%s1 + $0x64] sm:$0xf]
      %v260 = vld [vmem:[%s1 + $0x68] sm:$0xf]
      %v261 = vld [vmem:[%s1 + $0x6c] sm:$0xf]
      %v262 = vld [vmem:[%s1 + $0x70] sm:$0xf]
      %v263 = vld [vmem:[%s1 + $0x74] sm:$0xf]
      %v264 = vld [vmem:[%s1 + $0x78] sm:$0xf]
      %v265 = vld [vmem:[%s1 + $0x7c] sm:$0xf]
      %v266 = vld [vmem:[%s2] sm:$0x1]
      %v268 = vlaneseq
      %v269 = vshrl.u32 %v268, 7
      %v270 = vsub.s32 0, %v269
      %v271 = vrot.slane %v266, %v270
      %v275 = vunpack.c.l.b16 %v232
      %v276 = vunpack.c.h.b16 %v232
      %v277 = vunpack.c.l.b16 %v233
      %v278 = vunpack.c.h.b16 %v233
      %v279 = vpack.c.b16 %v277, %v275
      %v280 = vpack.c.b16 %v278, %v276
      %v315 = vunpack.c.l.b16 %v234
      %v316 = vunpack.c.l.b16 %v235
      %v317 = vunpack.c.l.b16 %v236
      %v318 = vunpack.c.l.b16 %v237
      %v319 = vunpack.c.l.b16 %v238
      %v320 = vunpack.c.l.b16 %v239
      %v321 = vunpack.c.l.b16 %v240
      %v322 = vunpack.c.l.b16 %v241
      %v323 = vunpack.c.l.b16 %v242
      %v324 = vunpack.c.l.b16 %v243
      %v325 = vunpack.c.l.b16 %v244
      %v326 = vunpack.c.l.b16 %v245
      %v327 = vunpack.c.l.b16 %v246
      %v328 = vunpack.c.l.b16 %v247
      %v329 = vunpack.c.l.b16 %v248
      %v330 = vunpack.c.l.b16 %v249
      %v331 = vunpack.c.l.b16 %v250
      %v332 = vunpack.c.l.b16 %v251
      %v333 = vunpack.c.l.b16 %v252
      %v334 = vunpack.c.l.b16 %v253
      %v335 = vunpack.c.l.b16 %v254
      %v336 = vunpack.c.l.b16 %v255
      %v337 = vunpack.c.l.b16 %v256
      %v338 = vunpack.c.l.b16 %v257
      %v339 = vunpack.c.l.b16 %v258
      %v340 = vunpack.c.l.b16 %v259
      %v341 = vunpack.c.l.b16 %v260
      %v342 = vunpack.c.l.b16 %v261
      %v343 = vunpack.c.l.b16 %v262
      %v344 = vunpack.c.l.b16 %v263
      %v345 = vunpack.c.l.b16 %v264
      %v346 = vunpack.c.l.b16 %v265
      %v347 = vpack.c.b16 %v316, %v315
      %v348 = vpack.c.b16 %v318, %v317
      %v349 = vpack.c.b16 %v320, %v319
      %v350 = vpack.c.b16 %v322, %v321
      %v351 = vpack.c.b16 %v324, %v323
      %v352 = vpack.c.b16 %v326, %v325
      %v353 = vpack.c.b16 %v328, %v327
      %v354 = vpack.c.b16 %v330, %v329
      %v355 = vpack.c.b16 %v332, %v331
      %v356 = vpack.c.b16 %v334, %v333
      %v357 = vpack.c.b16 %v336, %v335
      %v358 = vpack.c.b16 %v338, %v337
      %v359 = vpack.c.b16 %v340, %v339
      %v360 = vpack.c.b16 %v342, %v341
      %v361 = vpack.c.b16 %v344, %v343
      %v362 = vpack.c.b16 %v346, %v345
      %379 = vmatprep.subr.bf16.mxu0 0
      %380 = vmatpush1.bf16.msra.mxu0 %v354
      %381 = vmatprep.subr.bf16.mxu0 0
      %382 = vmatpush1.bf16.msra.mxu0 %v353
      %383 = vmatprep.subr.bf16.mxu0 0
      %384 = vmatpush1.bf16.msra.mxu0 %v352
      %385 = vmatprep.subr.bf16.mxu0 0
      %386 = vmatpush1.bf16.msra.mxu0 %v351
      %387 = vmatprep.subr.bf16.mxu0 0
      %388 = vmatpush1.bf16.msra.mxu0 %v350
      %389 = vmatprep.subr.bf16.mxu0 0
      %390 = vmatpush1.bf16.msra.mxu0 %v349
      %391 = vmatprep.subr.bf16.mxu0 0
      %392 = vmatpush1.bf16.msra.mxu0 %v348
      %393 = vmatprep.subr.bf16.mxu0 0
      %394 = vmatpush1.bf16.msra.mxu0 %v347
      %395 = vmatprep.subr.bf16.mxu0 0
      %396 = vmatpush2.bf16.msra.mxu0 %v362
      %397 = vmatprep.subr.bf16.mxu0 0
      %398 = vmatpush2.bf16.msra.mxu0 %v361
      %399 = vmatprep.subr.bf16.mxu0 0
      %400 = vmatpush2.bf16.msra.mxu0 %v360
      %401 = vmatprep.subr.bf16.mxu0 0
      %402 = vmatpush2.bf16.msra.mxu0 %v359
      %403 = vmatprep.subr.bf16.mxu0 0
      %404 = vmatpush2.bf16.msra.mxu0 %v358
      %405 = vmatprep.subr.bf16.mxu0 0
      %406 = vmatpush2.bf16.msra.mxu0 %v357
      %407 = vmatprep.subr.bf16.mxu0 0
      %408 = vmatpush2.bf16.msra.mxu0 %v356
      %409 = vmatprep.subr.bf16.mxu0 0
      %410 = vmatpush2.bf16.msra.mxu0 %v355
      %411 = vmatprep.mubr.bf16.mxu0 %v280
      %412 = vmatmul.mubr.bf16.gmra.mxu0 %v279
      %v413 = vpop.f32.mrf.mxu0
      %v414 = vadd.f32 %v271, %v413
      %v415 = vpop.f32.mrf.mxu0
      %v416 = vpop.f32.mrf.mxu0
      %v417 = vadd.f32 %v271, %v416
      %v418 = vpop.f32.mrf.mxu0
      %419 = vdwg.mxu0
      %v420 = vmax.f32 %v414, 0.0
      %v421 = vmax.f32 %v417, 0.0
      %v422 = vld [vmem:[%s3] sm:$0xf]
      %v423 = vld [vmem:[%s3 + $0x4] sm:$0xf]
      %v424 = vld [vmem:[%s3 + $0x8] sm:$0xf]
      %v425 = vld [vmem:[%s3 + $0xc] sm:$0xf]
      %v426 = vld [vmem:[%s3 + $0x10] sm:$0xf]
      %v427 = vld [vmem:[%s3 + $0x14] sm:$0xf]
      %v428 = vld [vmem:[%s3 + $0x18] sm:$0xf]
      %v429 = vld [vmem:[%s3 + $0x1c] sm:$0xf]
      %v430 = vld [vmem:[%s3 + $0x20] sm:$0xf]
      %v431 = vld [vmem:[%s3 + $0x24] sm:$0xf]
      %v432 = vld [vmem:[%s3 + $0x28] sm:$0xf]
      %v433 = vld [vmem:[%s3 + $0x2c] sm:$0xf]
      %v434 = vld [vmem:[%s3 + $0x30] sm:$0xf]
      %v435 = vld [vmem:[%s3 + $0x34] sm:$0xf]
      %v436 = vld [vmem:[%s3 + $0x38] sm:$0xf]
      %v437 = vld [vmem:[%s3 + $0x3c] sm:$0xf]
      %v438 = vld [vmem:[%s4] sm:$0x1]
      %v439 = vpack.c.bf16 %v421, %v420
      %v441 = vlaneseq
      %v442 = vshrl.u32 %v441, 7
      %v443 = vsub.s32 0, %v442
      %v444 = vrot.slane %v438, %v443
      %v462 = vunpack.c.l.b16 %v422
      %v463 = vunpack.c.l.b16 %v423
      %v464 = vunpack.c.l.b16 %v424
      %v465 = vunpack.c.l.b16 %v425
      %v466 = vunpack.c.l.b16 %v426
      %v467 = vunpack.c.l.b16 %v427
      %v468 = vunpack.c.l.b16 %v428
      %v469 = vunpack.c.l.b16 %v429
      %v470 = vunpack.c.l.b16 %v430
      %v471 = vunpack.c.l.b16 %v431
      %v472 = vunpack.c.l.b16 %v432
      %v473 = vunpack.c.l.b16 %v433
      %v474 = vunpack.c.l.b16 %v434
      %v475 = vunpack.c.l.b16 %v435
      %v476 = vunpack.c.l.b16 %v436
      %v477 = vunpack.c.l.b16 %v437
      %v478 = vpack.c.b16 %v463, %v462
      %v479 = vpack.c.b16 %v465, %v464
      %v480 = vpack.c.b16 %v467, %v466
      %v481 = vpack.c.b16 %v469, %v468
      %v482 = vpack.c.b16 %v471, %v470
      %v483 = vpack.c.b16 %v473, %v472
      %v484 = vpack.c.b16 %v475, %v474
      %v485 = vpack.c.b16 %v477, %v476
      %494 = vmatprep.subr.bf16.mxu0 0
      %495 = vmatpush1.bf16.msra.mxu0 %v485
      %496 = vmatprep.subr.bf16.mxu0 0
      %497 = vmatpush1.bf16.msra.mxu0 %v484
      %498 = vmatprep.subr.bf16.mxu0 0
      %499 = vmatpush1.bf16.msra.mxu0 %v483
      %500 = vmatprep.subr.bf16.mxu0 0
      %501 = vmatpush1.bf16.msra.mxu0 %v482
      %502 = vmatprep.subr.bf16.mxu0 0
      %503 = vmatpush1.bf16.msra.mxu0 %v481
      %504 = vmatprep.subr.bf16.mxu0 0
      %505 = vmatpush1.bf16.msra.mxu0 %v480
      %506 = vmatprep.subr.bf16.mxu0 0
      %507 = vmatpush1.bf16.msra.mxu0 %v479
      %508 = vmatprep.subr.bf16.mxu0 0
      %509 = vmatpush1.bf16.msra.mxu0 %v478
      %510 = vmatprep.subr.bf16.mxu0 0
      %511 = vmatpush2.bf16.msra.mxu0 0
      %512 = vmatprep.subr.bf16.mxu0 0
      %513 = vmatpush2.bf16.msra.mxu0 0
      %514 = vmatprep.subr.bf16.mxu0 0
      %515 = vmatpush2.bf16.msra.mxu0 0
      %516 = vmatprep.subr.bf16.mxu0 0
      %517 = vmatpush2.bf16.msra.mxu0 0
      %518 = vmatprep.subr.bf16.mxu0 0
      %519 = vmatpush2.bf16.msra.mxu0 0
      %520 = vmatprep.subr.bf16.mxu0 0
      %521 = vmatpush2.bf16.msra.mxu0 0
      %522 = vmatprep.subr.bf16.mxu0 0
      %523 = vmatpush2.bf16.msra.mxu0 0
      %524 = vmatprep.subr.bf16.mxu0 0
      %525 = vmatpush2.bf16.msra.mxu0 0
      %526 = vmatprep.mubr.bf16.mxu0 0
      %527 = vmatmul.mubr.bf16.gmra.mxu0 %v439
      %v528 = vpop.f32.mrf.mxu0
      %v529 = vadd.f32 %v444, %v528
      %v530 = vpop.f32.mrf.mxu0
      %v531 = vpop.f32.mrf.mxu0
      %v532 = vadd.f32 %v444, %v531
      %v533 = vpop.f32.mrf.mxu0
      %534 = vdwg.mxu0
      %v535 = vmax.f32 %v529, 0.0
      %v536 = vmax.f32 %v532, 0.0
      %537 = vst [vmem:[%s229] sm:$0xff] %v535
      %538 = vst [vmem:[%s229 + $0x8] sm:$0xff] %v536
      %s539 = smul.u32 2, %s16
      %p540 = scmp.lt.s32.totalorder %s539, 3
      %s541 = scalar_select %p540, %s539, 3
      %s542 = smul.addr %s541, 8
      %s543 = scalar_lea.vmem %s5, %s542
      // Predicated region
      $region41: #{pointnet2_msg_forward.14} parent=39 // pred_check
        %p544 = pneg %p144
      $region42: #{pointnet2_msg_forward.14} parent=39 // pred_check_branch
        %546 = sbr.rel (%p544) target = $region44
      $region43: #{pointnet2_msg_forward.14} parent=39 // pred_region
        %s547 = smul.u32 2, %s16
      $region44: #{pointnet2_msg_forward.14} parent=39 // pred_fallthru
        _
    $region40: #{pointnet2_msg_forward.14} parent=5 // pred_fallthru
      _
    %p548 = scmp.le.s32.totalorder 2, %s11
    // Predicated region
    $region45: #{pointnet2_msg_forward.14} parent=5 // pred_check
      %p549 = pneg %p548
    $region46: #{pointnet2_msg_forward.14} parent=5 // pred_check_branch
      %551 = sbr.rel (%p549) target = $region48
    $region47: #{pointnet2_msg_forward.14} parent=5 // pred_region
      %s552 = ssub.s32 %s11, 2
      // Predicated region
      $region49: #{pointnet2_msg_forward.14} parent=47 // pred_check
        %p553 = pneg %p150
      $region50: #{pointnet2_msg_forward.14} parent=47 // pred_check_branch
        %555 = sbr.rel (%p553) target = $region52
      $region51: #{pointnet2_msg_forward.14} parent=47 // pred_region
        %s556 = smul.u32 2, %s17
        %p557 = scmp.lt.s32.totalorder %s556, 3
        %s558 = scalar_select %p557, %s556, 3
        %s559 = smul.addr %s558, 8
        %s560 = scalar_lea.vmem %s5, %s559
      $region52: #{pointnet2_msg_forward.14} parent=47 // pred_fallthru
        _
    $region48: #{pointnet2_msg_forward.14} parent=5 // pred_fallthru
      _
  $region6: #{pointnet2_msg_forward.14} parent=0 // loop_footer
    %s15 = sadd.s32 1, %s11
  $region7: #{pointnet2_msg_forward.14} parent=0 // loop_footer_branch
    %10 = sbr.rel target = $region3
  $region8: #{pointnet2_msg_forward.14} parent=0 // loop_exit
    _

// kernel: pointnet2_msg_forward.15
$region0: #{pointnet2_msg_forward.15}
  #allocation0 [shape = 'u32[]', space=smem, size = 0x4, offset = 0x4, fixed_abs, tag = 'smem constant byte address 0x4 - core index']
  #allocation1 [shape = 'u32[144,128]{1,0:T(1,128)}', space=vmem, size = 0x12000, scoped, tag = 'internal scratch']
  %s0 = inlined_call_operand.vmem [shape: bf16[64,128], index: 0, kind: input, shape index: {}]
  %s1 = inlined_call_operand.vmem [shape: bf16[128,128], index: 1, kind: input, shape index: {}]
  %s2 = inlined_call_operand.vmem [shape: f32[1,128], index: 2, kind: input, shape index: {}]
  %s3 = inlined_call_operand.vmem [shape: bf16[128,128], index: 3, kind: input, shape index: {}]
  %s4 = inlined_call_operand.vmem [shape: f32[1,128], index: 4, kind: input, shape index: {}]
  %s5 = inlined_call_operand.vmem [shape: f32[64,128], index: 5, kind: output, shape index: {}]
  %s6 = sld [smem:[#allocation0]]
  $region53: #{pointnet2_msg_forward.15} parent=0
    _
  %s8 = ssub.s32 1, %s6
  %s9 = scalar_select 0, %s8, %s6
  loop: start=0, step=1, limit=4
  $region2: #{pointnet2_msg_forward.15} parent=0 // loop_pre_header
    _
  $region3: #{pointnet2_msg_forward.15} parent=0 // loop_header
    %s11 = sphi 0, %s15
    %p12 = scmp.ge.s32.totalorder %s11, 4
    %s21 = sphi 0, %s23
    %s24 = sphi 0, %s21
    %s25 = sphi 0, %s24
    %s41 = sphi 0, %s25
    %s45 = sphi 0, %s45
    %s47 = sphi 0, %s45
    %s48 = sphi 0, %s47
    %s62 = sphi 0, %s48
    %s66 = sphi 0, %s66
    %s68 = sphi 0, %s66
    %s69 = sphi 0, %s68
    %s83 = sphi 0, %s69
    %s87 = sphi 0, %s87
    %s89 = sphi 0, %s87
    %s90 = sphi 0, %s89
    %s104 = sphi 0, %s90
    %s108 = sphi 0, %s108
    %s110 = sphi 0, %s108
    %s111 = sphi 0, %s110
    %s125 = sphi 0, %s111
    %s131 = sphi 0, %s133
    %s134 = sphi 0, %s131
    %s135 = sphi 0, %s134
    %s151 = sphi 0, %s135
  $region4: #{pointnet2_msg_forward.15} parent=0 // loop_header_branch
    %14 = sbr.rel (%p12) target = $region8
  $region5: #{pointnet2_msg_forward.15} parent=0 // loop_body
    %s16 = ssub.s32 %s11, 1
    %s17 = ssub.s32 %s11, 2
    %s18 = sadd.s32 %s11, 1
    %s19 = ssub.s32 %s11, %s18
    %p20 = scmp.eq.s32.totalorder %s19, 0
    %s22 = sadd.s32 %s21, 1
    %s23 = scalar_select %p20, %s21, %s22
    %p26 = pneg %p20
    %p27 = scmp.eq.s32.totalorder %s11, 1
    %p28 = por %p26, %p27
    %p29 = scmp.ne.s32.totalorder %s21, %s24
    %p30 = scmp.eq.s32.totalorder %s11, 0
    %p31 = por %p29, %p30
    %p32 = scmp.ne.s32.totalorder %s21, %s24
    %p33 = scmp.eq.s32.totalorder %s16, 1
    %p34 = por %p32, %p33
    %p35 = scmp.ne.s32.totalorder %s24, %s25
    %p36 = scmp.eq.s32.totalorder %s16, 0
    %p37 = por %p35, %p36
    %p38 = scmp.ne.s32.totalorder %s24, %s25
    %p39 = scmp.eq.s32.totalorder %s17, 1
    %p40 = por %p38, %p39
    %p42 = scmp.ne.s32.totalorder %s25, %s41
    %p43 = scmp.eq.s32.totalorder %s17, 0
    %p44 = por %p42, %p43
    %s46 = sadd.s32 %s45, 1
    %p49 = scmp.eq.s32.totalorder %s11, 1
    %p50 = scmp.ne.s32.totalorder %s45, %s47
    %p51 = scmp.eq.s32.totalorder %s11, 0
    %p52 = por %p50, %p51
    %p53 = scmp.ne.s32.totalorder %s45, %s47
    %p54 = scmp.eq.s32.totalorder %s16, 1
    %p55 = por %p53, %p54
    %p56 = scmp.ne.s32.totalorder %s47, %s48
    %p57 = scmp.eq.s32.totalorder %s16, 0
    %p58 = por %p56, %p57
    %p59 = scmp.ne.s32.totalorder %s47, %s48
    %p60 = scmp.eq.s32.totalorder %s17, 1
    %p61 = por %p59, %p60
    %p63 = scmp.ne.s32.totalorder %s48, %s62
    %p64 = scmp.eq.s32.totalorder %s17, 0
    %p65 = por %p63, %p64
    %s67 = sadd.s32 %s66, 1
    %p70 = scmp.eq.s32.totalorder %s11, 1
    %p71 = scmp.ne.s32.totalorder %s66, %s68
    %p72 = scmp.eq.s32.totalorder %s11, 0
    %p73 = por %p71, %p72
    %p74 = scmp.ne.s32.totalorder %s66, %s68
    %p75 = scmp.eq.s32.totalorder %s16, 1
    %p76 = por %p74, %p75
    %p77 = scmp.ne.s32.totalorder %s68, %s69
    %p78 = scmp.eq.s32.totalorder %s16, 0
    %p79 = por %p77, %p78
    %p80 = scmp.ne.s32.totalorder %s68, %s69
    %p81 = scmp.eq.s32.totalorder %s17, 1
    %p82 = por %p80, %p81
    %p84 = scmp.ne.s32.totalorder %s69, %s83
    %p85 = scmp.eq.s32.totalorder %s17, 0
    %p86 = por %p84, %p85
    %s88 = sadd.s32 %s87, 1
    %p91 = scmp.eq.s32.totalorder %s11, 1
    %p92 = scmp.ne.s32.totalorder %s87, %s89
    %p93 = scmp.eq.s32.totalorder %s11, 0
    %p94 = por %p92, %p93
    %p95 = scmp.ne.s32.totalorder %s87, %s89
    %p96 = scmp.eq.s32.totalorder %s16, 1
    %p97 = por %p95, %p96
    %p98 = scmp.ne.s32.totalorder %s89, %s90
    %p99 = scmp.eq.s32.totalorder %s16, 0
    %p100 = por %p98, %p99
    %p101 = scmp.ne.s32.totalorder %s89, %s90
    %p102 = scmp.eq.s32.totalorder %s17, 1
    %p103 = por %p101, %p102
    %p105 = scmp.ne.s32.totalorder %s90, %s104
    %p106 = scmp.eq.s32.totalorder %s17, 0
    %p107 = por %p105, %p106
    %s109 = sadd.s32 %s108, 1
    %p112 = scmp.eq.s32.totalorder %s11, 1
    %p113 = scmp.ne.s32.totalorder %s108, %s110
    %p114 = scmp.eq.s32.totalorder %s11, 0
    %p115 = por %p113, %p114
    %p116 = scmp.ne.s32.totalorder %s108, %s110
    %p117 = scmp.eq.s32.totalorder %s16, 1
    %p118 = por %p116, %p117
    %p119 = scmp.ne.s32.totalorder %s110, %s111
    %p120 = scmp.eq.s32.totalorder %s16, 0
    %p121 = por %p119, %p120
    %p122 = scmp.ne.s32.totalorder %s110, %s111
    %p123 = scmp.eq.s32.totalorder %s17, 1
    %p124 = por %p122, %p123
    %p126 = scmp.ne.s32.totalorder %s111, %s125
    %p127 = scmp.eq.s32.totalorder %s17, 0
    %p128 = por %p126, %p127
    %s129 = ssub.s32 %s11, %s18
    %p130 = scmp.eq.s32.totalorder %s129, 0
    %s132 = sadd.s32 %s131, 1
    %s133 = scalar_select %p130, %s131, %s132
    %p136 = pneg %p130
    %p137 = scmp.eq.s32.totalorder %s11, 1
    %p138 = por %p136, %p137
    %p139 = scmp.ne.s32.totalorder %s131, %s134
    %p140 = scmp.eq.s32.totalorder %s11, 0
    %p141 = por %p139, %p140
    %p142 = scmp.ne.s32.totalorder %s131, %s134
    %p143 = scmp.eq.s32.totalorder %s16, 1
    %p144 = por %p142, %p143
    %p145 = scmp.ne.s32.totalorder %s134, %s135
    %p146 = scmp.eq.s32.totalorder %s16, 0
    %p147 = por %p145, %p146
    %p148 = scmp.ne.s32.totalorder %s134, %s135
    %p149 = scmp.eq.s32.totalorder %s17, 1
    %p150 = por %p148, %p149
    %p152 = scmp.ne.s32.totalorder %s135, %s151
    %p153 = scmp.eq.s32.totalorder %s17, 0
    %p154 = por %p152, %p153
    %p155 = scmp.le.s32.totalorder 1, %s11
    %p156 = scmp.lt.s32.totalorder %s11, 3
    %p157 = pnand %p155, %p156
    %p158 = pneg %p157
    // Predicated region
    $region9: #{pointnet2_msg_forward.15} parent=5 // pred_check
      _
    $region10: #{pointnet2_msg_forward.15} parent=5 // pred_check_branch
      %160 = sbr.rel (%p157) target = $region12
    $region11: #{pointnet2_msg_forward.15} parent=5 // pred_region
      %s161 = ssub.s32 %s11, 1
      // Predicated region
      $region13: #{pointnet2_msg_forward.15} parent=11 // pred_check
        %p162 = pneg %p58
      $region14: #{pointnet2_msg_forward.15} parent=11 // pred_check_branch
        %164 = sbr.rel (%p162) target = $region16
      $region15: #{pointnet2_msg_forward.15} parent=11 // pred_region
        _
      $region16: #{pointnet2_msg_forward.15} parent=11 // pred_fallthru
        _
      // Predicated region
      $region17: #{pointnet2_msg_forward.15} parent=11 // pred_check
        %p165 = pneg %p79
      $region18: #{pointnet2_msg_forward.15} parent=11 // pred_check_branch
        %167 = sbr.rel (%p165) target = $region20
      $region19: #{pointnet2_msg_forward.15} parent=11 // pred_region
        _
      $region20: #{pointnet2_msg_forward.15} parent=11 // pred_fallthru
        _
      // Predicated region
      $region21: #{pointnet2_msg_forward.15} parent=11 // pred_check
        %p168 = pneg %p100
      $region22: #{pointnet2_msg_forward.15} parent=11 // pred_check_branch
        %170 = sbr.rel (%p168) target = $region24
      $region23: #{pointnet2_msg_forward.15} parent=11 // pred_region
        _
      $region24: #{pointnet2_msg_forward.15} parent=11 // pred_fallthru
        _
      // Predicated region
      $region25: #{pointnet2_msg_forward.15} parent=11 // pred_check
        %p171 = pneg %p121
      $region26: #{pointnet2_msg_forward.15} parent=11 // pred_check_branch
        %173 = sbr.rel (%p171) target = $region28
      $region27: #{pointnet2_msg_forward.15} parent=11 // pred_region
        _
      $region28: #{pointnet2_msg_forward.15} parent=11 // pred_fallthru
        _
    $region12: #{pointnet2_msg_forward.15} parent=5 // pred_fallthru
      _
    %p174 = scmp.lt.s32.totalorder %s11, 2
    // Predicated region
    $region29: #{pointnet2_msg_forward.15} parent=5 // pred_check
      %p175 = pneg %p174
    $region30: #{pointnet2_msg_forward.15} parent=5 // pred_check_branch
      %177 = sbr.rel (%p175) target = $region32
    $region31: #{pointnet2_msg_forward.15} parent=5 // pred_region
      // Predicated region
      $region33: #{pointnet2_msg_forward.15} parent=31 // pred_check
        %p178 = pneg %p31
      $region34: #{pointnet2_msg_forward.15} parent=31 // pred_check_branch
        %180 = sbr.rel (%p178) target = $region36
      $region35: #{pointnet2_msg_forward.15} parent=31 // pred_region
        %s181 = smul.u32 4, %s11
        %p182 = scmp.lt.s32.totalorder %s181, 7
        %s183 = scalar_select %p182, %s181, 7
        %s184 = smul.addr %s183, 4
        %s185 = scalar_lea.vmem %s0, %s184
        %s186 = smul.u32 4, %s11
      $region36: #{pointnet2_msg_forward.15} parent=31 // pred_fallthru
        _
    $region32: #{pointnet2_msg_forward.15} parent=5 // pred_fallthru
      _
    %p187 = scmp.le.s32.totalorder 1, %s11
    %p188 = scmp.lt.s32.totalorder %s11, 3
    %p189 = pnand %p187, %p188
    %p190 = pneg %p189
    // Predicated region
    $region37: #{pointnet2_msg_forward.15} parent=5 // pred_check
      _
    $region38: #{pointnet2_msg_forward.15} parent=5 // pred_check_branch
      %192 = sbr.rel (%p189) target = $region40
    $region39: #{pointnet2_msg_forward.15} parent=5 // pred_region
      %s193 = ssub.s32 %s11, 1
      %s194 = smul.u32 4, %s16
      %p195 = scmp.lt.s32.totalorder %s194, 7
      %s196 = scalar_select %p195, %s194, 7
      %s197 = smul.addr %s196, 4
      %s198 = scalar_lea.vmem %s0, %s197
      %p199 = pneg %p37
      %p200 = pneg %p34
      %p201 = pneg %p58
      %p202 = pneg %p55
      %p203 = pneg %p79
      %p204 = pneg %p76
      %p205 = pneg %p100
      %p206 = pneg %p97
      %p207 = pneg %p121
      %p208 = pneg %p118
      %p209 = pneg %p147
      %p210 = pneg %p144
      %s211 = smul.u32 4, %s16
      %p212 = scmp.lt.s32.totalorder %s211, 7
      %s213 = scalar_select %p212, %s211, 7
      %s214 = smul.addr %s213, 8
      %s215 = scalar_lea.vmem %s5, %s214
      %s216 = smul.u32 4, %s16
      %p217 = scmp.lt.s32.totalorder %s216, 7
      %s218 = scalar_select %p217, %s216, 7
      %s219 = smul.addr %s218, 4
      %s220 = scalar_lea.vmem %s0, %s219
      %s221 = smul.u32 4, %s16
      %s222 = smul.u32 4, %s16
      %p223 = scmp.lt.s32.totalorder %s222, 7
      %s224 = scalar_select %p223, %s222, 7
      %s225 = smul.addr %s224, 8
      %s226 = scalar_lea.vmem %s5, %s225
      %s227 = smul.u32 4, %s16
      %v229 = vld [vmem:[%s220] sm:$0xf]
      %v230 = vld [vmem:[%s220 + $0x4] sm:$0xf]
      %v231 = vld [vmem:[%s220 + $0x8] sm:$0xf]
      %v232 = vld [vmem:[%s220 + $0xc] sm:$0xf]
      %v233 = vld [vmem:[%s1] sm:$0xf]
      %v234 = vld [vmem:[%s1 + $0x4] sm:$0xf]
      %v235 = vld [vmem:[%s1 + $0x8] sm:$0xf]
      %v236 = vld [vmem:[%s1 + $0xc] sm:$0xf]
      %v237 = vld [vmem:[%s1 + $0x10] sm:$0xf]
      %v238 = vld [vmem:[%s1 + $0x14] sm:$0xf]
      %v239 = vld [vmem:[%s1 + $0x18] sm:$0xf]
      %v240 = vld [vmem:[%s1 + $0x1c] sm:$0xf]
      %v241 = vld [vmem:[%s1 + $0x20] sm:$0xf]
      %v242 = vld [vmem:[%s1 + $0x24] sm:$0xf]
      %v243 = vld [vmem:[%s1 + $0x28] sm:$0xf]
      %v244 = vld [vmem:[%s1 + $0x2c] sm:$0xf]
      %v245 = vld [vmem:[%s1 + $0x30] sm:$0xf]
      %v246 = vld [vmem:[%s1 + $0x34] sm:$0xf]
      %v247 = vld [vmem:[%s1 + $0x38] sm:$0xf]
      %v248 = vld [vmem:[%s1 + $0x3c] sm:$0xf]
      %v249 = vld [vmem:[%s2] sm:$0x1]
      %v251 = vlaneseq
      %v252 = vshrl.u32 %v251, 7
      %v253 = vsub.s32 0, %v252
      %v254 = vrot.slane %v249, %v253
      %v260 = vunpack.c.l.b16 %v229
      %v261 = vunpack.c.l.b16 %v230
      %v262 = vunpack.c.l.b16 %v231
      %v263 = vunpack.c.l.b16 %v232
      %v264 = vpack.c.b16 %v261, %v260
      %v265 = vpack.c.b16 %v263, %v262
      %v284 = vunpack.c.l.b16 %v233
      %v285 = vunpack.c.l.b16 %v234
      %v286 = vunpack.c.l.b16 %v235
      %v287 = vunpack.c.l.b16 %v236
      %v288 = vunpack.c.l.b16 %v237
      %v289 = vunpack.c.l.b16 %v238
      %v290 = vunpack.c.l.b16 %v239
      %v291 = vunpack.c.l.b16 %v240
      %v292 = vunpack.c.l.b16 %v241
      %v293 = vunpack.c.l.b16 %v242
      %v294 = vunpack.c.l.b16 %v243
      %v295 = vunpack.c.l.b16 %v244
      %v296 = vunpack.c.l.b16 %v245
      %v297 = vunpack.c.l.b16 %v246
      %v298 = vunpack.c.l.b16 %v247
      %v299 = vunpack.c.l.b16 %v248
      %v300 = vpack.c.b16 %v285, %v284
      %v301 = vpack.c.b16 %v287, %v286
      %v302 = vpack.c.b16 %v289, %v288
      %v303 = vpack.c.b16 %v291, %v290
      %v304 = vpack.c.b16 %v293, %v292
      %v305 = vpack.c.b16 %v295, %v294
      %v306 = vpack.c.b16 %v297, %v296
      %v307 = vpack.c.b16 %v299, %v298
      %316 = vmatprep.subr.bf16.mxu0 0
      %317 = vmatpush1.bf16.msra.mxu0 %v307
      %318 = vmatprep.subr.bf16.mxu0 0
      %319 = vmatpush1.bf16.msra.mxu0 %v306
      %320 = vmatprep.subr.bf16.mxu0 0
      %321 = vmatpush1.bf16.msra.mxu0 %v305
      %322 = vmatprep.subr.bf16.mxu0 0
      %323 = vmatpush1.bf16.msra.mxu0 %v304
      %324 = vmatprep.subr.bf16.mxu0 0
      %325 = vmatpush1.bf16.msra.mxu0 %v303
      %326 = vmatprep.subr.bf16.mxu0 0
      %327 = vmatpush1.bf16.msra.mxu0 %v302
      %328 = vmatprep.subr.bf16.mxu0 0
      %329 = vmatpush1.bf16.msra.mxu0 %v301
      %330 = vmatprep.subr.bf16.mxu0 0
      %331 = vmatpush1.bf16.msra.mxu0 %v300
      %332 = vmatprep.subr.bf16.mxu0 0
      %333 = vmatpush2.bf16.msra.mxu0 0
      %334 = vmatprep.subr.bf16.mxu0 0
      %335 = vmatpush2.bf16.msra.mxu0 0
      %336 = vmatprep.subr.bf16.mxu0 0
      %337 = vmatpush2.bf16.msra.mxu0 0
      %338 = vmatprep.subr.bf16.mxu0 0
      %339 = vmatpush2.bf16.msra.mxu0 0
      %340 = vmatprep.subr.bf16.mxu0 0
      %341 = vmatpush2.bf16.msra.mxu0 0
      %342 = vmatprep.subr.bf16.mxu0 0
      %343 = vmatpush2.bf16.msra.mxu0 0
      %344 = vmatprep.subr.bf16.mxu0 0
      %345 = vmatpush2.bf16.msra.mxu0 0
      %346 = vmatprep.subr.bf16.mxu0 0
      %347 = vmatpush2.bf16.msra.mxu0 0
      %348 = vmatprep.mubr.bf16.mxu0 0
      %349 = vmatmul.mubr.bf16.gmra.mxu0 %v264
      %v350 = vpop.f32.mrf.mxu0
      %v351 = vadd.f32 %v254, %v350
      %v352 = vpop.f32.mrf.mxu0
      %v353 = vpop.f32.mrf.mxu0
      %v354 = vadd.f32 %v254, %v353
      %v355 = vpop.f32.mrf.mxu0
      %356 = vmatprep.mubr.bf16.mxu0 0
      %357 = vmatmul.mubr.bf16.gmra.mxu0 %v265
      %v358 = vpop.f32.mrf.mxu0
      %v359 = vadd.f32 %v254, %v358
      %v360 = vpop.f32.mrf.mxu0
      %v361 = vpop.f32.mrf.mxu0
      %v362 = vadd.f32 %v254, %v361
      %v363 = vpop.f32.mrf.mxu0
      %364 = vdwg.mxu0
      %v365 = vmax.f32 %v351, 0.0
      %v366 = vmax.f32 %v354, 0.0
      %v367 = vmax.f32 %v359, 0.0
      %v368 = vmax.f32 %v362, 0.0
      %v369 = vld [vmem:[%s3] sm:$0xf]
      %v370 = vld [vmem:[%s3 + $0x4] sm:$0xf]
      %v371 = vld [vmem:[%s3 + $0x8] sm:$0xf]
      %v372 = vld [vmem:[%s3 + $0xc] sm:$0xf]
      %v373 = vld [vmem:[%s3 + $0x10] sm:$0xf]
      %v374 = vld [vmem:[%s3 + $0x14] sm:$0xf]
      %v375 = vld [vmem:[%s3 + $0x18] sm:$0xf]
      %v376 = vld [vmem:[%s3 + $0x1c] sm:$0xf]
      %v377 = vld [vmem:[%s3 + $0x20] sm:$0xf]
      %v378 = vld [vmem:[%s3 + $0x24] sm:$0xf]
      %v379 = vld [vmem:[%s3 + $0x28] sm:$0xf]
      %v380 = vld [vmem:[%s3 + $0x2c] sm:$0xf]
      %v381 = vld [vmem:[%s3 + $0x30] sm:$0xf]
      %v382 = vld [vmem:[%s3 + $0x34] sm:$0xf]
      %v383 = vld [vmem:[%s3 + $0x38] sm:$0xf]
      %v384 = vld [vmem:[%s3 + $0x3c] sm:$0xf]
      %v385 = vld [vmem:[%s4] sm:$0x1]
      %v386 = vpack.c.bf16 %v366, %v365
      %v387 = vpack.c.bf16 %v368, %v367
      %v389 = vlaneseq
      %v390 = vshrl.u32 %v389, 7
      %v391 = vsub.s32 0, %v390
      %v392 = vrot.slane %v385, %v391
      %v410 = vunpack.c.l.b16 %v369
      %v411 = vunpack.c.l.b16 %v370
      %v412 = vunpack.c.l.b16 %v371
      %v413 = vunpack.c.l.b16 %v372
      %v414 = vunpack.c.l.b16 %v373
      %v415 = vunpack.c.l.b16 %v374
      %v416 = vunpack.c.l.b16 %v375
      %v417 = vunpack.c.l.b16 %v376
      %v418 = vunpack.c.l.b16 %v377
      %v419 = vunpack.c.l.b16 %v378
      %v420 = vunpack.c.l.b16 %v379
      %v421 = vunpack.c.l.b16 %v380
      %v422 = vunpack.c.l.b16 %v381
      %v423 = vunpack.c.l.b16 %v382
      %v424 = vunpack.c.l.b16 %v383
      %v425 = vunpack.c.l.b16 %v384
      %v426 = vpack.c.b16 %v411, %v410
      %v427 = vpack.c.b16 %v413, %v412
      %v428 = vpack.c.b16 %v415, %v414
      %v429 = vpack.c.b16 %v417, %v416
      %v430 = vpack.c.b16 %v419, %v418
      %v431 = vpack.c.b16 %v421, %v420
      %v432 = vpack.c.b16 %v423, %v422
      %v433 = vpack.c.b16 %v425, %v424
      %442 = vmatprep.subr.bf16.mxu0 0
      %443 = vmatpush1.bf16.msra.mxu0 %v433
      %444 = vmatprep.subr.bf16.mxu0 0
      %445 = vmatpush1.bf16.msra.mxu0 %v432
      %446 = vmatprep.subr.bf16.mxu0 0
      %447 = vmatpush1.bf16.msra.mxu0 %v431
      %448 = vmatprep.subr.bf16.mxu0 0
      %449 = vmatpush1.bf16.msra.mxu0 %v430
      %450 = vmatprep.subr.bf16.mxu0 0
      %451 = vmatpush1.bf16.msra.mxu0 %v429
      %452 = vmatprep.subr.bf16.mxu0 0
      %453 = vmatpush1.bf16.msra.mxu0 %v428
      %454 = vmatprep.subr.bf16.mxu0 0
      %455 = vmatpush1.bf16.msra.mxu0 %v427
      %456 = vmatprep.subr.bf16.mxu0 0
      %457 = vmatpush1.bf16.msra.mxu0 %v426
      %458 = vmatprep.subr.bf16.mxu0 0
      %459 = vmatpush2.bf16.msra.mxu0 0
      %460 = vmatprep.subr.bf16.mxu0 0
      %461 = vmatpush2.bf16.msra.mxu0 0
      %462 = vmatprep.subr.bf16.mxu0 0
      %463 = vmatpush2.bf16.msra.mxu0 0
      %464 = vmatprep.subr.bf16.mxu0 0
      %465 = vmatpush2.bf16.msra.mxu0 0
      %466 = vmatprep.subr.bf16.mxu0 0
      %467 = vmatpush2.bf16.msra.mxu0 0
      %468 = vmatprep.subr.bf16.mxu0 0
      %469 = vmatpush2.bf16.msra.mxu0 0
      %470 = vmatprep.subr.bf16.mxu0 0
      %471 = vmatpush2.bf16.msra.mxu0 0
      %472 = vmatprep.subr.bf16.mxu0 0
      %473 = vmatpush2.bf16.msra.mxu0 0
      %474 = vmatprep.mubr.bf16.mxu0 0
      %475 = vmatmul.mubr.bf16.gmra.mxu0 %v386
      %v476 = vpop.f32.mrf.mxu0
      %v477 = vadd.f32 %v392, %v476
      %v478 = vpop.f32.mrf.mxu0
      %v479 = vpop.f32.mrf.mxu0
      %v480 = vadd.f32 %v392, %v479
      %v481 = vpop.f32.mrf.mxu0
      %482 = vmatprep.mubr.bf16.mxu0 0
      %483 = vmatmul.mubr.bf16.gmra.mxu0 %v387
      %v484 = vpop.f32.mrf.mxu0
      %v485 = vadd.f32 %v392, %v484
      %v486 = vpop.f32.mrf.mxu0
      %v487 = vpop.f32.mrf.mxu0
      %v488 = vadd.f32 %v392, %v487
      %v489 = vpop.f32.mrf.mxu0
      %490 = vdwg.mxu0
      %v491 = vmax.f32 %v477, 0.0
      %v492 = vmax.f32 %v480, 0.0
      %v493 = vmax.f32 %v485, 0.0
      %v494 = vmax.f32 %v488, 0.0
      %495 = vst [vmem:[%s226] sm:$0xff] %v491
      %496 = vst [vmem:[%s226 + $0x8] sm:$0xff] %v492
      %497 = vst [vmem:[%s226 + $0x10] sm:$0xff] %v493
      %498 = vst [vmem:[%s226 + $0x18] sm:$0xff] %v494
      %s499 = smul.u32 4, %s16
      %p500 = scmp.lt.s32.totalorder %s499, 7
      %s501 = scalar_select %p500, %s499, 7
      %s502 = smul.addr %s501, 8
      %s503 = scalar_lea.vmem %s5, %s502
      // Predicated region
      $region41: #{pointnet2_msg_forward.15} parent=39 // pred_check
        %p504 = pneg %p144
      $region42: #{pointnet2_msg_forward.15} parent=39 // pred_check_branch
        %506 = sbr.rel (%p504) target = $region44
      $region43: #{pointnet2_msg_forward.15} parent=39 // pred_region
        %s507 = smul.u32 4, %s16
      $region44: #{pointnet2_msg_forward.15} parent=39 // pred_fallthru
        _
    $region40: #{pointnet2_msg_forward.15} parent=5 // pred_fallthru
      _
    %p508 = scmp.le.s32.totalorder 2, %s11
    // Predicated region
    $region45: #{pointnet2_msg_forward.15} parent=5 // pred_check
      %p509 = pneg %p508
    $region46: #{pointnet2_msg_forward.15} parent=5 // pred_check_branch
      %511 = sbr.rel (%p509) target = $region48
    $region47: #{pointnet2_msg_forward.15} parent=5 // pred_region
      %s512 = ssub.s32 %s11, 2
      // Predicated region
      $region49: #{pointnet2_msg_forward.15} parent=47 // pred_check
        %p513 = pneg %p150
      $region50: #{pointnet2_msg_forward.15} parent=47 // pred_check_branch
        %515 = sbr.rel (%p513) target = $region52
      $region51: #{pointnet2_msg_forward.15} parent=47 // pred_region
        %s516 = smul.u32 4, %s17
        %p517 = scmp.lt.s32.totalorder %s516, 7
        %s518 = scalar_select %p517, %s516, 7
        %s519 = smul.addr %s518, 8
        %s520 = scalar_lea.vmem %s5, %s519
      $region52: #{pointnet2_msg_forward.15} parent=47 // pred_fallthru
        _
    $region48: #{pointnet2_msg_forward.15} parent=5 // pred_fallthru
      _
  $region6: #{pointnet2_msg_forward.15} parent=0 // loop_footer
    %s15 = sadd.s32 1, %s11
  $region7: #{pointnet2_msg_forward.15} parent=0 // loop_footer_branch
    %10 = sbr.rel target = $region3
  $region8: #{pointnet2_msg_forward.15} parent=0 // loop_exit
    _

// kernel: pointnet2_msg_forward.16
$region0: #{pointnet2_msg_forward.16}
  #allocation0 [shape = 'u32[]', space=smem, size = 0x4, offset = 0x4, fixed_abs, tag = 'smem constant byte address 0x4 - core index']
  #allocation1 [shape = 'u32[144,128]{1,0:T(1,128)}', space=vmem, size = 0x12000, scoped, tag = 'internal scratch']
  %s0 = inlined_call_operand.vmem [shape: bf16[128,38], index: 0, kind: input, shape index: {}]
  %s1 = inlined_call_operand.vmem [shape: bf16[38,128], index: 1, kind: input, shape index: {}]
  %s2 = inlined_call_operand.vmem [shape: f32[1,128], index: 2, kind: input, shape index: {}]
  %s3 = inlined_call_operand.vmem [shape: bf16[128,128], index: 3, kind: input, shape index: {}]
  %s4 = inlined_call_operand.vmem [shape: f32[1,128], index: 4, kind: input, shape index: {}]
  %s5 = inlined_call_operand.vmem [shape: bf16[128,128], index: 5, kind: input, shape index: {}]
  %s6 = inlined_call_operand.vmem [shape: f32[1,128], index: 6, kind: input, shape index: {}]
  %s7 = inlined_call_operand.vmem [shape: f32[128,128], index: 7, kind: output, shape index: {}]
  %s8 = sld [smem:[#allocation0]]
  $region61: #{pointnet2_msg_forward.16} parent=0
    _
  %s10 = ssub.s32 1, %s8
  %s11 = scalar_select 0, %s10, %s8
  loop: start=0, step=1, limit=4
  $region2: #{pointnet2_msg_forward.16} parent=0 // loop_pre_header
    _
  $region3: #{pointnet2_msg_forward.16} parent=0 // loop_header
    %s13 = sphi 0, %s17
    %p14 = scmp.ge.s32.totalorder %s13, 4
    %s23 = sphi 0, %s25
    %s26 = sphi 0, %s23
    %s27 = sphi 0, %s26
    %s43 = sphi 0, %s27
    %s47 = sphi 0, %s47
    %s49 = sphi 0, %s47
    %s50 = sphi 0, %s49
    %s64 = sphi 0, %s50
    %s68 = sphi 0, %s68
    %s70 = sphi 0, %s68
    %s71 = sphi 0, %s70
    %s85 = sphi 0, %s71
    %s89 = sphi 0, %s89
    %s91 = sphi 0, %s89
    %s92 = sphi 0, %s91
    %s106 = sphi 0, %s92
    %s110 = sphi 0, %s110
    %s112 = sphi 0, %s110
    %s113 = sphi 0, %s112
    %s127 = sphi 0, %s113
    %s131 = sphi 0, %s131
    %s133 = sphi 0, %s131
    %s134 = sphi 0, %s133
    %s148 = sphi 0, %s134
    %s152 = sphi 0, %s152
    %s154 = sphi 0, %s152
    %s155 = sphi 0, %s154
    %s169 = sphi 0, %s155
    %s175 = sphi 0, %s177
    %s178 = sphi 0, %s175
    %s179 = sphi 0, %s178
    %s195 = sphi 0, %s179
  $region4: #{pointnet2_msg_forward.16} parent=0 // loop_header_branch
    %16 = sbr.rel (%p14) target = $region8
  $region5: #{pointnet2_msg_forward.16} parent=0 // loop_body
    %s18 = ssub.s32 %s13, 1
    %s19 = ssub.s32 %s13, 2
    %s20 = sadd.s32 %s13, 1
    %s21 = ssub.s32 %s13, %s20
    %p22 = scmp.eq.s32.totalorder %s21, 0
    %s24 = sadd.s32 %s23, 1
    %s25 = scalar_select %p22, %s23, %s24
    %p28 = pneg %p22
    %p29 = scmp.eq.s32.totalorder %s13, 1
    %p30 = por %p28, %p29
    %p31 = scmp.ne.s32.totalorder %s23, %s26
    %p32 = scmp.eq.s32.totalorder %s13, 0
    %p33 = por %p31, %p32
    %p34 = scmp.ne.s32.totalorder %s23, %s26
    %p35 = scmp.eq.s32.totalorder %s18, 1
    %p36 = por %p34, %p35
    %p37 = scmp.ne.s32.totalorder %s26, %s27
    %p38 = scmp.eq.s32.totalorder %s18, 0
    %p39 = por %p37, %p38
    %p40 = scmp.ne.s32.totalorder %s26, %s27
    %p41 = scmp.eq.s32.totalorder %s19, 1
    %p42 = por %p40, %p41
    %p44 = scmp.ne.s32.totalorder %s27, %s43
    %p45 = scmp.eq.s32.totalorder %s19, 0
    %p46 = por %p44, %p45
    %s48 = sadd.s32 %s47, 1
    %p51 = scmp.eq.s32.totalorder %s13, 1
    %p52 = scmp.ne.s32.totalorder %s47, %s49
    %p53 = scmp.eq.s32.totalorder %s13, 0
    %p54 = por %p52, %p53
    %p55 = scmp.ne.s32.totalorder %s47, %s49
    %p56 = scmp.eq.s32.totalorder %s18, 1
    %p57 = por %p55, %p56
    %p58 = scmp.ne.s32.totalorder %s49, %s50
    %p59 = scmp.eq.s32.totalorder %s18, 0
    %p60 = por %p58, %p59
    %p61 = scmp.ne.s32.totalorder %s49, %s50
    %p62 = scmp.eq.s32.totalorder %s19, 1
    %p63 = por %p61, %p62
    %p65 = scmp.ne.s32.totalorder %s50, %s64
    %p66 = scmp.eq.s32.totalorder %s19, 0
    %p67 = por %p65, %p66
    %s69 = sadd.s32 %s68, 1
    %p72 = scmp.eq.s32.totalorder %s13, 1
    %p73 = scmp.ne.s32.totalorder %s68, %s70
    %p74 = scmp.eq.s32.totalorder %s13, 0
    %p75 = por %p73, %p74
    %p76 = scmp.ne.s32.totalorder %s68, %s70
    %p77 = scmp.eq.s32.totalorder %s18, 1
    %p78 = por %p76, %p77
    %p79 = scmp.ne.s32.totalorder %s70, %s71
    %p80 = scmp.eq.s32.totalorder %s18, 0
    %p81 = por %p79, %p80
    %p82 = scmp.ne.s32.totalorder %s70, %s71
    %p83 = scmp.eq.s32.totalorder %s19, 1
    %p84 = por %p82, %p83
    %p86 = scmp.ne.s32.totalorder %s71, %s85
    %p87 = scmp.eq.s32.totalorder %s19, 0
    %p88 = por %p86, %p87
    %s90 = sadd.s32 %s89, 1
    %p93 = scmp.eq.s32.totalorder %s13, 1
    %p94 = scmp.ne.s32.totalorder %s89, %s91
    %p95 = scmp.eq.s32.totalorder %s13, 0
    %p96 = por %p94, %p95
    %p97 = scmp.ne.s32.totalorder %s89, %s91
    %p98 = scmp.eq.s32.totalorder %s18, 1
    %p99 = por %p97, %p98
    %p100 = scmp.ne.s32.totalorder %s91, %s92
    %p101 = scmp.eq.s32.totalorder %s18, 0
    %p102 = por %p100, %p101
    %p103 = scmp.ne.s32.totalorder %s91, %s92
    %p104 = scmp.eq.s32.totalorder %s19, 1
    %p105 = por %p103, %p104
    %p107 = scmp.ne.s32.totalorder %s92, %s106
    %p108 = scmp.eq.s32.totalorder %s19, 0
    %p109 = por %p107, %p108
    %s111 = sadd.s32 %s110, 1
    %p114 = scmp.eq.s32.totalorder %s13, 1
    %p115 = scmp.ne.s32.totalorder %s110, %s112
    %p116 = scmp.eq.s32.totalorder %s13, 0
    %p117 = por %p115, %p116
    %p118 = scmp.ne.s32.totalorder %s110, %s112
    %p119 = scmp.eq.s32.totalorder %s18, 1
    %p120 = por %p118, %p119
    %p121 = scmp.ne.s32.totalorder %s112, %s113
    %p122 = scmp.eq.s32.totalorder %s18, 0
    %p123 = por %p121, %p122
    %p124 = scmp.ne.s32.totalorder %s112, %s113
    %p125 = scmp.eq.s32.totalorder %s19, 1
    %p126 = por %p124, %p125
    %p128 = scmp.ne.s32.totalorder %s113, %s127
    %p129 = scmp.eq.s32.totalorder %s19, 0
    %p130 = por %p128, %p129
    %s132 = sadd.s32 %s131, 1
    %p135 = scmp.eq.s32.totalorder %s13, 1
    %p136 = scmp.ne.s32.totalorder %s131, %s133
    %p137 = scmp.eq.s32.totalorder %s13, 0
    %p138 = por %p136, %p137
    %p139 = scmp.ne.s32.totalorder %s131, %s133
    %p140 = scmp.eq.s32.totalorder %s18, 1
    %p141 = por %p139, %p140
    %p142 = scmp.ne.s32.totalorder %s133, %s134
    %p143 = scmp.eq.s32.totalorder %s18, 0
    %p144 = por %p142, %p143
    %p145 = scmp.ne.s32.totalorder %s133, %s134
    %p146 = scmp.eq.s32.totalorder %s19, 1
    %p147 = por %p145, %p146
    %p149 = scmp.ne.s32.totalorder %s134, %s148
    %p150 = scmp.eq.s32.totalorder %s19, 0
    %p151 = por %p149, %p150
    %s153 = sadd.s32 %s152, 1
    %p156 = scmp.eq.s32.totalorder %s13, 1
    %p157 = scmp.ne.s32.totalorder %s152, %s154
    %p158 = scmp.eq.s32.totalorder %s13, 0
    %p159 = por %p157, %p158
    %p160 = scmp.ne.s32.totalorder %s152, %s154
    %p161 = scmp.eq.s32.totalorder %s18, 1
    %p162 = por %p160, %p161
    %p163 = scmp.ne.s32.totalorder %s154, %s155
    %p164 = scmp.eq.s32.totalorder %s18, 0
    %p165 = por %p163, %p164
    %p166 = scmp.ne.s32.totalorder %s154, %s155
    %p167 = scmp.eq.s32.totalorder %s19, 1
    %p168 = por %p166, %p167
    %p170 = scmp.ne.s32.totalorder %s155, %s169
    %p171 = scmp.eq.s32.totalorder %s19, 0
    %p172 = por %p170, %p171
    %s173 = ssub.s32 %s13, %s20
    %p174 = scmp.eq.s32.totalorder %s173, 0
    %s176 = sadd.s32 %s175, 1
    %s177 = scalar_select %p174, %s175, %s176
    %p180 = pneg %p174
    %p181 = scmp.eq.s32.totalorder %s13, 1
    %p182 = por %p180, %p181
    %p183 = scmp.ne.s32.totalorder %s175, %s178
    %p184 = scmp.eq.s32.totalorder %s13, 0
    %p185 = por %p183, %p184
    %p186 = scmp.ne.s32.totalorder %s175, %s178
    %p187 = scmp.eq.s32.totalorder %s18, 1
    %p188 = por %p186, %p187
    %p189 = scmp.ne.s32.totalorder %s178, %s179
    %p190 = scmp.eq.s32.totalorder %s18, 0
    %p191 = por %p189, %p190
    %p192 = scmp.ne.s32.totalorder %s178, %s179
    %p193 = scmp.eq.s32.totalorder %s19, 1
    %p194 = por %p192, %p193
    %p196 = scmp.ne.s32.totalorder %s179, %s195
    %p197 = scmp.eq.s32.totalorder %s19, 0
    %p198 = por %p196, %p197
    %p199 = scmp.le.s32.totalorder 1, %s13
    %p200 = scmp.lt.s32.totalorder %s13, 3
    %p201 = pnand %p199, %p200
    %p202 = pneg %p201
    // Predicated region
    $region9: #{pointnet2_msg_forward.16} parent=5 // pred_check
      _
    $region10: #{pointnet2_msg_forward.16} parent=5 // pred_check_branch
      %204 = sbr.rel (%p201) target = $region12
    $region11: #{pointnet2_msg_forward.16} parent=5 // pred_region
      %s205 = ssub.s32 %s13, 1
      // Predicated region
      $region13: #{pointnet2_msg_forward.16} parent=11 // pred_check
        %p206 = pneg %p60
      $region14: #{pointnet2_msg_forward.16} parent=11 // pred_check_branch
        %208 = sbr.rel (%p206) target = $region16
      $region15: #{pointnet2_msg_forward.16} parent=11 // pred_region
        _
      $region16: #{pointnet2_msg_forward.16} parent=11 // pred_fallthru
        _
      // Predicated region
      $region17: #{pointnet2_msg_forward.16} parent=11 // pred_check
        %p209 = pneg %p81
      $region18: #{pointnet2_msg_forward.16} parent=11 // pred_check_branch
        %211 = sbr.rel (%p209) target = $region20
      $region19: #{pointnet2_msg_forward.16} parent=11 // pred_region
        _
      $region20: #{pointnet2_msg_forward.16} parent=11 // pred_fallthru
        _
      // Predicated region
      $region21: #{pointnet2_msg_forward.16} parent=11 // pred_check
        %p212 = pneg %p102
      $region22: #{pointnet2_msg_forward.16} parent=11 // pred_check_branch
        %214 = sbr.rel (%p212) target = $region24
      $region23: #{pointnet2_msg_forward.16} parent=11 // pred_region
        _
      $region24: #{pointnet2_msg_forward.16} parent=11 // pred_fallthru
        _
      // Predicated region
      $region25: #{pointnet2_msg_forward.16} parent=11 // pred_check
        %p215 = pneg %p123
      $region26: #{pointnet2_msg_forward.16} parent=11 // pred_check_branch
        %217 = sbr.rel (%p215) target = $region28
      $region27: #{pointnet2_msg_forward.16} parent=11 // pred_region
        _
      $region28: #{pointnet2_msg_forward.16} parent=11 // pred_fallthru
        _
      // Predicated region
      $region29: #{pointnet2_msg_forward.16} parent=11 // pred_check
        %p218 = pneg %p144
      $region30: #{pointnet2_msg_forward.16} parent=11 // pred_check_branch
        %220 = sbr.rel (%p218) target = $region32
      $region31: #{pointnet2_msg_forward.16} parent=11 // pred_region
        _
      $region32: #{pointnet2_msg_forward.16} parent=11 // pred_fallthru
        _
      // Predicated region
      $region33: #{pointnet2_msg_forward.16} parent=11 // pred_check
        %p221 = pneg %p165
      $region34: #{pointnet2_msg_forward.16} parent=11 // pred_check_branch
        %223 = sbr.rel (%p221) target = $region36
      $region35: #{pointnet2_msg_forward.16} parent=11 // pred_region
        _
      $region36: #{pointnet2_msg_forward.16} parent=11 // pred_fallthru
        _
    $region12: #{pointnet2_msg_forward.16} parent=5 // pred_fallthru
      _
    %p224 = scmp.lt.s32.totalorder %s13, 2
    // Predicated region
    $region37: #{pointnet2_msg_forward.16} parent=5 // pred_check
      %p225 = pneg %p224
    $region38: #{pointnet2_msg_forward.16} parent=5 // pred_check_branch
      %227 = sbr.rel (%p225) target = $region40
    $region39: #{pointnet2_msg_forward.16} parent=5 // pred_region
      // Predicated region
      $region41: #{pointnet2_msg_forward.16} parent=39 // pred_check
        %p228 = pneg %p33
      $region42: #{pointnet2_msg_forward.16} parent=39 // pred_check_branch
        %230 = sbr.rel (%p228) target = $region44
      $region43: #{pointnet2_msg_forward.16} parent=39 // pred_region
        %s231 = smul.u32 8, %s13
        %p232 = scmp.lt.s32.totalorder %s231, 15
        %s233 = scalar_select %p232, %s231, 15
        %s234 = smul.addr %s233, 4
        %s235 = scalar_lea.vmem %s0, %s234
        %s236 = smul.u32 8, %s13
      $region44: #{pointnet2_msg_forward.16} parent=39 // pred_fallthru
        _
    $region40: #{pointnet2_msg_forward.16} parent=5 // pred_fallthru
      _
    %p237 = scmp.le.s32.totalorder 1, %s13
    %p238 = scmp.lt.s32.totalorder %s13, 3
    %p239 = pnand %p237, %p238
    %p240 = pneg %p239
    // Predicated region
    $region45: #{pointnet2_msg_forward.16} parent=5 // pred_check
      _
    $region46: #{pointnet2_msg_forward.16} parent=5 // pred_check_branch
      %242 = sbr.rel (%p239) target = $region48
    $region47: #{pointnet2_msg_forward.16} parent=5 // pred_region
      %s243 = ssub.s32 %s13, 1
      %s244 = smul.u32 8, %s18
      %p245 = scmp.lt.s32.totalorder %s244, 15
      %s246 = scalar_select %p245, %s244, 15
      %s247 = smul.addr %s246, 4
      %s248 = scalar_lea.vmem %s0, %s247
      %p249 = pneg %p39
      %p250 = pneg %p36
      %p251 = pneg %p60
      %p252 = pneg %p57
      %p253 = pneg %p81
      %p254 = pneg %p78
      %p255 = pneg %p102
      %p256 = pneg %p99
      %p257 = pneg %p123
      %p258 = pneg %p120
      %p259 = pneg %p144
      %p260 = pneg %p141
      %p261 = pneg %p165
      %p262 = pneg %p162
      %p263 = pneg %p191
      %p264 = pneg %p188
      %s265 = smul.u32 8, %s18
      %p266 = scmp.lt.s32.totalorder %s265, 15
      %s267 = scalar_select %p266, %s265, 15
      %s268 = smul.addr %s267, 8
      %s269 = scalar_lea.vmem %s7, %s268
      %s270 = smul.u32 8, %s18
      %p271 = scmp.lt.s32.totalorder %s270, 15
      %s272 = scalar_select %p271, %s270, 15
      %s273 = smul.addr %s272, 4
      %s274 = scalar_lea.vmem %s0, %s273
      %s275 = smul.u32 8, %s18
      %s276 = smul.u32 8, %s18
      %p277 = scmp.lt.s32.totalorder %s276, 15
      %s278 = scalar_select %p277, %s276, 15
      %s279 = smul.addr %s278, 8
      %s280 = scalar_lea.vmem %s7, %s279
      %s281 = smul.u32 8, %s18
      %v283 = vld [vmem:[%s274] sm:$0xf]
      %v284 = vld [vmem:[%s274 + $0x4] sm:$0xf]
      %v285 = vld [vmem:[%s274 + $0x8] sm:$0xf]
      %v286 = vld [vmem:[%s274 + $0xc] sm:$0xf]
      %v287 = vld [vmem:[%s274 + $0x10] sm:$0xf]
      %v288 = vld [vmem:[%s274 + $0x14] sm:$0xf]
      %v289 = vld [vmem:[%s274 + $0x18] sm:$0xf]
      %v290 = vld [vmem:[%s274 + $0x1c] sm:$0xf]
      %v291 = vld [vmem:[%s1] sm:$0xf]
      %v292 = vld [vmem:[%s1 + $0x4] sm:$0xf]
      %v293 = vld [vmem:[%s1 + $0x8] sm:$0xf]
      %v294 = vld [vmem:[%s1 + $0xc] sm:$0xf]
      %v295 = vld [vmem:[%s1 + $0x10] sm:$0x7]
      %v296 = vld [vmem:[%s2] sm:$0x1]
      %v298 = vlaneseq
      %v299 = vshrl.u32 %v298, 7
      %v300 = vsub.s32 0, %v299
      %v301 = vrot.slane %v296, %v300
      %v311 = vunpack.c.l.b16 %v283
      %v312 = vunpack.c.l.b16 %v284
      %v313 = vunpack.c.l.b16 %v285
      %v314 = vunpack.c.l.b16 %v286
      %v315 = vunpack.c.l.b16 %v287
      %v316 = vunpack.c.l.b16 %v288
      %v317 = vunpack.c.l.b16 %v289
      %v318 = vunpack.c.l.b16 %v290
      %v319 = vpack.c.b16 %v312, %v311
      %v320 = vpack.c.b16 %v314, %v313
      %v321 = vpack.c.b16 %v316, %v315
      %v322 = vpack.c.b16 %v318, %v317
      %v328 = vunpack.c.l.b16 %v291
      %v329 = vunpack.c.l.b16 %v292
      %v330 = vunpack.c.l.b16 %v293
      %v331 = vunpack.c.l.b16 %v294
      %v332 = vunpack.c.l.b16 %v295
      %v333 = vpack.c.b16 %v329, %v328
      %v334 = vpack.c.b16 %v331, %v330
      %v335 = vpack.c.b16 %v332, %v332
      %vm338 = vcmask 310272
      %v340 = vsel %vm338, %v319, 0
      %v343 = vsel %vm338, %v320, 0
      %v346 = vsel %vm338, %v321, 0
      %v349 = vsel %vm338, %v322, 0
      %vm351 = vcmask 1042432
      %v353 = vsel %vm351, %v335, 0
      %355 = vmatprep.subr.bf16.mxu0 0
      %356 = vmatpush1.bf16.msra.mxu0 0
      %357 = vmatprep.subr.bf16.mxu0 0
      %358 = vmatpush1.bf16.msra.mxu0 0
      %359 = vmatprep.subr.bf16.mxu0 0
      %360 = vmatpush1.bf16.msra.mxu0 0
      %361 = vmatprep.subr.bf16.mxu0 0
      %362 = vmatpush1.bf16.msra.mxu0 0
      %363 = vmatprep.subr.bf16.mxu0 0
      %364 = vmatpush1.bf16.msra.mxu0 0
      %365 = vmatprep.subr.bf16.mxu0 0
      %366 = vmatpush1.bf16.msra.mxu0 %v353
      %367 = vmatprep.subr.bf16.mxu0 0
      %368 = vmatpush1.bf16.msra.mxu0 %v334
      %369 = vmatprep.subr.bf16.mxu0 0
      %370 = vmatpush1.bf16.msra.mxu0 %v333
      %371 = vmatprep.subr.bf16.mxu0 0
      %372 = vmatpush2.bf16.msra.mxu0 0
      %373 = vmatprep.subr.bf16.mxu0 0
      %374 = vmatpush2.bf16.msra.mxu0 0
      %375 = vmatprep.subr.bf16.mxu0 0
      %376 = vmatpush2.bf16.msra.mxu0 0
      %377 = vmatprep.subr.bf16.mxu0 0
      %378 = vmatpush2.bf16.msra.mxu0 0
      %379 = vmatprep.subr.bf16.mxu0 0
      %380 = vmatpush2.bf16.msra.mxu0 0
      %381 = vmatprep.subr.bf16.mxu0 0
      %382 = vmatpush2.bf16.msra.mxu0 0
      %383 = vmatprep.subr.bf16.mxu0 0
      %384 = vmatpush2.bf16.msra.mxu0 0
      %385 = vmatprep.subr.bf16.mxu0 0
      %386 = vmatpush2.bf16.msra.mxu0 0
      %387 = vmatprep.mubr.bf16.mxu0 0
      %388 = vmatmul.mubr.bf16.gmra.mxu0 %v340
      %v389 = vpop.f32.mrf.mxu0
      %v390 = vadd.f32 %v301, %v389
      %v391 = vpop.f32.mrf.mxu0
      %v392 = vpop.f32.mrf.mxu0
      %v393 = vadd.f32 %v301, %v392
      %v394 = vpop.f32.mrf.mxu0
      %395 = vmatprep.mubr.bf16.mxu0 0
      %396 = vmatmul.mubr.bf16.gmra.mxu0 %v343
      %v397 = vpop.f32.mrf.mxu0
      %v398 = vadd.f32 %v301, %v397
      %v399 = vpop.f32.mrf.mxu0
      %v400 = vpop.f32.mrf.mxu0
      %v401 = vadd.f32 %v301, %v400
      %v402 = vpop.f32.mrf.mxu0
      %403 = vmatprep.mubr.bf16.mxu0 0
      %404 = vmatmul.mubr.bf16.gmra.mxu0 %v346
      %v405 = vpop.f32.mrf.mxu0
      %v406 = vadd.f32 %v301, %v405
      %v407 = vpop.f32.mrf.mxu0
      %v408 = vpop.f32.mrf.mxu0
      %v409 = vadd.f32 %v301, %v408
      %v410 = vpop.f32.mrf.mxu0
      %411 = vmatprep.mubr.bf16.mxu0 0
      %412 = vmatmul.mubr.bf16.gmra.mxu0 %v349
      %v413 = vpop.f32.mrf.mxu0
      %v414 = vadd.f32 %v301, %v413
      %v415 = vpop.f32.mrf.mxu0
      %v416 = vpop.f32.mrf.mxu0
      %v417 = vadd.f32 %v301, %v416
      %v418 = vpop.f32.mrf.mxu0
      %419 = vdwg.mxu0
      %v420 = vmax.f32 %v390, 0.0
      %v421 = vmax.f32 %v393, 0.0
      %v422 = vmax.f32 %v398, 0.0
      %v423 = vmax.f32 %v401, 0.0
      %v424 = vmax.f32 %v406, 0.0
      %v425 = vmax.f32 %v409, 0.0
      %v426 = vmax.f32 %v414, 0.0
      %v427 = vmax.f32 %v417, 0.0
      %v428 = vld [vmem:[%s3] sm:$0xf]
      %v429 = vld [vmem:[%s3 + $0x4] sm:$0xf]
      %v430 = vld [vmem:[%s3 + $0x8] sm:$0xf]
      %v431 = vld [vmem:[%s3 + $0xc] sm:$0xf]
      %v432 = vld [vmem:[%s3 + $0x10] sm:$0xf]
      %v433 = vld [vmem:[%s3 + $0x14] sm:$0xf]
      %v434 = vld [vmem:[%s3 + $0x18] sm:$0xf]
      %v435 = vld [vmem:[%s3 + $0x1c] sm:$0xf]
      %v436 = vld [vmem:[%s3 + $0x20] sm:$0xf]
      %v437 = vld [vmem:[%s3 + $0x24] sm:$0xf]
      %v438 = vld [vmem:[%s3 + $0x28] sm:$0xf]
      %v439 = vld [vmem:[%s3 + $0x2c] sm:$0xf]
      %v440 = vld [vmem:[%s3 + $0x30] sm:$0xf]
      %v441 = vld [vmem:[%s3 + $0x34] sm:$0xf]
      %v442 = vld [vmem:[%s3 + $0x38] sm:$0xf]
      %v443 = vld [vmem:[%s3 + $0x3c] sm:$0xf]
      %v444 = vld [vmem:[%s4] sm:$0x1]
      %v445 = vpack.c.bf16 %v421, %v420
      %v446 = vpack.c.bf16 %v423, %v422
      %v447 = vpack.c.bf16 %v425, %v424
      %v448 = vpack.c.bf16 %v427, %v426
      %v450 = vlaneseq
      %v451 = vshrl.u32 %v450, 7
      %v452 = vsub.s32 0, %v451
      %v453 = vrot.slane %v444, %v452
      %v471 = vunpack.c.l.b16 %v428
      %v472 = vunpack.c.l.b16 %v429
      %v473 = vunpack.c.l.b16 %v430
      %v474 = vunpack.c.l.b16 %v431
      %v475 = vunpack.c.l.b16 %v432
      %v476 = vunpack.c.l.b16 %v433
      %v477 = vunpack.c.l.b16 %v434
      %v478 = vunpack.c.l.b16 %v435
      %v479 = vunpack.c.l.b16 %v436
      %v480 = vunpack.c.l.b16 %v437
      %v481 = vunpack.c.l.b16 %v438
      %v482 = vunpack.c.l.b16 %v439
      %v483 = vunpack.c.l.b16 %v440
      %v484 = vunpack.c.l.b16 %v441
      %v485 = vunpack.c.l.b16 %v442
      %v486 = vunpack.c.l.b16 %v443
      %v487 = vpack.c.b16 %v472, %v471
      %v488 = vpack.c.b16 %v474, %v473
      %v489 = vpack.c.b16 %v476, %v475
      %v490 = vpack.c.b16 %v478, %v477
      %v491 = vpack.c.b16 %v480, %v479
      %v492 = vpack.c.b16 %v482, %v481
      %v493 = vpack.c.b16 %v484, %v483
      %v494 = vpack.c.b16 %v486, %v485
      %503 = vmatprep.subr.bf16.mxu0 0
      %504 = vmatpush1.bf16.msra.mxu0 %v494
      %505 = vmatprep.subr.bf16.mxu0 0
      %506 = vmatpush1.bf16.msra.mxu0 %v493
      %507 = vmatprep.subr.bf16.mxu0 0
      %508 = vmatpush1.bf16.msra.mxu0 %v492
      %509 = vmatprep.subr.bf16.mxu0 0
      %510 = vmatpush1.bf16.msra.mxu0 %v491
      %511 = vmatprep.subr.bf16.mxu0 0
      %512 = vmatpush1.bf16.msra.mxu0 %v490
      %513 = vmatprep.subr.bf16.mxu0 0
      %514 = vmatpush1.bf16.msra.mxu0 %v489
      %515 = vmatprep.subr.bf16.mxu0 0
      %516 = vmatpush1.bf16.msra.mxu0 %v488
      %517 = vmatprep.subr.bf16.mxu0 0
      %518 = vmatpush1.bf16.msra.mxu0 %v487
      %519 = vmatprep.subr.bf16.mxu0 0
      %520 = vmatpush2.bf16.msra.mxu0 0
      %521 = vmatprep.subr.bf16.mxu0 0
      %522 = vmatpush2.bf16.msra.mxu0 0
      %523 = vmatprep.subr.bf16.mxu0 0
      %524 = vmatpush2.bf16.msra.mxu0 0
      %525 = vmatprep.subr.bf16.mxu0 0
      %526 = vmatpush2.bf16.msra.mxu0 0
      %527 = vmatprep.subr.bf16.mxu0 0
      %528 = vmatpush2.bf16.msra.mxu0 0
      %529 = vmatprep.subr.bf16.mxu0 0
      %530 = vmatpush2.bf16.msra.mxu0 0
      %531 = vmatprep.subr.bf16.mxu0 0
      %532 = vmatpush2.bf16.msra.mxu0 0
      %533 = vmatprep.subr.bf16.mxu0 0
      %534 = vmatpush2.bf16.msra.mxu0 0
      %535 = vmatprep.mubr.bf16.mxu0 0
      %536 = vmatmul.mubr.bf16.gmra.mxu0 %v445
      %v537 = vpop.f32.mrf.mxu0
      %v538 = vadd.f32 %v453, %v537
      %v539 = vpop.f32.mrf.mxu0
      %v540 = vpop.f32.mrf.mxu0
      %v541 = vadd.f32 %v453, %v540
      %v542 = vpop.f32.mrf.mxu0
      %543 = vmatprep.mubr.bf16.mxu0 0
      %544 = vmatmul.mubr.bf16.gmra.mxu0 %v446
      %v545 = vpop.f32.mrf.mxu0
      %v546 = vadd.f32 %v453, %v545
      %v547 = vpop.f32.mrf.mxu0
      %v548 = vpop.f32.mrf.mxu0
      %v549 = vadd.f32 %v453, %v548
      %v550 = vpop.f32.mrf.mxu0
      %551 = vmatprep.mubr.bf16.mxu0 0
      %552 = vmatmul.mubr.bf16.gmra.mxu0 %v447
      %v553 = vpop.f32.mrf.mxu0
      %v554 = vadd.f32 %v453, %v553
      %v555 = vpop.f32.mrf.mxu0
      %v556 = vpop.f32.mrf.mxu0
      %v557 = vadd.f32 %v453, %v556
      %v558 = vpop.f32.mrf.mxu0
      %559 = vmatprep.mubr.bf16.mxu0 0
      %560 = vmatmul.mubr.bf16.gmra.mxu0 %v448
      %v561 = vpop.f32.mrf.mxu0
      %v562 = vadd.f32 %v453, %v561
      %v563 = vpop.f32.mrf.mxu0
      %v564 = vpop.f32.mrf.mxu0
      %v565 = vadd.f32 %v453, %v564
      %v566 = vpop.f32.mrf.mxu0
      %567 = vdwg.mxu0
      %v568 = vmax.f32 %v538, 0.0
      %v569 = vmax.f32 %v541, 0.0
      %v570 = vmax.f32 %v546, 0.0
      %v571 = vmax.f32 %v549, 0.0
      %v572 = vmax.f32 %v554, 0.0
      %v573 = vmax.f32 %v557, 0.0
      %v574 = vmax.f32 %v562, 0.0
      %v575 = vmax.f32 %v565, 0.0
      %v576 = vld [vmem:[%s5] sm:$0xf]
      %v577 = vld [vmem:[%s5 + $0x4] sm:$0xf]
      %v578 = vld [vmem:[%s5 + $0x8] sm:$0xf]
      %v579 = vld [vmem:[%s5 + $0xc] sm:$0xf]
      %v580 = vld [vmem:[%s5 + $0x10] sm:$0xf]
      %v581 = vld [vmem:[%s5 + $0x14] sm:$0xf]
      %v582 = vld [vmem:[%s5 + $0x18] sm:$0xf]
      %v583 = vld [vmem:[%s5 + $0x1c] sm:$0xf]
      %v584 = vld [vmem:[%s5 + $0x20] sm:$0xf]
      %v585 = vld [vmem:[%s5 + $0x24] sm:$0xf]
      %v586 = vld [vmem:[%s5 + $0x28] sm:$0xf]
      %v587 = vld [vmem:[%s5 + $0x2c] sm:$0xf]
      %v588 = vld [vmem:[%s5 + $0x30] sm:$0xf]
      %v589 = vld [vmem:[%s5 + $0x34] sm:$0xf]
      %v590 = vld [vmem:[%s5 + $0x38] sm:$0xf]
      %v591 = vld [vmem:[%s5 + $0x3c] sm:$0xf]
      %v592 = vld [vmem:[%s6] sm:$0x1]
      %v593 = vpack.c.bf16 %v569, %v568
      %v594 = vpack.c.bf16 %v571, %v570
      %v595 = vpack.c.bf16 %v573, %v572
      %v596 = vpack.c.bf16 %v575, %v574
      %v598 = vlaneseq
      %v599 = vshrl.u32 %v598, 7
      %v600 = vsub.s32 0, %v599
      %v601 = vrot.slane %v592, %v600
      %v619 = vunpack.c.l.b16 %v576
      %v620 = vunpack.c.l.b16 %v577
      %v621 = vunpack.c.l.b16 %v578
      %v622 = vunpack.c.l.b16 %v579
      %v623 = vunpack.c.l.b16 %v580
      %v624 = vunpack.c.l.b16 %v581
      %v625 = vunpack.c.l.b16 %v582
      %v626 = vunpack.c.l.b16 %v583
      %v627 = vunpack.c.l.b16 %v584
      %v628 = vunpack.c.l.b16 %v585
      %v629 = vunpack.c.l.b16 %v586
      %v630 = vunpack.c.l.b16 %v587
      %v631 = vunpack.c.l.b16 %v588
      %v632 = vunpack.c.l.b16 %v589
      %v633 = vunpack.c.l.b16 %v590
      %v634 = vunpack.c.l.b16 %v591
      %v635 = vpack.c.b16 %v620, %v619
      %v636 = vpack.c.b16 %v622, %v621
      %v637 = vpack.c.b16 %v624, %v623
      %v638 = vpack.c.b16 %v626, %v625
      %v639 = vpack.c.b16 %v628, %v627
      %v640 = vpack.c.b16 %v630, %v629
      %v641 = vpack.c.b16 %v632, %v631
      %v642 = vpack.c.b16 %v634, %v633
      %651 = vmatprep.subr.bf16.mxu0 0
      %652 = vmatpush1.bf16.msra.mxu0 %v642
      %653 = vmatprep.subr.bf16.mxu0 0
      %654 = vmatpush1.bf16.msra.mxu0 %v641
      %655 = vmatprep.subr.bf16.mxu0 0
      %656 = vmatpush1.bf16.msra.mxu0 %v640
      %657 = vmatprep.subr.bf16.mxu0 0
      %658 = vmatpush1.bf16.msra.mxu0 %v639
      %659 = vmatprep.subr.bf16.mxu0 0
      %660 = vmatpush1.bf16.msra.mxu0 %v638
      %661 = vmatprep.subr.bf16.mxu0 0
      %662 = vmatpush1.bf16.msra.mxu0 %v637
      %663 = vmatprep.subr.bf16.mxu0 0
      %664 = vmatpush1.bf16.msra.mxu0 %v636
      %665 = vmatprep.subr.bf16.mxu0 0
      %666 = vmatpush1.bf16.msra.mxu0 %v635
      %667 = vmatprep.subr.bf16.mxu0 0
      %668 = vmatpush2.bf16.msra.mxu0 0
      %669 = vmatprep.subr.bf16.mxu0 0
      %670 = vmatpush2.bf16.msra.mxu0 0
      %671 = vmatprep.subr.bf16.mxu0 0
      %672 = vmatpush2.bf16.msra.mxu0 0
      %673 = vmatprep.subr.bf16.mxu0 0
      %674 = vmatpush2.bf16.msra.mxu0 0
      %675 = vmatprep.subr.bf16.mxu0 0
      %676 = vmatpush2.bf16.msra.mxu0 0
      %677 = vmatprep.subr.bf16.mxu0 0
      %678 = vmatpush2.bf16.msra.mxu0 0
      %679 = vmatprep.subr.bf16.mxu0 0
      %680 = vmatpush2.bf16.msra.mxu0 0
      %681 = vmatprep.subr.bf16.mxu0 0
      %682 = vmatpush2.bf16.msra.mxu0 0
      %683 = vmatprep.mubr.bf16.mxu0 0
      %684 = vmatmul.mubr.bf16.gmra.mxu0 %v593
      %v685 = vpop.f32.mrf.mxu0
      %v686 = vadd.f32 %v601, %v685
      %v687 = vpop.f32.mrf.mxu0
      %v688 = vpop.f32.mrf.mxu0
      %v689 = vadd.f32 %v601, %v688
      %v690 = vpop.f32.mrf.mxu0
      %691 = vmatprep.mubr.bf16.mxu0 0
      %692 = vmatmul.mubr.bf16.gmra.mxu0 %v594
      %v693 = vpop.f32.mrf.mxu0
      %v694 = vadd.f32 %v601, %v693
      %v695 = vpop.f32.mrf.mxu0
      %v696 = vpop.f32.mrf.mxu0
      %v697 = vadd.f32 %v601, %v696
      %v698 = vpop.f32.mrf.mxu0
      %699 = vmatprep.mubr.bf16.mxu0 0
      %700 = vmatmul.mubr.bf16.gmra.mxu0 %v595
      %v701 = vpop.f32.mrf.mxu0
      %v702 = vadd.f32 %v601, %v701
      %v703 = vpop.f32.mrf.mxu0
      %v704 = vpop.f32.mrf.mxu0
      %v705 = vadd.f32 %v601, %v704
      %v706 = vpop.f32.mrf.mxu0
      %707 = vmatprep.mubr.bf16.mxu0 0
      %708 = vmatmul.mubr.bf16.gmra.mxu0 %v596
      %v709 = vpop.f32.mrf.mxu0
      %v710 = vadd.f32 %v601, %v709
      %v711 = vpop.f32.mrf.mxu0
      %v712 = vpop.f32.mrf.mxu0
      %v713 = vadd.f32 %v601, %v712
      %v714 = vpop.f32.mrf.mxu0
      %715 = vdwg.mxu0
      %v716 = vmax.f32 %v686, 0.0
      %v717 = vmax.f32 %v689, 0.0
      %v718 = vmax.f32 %v694, 0.0
      %v719 = vmax.f32 %v697, 0.0
      %v720 = vmax.f32 %v702, 0.0
      %v721 = vmax.f32 %v705, 0.0
      %v722 = vmax.f32 %v710, 0.0
      %v723 = vmax.f32 %v713, 0.0
      %724 = vst [vmem:[%s280] sm:$0xff] %v716
      %725 = vst [vmem:[%s280 + $0x8] sm:$0xff] %v717
      %726 = vst [vmem:[%s280 + $0x10] sm:$0xff] %v718
      %727 = vst [vmem:[%s280 + $0x18] sm:$0xff] %v719
      %728 = vst [vmem:[%s280 + $0x20] sm:$0xff] %v720
      %729 = vst [vmem:[%s280 + $0x28] sm:$0xff] %v721
      %730 = vst [vmem:[%s280 + $0x30] sm:$0xff] %v722
      %731 = vst [vmem:[%s280 + $0x38] sm:$0xff] %v723
      %s732 = smul.u32 8, %s18
      %p733 = scmp.lt.s32.totalorder %s732, 15
      %s734 = scalar_select %p733, %s732, 15
      %s735 = smul.addr %s734, 8
      %s736 = scalar_lea.vmem %s7, %s735
      // Predicated region
      $region49: #{pointnet2_msg_forward.16} parent=47 // pred_check
        %p737 = pneg %p188
      $region50: #{pointnet2_msg_forward.16} parent=47 // pred_check_branch
        %739 = sbr.rel (%p737) target = $region52
      $region51: #{pointnet2_msg_forward.16} parent=47 // pred_region
        %s740 = smul.u32 8, %s18
      $region52: #{pointnet2_msg_forward.16} parent=47 // pred_fallthru
        _
    $region48: #{pointnet2_msg_forward.16} parent=5 // pred_fallthru
      _
    %p741 = scmp.le.s32.totalorder 2, %s13
    // Predicated region
    $region53: #{pointnet2_msg_forward.16} parent=5 // pred_check
      %p742 = pneg %p741
    $region54: #{pointnet2_msg_forward.16} parent=5 // pred_check_branch
      %744 = sbr.rel (%p742) target = $region56
    $region55: #{pointnet2_msg_forward.16} parent=5 // pred_region
      %s745 = ssub.s32 %s13, 2
      // Predicated region
      $region57: #{pointnet2_msg_forward.16} parent=55 // pred_check
        %p746 = pneg %p194
      $region58: #{pointnet2_msg_forward.16} parent=55 // pred_check_branch
        %748 = sbr.rel (%p746) target = $region60
      $region59: #{pointnet2_msg_forward.16} parent=55 // pred_region
        %s749 = smul.u32 8, %s19
        %p750 = scmp.lt.s32.totalorder %s749, 15
        %s751 = scalar_select %p750, %s749, 15
        %s752 = smul.addr %s751, 8
        %s753 = scalar_lea.vmem %s7, %s752
      $region60: #{pointnet2_msg_forward.16} parent=55 // pred_fallthru
        _
    $region56: #{pointnet2_msg_forward.16} parent=5 // pred_fallthru
      _
  $region6: #{pointnet2_msg_forward.16} parent=0 // loop_footer
    %s17 = sadd.s32 1, %s13
  $region7: #{pointnet2_msg_forward.16} parent=0 // loop_footer_branch
    %12 = sbr.rel target = $region3
  $region8: #{pointnet2_msg_forward.16} parent=0 // loop_exit
    _

// kernel: pointnet2_msg_forward.17
$region0: #{pointnet2_msg_forward.17}
  #allocation0 [shape = 'u32[]', space=smem, size = 0x4, offset = 0x4, fixed_abs, tag = 'smem constant byte address 0x4 - core index']
  #allocation1 [shape = 'u32[144,128]{1,0:T(1,128)}', space=vmem, size = 0x12000, scoped, tag = 'internal scratch']
  %s0 = inlined_call_operand.vmem [shape: bf16[128,32], index: 0, kind: input, shape index: {}]
  %s1 = inlined_call_operand.vmem [shape: bf16[32,128], index: 1, kind: input, shape index: {}]
  %s2 = inlined_call_operand.vmem [shape: f32[1,128], index: 2, kind: input, shape index: {}]
  %s3 = inlined_call_operand.vmem [shape: f32[128,128], index: 3, kind: output, shape index: {}]
  %s4 = sld [smem:[#allocation0]]
  $region45: #{pointnet2_msg_forward.17} parent=0
    _
  %s6 = ssub.s32 1, %s4
  %s7 = scalar_select 0, %s6, %s4
  loop: start=0, step=1, limit=4
  $region2: #{pointnet2_msg_forward.17} parent=0 // loop_pre_header
    _
  $region3: #{pointnet2_msg_forward.17} parent=0 // loop_header
    %s9 = sphi 0, %s13
    %p10 = scmp.ge.s32.totalorder %s9, 4
    %s19 = sphi 0, %s21
    %s22 = sphi 0, %s19
    %s23 = sphi 0, %s22
    %s39 = sphi 0, %s23
    %s43 = sphi 0, %s43
    %s45 = sphi 0, %s43
    %s46 = sphi 0, %s45
    %s60 = sphi 0, %s46
    %s64 = sphi 0, %s64
    %s66 = sphi 0, %s64
    %s67 = sphi 0, %s66
    %s81 = sphi 0, %s67
    %s87 = sphi 0, %s89
    %s90 = sphi 0, %s87
    %s91 = sphi 0, %s90
    %s107 = sphi 0, %s91
  $region4: #{pointnet2_msg_forward.17} parent=0 // loop_header_branch
    %12 = sbr.rel (%p10) target = $region8
  $region5: #{pointnet2_msg_forward.17} parent=0 // loop_body
    %s14 = ssub.s32 %s9, 1
    %s15 = ssub.s32 %s9, 2
    %s16 = sadd.s32 %s9, 1
    %s17 = ssub.s32 %s9, %s16
    %p18 = scmp.eq.s32.totalorder %s17, 0
    %s20 = sadd.s32 %s19, 1
    %s21 = scalar_select %p18, %s19, %s20
    %p24 = pneg %p18
    %p25 = scmp.eq.s32.totalorder %s9, 1
    %p26 = por %p24, %p25
    %p27 = scmp.ne.s32.totalorder %s19, %s22
    %p28 = scmp.eq.s32.totalorder %s9, 0
    %p29 = por %p27, %p28
    %p30 = scmp.ne.s32.totalorder %s19, %s22
    %p31 = scmp.eq.s32.totalorder %s14, 1
    %p32 = por %p30, %p31
    %p33 = scmp.ne.s32.totalorder %s22, %s23
    %p34 = scmp.eq.s32.totalorder %s14, 0
    %p35 = por %p33, %p34
    %p36 = scmp.ne.s32.totalorder %s22, %s23
    %p37 = scmp.eq.s32.totalorder %s15, 1
    %p38 = por %p36, %p37
    %p40 = scmp.ne.s32.totalorder %s23, %s39
    %p41 = scmp.eq.s32.totalorder %s15, 0
    %p42 = por %p40, %p41
    %s44 = sadd.s32 %s43, 1
    %p47 = scmp.eq.s32.totalorder %s9, 1
    %p48 = scmp.ne.s32.totalorder %s43, %s45
    %p49 = scmp.eq.s32.totalorder %s9, 0
    %p50 = por %p48, %p49
    %p51 = scmp.ne.s32.totalorder %s43, %s45
    %p52 = scmp.eq.s32.totalorder %s14, 1
    %p53 = por %p51, %p52
    %p54 = scmp.ne.s32.totalorder %s45, %s46
    %p55 = scmp.eq.s32.totalorder %s14, 0
    %p56 = por %p54, %p55
    %p57 = scmp.ne.s32.totalorder %s45, %s46
    %p58 = scmp.eq.s32.totalorder %s15, 1
    %p59 = por %p57, %p58
    %p61 = scmp.ne.s32.totalorder %s46, %s60
    %p62 = scmp.eq.s32.totalorder %s15, 0
    %p63 = por %p61, %p62
    %s65 = sadd.s32 %s64, 1
    %p68 = scmp.eq.s32.totalorder %s9, 1
    %p69 = scmp.ne.s32.totalorder %s64, %s66
    %p70 = scmp.eq.s32.totalorder %s9, 0
    %p71 = por %p69, %p70
    %p72 = scmp.ne.s32.totalorder %s64, %s66
    %p73 = scmp.eq.s32.totalorder %s14, 1
    %p74 = por %p72, %p73
    %p75 = scmp.ne.s32.totalorder %s66, %s67
    %p76 = scmp.eq.s32.totalorder %s14, 0
    %p77 = por %p75, %p76
    %p78 = scmp.ne.s32.totalorder %s66, %s67
    %p79 = scmp.eq.s32.totalorder %s15, 1
    %p80 = por %p78, %p79
    %p82 = scmp.ne.s32.totalorder %s67, %s81
    %p83 = scmp.eq.s32.totalorder %s15, 0
    %p84 = por %p82, %p83
    %s85 = ssub.s32 %s9, %s16
    %p86 = scmp.eq.s32.totalorder %s85, 0
    %s88 = sadd.s32 %s87, 1
    %s89 = scalar_select %p86, %s87, %s88
    %p92 = pneg %p86
    %p93 = scmp.eq.s32.totalorder %s9, 1
    %p94 = por %p92, %p93
    %p95 = scmp.ne.s32.totalorder %s87, %s90
    %p96 = scmp.eq.s32.totalorder %s9, 0
    %p97 = por %p95, %p96
    %p98 = scmp.ne.s32.totalorder %s87, %s90
    %p99 = scmp.eq.s32.totalorder %s14, 1
    %p100 = por %p98, %p99
    %p101 = scmp.ne.s32.totalorder %s90, %s91
    %p102 = scmp.eq.s32.totalorder %s14, 0
    %p103 = por %p101, %p102
    %p104 = scmp.ne.s32.totalorder %s90, %s91
    %p105 = scmp.eq.s32.totalorder %s15, 1
    %p106 = por %p104, %p105
    %p108 = scmp.ne.s32.totalorder %s91, %s107
    %p109 = scmp.eq.s32.totalorder %s15, 0
    %p110 = por %p108, %p109
    %p111 = scmp.le.s32.totalorder 1, %s9
    %p112 = scmp.lt.s32.totalorder %s9, 3
    %p113 = pnand %p111, %p112
    %p114 = pneg %p113
    // Predicated region
    $region9: #{pointnet2_msg_forward.17} parent=5 // pred_check
      _
    $region10: #{pointnet2_msg_forward.17} parent=5 // pred_check_branch
      %116 = sbr.rel (%p113) target = $region12
    $region11: #{pointnet2_msg_forward.17} parent=5 // pred_region
      %s117 = ssub.s32 %s9, 1
      // Predicated region
      $region13: #{pointnet2_msg_forward.17} parent=11 // pred_check
        %p118 = pneg %p56
      $region14: #{pointnet2_msg_forward.17} parent=11 // pred_check_branch
        %120 = sbr.rel (%p118) target = $region16
      $region15: #{pointnet2_msg_forward.17} parent=11 // pred_region
        _
      $region16: #{pointnet2_msg_forward.17} parent=11 // pred_fallthru
        _
      // Predicated region
      $region17: #{pointnet2_msg_forward.17} parent=11 // pred_check
        %p121 = pneg %p77
      $region18: #{pointnet2_msg_forward.17} parent=11 // pred_check_branch
        %123 = sbr.rel (%p121) target = $region20
      $region19: #{pointnet2_msg_forward.17} parent=11 // pred_region
        _
      $region20: #{pointnet2_msg_forward.17} parent=11 // pred_fallthru
        _
    $region12: #{pointnet2_msg_forward.17} parent=5 // pred_fallthru
      _
    %p124 = scmp.lt.s32.totalorder %s9, 2
    // Predicated region
    $region21: #{pointnet2_msg_forward.17} parent=5 // pred_check
      %p125 = pneg %p124
    $region22: #{pointnet2_msg_forward.17} parent=5 // pred_check_branch
      %127 = sbr.rel (%p125) target = $region24
    $region23: #{pointnet2_msg_forward.17} parent=5 // pred_region
      // Predicated region
      $region25: #{pointnet2_msg_forward.17} parent=23 // pred_check
        %p128 = pneg %p29
      $region26: #{pointnet2_msg_forward.17} parent=23 // pred_check_branch
        %130 = sbr.rel (%p128) target = $region28
      $region27: #{pointnet2_msg_forward.17} parent=23 // pred_region
        %s131 = smul.u32 8, %s9
        %p132 = scmp.lt.s32.totalorder %s131, 15
        %s133 = scalar_select %p132, %s131, 15
        %s134 = smul.addr %s133, 4
        %s135 = scalar_lea.vmem %s0, %s134
        %s136 = smul.u32 8, %s9
      $region28: #{pointnet2_msg_forward.17} parent=23 // pred_fallthru
        _
    $region24: #{pointnet2_msg_forward.17} parent=5 // pred_fallthru
      _
    %p137 = scmp.le.s32.totalorder 1, %s9
    %p138 = scmp.lt.s32.totalorder %s9, 3
    %p139 = pnand %p137, %p138
    %p140 = pneg %p139
    // Predicated region
    $region29: #{pointnet2_msg_forward.17} parent=5 // pred_check
      _
    $region30: #{pointnet2_msg_forward.17} parent=5 // pred_check_branch
      %142 = sbr.rel (%p139) target = $region32
    $region31: #{pointnet2_msg_forward.17} parent=5 // pred_region
      %s143 = ssub.s32 %s9, 1
      %s144 = smul.u32 8, %s14
      %p145 = scmp.lt.s32.totalorder %s144, 15
      %s146 = scalar_select %p145, %s144, 15
      %s147 = smul.addr %s146, 4
      %s148 = scalar_lea.vmem %s0, %s147
      %p149 = pneg %p35
      %p150 = pneg %p32
      %p151 = pneg %p56
      %p152 = pneg %p53
      %p153 = pneg %p77
      %p154 = pneg %p74
      %p155 = pneg %p103
      %p156 = pneg %p100
      %s157 = smul.u32 8, %s14
      %p158 = scmp.lt.s32.totalorder %s157, 15
      %s159 = scalar_select %p158, %s157, 15
      %s160 = smul.addr %s159, 8
      %s161 = scalar_lea.vmem %s3, %s160
      %s162 = smul.u32 8, %s14
      %p163 = scmp.lt.s32.totalorder %s162, 15
      %s164 = scalar_select %p163, %s162, 15
      %s165 = smul.addr %s164, 4
      %s166 = scalar_lea.vmem %s0, %s165
      %s167 = smul.u32 8, %s14
      %s168 = smul.u32 8, %s14
      %p169 = scmp.lt.s32.totalorder %s168, 15
      %s170 = scalar_select %p169, %s168, 15
      %s171 = smul.addr %s170, 8
      %s172 = scalar_lea.vmem %s3, %s171
      %s173 = smul.u32 8, %s14
      %v175 = vld [vmem:[%s166] sm:$0xf]
      %v176 = vld [vmem:[%s166 + $0x4] sm:$0xf]
      %v177 = vld [vmem:[%s166 + $0x8] sm:$0xf]
      %v178 = vld [vmem:[%s166 + $0xc] sm:$0xf]
      %v179 = vld [vmem:[%s166 + $0x10] sm:$0xf]
      %v180 = vld [vmem:[%s166 + $0x14] sm:$0xf]
      %v181 = vld [vmem:[%s166 + $0x18] sm:$0xf]
      %v182 = vld [vmem:[%s166 + $0x1c] sm:$0xf]
      %v183 = vld [vmem:[%s1] sm:$0xf]
      %v184 = vld [vmem:[%s1 + $0x4] sm:$0xf]
      %v185 = vld [vmem:[%s1 + $0x8] sm:$0xf]
      %v186 = vld [vmem:[%s1 + $0xc] sm:$0xf]
      %v187 = vld [vmem:[%s2] sm:$0x1]
      %v189 = vlaneseq
      %v190 = vshrl.u32 %v189, 7
      %v191 = vsub.s32 0, %v190
      %v192 = vrot.slane %v187, %v191
      %v202 = vunpack.c.l.b16 %v175
      %v203 = vunpack.c.l.b16 %v176
      %v204 = vunpack.c.l.b16 %v177
      %v205 = vunpack.c.l.b16 %v178
      %v206 = vunpack.c.l.b16 %v179
      %v207 = vunpack.c.l.b16 %v180
      %v208 = vunpack.c.l.b16 %v181
      %v209 = vunpack.c.l.b16 %v182
      %v210 = vpack.c.b16 %v203, %v202
      %v211 = vpack.c.b16 %v205, %v204
      %v212 = vpack.c.b16 %v207, %v206
      %v213 = vpack.c.b16 %v209, %v208
      %v218 = vunpack.c.l.b16 %v183
      %v219 = vunpack.c.l.b16 %v184
      %v220 = vunpack.c.l.b16 %v185
      %v221 = vunpack.c.l.b16 %v186
      %v222 = vpack.c.b16 %v219, %v218
      %v223 = vpack.c.b16 %v221, %v220
      %vm226 = vcmask 261120
      %v228 = vsel %vm226, %v210, 0
      %v231 = vsel %vm226, %v211, 0
      %v234 = vsel %vm226, %v212, 0
      %v237 = vsel %vm226, %v213, 0
      %239 = vmatprep.subr.bf16.mxu0 0
      %240 = vmatpush1.bf16.msra.mxu0 0
      %241 = vmatprep.subr.bf16.mxu0 0
      %242 = vmatpush1.bf16.msra.mxu0 0
      %243 = vmatprep.subr.bf16.mxu0 0
      %244 = vmatpush1.bf16.msra.mxu0 0
      %245 = vmatprep.subr.bf16.mxu0 0
      %246 = vmatpush1.bf16.msra.mxu0 0
      %247 = vmatprep.subr.bf16.mxu0 0
      %248 = vmatpush1.bf16.msra.mxu0 0
      %249 = vmatprep.subr.bf16.mxu0 0
      %250 = vmatpush1.bf16.msra.mxu0 0
      %251 = vmatprep.subr.bf16.mxu0 0
      %252 = vmatpush1.bf16.msra.mxu0 %v223
      %253 = vmatprep.subr.bf16.mxu0 0
      %254 = vmatpush1.bf16.msra.mxu0 %v222
      %255 = vmatprep.subr.bf16.mxu0 0
      %256 = vmatpush2.bf16.msra.mxu0 0
      %257 = vmatprep.subr.bf16.mxu0 0
      %258 = vmatpush2.bf16.msra.mxu0 0
      %259 = vmatprep.subr.bf16.mxu0 0
      %260 = vmatpush2.bf16.msra.mxu0 0
      %261 = vmatprep.subr.bf16.mxu0 0
      %262 = vmatpush2.bf16.msra.mxu0 0
      %263 = vmatprep.subr.bf16.mxu0 0
      %264 = vmatpush2.bf16.msra.mxu0 0
      %265 = vmatprep.subr.bf16.mxu0 0
      %266 = vmatpush2.bf16.msra.mxu0 0
      %267 = vmatprep.subr.bf16.mxu0 0
      %268 = vmatpush2.bf16.msra.mxu0 0
      %269 = vmatprep.subr.bf16.mxu0 0
      %270 = vmatpush2.bf16.msra.mxu0 0
      %271 = vmatprep.mubr.bf16.mxu0 0
      %272 = vmatmul.mubr.bf16.gmra.mxu0 %v228
      %v273 = vpop.f32.mrf.mxu0
      %v274 = vadd.f32 %v192, %v273
      %v275 = vpop.f32.mrf.mxu0
      %v276 = vpop.f32.mrf.mxu0
      %v277 = vadd.f32 %v192, %v276
      %v278 = vpop.f32.mrf.mxu0
      %279 = vmatprep.mubr.bf16.mxu0 0
      %280 = vmatmul.mubr.bf16.gmra.mxu0 %v231
      %v281 = vpop.f32.mrf.mxu0
      %v282 = vadd.f32 %v192, %v281
      %v283 = vpop.f32.mrf.mxu0
      %v284 = vpop.f32.mrf.mxu0
      %v285 = vadd.f32 %v192, %v284
      %v286 = vpop.f32.mrf.mxu0
      %287 = vmatprep.mubr.bf16.mxu0 0
      %288 = vmatmul.mubr.bf16.gmra.mxu0 %v234
      %v289 = vpop.f32.mrf.mxu0
      %v290 = vadd.f32 %v192, %v289
      %v291 = vpop.f32.mrf.mxu0
      %v292 = vpop.f32.mrf.mxu0
      %v293 = vadd.f32 %v192, %v292
      %v294 = vpop.f32.mrf.mxu0
      %295 = vmatprep.mubr.bf16.mxu0 0
      %296 = vmatmul.mubr.bf16.gmra.mxu0 %v237
      %v297 = vpop.f32.mrf.mxu0
      %v298 = vadd.f32 %v192, %v297
      %v299 = vpop.f32.mrf.mxu0
      %v300 = vpop.f32.mrf.mxu0
      %v301 = vadd.f32 %v192, %v300
      %v302 = vpop.f32.mrf.mxu0
      %303 = vdwg.mxu0
      %v304 = vmax.f32 %v274, 0.0
      %v305 = vmax.f32 %v277, 0.0
      %v306 = vmax.f32 %v282, 0.0
      %v307 = vmax.f32 %v285, 0.0
      %v308 = vmax.f32 %v290, 0.0
      %v309 = vmax.f32 %v293, 0.0
      %v310 = vmax.f32 %v298, 0.0
      %v311 = vmax.f32 %v301, 0.0
      %312 = vst [vmem:[%s172] sm:$0xff] %v304
      %313 = vst [vmem:[%s172 + $0x8] sm:$0xff] %v305
      %314 = vst [vmem:[%s172 + $0x10] sm:$0xff] %v306
      %315 = vst [vmem:[%s172 + $0x18] sm:$0xff] %v307
      %316 = vst [vmem:[%s172 + $0x20] sm:$0xff] %v308
      %317 = vst [vmem:[%s172 + $0x28] sm:$0xff] %v309
      %318 = vst [vmem:[%s172 + $0x30] sm:$0xff] %v310
      %319 = vst [vmem:[%s172 + $0x38] sm:$0xff] %v311
      %s320 = smul.u32 8, %s14
      %p321 = scmp.lt.s32.totalorder %s320, 15
      %s322 = scalar_select %p321, %s320, 15
      %s323 = smul.addr %s322, 8
      %s324 = scalar_lea.vmem %s3, %s323
      // Predicated region
      $region33: #{pointnet2_msg_forward.17} parent=31 // pred_check
        %p325 = pneg %p100
      $region34: #{pointnet2_msg_forward.17} parent=31 // pred_check_branch
        %327 = sbr.rel (%p325) target = $region36
      $region35: #{pointnet2_msg_forward.17} parent=31 // pred_region
        %s328 = smul.u32 8, %s14
      $region36: #{pointnet2_msg_forward.17} parent=31 // pred_fallthru
        _
    $region32: #{pointnet2_msg_forward.17} parent=5 // pred_fallthru
      _
    %p329 = scmp.le.s32.totalorder 2, %s9
    // Predicated region
    $region37: #{pointnet2_msg_forward.17} parent=5 // pred_check
      %p330 = pneg %p329
    $region38: #{pointnet2_msg_forward.17} parent=5 // pred_check_branch
      %332 = sbr.rel (%p330) target = $region40
    $region39: #{pointnet2_msg_forward.17} parent=5 // pred_region
      %s333 = ssub.s32 %s9, 2
      // Predicated region
      $region41: #{pointnet2_msg_forward.17} parent=39 // pred_check
        %p334 = pneg %p106
      $region42: #{pointnet2_msg_forward.17} parent=39 // pred_check_branch
        %336 = sbr.rel (%p334) target = $region44
      $region43: #{pointnet2_msg_forward.17} parent=39 // pred_region
        %s337 = smul.u32 8, %s15
        %p338 = scmp.lt.s32.totalorder %s337, 15
        %s339 = scalar_select %p338, %s337, 15
        %s340 = smul.addr %s339, 8
        %s341 = scalar_lea.vmem %s3, %s340
      $region44: #{pointnet2_msg_forward.17} parent=39 // pred_fallthru
        _
    $region40: #{pointnet2_msg_forward.17} parent=5 // pred_fallthru
      _
  $region6: #{pointnet2_msg_forward.17} parent=0 // loop_footer
    %s13 = sadd.s32 1, %s9
  $region7: #{pointnet2_msg_forward.17} parent=0 // loop_footer_branch
    %8 = sbr.rel target = $region3
  $region8: #{pointnet2_msg_forward.17} parent=0 // loop_exit
    _

</llo_original>
